<compile_context>
chip_gen: v5e
topology: v5e:2x2
jax: 0.10.0
libtpu: 0.0.40
codegen_flags: <defaults>
</compile_context>

<pallas_src>
import jax
import jax.numpy as jnp
from jax import lax
from jax.experimental import pallas as pl
from jax.experimental.pallas import tpu as pltpu

HIDDEN = 200   # fixed by the PyTorch module: nn.LSTM(embed_len, 200, bidirectional=True)
HP = 256       # per-gate padded width (2 vregs) -> vreg-aligned gate slices


def _bilstm_chunk_kernel(x_ref, wih_ref, whh_ref, b_ref, out_ref, xg_ref, h_ref, c_ref):
    """One time-chunk of the fused bidirectional LSTM.

    x_ref   : (Tc*2Bp, 2E)  bf16  per time step t rows [fwd(Bp) | bwd(Bp)];
                                    fwd rows: [x(t) | 0], bwd rows: [0 | x_rev(t)]
    wih_ref : (2E, 4*HP)    bf16  vstack(wih_f, wih_b), gate-packed (i,f,g,o)
    whh_ref : (2HP, 4*HP)   bf16  vstack(whh_f, whh_b), gate-packed
    b_ref   : (2Bp, 4*HP)   f32   rows [0:Bp]=fwd bias, [Bp:2Bp]=bwd bias
    out_ref : (Tc*2Bp, HP)  f32   per step: rows [0:Bp]=fwd h(t), [Bp:2Bp]=bwd h
    xg_ref  : (Tc*2Bp, 4HP) f32   scratch: chunk input projections
    h_ref,
    c_ref   : (2Bp, HP)     f32   scratch: recurrent state carried across chunks
    """
    rows, four_hp = xg_ref.shape
    twoB = h_ref.shape[0]
    Tc = rows // twoB
    Hp = four_hp // 4
    Bp = twoB // 2

    # ---- init recurrent state once, at the first chunk ----
    @pl.when(pl.program_id(0) == 0)
    def _():
        h_ref[...] = jnp.zeros_like(h_ref)
        c_ref[...] = jnp.zeros_like(c_ref)

    # ---- chunk input projection: ONE block-diagonal MXU matmul, no select ----
    xg_ref[...] = jnp.dot(x_ref[...], wih_ref[...],
                          preferred_element_type=jnp.float32)

    # ---- loop invariants (hoisted out of the serial recurrence) ----
    whh = whh_ref[...]                                   # (2HP, 4HP) bf16
    bias = b_ref[...]                                    # (2Bp, 4HP) f32
    row_i = lax.broadcasted_iota(jnp.int32, (twoB, 2 * Hp), 0)
    col_i = lax.broadcasted_iota(jnp.int32, (twoB, 2 * Hp), 1)
    stage_mask = (row_i < Bp) == (col_i < Hp)            # block-diag h placement

    def body(t, carry):
        h_prev, c_prev = carry                           # f32 (2Bp, HP)
        # stage h block-diagonally: fwd rows -> cols [0:HP], bwd rows -> [HP:2HP]
        h2 = jnp.concatenate([h_prev, h_prev], axis=1)   # (2Bp, 2HP)
        hb = jnp.where(stage_mask, h2, 0.0).astype(jnp.bfloat16)
        gm = jnp.dot(hb, whh, preferred_element_type=jnp.float32)   # (2Bp, 4HP)

        r0 = pl.multiple_of(t * twoB, twoB)
        g = xg_ref[pl.ds(r0, twoB), :] + gm + bias
        # gate slices are 256-lane aligned (gate order i, f, g, o)
        i_g = jax.nn.sigmoid(g[:, 0 * Hp:1 * Hp])
        f_g = jax.nn.sigmoid(g[:, 1 * Hp:2 * Hp])
        g_g = jnp.tanh(g[:, 2 * Hp:3 * Hp])
        o_g = jax.nn.sigmoid(g[:, 3 * Hp:4 * Hp])
        c = f_g * c_prev + i_g * g_g
        h = o_g * jnp.tanh(c)
        out_ref[pl.ds(r0, twoB), :] = h                  # lane-dense (2Bp, 256) store
        return (h, c)

    unroll = True if Tc <= 8 else 4
    h_last, c_last = lax.fori_loop(0, Tc, body, (h_ref[...], c_ref[...]),
                                   unroll=unroll)
    h_ref[...] = h_last
    c_ref[...] = c_last


# ---------------------- wrapper-side weight packing ----------------------
def _pack_w_ih(w_ih, hp):
    """PyTorch (4H, E) -> (E, 4*hp), gate blocks 256-lane aligned, pre-transposed."""
    four_h, e = w_ih.shape
    h = four_h // 4
    w = jnp.transpose(w_ih.reshape(4, h, e), (2, 0, 1))       # (E, 4, H)
    w = jnp.pad(w, ((0, 0), (0, 0), (0, hp - h)))             # (E, 4, HP)
    return w.reshape(e, 4 * hp)


def _pack_w_hh(w_hh, hp):
    """PyTorch (4H, H) -> (hp, 4*hp), zero-padded, pre-transposed."""
    four_h, h = w_hh.shape
    w = jnp.transpose(w_hh.reshape(4, h, h), (2, 0, 1))        # (H, 4, H)
    w = jnp.pad(w, ((0, hp - h), (0, 0), (0, hp - h)))         # (HP, 4, HP)
    return w.reshape(hp, 4 * hp)


def _pack_bias(b_ih, b_hh, hp):
    four_h = b_ih.shape[0]
    h = four_h // 4
    b = (b_ih + b_hh).reshape(4, h)
    b = jnp.pad(b, ((0, 0), (0, hp - h)))
    return b.reshape(1, 4 * hp)


# ---------------------- VMEM budgeting for the time chunk ----------------------
def _vmem_bytes(tc, bp, e):
    twoB = 2 * bp
    per_t = twoB * (2 * (2 * e) * 2      # x block (bf16, double-buffered)
                    + 2 * HP * 4         # out block (f32, double-buffered)
                    + 4 * HP * 4)        # xg scratch (f32)
    fixed = (2 * (2 * e) * 4 * HP * 2    # wih_comb (bf16, double-buffered)
             + 2 * (2 * HP) * 4 * HP * 2 # whh_comb (bf16, double-buffered)
             + 2 * twoB * 4 * HP * 4     # bias (f32, double-buffered)
             + 2 * twoB * HP * 4)        # h, c scratch
    return tc * per_t + fixed


def _pick_time_chunk(T, bp, e, budget=24 * 1024 * 1024):
    twoB = 2 * bp
    per_t = twoB * (2 * (2 * e) * 2 + 2 * HP * 4 + 4 * HP * 4)
    fixed = _vmem_bytes(0, bp, e)
    tc = (budget - fixed) // per_t if budget > fixed else 1
    return int(max(1, min(T, tc, 512)))


def encode1_forward(tokens, params, *, time_chunk=None):
    """tokens: (B, T) int32 -> (B, T, 2*HIDDEN) float32 (== PyTorch Encode1 output)."""
    emb = jnp.take(params["embed"], tokens, axis=0)            # (B, T, E) embedding gather (glue)
    Bsz, T, E = emb.shape
    H, Hp = HIDDEN, HP

    # batch padding so 2*Bp is a multiple of 8 -> full sublane occupancy, aligned blocks
    Bp = ((Bsz + 3) // 4) * 4
    twoB = 2 * Bp

    x_tm = jnp.transpose(emb, (1, 0, 2)).astype(jnp.bfloat16)  # (T, B, E) time-major
    x_tm = jnp.pad(x_tm, ((0, 0), (0, Bp - Bsz), (0, 0)))      # (T, Bp, E)

    # time chunking: budget-driven Tc; pad T to a multiple of Tc (pad appended
    # AFTER each direction's processing order so real outputs are unaffected).
    if time_chunk is None:
        time_chunk = _pick_time_chunk(T, Bp, E)
    Tc = int(time_chunk)
    C = -(-T // Tc)
    T_pad = C * Tc

    x_f = jnp.pad(x_tm, ((0, T_pad - T), (0, 0), (0, 0)))          # fwd stream
    x_b = jnp.pad(x_tm[::-1], ((0, T_pad - T), (0, 0), (0, 0)))    # bwd stream (reversed, pad after)
    zeros = jnp.zeros_like(x_f)
    # block-diagonal direction packing along the contraction dim
    x_fwd_rows = jnp.concatenate([x_f, zeros], axis=-1)            # (T_pad, Bp, 2E)
    x_bwd_rows = jnp.concatenate([zeros, x_b], axis=-1)            # (T_pad, Bp, 2E)
    x_pair = jnp.concatenate([x_fwd_rows, x_bwd_rows], axis=1)     # (T_pad, 2Bp, 2E)
    x_flat = x_pair.reshape(T_pad * twoB, 2 * E)

    # pre-transposed, gate-aligned, direction-stacked packed weights (bf16 for the MXU)
    wih_comb = jnp.concatenate([_pack_w_ih(params["w_ih_f"], Hp),
                                _pack_w_ih(params["w_ih_b"], Hp)],
                               axis=0).astype(jnp.bfloat16)        # (2E, 4HP)
    whh_comb = jnp.concatenate([_pack_w_hh(params["w_hh_f"], Hp),
                                _pack_w_hh(params["w_hh_b"], Hp)],
                               axis=0).astype(jnp.bfloat16)        # (2HP, 4HP)
    b_f = _pack_bias(params["b_ih_f"], params["b_hh_f"], Hp)
    b_b = _pack_bias(params["b_ih_b"], params["b_hh_b"], Hp)
    b_comb = jnp.concatenate([jnp.tile(b_f, (Bp, 1)),
                              jnp.tile(b_b, (Bp, 1))], axis=0)     # (2Bp, 4HP) f32

    grid_spec = pltpu.PrefetchScalarGridSpec(
        num_scalar_prefetch=0,
        grid=(C,),
        in_specs=[
            pl.BlockSpec((Tc * twoB, 2 * E), lambda i: (i, 0)),    # x chunk
            pl.BlockSpec((2 * E, 4 * Hp), lambda i: (0, 0)),       # wih_comb (resident)
            pl.BlockSpec((2 * Hp, 4 * Hp), lambda i: (0, 0)),      # whh_comb (resident)
            pl.BlockSpec((twoB, 4 * Hp), lambda i: (0, 0)),        # bias (resident)
        ],
        out_specs=pl.BlockSpec((Tc * twoB, Hp), lambda i: (i, 0)),
        scratch_shapes=[
            pltpu.VMEM((Tc * twoB, 4 * Hp), jnp.float32),          # chunk input projections
            pltpu.VMEM((twoB, Hp), jnp.float32),                   # h state (fwd|bwd)
            pltpu.VMEM((twoB, Hp), jnp.float32),                   # c state (fwd|bwd)
        ],
    )

    vmem_need = _vmem_bytes(Tc, Bp, E)
    vmem_limit = int(min(48 * 1024 * 1024, max(32 * 1024 * 1024, vmem_need + 8 * 1024 * 1024)))

    out = pl.pallas_call(
        _bilstm_chunk_kernel,
        out_shape=jax.ShapeDtypeStruct((T_pad * twoB, Hp), jnp.float32),
        grid_spec=grid_spec,
        compiler_params=pltpu.CompilerParams(
            dimension_semantics=("arbitrary",),          # chunks carry h/c -> sequential
            vmem_limit_bytes=vmem_limit,
        ),
    )(x_flat, wih_comb, whh_comb, b_comb)

    out3 = out.reshape(T_pad, twoB, Hp)
    h_f = out3[:T, :Bsz, :H]                 # (T, B, H)  forward direction
    h_b = out3[:T, Bp:Bp + Bsz, :H][::-1]    # (T, B, H)  un-reverse backward direction
    h = jnp.concatenate([h_f, h_b], axis=-1)
    return jnp.transpose(h, (1, 0, 2))       # (B, T, 2H) batch_first, like PyTorch


# ---------------- pure-JAX references (sanity checks only) ----------------
def _lstm_dir_ref(xg, w_hh, cast_bf16):
    T, B, four_h = xg.shape
    H = four_h // 4
    w_hh_t = w_hh.T.astype(jnp.bfloat16) if cast_bf16 else w_hh.T

    def step(carry, g_x):
        h_prev, c_prev = carry
        hh = h_prev.astype(jnp.bfloat16) if cast_bf16 else h_prev
        g = g_x + jnp.dot(hh, w_hh_t, preferred_element_type=jnp.float32)
        i = jax.nn.sigmoid(g[:, 0 * H:1 * H])
        f = jax.nn.sigmoid(g[:, 1 * H:2 * H])
        gg = jnp.tanh(g[:, 2 * H:3 * H])
        o = jax.nn.sigmoid(g[:, 3 * H:4 * H])
        c = f * c_prev + i * gg
        h = o * jnp.tanh(c)
        return (h, c), h

    h0 = jnp.zeros((B, H), jnp.float32)
    _, hs = lax.scan(step, (h0, h0), xg)
    return hs  # (T, B, H)


def encode1_reference(tokens, params, *, match_bf16=False):
    emb = jnp.take(params["embed"], tokens, axis=0)
    x_tm = jnp.transpose(emb, (1, 0, 2)).astype(jnp.float32)
    if match_bf16:
        x_tm = x_tm.astype(jnp.bfloat16)
    T, B, E = x_tm.shape
    H = HIDDEN
    x2 = x_tm.reshape(T * B, E)

    def proj(w_ih, b_ih, b_hh):
        w = w_ih.T.astype(jnp.bfloat16) if match_bf16 else w_ih.T
        b = (b_ih + b_hh).reshape(1, 4 * H)
        return (jnp.dot(x2, w, preferred_element_type=jnp.float32) + b).reshape(T, B, 4 * H)

    xg_f = proj(params["w_ih_f"], params["b_ih_f"], params["b_hh_f"])
    xg_b = proj(params["w_ih_b"], params["b_ih_b"], params["b_hh_b"])
    out_f = _lstm_dir_ref(xg_f, params["w_hh_f"], match_bf16)
    out_b = _lstm_dir_ref(xg_b[::-1], params["w_hh_b"], match_bf16)[::-1]
    h = jnp.concatenate([out_f, out_b], axis=-1)
    return jnp.transpose(h, (1, 0, 2))


def init_params(key, vocab_num, embed_len, hidden):
    ks = jax.random.split(key, 9)
    s = 1.0 / jnp.sqrt(hidden)
    u = lambda k, shape: jax.random.uniform(k, shape, jnp.float32, -s, s)
    return {
        "embed":  jax.random.normal(ks[0], (vocab_num, embed_len), jnp.float32) * 0.1,
        "w_ih_f": u(ks[1], (4 * hidden, embed_len)),
        "w_hh_f": u(ks[2], (4 * hidden, hidden)),
        "b_ih_f": u(ks[3], (4 * hidden,)),
        "b_hh_f": u(ks[4], (4 * hidden,)),
        "w_ih_b": u(ks[5], (4 * hidden, embed_len)),
        "w_hh_b": u(ks[6], (4 * hidden, hidden)),
        "b_ih_b": u(ks[7], (4 * hidden,)),
        "b_hh_b": u(ks[8], (4 * hidden,)),
    }


if __name__ == "__main__":
    key = jax.random.PRNGKey(0)
    k_par, k_tok = jax.random.split(key)

    VOCAB, EMBED, B, T = 50, 32, 2, 8
    params = init_params(k_par, VOCAB, EMBED, HIDDEN)
    tokens = jax.random.randint(k_tok, (B, T), 0, VOCAB, dtype=jnp.int32)

    h = jax.block_until_ready(jax.jit(encode1_forward)(tokens, params))
    assert h.shape == (B, T, 2 * HIDDEN) and h.dtype == jnp.float32

    # Tight check vs a reference that applies the same bf16 matmul casts
    # (catches gate-packing / padding / block-diagonal layout bugs).
    h_bf = jax.block_until_ready(encode1_reference(tokens, params, match_bf16=True))
    err_bf = float(jnp.max(jnp.abs(h - h_bf)))
    assert err_bf < 5e-3, f"mismatch vs bf16-matched reference: {err_bf}"

    # Loose check vs the exact f32 PyTorch-equivalent reference (bf16 matmul
    # inputs in the kernel bound the achievable agreement).
    h_f32 = jax.block_until_ready(encode1_reference(tokens, params, match_bf16=False))
    err_f32 = float(jnp.max(jnp.abs(h - h_f32)))
    assert err_f32 < 3e-2, f"mismatch vs f32 reference: {err_f32}"

    # Exercise the multi-chunk + padded-T path (T=8, Tc=3 -> T_pad=9, 3 chunks).
    h_chunk = jax.block_until_ready(
        jax.jit(lambda t, p: encode1_forward(t, p, time_chunk=3))(tokens, params))
    err_chunk = float(jnp.max(jnp.abs(h_chunk - h_bf)))
    assert err_chunk < 5e-3, f"mismatch with time chunking: {err_chunk}"

    print("KERNEL_OK")
</pallas_src>

<mosaic_0001>
module attributes {stable_mosaic.version = 11 : i64} {
  func.func @_bilstm_chunk_kernel(%arg0: i32, %arg1: memref<64x64xbf16, #tpu.memory_space<vmem>>, %arg2: memref<64x1024xbf16, #tpu.memory_space<vmem>>, %arg3: memref<512x1024xbf16, #tpu.memory_space<vmem>>, %arg4: memref<8x1024xf32, #tpu.memory_space<vmem>>, %arg5: memref<64x256xf32, #tpu.memory_space<vmem>>, %arg6: memref<64x1024xf32, #tpu.memory_space<vmem>>, %arg7: memref<8x256xf32, #tpu.memory_space<vmem>>, %arg8: memref<8x256xf32, #tpu.memory_space<vmem>>) attributes {dimension_semantics = [#tpu.dimension_semantics<arbitrary>], iteration_bounds = array<i64: 1>, scalar_prefetch = 0 : i64, scratch_operands = 3 : i64, tpu.core_type = #tpu.core_type<tc>, window_params = [{transform_indices = @transform_0, window_bounds = array<i64: 64, 64>}, {pipeline_mode = #tpu.pipeline_mode<synchronous>, transform_indices = @transform_1, window_bounds = array<i64: 64, 1024>}, {pipeline_mode = #tpu.pipeline_mode<synchronous>, transform_indices = @transform_2, window_bounds = array<i64: 512, 1024>}, {pipeline_mode = #tpu.pipeline_mode<synchronous>, transform_indices = @transform_3, window_bounds = array<i64: 8, 1024>}, {transform_indices = @transform_4, window_bounds = array<i64: 64, 256>}]} {
    %c0_i32 = arith.constant 0 : i32
    %0 = arith.cmpi eq, %arg0, %c0_i32 : i32
    %1 = arith.extui %0 : i1 to i32
    %c0_i32_0 = arith.constant 0 : i32
    %2 = arith.cmpi ne, %1, %c0_i32_0 : i32
    scf.if %2 {
      %cst_85 = arith.constant 0.000000e+00 : f32
      %325 = vector.broadcast %cst_85 : f32 to vector<8x256xf32>
      %c0_86 = arith.constant 0 : index
      %c0_87 = arith.constant 0 : index
      %326 = vector.load %arg7[%c0_86, %c0_87] : memref<8x256xf32, #tpu.memory_space<vmem>>, vector<8x256xf32>
      tpu.vector_store %arg7[%c0_86, %c0_87], %325 {strides = array<i32>} : memref<8x256xf32, #tpu.memory_space<vmem>>, vector<8x256xf32>,
      %cst_88 = arith.constant 0.000000e+00 : f32
      %327 = vector.broadcast %cst_88 : f32 to vector<8x256xf32>
      %c0_89 = arith.constant 0 : index
      %c0_90 = arith.constant 0 : index
      %328 = vector.load %arg8[%c0_89, %c0_90] : memref<8x256xf32, #tpu.memory_space<vmem>>, vector<8x256xf32>
      tpu.vector_store %arg8[%c0_89, %c0_90], %327 {strides = array<i32>} : memref<8x256xf32, #tpu.memory_space<vmem>>, vector<8x256xf32>,
    } else {
    }
    %c0 = arith.constant 0 : index
    %c0_1 = arith.constant 0 : index
    %3 = vector.load %arg1[%c0, %c0_1] : memref<64x64xbf16, #tpu.memory_space<vmem>>, vector<64x64xbf16>
    %c0_2 = arith.constant 0 : index
    %c0_3 = arith.constant 0 : index
    %4 = vector.load %arg2[%c0_2, %c0_3] : memref<64x1024xbf16, #tpu.memory_space<vmem>>, vector<64x1024xbf16>
    %cst = arith.constant dense<0.000000e+00> : vector<64x1024xf32>
    %5 = tpu.matmul %3, %4, %cst {dimension_numbers = #tpu.dot_dimension_numbers<[1], [0], [0], [1], [0, 0, 1, 1], [], []>} : vector<64x64xbf16>, vector<64x1024xbf16>, vector<64x1024xf32> -> vector<64x1024xf32>
    %c0_4 = arith.constant 0 : index
    %c0_5 = arith.constant 0 : index
    %6 = vector.load %arg6[%c0_4, %c0_5] : memref<64x1024xf32, #tpu.memory_space<vmem>>, vector<64x1024xf32>
    tpu.vector_store %arg6[%c0_4, %c0_5], %5 {strides = array<i32>} : memref<64x1024xf32, #tpu.memory_space<vmem>>, vector<64x1024xf32>,
    %c0_6 = arith.constant 0 : index
    %c0_7 = arith.constant 0 : index
    %7 = vector.load %arg3[%c0_6, %c0_7] : memref<512x1024xbf16, #tpu.memory_space<vmem>>, vector<512x1024xbf16>
    %c0_8 = arith.constant 0 : index
    %c0_9 = arith.constant 0 : index
    %8 = vector.load %arg4[%c0_8, %c0_9] : memref<8x1024xf32, #tpu.memory_space<vmem>>, vector<8x1024xf32>
    %9 = tpu.iota {dimensions = array<i32: 0>} : vector<8x512xi32>
    %10 = tpu.iota {dimensions = array<i32: 1>} : vector<8x512xi32>
    %c4_i32 = arith.constant 4 : i32
    %11 = vector.broadcast %c4_i32 : i32 to vector<8x512xi32>
    %12 = arith.cmpi slt, %9, %11 : vector<8x512xi32>
    %c256_i32 = arith.constant 256 : i32
    %13 = vector.broadcast %c256_i32 : i32 to vector<8x512xi32>
    %14 = arith.cmpi slt, %10, %13 : vector<8x512xi32>
    %15 = arith.xori %12, %14 : vector<8x512xi1>
    %cst_10 = arith.constant dense<true> : vector<8x512xi1>
    %16 = arith.xori %15, %cst_10 : vector<8x512xi1>
    %c0_11 = arith.constant 0 : index
    %c0_12 = arith.constant 0 : index
    %17 = vector.load %arg7[%c0_11, %c0_12] : memref<8x256xf32, #tpu.memory_space<vmem>>, vector<8x256xf32>
    %c0_13 = arith.constant 0 : index
    %c0_14 = arith.constant 0 : index
    %18 = vector.load %arg8[%c0_13, %c0_14] : memref<8x256xf32, #tpu.memory_space<vmem>>, vector<8x256xf32>
    %c0_i32_15 = arith.constant 0 : i32
    %19 = tpu.concatenate %17, %17 in 1 : vector<8x256xf32>, vector<8x256xf32> -> vector<8x512xf32>
    %cst_16 = arith.constant 0.000000e+00 : f32
    %20 = vector.broadcast %cst_16 : f32 to vector<8x512xf32>
    %21 = arith.select %16, %19, %20 : vector<8x512xi1>, vector<8x512xf32>
    %22 = arith.truncf %21 : vector<8x512xf32> to vector<8x512xbf16>
    %cst_17 = arith.constant dense<0.000000e+00> : vector<8x1024xf32>
    %23 = tpu.matmul %22, %7, %cst_17 {dimension_numbers = #tpu.dot_dimension_numbers<[1], [0], [0], [1], [0, 0, 1, 1], [], []>} : vector<8x512xbf16>, vector<512x1024xbf16>, vector<8x1024xf32> -> vector<8x1024xf32>
    %c8_i32 = arith.constant 8 : i32
    %24 = arith.muli %c0_i32_15, %c8_i32 : i32
    %25 = tpu.assume_multiple %24, 8 : i32
    %26 = arith.index_cast %25 : i32 to index
    %c0_18 = arith.constant 0 : index
    %27 = vector.load %arg6[%26, %c0_18] : memref<64x1024xf32, #tpu.memory_space<vmem>>, vector<8x1024xf32>
    %28 = arith.addf %27, %23 : vector<8x1024xf32>
    %29 = arith.addf %28, %8 : vector<8x1024xf32>
    %30 = vector.extract_strided_slice %29 {offsets = [0, 0], sizes = [8, 256], strides = [1, 1]} : vector<8x1024xf32> to vector<8x256xf32>
    %31 = arith.negf %30 : vector<8x256xf32>
    %32 = math.exp %31 : vector<8x256xf32>
    %cst_19 = arith.constant 1.000000e+00 : f32
    %33 = vector.broadcast %cst_19 : f32 to vector<8x256xf32>
    %34 = arith.addf %33, %32 : vector<8x256xf32>
    %35 = arith.divf %33, %34 : vector<8x256xf32>
    %36 = vector.extract_strided_slice %29 {offsets = [0, 256], sizes = [8, 256], strides = [1, 1]} : vector<8x1024xf32> to vector<8x256xf32>
    %37 = arith.negf %36 : vector<8x256xf32>
    %38 = math.exp %37 : vector<8x256xf32>
    %cst_20 = arith.constant 1.000000e+00 : f32
    %39 = vector.broadcast %cst_20 : f32 to vector<8x256xf32>
    %40 = arith.addf %39, %38 : vector<8x256xf32>
    %41 = arith.divf %39, %40 : vector<8x256xf32>
    %42 = vector.extract_strided_slice %29 {offsets = [0, 512], sizes = [8, 256], strides = [1, 1]} : vector<8x1024xf32> to vector<8x256xf32>
    %43 = math.tanh %42 : vector<8x256xf32>
    %44 = vector.extract_strided_slice %29 {offsets = [0, 768], sizes = [8, 256], strides = [1, 1]} : vector<8x1024xf32> to vector<8x256xf32>
    %45 = arith.negf %44 : vector<8x256xf32>
    %46 = math.exp %45 : vector<8x256xf32>
    %cst_21 = arith.constant 1.000000e+00 : f32
    %47 = vector.broadcast %cst_21 : f32 to vector<8x256xf32>
    %48 = arith.addf %47, %46 : vector<8x256xf32>
    %49 = arith.divf %47, %48 : vector<8x256xf32>
    %50 = arith.mulf %41, %18 : vector<8x256xf32>
    %51 = arith.mulf %35, %43 : vector<8x256xf32>
    %52 = arith.addf %50, %51 : vector<8x256xf32>
    %53 = math.tanh %52 : vector<8x256xf32>
    %54 = arith.mulf %49, %53 : vector<8x256xf32>
    %55 = arith.index_cast %25 : i32 to index
    %c0_22 = arith.constant 0 : index
    %56 = vector.load %arg5[%55, %c0_22] : memref<64x256xf32, #tpu.memory_space<vmem>>, vector<8x256xf32>
    tpu.vector_store %arg5[%55, %c0_22], %54 {strides = array<i32>} : memref<64x256xf32, #tpu.memory_space<vmem>>, vector<8x256xf32>,
    %c1_i32 = arith.constant 1 : i32
    %57 = tpu.concatenate %54, %54 in 1 : vector<8x256xf32>, vector<8x256xf32> -> vector<8x512xf32>
    %cst_23 = arith.constant 0.000000e+00 : f32
    %58 = vector.broadcast %cst_23 : f32 to vector<8x512xf32>
    %59 = arith.select %16, %57, %58 : vector<8x512xi1>, vector<8x512xf32>
    %60 = arith.truncf %59 : vector<8x512xf32> to vector<8x512xbf16>
    %cst_24 = arith.constant dense<0.000000e+00> : vector<8x1024xf32>
    %61 = tpu.matmul %60, %7, %cst_24 {dimension_numbers = #tpu.dot_dimension_numbers<[1], [0], [0], [1], [0, 0, 1, 1], [], []>} : vector<8x512xbf16>, vector<512x1024xbf16>, vector<8x1024xf32> -> vector<8x1024xf32>
    %c8_i32_25 = arith.constant 8 : i32
    %62 = arith.muli %c1_i32, %c8_i32_25 : i32
    %63 = tpu.assume_multiple %62, 8 : i32
    %64 = arith.index_cast %63 : i32 to index
    %c0_26 = arith.constant 0 : index
    %65 = vector.load %arg6[%64, %c0_26] : memref<64x1024xf32, #tpu.memory_space<vmem>>, vector<8x1024xf32>
    %66 = arith.addf %65, %61 : vector<8x1024xf32>
    %67 = arith.addf %66, %8 : vector<8x1024xf32>
    %68 = vector.extract_strided_slice %67 {offsets = [0, 0], sizes = [8, 256], strides = [1, 1]} : vector<8x1024xf32> to vector<8x256xf32>
    %69 = arith.negf %68 : vector<8x256xf32>
    %70 = math.exp %69 : vector<8x256xf32>
    %cst_27 = arith.constant 1.000000e+00 : f32
    %71 = vector.broadcast %cst_27 : f32 to vector<8x256xf32>
    %72 = arith.addf %71, %70 : vector<8x256xf32>
    %73 = arith.divf %71, %72 : vector<8x256xf32>
    %74 = vector.extract_strided_slice %67 {offsets = [0, 256], sizes = [8, 256], strides = [1, 1]} : vector<8x1024xf32> to vector<8x256xf32>
    %75 = arith.negf %74 : vector<8x256xf32>
    %76 = math.exp %75 : vector<8x256xf32>
    %cst_28 = arith.constant 1.000000e+00 : f32
    %77 = vector.broadcast %cst_28 : f32 to vector<8x256xf32>
    %78 = arith.addf %77, %76 : vector<8x256xf32>
    %79 = arith.divf %77, %78 : vector<8x256xf32>
    %80 = vector.extract_strided_slice %67 {offsets = [0, 512], sizes = [8, 256], strides = [1, 1]} : vector<8x1024xf32> to vector<8x256xf32>
    %81 = math.tanh %80 : vector<8x256xf32>
    %82 = vector.extract_strided_slice %67 {offsets = [0, 768], sizes = [8, 256], strides = [1, 1]} : vector<8x1024xf32> to vector<8x256xf32>
    %83 = arith.negf %82 : vector<8x256xf32>
    %84 = math.exp %83 : vector<8x256xf32>
    %cst_29 = arith.constant 1.000000e+00 : f32
    %85 = vector.broadcast %cst_29 : f32 to vector<8x256xf32>
    %86 = arith.addf %85, %84 : vector<8x256xf32>
    %87 = arith.divf %85, %86 : vector<8x256xf32>
    %88 = arith.mulf %79, %52 : vector<8x256xf32>
    %89 = arith.mulf %73, %81 : vector<8x256xf32>
    %90 = arith.addf %88, %89 : vector<8x256xf32>
    %91 = math.tanh %90 : vector<8x256xf32>
    %92 = arith.mulf %87, %91 : vector<8x256xf32>
    %93 = arith.index_cast %63 : i32 to index
    %c0_30 = arith.constant 0 : index
    %94 = vector.load %arg5[%93, %c0_30] : memref<64x256xf32, #tpu.memory_space<vmem>>, vector<8x256xf32>
    tpu.vector_store %arg5[%93, %c0_30], %92 {strides = array<i32>} : memref<64x256xf32, #tpu.memory_space<vmem>>, vector<8x256xf32>,
    %c2_i32 = arith.constant 2 : i32
    %95 = tpu.concatenate %92, %92 in 1 : vector<8x256xf32>, vector<8x256xf32> -> vector<8x512xf32>
    %cst_31 = arith.constant 0.000000e+00 : f32
    %96 = vector.broadcast %cst_31 : f32 to vector<8x512xf32>
    %97 = arith.select %16, %95, %96 : vector<8x512xi1>, vector<8x512xf32>
    %98 = arith.truncf %97 : vector<8x512xf32> to vector<8x512xbf16>
    %cst_32 = arith.constant dense<0.000000e+00> : vector<8x1024xf32>
    %99 = tpu.matmul %98, %7, %cst_32 {dimension_numbers = #tpu.dot_dimension_numbers<[1], [0], [0], [1], [0, 0, 1, 1], [], []>} : vector<8x512xbf16>, vector<512x1024xbf16>, vector<8x1024xf32> -> vector<8x1024xf32>
    %c8_i32_33 = arith.constant 8 : i32
    %100 = arith.muli %c2_i32, %c8_i32_33 : i32
    %101 = tpu.assume_multiple %100, 8 : i32
    %102 = arith.index_cast %101 : i32 to index
    %c0_34 = arith.constant 0 : index
    %103 = vector.load %arg6[%102, %c0_34] : memref<64x1024xf32, #tpu.memory_space<vmem>>, vector<8x1024xf32>
    %104 = arith.addf %103, %99 : vector<8x1024xf32>
    %105 = arith.addf %104, %8 : vector<8x1024xf32>
    %106 = vector.extract_strided_slice %105 {offsets = [0, 0], sizes = [8, 256], strides = [1, 1]} : vector<8x1024xf32> to vector<8x256xf32>
    %107 = arith.negf %106 : vector<8x256xf32>
    %108 = math.exp %107 : vector<8x256xf32>
    %cst_35 = arith.constant 1.000000e+00 : f32
    %109 = vector.broadcast %cst_35 : f32 to vector<8x256xf32>
    %110 = arith.addf %109, %108 : vector<8x256xf32>
    %111 = arith.divf %109, %110 : vector<8x256xf32>
    %112 = vector.extract_strided_slice %105 {offsets = [0, 256], sizes = [8, 256], strides = [1, 1]} : vector<8x1024xf32> to vector<8x256xf32>
    %113 = arith.negf %112 : vector<8x256xf32>
    %114 = math.exp %113 : vector<8x256xf32>
    %cst_36 = arith.constant 1.000000e+00 : f32
    %115 = vector.broadcast %cst_36 : f32 to vector<8x256xf32>
    %116 = arith.addf %115, %114 : vector<8x256xf32>
    %117 = arith.divf %115, %116 : vector<8x256xf32>
    %118 = vector.extract_strided_slice %105 {offsets = [0, 512], sizes = [8, 256], strides = [1, 1]} : vector<8x1024xf32> to vector<8x256xf32>
    %119 = math.tanh %118 : vector<8x256xf32>
    %120 = vector.extract_strided_slice %105 {offsets = [0, 768], sizes = [8, 256], strides = [1, 1]} : vector<8x1024xf32> to vector<8x256xf32>
    %121 = arith.negf %120 : vector<8x256xf32>
    %122 = math.exp %121 : vector<8x256xf32>
    %cst_37 = arith.constant 1.000000e+00 : f32
    %123 = vector.broadcast %cst_37 : f32 to vector<8x256xf32>
    %124 = arith.addf %123, %122 : vector<8x256xf32>
    %125 = arith.divf %123, %124 : vector<8x256xf32>
    %126 = arith.mulf %117, %90 : vector<8x256xf32>
    %127 = arith.mulf %111, %119 : vector<8x256xf32>
    %128 = arith.addf %126, %127 : vector<8x256xf32>
    %129 = math.tanh %128 : vector<8x256xf32>
    %130 = arith.mulf %125, %129 : vector<8x256xf32>
    %131 = arith.index_cast %101 : i32 to index
    %c0_38 = arith.constant 0 : index
    %132 = vector.load %arg5[%131, %c0_38] : memref<64x256xf32, #tpu.memory_space<vmem>>, vector<8x256xf32>
    tpu.vector_store %arg5[%131, %c0_38], %130 {strides = array<i32>} : memref<64x256xf32, #tpu.memory_space<vmem>>, vector<8x256xf32>,
    %c3_i32 = arith.constant 3 : i32
    %133 = tpu.concatenate %130, %130 in 1 : vector<8x256xf32>, vector<8x256xf32> -> vector<8x512xf32>
    %cst_39 = arith.constant 0.000000e+00 : f32
    %134 = vector.broadcast %cst_39 : f32 to vector<8x512xf32>
    %135 = arith.select %16, %133, %134 : vector<8x512xi1>, vector<8x512xf32>
    %136 = arith.truncf %135 : vector<8x512xf32> to vector<8x512xbf16>
    %cst_40 = arith.constant dense<0.000000e+00> : vector<8x1024xf32>
    %137 = tpu.matmul %136, %7, %cst_40 {dimension_numbers = #tpu.dot_dimension_numbers<[1], [0], [0], [1], [0, 0, 1, 1], [], []>} : vector<8x512xbf16>, vector<512x1024xbf16>, vector<8x1024xf32> -> vector<8x1024xf32>
    %c8_i32_41 = arith.constant 8 : i32
    %138 = arith.muli %c3_i32, %c8_i32_41 : i32
    %139 = tpu.assume_multiple %138, 8 : i32
    %140 = arith.index_cast %139 : i32 to index
    %c0_42 = arith.constant 0 : index
    %141 = vector.load %arg6[%140, %c0_42] : memref<64x1024xf32, #tpu.memory_space<vmem>>, vector<8x1024xf32>
    %142 = arith.addf %141, %137 : vector<8x1024xf32>
    %143 = arith.addf %142, %8 : vector<8x1024xf32>
    %144 = vector.extract_strided_slice %143 {offsets = [0, 0], sizes = [8, 256], strides = [1, 1]} : vector<8x1024xf32> to vector<8x256xf32>
    %145 = arith.negf %144 : vector<8x256xf32>
    %146 = math.exp %145 : vector<8x256xf32>
    %cst_43 = arith.constant 1.000000e+00 : f32
    %147 = vector.broadcast %cst_43 : f32 to vector<8x256xf32>
    %148 = arith.addf %147, %146 : vector<8x256xf32>
    %149 = arith.divf %147, %148 : vector<8x256xf32>
    %150 = vector.extract_strided_slice %143 {offsets = [0, 256], sizes = [8, 256], strides = [1, 1]} : vector<8x1024xf32> to vector<8x256xf32>
    %151 = arith.negf %150 : vector<8x256xf32>
    %152 = math.exp %151 : vector<8x256xf32>
    %cst_44 = arith.constant 1.000000e+00 : f32
    %153 = vector.broadcast %cst_44 : f32 to vector<8x256xf32>
    %154 = arith.addf %153, %152 : vector<8x256xf32>
    %155 = arith.divf %153, %154 : vector<8x256xf32>
    %156 = vector.extract_strided_slice %143 {offsets = [0, 512], sizes = [8, 256], strides = [1, 1]} : vector<8x1024xf32> to vector<8x256xf32>
    %157 = math.tanh %156 : vector<8x256xf32>
    %158 = vector.extract_strided_slice %143 {offsets = [0, 768], sizes = [8, 256], strides = [1, 1]} : vector<8x1024xf32> to vector<8x256xf32>
    %159 = arith.negf %158 : vector<8x256xf32>
    %160 = math.exp %159 : vector<8x256xf32>
    %cst_45 = arith.constant 1.000000e+00 : f32
    %161 = vector.broadcast %cst_45 : f32 to vector<8x256xf32>
    %162 = arith.addf %161, %160 : vector<8x256xf32>
    %163 = arith.divf %161, %162 : vector<8x256xf32>
    %164 = arith.mulf %155, %128 : vector<8x256xf32>
    %165 = arith.mulf %149, %157 : vector<8x256xf32>
    %166 = arith.addf %164, %165 : vector<8x256xf32>
    %167 = math.tanh %166 : vector<8x256xf32>
    %168 = arith.mulf %163, %167 : vector<8x256xf32>
    %169 = arith.index_cast %139 : i32 to index
    %c0_46 = arith.constant 0 : index
    %170 = vector.load %arg5[%169, %c0_46] : memref<64x256xf32, #tpu.memory_space<vmem>>, vector<8x256xf32>
    tpu.vector_store %arg5[%169, %c0_46], %168 {strides = array<i32>} : memref<64x256xf32, #tpu.memory_space<vmem>>, vector<8x256xf32>,
    %c4_i32_47 = arith.constant 4 : i32
    %171 = tpu.concatenate %168, %168 in 1 : vector<8x256xf32>, vector<8x256xf32> -> vector<8x512xf32>
    %cst_48 = arith.constant 0.000000e+00 : f32
    %172 = vector.broadcast %cst_48 : f32 to vector<8x512xf32>
    %173 = arith.select %16, %171, %172 : vector<8x512xi1>, vector<8x512xf32>
    %174 = arith.truncf %173 : vector<8x512xf32> to vector<8x512xbf16>
    %cst_49 = arith.constant dense<0.000000e+00> : vector<8x1024xf32>
    %175 = tpu.matmul %174, %7, %cst_49 {dimension_numbers = #tpu.dot_dimension_numbers<[1], [0], [0], [1], [0, 0, 1, 1], [], []>} : vector<8x512xbf16>, vector<512x1024xbf16>, vector<8x1024xf32> -> vector<8x1024xf32>
    %c8_i32_50 = arith.constant 8 : i32
    %176 = arith.muli %c4_i32_47, %c8_i32_50 : i32
    %177 = tpu.assume_multiple %176, 8 : i32
    %178 = arith.index_cast %177 : i32 to index
    %c0_51 = arith.constant 0 : index
    %179 = vector.load %arg6[%178, %c0_51] : memref<64x1024xf32, #tpu.memory_space<vmem>>, vector<8x1024xf32>
    %180 = arith.addf %179, %175 : vector<8x1024xf32>
    %181 = arith.addf %180, %8 : vector<8x1024xf32>
    %182 = vector.extract_strided_slice %181 {offsets = [0, 0], sizes = [8, 256], strides = [1, 1]} : vector<8x1024xf32> to vector<8x256xf32>
    %183 = arith.negf %182 : vector<8x256xf32>
    %184 = math.exp %183 : vector<8x256xf32>
    %cst_52 = arith.constant 1.000000e+00 : f32
    %185 = vector.broadcast %cst_52 : f32 to vector<8x256xf32>
    %186 = arith.addf %185, %184 : vector<8x256xf32>
    %187 = arith.divf %185, %186 : vector<8x256xf32>
    %188 = vector.extract_strided_slice %181 {offsets = [0, 256], sizes = [8, 256], strides = [1, 1]} : vector<8x1024xf32> to vector<8x256xf32>
    %189 = arith.negf %188 : vector<8x256xf32>
    %190 = math.exp %189 : vector<8x256xf32>
    %cst_53 = arith.constant 1.000000e+00 : f32
    %191 = vector.broadcast %cst_53 : f32 to vector<8x256xf32>
    %192 = arith.addf %191, %190 : vector<8x256xf32>
    %193 = arith.divf %191, %192 : vector<8x256xf32>
    %194 = vector.extract_strided_slice %181 {offsets = [0, 512], sizes = [8, 256], strides = [1, 1]} : vector<8x1024xf32> to vector<8x256xf32>
    %195 = math.tanh %194 : vector<8x256xf32>
    %196 = vector.extract_strided_slice %181 {offsets = [0, 768], sizes = [8, 256], strides = [1, 1]} : vector<8x1024xf32> to vector<8x256xf32>
    %197 = arith.negf %196 : vector<8x256xf32>
    %198 = math.exp %197 : vector<8x256xf32>
    %cst_54 = arith.constant 1.000000e+00 : f32
    %199 = vector.broadcast %cst_54 : f32 to vector<8x256xf32>
    %200 = arith.addf %199, %198 : vector<8x256xf32>
    %201 = arith.divf %199, %200 : vector<8x256xf32>
    %202 = arith.mulf %193, %166 : vector<8x256xf32>
    %203 = arith.mulf %187, %195 : vector<8x256xf32>
    %204 = arith.addf %202, %203 : vector<8x256xf32>
    %205 = math.tanh %204 : vector<8x256xf32>
    %206 = arith.mulf %201, %205 : vector<8x256xf32>
    %207 = arith.index_cast %177 : i32 to index
    %c0_55 = arith.constant 0 : index
    %208 = vector.load %arg5[%207, %c0_55] : memref<64x256xf32, #tpu.memory_space<vmem>>, vector<8x256xf32>
    tpu.vector_store %arg5[%207, %c0_55], %206 {strides = array<i32>} : memref<64x256xf32, #tpu.memory_space<vmem>>, vector<8x256xf32>,
    %c5_i32 = arith.constant 5 : i32
    %209 = tpu.concatenate %206, %206 in 1 : vector<8x256xf32>, vector<8x256xf32> -> vector<8x512xf32>
    %cst_56 = arith.constant 0.000000e+00 : f32
    %210 = vector.broadcast %cst_56 : f32 to vector<8x512xf32>
    %211 = arith.select %16, %209, %210 : vector<8x512xi1>, vector<8x512xf32>
    %212 = arith.truncf %211 : vector<8x512xf32> to vector<8x512xbf16>
    %cst_57 = arith.constant dense<0.000000e+00> : vector<8x1024xf32>
    %213 = tpu.matmul %212, %7, %cst_57 {dimension_numbers = #tpu.dot_dimension_numbers<[1], [0], [0], [1], [0, 0, 1, 1], [], []>} : vector<8x512xbf16>, vector<512x1024xbf16>, vector<8x1024xf32> -> vector<8x1024xf32>
    %c8_i32_58 = arith.constant 8 : i32
    %214 = arith.muli %c5_i32, %c8_i32_58 : i32
    %215 = tpu.assume_multiple %214, 8 : i32
    %216 = arith.index_cast %215 : i32 to index
    %c0_59 = arith.constant 0 : index
    %217 = vector.load %arg6[%216, %c0_59] : memref<64x1024xf32, #tpu.memory_space<vmem>>, vector<8x1024xf32>
    %218 = arith.addf %217, %213 : vector<8x1024xf32>
    %219 = arith.addf %218, %8 : vector<8x1024xf32>
    %220 = vector.extract_strided_slice %219 {offsets = [0, 0], sizes = [8, 256], strides = [1, 1]} : vector<8x1024xf32> to vector<8x256xf32>
    %221 = arith.negf %220 : vector<8x256xf32>
    %222 = math.exp %221 : vector<8x256xf32>
    %cst_60 = arith.constant 1.000000e+00 : f32
    %223 = vector.broadcast %cst_60 : f32 to vector<8x256xf32>
    %224 = arith.addf %223, %222 : vector<8x256xf32>
    %225 = arith.divf %223, %224 : vector<8x256xf32>
    %226 = vector.extract_strided_slice %219 {offsets = [0, 256], sizes = [8, 256], strides = [1, 1]} : vector<8x1024xf32> to vector<8x256xf32>
    %227 = arith.negf %226 : vector<8x256xf32>
    %228 = math.exp %227 : vector<8x256xf32>
    %cst_61 = arith.constant 1.000000e+00 : f32
    %229 = vector.broadcast %cst_61 : f32 to vector<8x256xf32>
    %230 = arith.addf %229, %228 : vector<8x256xf32>
    %231 = arith.divf %229, %230 : vector<8x256xf32>
    %232 = vector.extract_strided_slice %219 {offsets = [0, 512], sizes = [8, 256], strides = [1, 1]} : vector<8x1024xf32> to vector<8x256xf32>
    %233 = math.tanh %232 : vector<8x256xf32>
    %234 = vector.extract_strided_slice %219 {offsets = [0, 768], sizes = [8, 256], strides = [1, 1]} : vector<8x1024xf32> to vector<8x256xf32>
    %235 = arith.negf %234 : vector<8x256xf32>
    %236 = math.exp %235 : vector<8x256xf32>
    %cst_62 = arith.constant 1.000000e+00 : f32
    %237 = vector.broadcast %cst_62 : f32 to vector<8x256xf32>
    %238 = arith.addf %237, %236 : vector<8x256xf32>
    %239 = arith.divf %237, %238 : vector<8x256xf32>
    %240 = arith.mulf %231, %204 : vector<8x256xf32>
    %241 = arith.mulf %225, %233 : vector<8x256xf32>
    %242 = arith.addf %240, %241 : vector<8x256xf32>
    %243 = math.tanh %242 : vector<8x256xf32>
    %244 = arith.mulf %239, %243 : vector<8x256xf32>
    %245 = arith.index_cast %215 : i32 to index
    %c0_63 = arith.constant 0 : index
    %246 = vector.load %arg5[%245, %c0_63] : memref<64x256xf32, #tpu.memory_space<vmem>>, vector<8x256xf32>
    tpu.vector_store %arg5[%245, %c0_63], %244 {strides = array<i32>} : memref<64x256xf32, #tpu.memory_space<vmem>>, vector<8x256xf32>,
    %c6_i32 = arith.constant 6 : i32
    %247 = tpu.concatenate %244, %244 in 1 : vector<8x256xf32>, vector<8x256xf32> -> vector<8x512xf32>
    %cst_64 = arith.constant 0.000000e+00 : f32
    %248 = vector.broadcast %cst_64 : f32 to vector<8x512xf32>
    %249 = arith.select %16, %247, %248 : vector<8x512xi1>, vector<8x512xf32>
    %250 = arith.truncf %249 : vector<8x512xf32> to vector<8x512xbf16>
    %cst_65 = arith.constant dense<0.000000e+00> : vector<8x1024xf32>
    %251 = tpu.matmul %250, %7, %cst_65 {dimension_numbers = #tpu.dot_dimension_numbers<[1], [0], [0], [1], [0, 0, 1, 1], [], []>} : vector<8x512xbf16>, vector<512x1024xbf16>, vector<8x1024xf32> -> vector<8x1024xf32>
    %c8_i32_66 = arith.constant 8 : i32
    %252 = arith.muli %c6_i32, %c8_i32_66 : i32
    %253 = tpu.assume_multiple %252, 8 : i32
    %254 = arith.index_cast %253 : i32 to index
    %c0_67 = arith.constant 0 : index
    %255 = vector.load %arg6[%254, %c0_67] : memref<64x1024xf32, #tpu.memory_space<vmem>>, vector<8x1024xf32>
    %256 = arith.addf %255, %251 : vector<8x1024xf32>
    %257 = arith.addf %256, %8 : vector<8x1024xf32>
    %258 = vector.extract_strided_slice %257 {offsets = [0, 0], sizes = [8, 256], strides = [1, 1]} : vector<8x1024xf32> to vector<8x256xf32>
    %259 = arith.negf %258 : vector<8x256xf32>
    %260 = math.exp %259 : vector<8x256xf32>
    %cst_68 = arith.constant 1.000000e+00 : f32
    %261 = vector.broadcast %cst_68 : f32 to vector<8x256xf32>
    %262 = arith.addf %261, %260 : vector<8x256xf32>
    %263 = arith.divf %261, %262 : vector<8x256xf32>
    %264 = vector.extract_strided_slice %257 {offsets = [0, 256], sizes = [8, 256], strides = [1, 1]} : vector<8x1024xf32> to vector<8x256xf32>
    %265 = arith.negf %264 : vector<8x256xf32>
    %266 = math.exp %265 : vector<8x256xf32>
    %cst_69 = arith.constant 1.000000e+00 : f32
    %267 = vector.broadcast %cst_69 : f32 to vector<8x256xf32>
    %268 = arith.addf %267, %266 : vector<8x256xf32>
    %269 = arith.divf %267, %268 : vector<8x256xf32>
    %270 = vector.extract_strided_slice %257 {offsets = [0, 512], sizes = [8, 256], strides = [1, 1]} : vector<8x1024xf32> to vector<8x256xf32>
    %271 = math.tanh %270 : vector<8x256xf32>
    %272 = vector.extract_strided_slice %257 {offsets = [0, 768], sizes = [8, 256], strides = [1, 1]} : vector<8x1024xf32> to vector<8x256xf32>
    %273 = arith.negf %272 : vector<8x256xf32>
    %274 = math.exp %273 : vector<8x256xf32>
    %cst_70 = arith.constant 1.000000e+00 : f32
    %275 = vector.broadcast %cst_70 : f32 to vector<8x256xf32>
    %276 = arith.addf %275, %274 : vector<8x256xf32>
    %277 = arith.divf %275, %276 : vector<8x256xf32>
    %278 = arith.mulf %269, %242 : vector<8x256xf32>
    %279 = arith.mulf %263, %271 : vector<8x256xf32>
    %280 = arith.addf %278, %279 : vector<8x256xf32>
    %281 = math.tanh %280 : vector<8x256xf32>
    %282 = arith.mulf %277, %281 : vector<8x256xf32>
    %283 = arith.index_cast %253 : i32 to index
    %c0_71 = arith.constant 0 : index
    %284 = vector.load %arg5[%283, %c0_71] : memref<64x256xf32, #tpu.memory_space<vmem>>, vector<8x256xf32>
    tpu.vector_store %arg5[%283, %c0_71], %282 {strides = array<i32>} : memref<64x256xf32, #tpu.memory_space<vmem>>, vector<8x256xf32>,
    %c7_i32 = arith.constant 7 : i32
    %285 = tpu.concatenate %282, %282 in 1 : vector<8x256xf32>, vector<8x256xf32> -> vector<8x512xf32>
    %cst_72 = arith.constant 0.000000e+00 : f32
    %286 = vector.broadcast %cst_72 : f32 to vector<8x512xf32>
    %287 = arith.select %16, %285, %286 : vector<8x512xi1>, vector<8x512xf32>
    %288 = arith.truncf %287 : vector<8x512xf32> to vector<8x512xbf16>
    %cst_73 = arith.constant dense<0.000000e+00> : vector<8x1024xf32>
    %289 = tpu.matmul %288, %7, %cst_73 {dimension_numbers = #tpu.dot_dimension_numbers<[1], [0], [0], [1], [0, 0, 1, 1], [], []>} : vector<8x512xbf16>, vector<512x1024xbf16>, vector<8x1024xf32> -> vector<8x1024xf32>
    %c8_i32_74 = arith.constant 8 : i32
    %290 = arith.muli %c7_i32, %c8_i32_74 : i32
    %291 = tpu.assume_multiple %290, 8 : i32
    %292 = arith.index_cast %291 : i32 to index
    %c0_75 = arith.constant 0 : index
    %293 = vector.load %arg6[%292, %c0_75] : memref<64x1024xf32, #tpu.memory_space<vmem>>, vector<8x1024xf32>
    %294 = arith.addf %293, %289 : vector<8x1024xf32>
    %295 = arith.addf %294, %8 : vector<8x1024xf32>
    %296 = vector.extract_strided_slice %295 {offsets = [0, 0], sizes = [8, 256], strides = [1, 1]} : vector<8x1024xf32> to vector<8x256xf32>
    %297 = arith.negf %296 : vector<8x256xf32>
    %298 = math.exp %297 : vector<8x256xf32>
    %cst_76 = arith.constant 1.000000e+00 : f32
    %299 = vector.broadcast %cst_76 : f32 to vector<8x256xf32>
    %300 = arith.addf %299, %298 : vector<8x256xf32>
    %301 = arith.divf %299, %300 : vector<8x256xf32>
    %302 = vector.extract_strided_slice %295 {offsets = [0, 256], sizes = [8, 256], strides = [1, 1]} : vector<8x1024xf32> to vector<8x256xf32>
    %303 = arith.negf %302 : vector<8x256xf32>
    %304 = math.exp %303 : vector<8x256xf32>
    %cst_77 = arith.constant 1.000000e+00 : f32
    %305 = vector.broadcast %cst_77 : f32 to vector<8x256xf32>
    %306 = arith.addf %305, %304 : vector<8x256xf32>
    %307 = arith.divf %305, %306 : vector<8x256xf32>
    %308 = vector.extract_strided_slice %295 {offsets = [0, 512], sizes = [8, 256], strides = [1, 1]} : vector<8x1024xf32> to vector<8x256xf32>
    %309 = math.tanh %308 : vector<8x256xf32>
    %310 = vector.extract_strided_slice %295 {offsets = [0, 768], sizes = [8, 256], strides = [1, 1]} : vector<8x1024xf32> to vector<8x256xf32>
    %311 = arith.negf %310 : vector<8x256xf32>
    %312 = math.exp %311 : vector<8x256xf32>
    %cst_78 = arith.constant 1.000000e+00 : f32
    %313 = vector.broadcast %cst_78 : f32 to vector<8x256xf32>
    %314 = arith.addf %313, %312 : vector<8x256xf32>
    %315 = arith.divf %313, %314 : vector<8x256xf32>
    %316 = arith.mulf %307, %280 : vector<8x256xf32>
    %317 = arith.mulf %301, %309 : vector<8x256xf32>
    %318 = arith.addf %316, %317 : vector<8x256xf32>
    %319 = math.tanh %318 : vector<8x256xf32>
    %320 = arith.mulf %315, %319 : vector<8x256xf32>
    %321 = arith.index_cast %291 : i32 to index
    %c0_79 = arith.constant 0 : index
    %322 = vector.load %arg5[%321, %c0_79] : memref<64x256xf32, #tpu.memory_space<vmem>>, vector<8x256xf32>
    tpu.vector_store %arg5[%321, %c0_79], %320 {strides = array<i32>} : memref<64x256xf32, #tpu.memory_space<vmem>>, vector<8x256xf32>,
    %c8_i32_80 = arith.constant 8 : i32
    %c0_81 = arith.constant 0 : index
    %c0_82 = arith.constant 0 : index
    %323 = vector.load %arg7[%c0_81, %c0_82] : memref<8x256xf32, #tpu.memory_space<vmem>>, vector<8x256xf32>
    tpu.vector_store %arg7[%c0_81, %c0_82], %320 {strides = array<i32>} : memref<8x256xf32, #tpu.memory_space<vmem>>, vector<8x256xf32>,
    %c0_83 = arith.constant 0 : index
    %c0_84 = arith.constant 0 : index
    %324 = vector.load %arg8[%c0_83, %c0_84] : memref<8x256xf32, #tpu.memory_space<vmem>>, vector<8x256xf32>
    tpu.vector_store %arg8[%c0_83, %c0_84], %318 {strides = array<i32>} : memref<8x256xf32, #tpu.memory_space<vmem>>, vector<8x256xf32>,
    return
  }
  func.func @transform_0(%arg0: i32) -> (i32, i32) {
    %c0_i32 = arith.constant 0 : i32
    %c0_i32_0 = arith.constant 0 : i32
    return %arg0, %c0_i32 : i32, i32
  }
  func.func @transform_1(%arg0: i32) -> (i32, i32) {
    %c0_i32 = arith.constant 0 : i32
    %c0_i32_0 = arith.constant 0 : i32
    %c0_i32_1 = arith.constant 0 : i32
    return %c0_i32, %c0_i32_0 : i32, i32
  }
  func.func @transform_2(%arg0: i32) -> (i32, i32) {
    %c0_i32 = arith.constant 0 : i32
    %c0_i32_0 = arith.constant 0 : i32
    %c0_i32_1 = arith.constant 0 : i32
    return %c0_i32, %c0_i32_0 : i32, i32
  }
  func.func @transform_3(%arg0: i32) -> (i32, i32) {
    %c0_i32 = arith.constant 0 : i32
    %c0_i32_0 = arith.constant 0 : i32
    %c0_i32_1 = arith.constant 0 : i32
    return %c0_i32, %c0_i32_0 : i32, i32
  }
  func.func @transform_4(%arg0: i32) -> (i32, i32) {
    %c0_i32 = arith.constant 0 : i32
    %c0_i32_0 = arith.constant 0 : i32
    return %arg0, %c0_i32 : i32, i32
  }
}

</mosaic_0001>

<llo_original>
// kernel: encode1_forward.1
$region0: #{encode1_forward.1}
  #allocation0 [shape = 'u32[]', space=smem, size = 0x4, offset = 0x4, fixed_abs, tag = 'smem constant byte address 0x4 - core index']
  #allocation1 [shape = 'u32[72,128]{1,0:T(1,128)}', space=vmem, size = 0x9000, scoped, tag = 'internal scratch']
  #allocation2 [shape = 'f32[64,1024]{1,0:T(8,128)}', space=vmem, size = 0x40000, scoped, tag = 'scratch operand']
  #allocation3 [shape = 'f32[8,256]{1,0:T(8,128)}', space=vmem, size = 0x2000, scoped, tag = 'scratch operand']
  #allocation4 [shape = 'f32[8,256]{1,0:T(8,128)}', space=vmem, size = 0x2000, scoped, tag = 'scratch operand']
  %s0 = inlined_call_operand.vmem [shape: bf16[64,64], index: 0, kind: input, shape index: {}]
  %s1 = inlined_call_operand.vmem [shape: bf16[64,1024], index: 1, kind: input, shape index: {}]
  %s2 = inlined_call_operand.vmem [shape: bf16[512,1024], index: 2, kind: input, shape index: {}]
  %s3 = inlined_call_operand.vmem [shape: f32[8,1024], index: 3, kind: input, shape index: {}]
  %s4 = inlined_call_operand.vmem [shape: f32[64,256], index: 4, kind: output, shape index: {}]
  %s5 = sld [smem:[#allocation0]]
  $region30: #{encode1_forward.1} parent=0
    _
  %s7 = ssub.s32 1, %s5
  %s8 = scalar_select 0, %s7, %s5
  // Predicated region
  $region2: #{encode1_forward.1} parent=0 // pred_check
    _
  $region3: #{encode1_forward.1} parent=0 // pred_check_branch
    %10 = sbr.rel (0) target = $region5
  $region4: #{encode1_forward.1} parent=0 // pred_region
    _
  $region5: #{encode1_forward.1} parent=0 // pred_fallthru
    _
  // Predicated region
  $region6: #{encode1_forward.1} parent=0 // pred_check
    _
  $region7: #{encode1_forward.1} parent=0 // pred_check_branch
    %12 = sbr.rel (0) target = $region9
  $region8: #{encode1_forward.1} parent=0 // pred_region
    _
  $region9: #{encode1_forward.1} parent=0 // pred_fallthru
    _
  // Predicated region
  $region10: #{encode1_forward.1} parent=0 // pred_check
    _
  $region11: #{encode1_forward.1} parent=0 // pred_check_branch
    %14 = sbr.rel (0) target = $region13
  $region12: #{encode1_forward.1} parent=0 // pred_region
    _
  $region13: #{encode1_forward.1} parent=0 // pred_fallthru
    _
  // Predicated region
  $region14: #{encode1_forward.1} parent=0 // pred_check
    _
  $region15: #{encode1_forward.1} parent=0 // pred_check_branch
    %16 = sbr.rel (0) target = $region17
  $region16: #{encode1_forward.1} parent=0 // pred_region
    _
  $region17: #{encode1_forward.1} parent=0 // pred_fallthru
    _
  %p18 = scmp.eq.s32.totalorder 0, 0
  // Predicated region
  $region18: #{encode1_forward.1} parent=0 // pred_check
    %p19 = pneg %p18
  $region19: #{encode1_forward.1} parent=0 // pred_check_branch
    %21 = sbr.rel (%p19) target = $region21
  $region20: #{encode1_forward.1} parent=0 // pred_region
    %22 = vst [vmem:[#allocation3] sm:$0xff] 0.0
    %23 = vst [vmem:[#allocation3 + $0x8] sm:$0xff] 0.0
    %24 = vst [vmem:[#allocation4] sm:$0xff] 0.0
    %25 = vst [vmem:[#allocation4 + $0x8] sm:$0xff] 0.0
  $region21: #{encode1_forward.1} parent=0 // pred_fallthru
    _
  %v26 = vld [vmem:[%s0] sm:$0xf]
  %v27 = vld [vmem:[%s0 + $0x4] sm:$0xf]
  %v28 = vld [vmem:[%s0 + $0x8] sm:$0xf]
  %v29 = vld [vmem:[%s0 + $0xc] sm:$0xf]
  %v30 = vld [vmem:[%s0 + $0x10] sm:$0xf]
  %v31 = vld [vmem:[%s0 + $0x14] sm:$0xf]
  %v32 = vld [vmem:[%s0 + $0x18] sm:$0xf]
  %v33 = vld [vmem:[%s0 + $0x1c] sm:$0xf]
  %v34 = vld [vmem:[%s1] sm:$0xff]
  %v35 = vld [vmem:[%s1 + $0x8] sm:$0xff]
  %v36 = vld [vmem:[%s1 + $0x10] sm:$0xff]
  %v37 = vld [vmem:[%s1 + $0x18] sm:$0xff]
  %v38 = vld [vmem:[%s1 + $0x20] sm:$0xff]
  %v39 = vld [vmem:[%s1 + $0x28] sm:$0xff]
  %v40 = vld [vmem:[%s1 + $0x30] sm:$0xff]
  %v41 = vld [vmem:[%s1 + $0x38] sm:$0xff]
  %v42 = vld [vmem:[%s1 + $0x40] sm:$0xff]
  %v43 = vld [vmem:[%s1 + $0x48] sm:$0xff]
  %v44 = vld [vmem:[%s1 + $0x50] sm:$0xff]
  %v45 = vld [vmem:[%s1 + $0x58] sm:$0xff]
  %v46 = vld [vmem:[%s1 + $0x60] sm:$0xff]
  %v47 = vld [vmem:[%s1 + $0x68] sm:$0xff]
  %v48 = vld [vmem:[%s1 + $0x70] sm:$0xff]
  %v49 = vld [vmem:[%s1 + $0x78] sm:$0xff]
  %v50 = vld [vmem:[%s1 + $0x80] sm:$0xff]
  %v51 = vld [vmem:[%s1 + $0x88] sm:$0xff]
  %v52 = vld [vmem:[%s1 + $0x90] sm:$0xff]
  %v53 = vld [vmem:[%s1 + $0x98] sm:$0xff]
  %v54 = vld [vmem:[%s1 + $0xa0] sm:$0xff]
  %v55 = vld [vmem:[%s1 + $0xa8] sm:$0xff]
  %v56 = vld [vmem:[%s1 + $0xb0] sm:$0xff]
  %v57 = vld [vmem:[%s1 + $0xb8] sm:$0xff]
  %v58 = vld [vmem:[%s1 + $0xc0] sm:$0xff]
  %v59 = vld [vmem:[%s1 + $0xc8] sm:$0xff]
  %v60 = vld [vmem:[%s1 + $0xd0] sm:$0xff]
  %v61 = vld [vmem:[%s1 + $0xd8] sm:$0xff]
  %v62 = vld [vmem:[%s1 + $0xe0] sm:$0xff]
  %v63 = vld [vmem:[%s1 + $0xe8] sm:$0xff]
  %v64 = vld [vmem:[%s1 + $0xf0] sm:$0xff]
  %v65 = vld [vmem:[%s1 + $0xf8] sm:$0xff]
  %v74 = vunpack.c.l.b16 %v26
  %v75 = vunpack.c.l.b16 %v27
  %v76 = vunpack.c.l.b16 %v28
  %v77 = vunpack.c.l.b16 %v29
  %v78 = vunpack.c.l.b16 %v30
  %v79 = vunpack.c.l.b16 %v31
  %v80 = vunpack.c.l.b16 %v32
  %v81 = vunpack.c.l.b16 %v33
  %v82 = vpack.c.b16 %v75, %v74
  %v83 = vpack.c.b16 %v77, %v76
  %v84 = vpack.c.b16 %v79, %v78
  %v85 = vpack.c.b16 %v81, %v80
  %v118 = vunpack.c.l.b16 %v34
  %v119 = vunpack.c.h.b16 %v34
  %v120 = vunpack.c.l.b16 %v35
  %v121 = vunpack.c.h.b16 %v35
  %v122 = vunpack.c.l.b16 %v36
  %v123 = vunpack.c.h.b16 %v36
  %v124 = vunpack.c.l.b16 %v37
  %v125 = vunpack.c.h.b16 %v37
  %v126 = vunpack.c.l.b16 %v38
  %v127 = vunpack.c.h.b16 %v38
  %v128 = vunpack.c.l.b16 %v39
  %v129 = vunpack.c.h.b16 %v39
  %v130 = vunpack.c.l.b16 %v40
  %v131 = vunpack.c.h.b16 %v40
  %v132 = vunpack.c.l.b16 %v41
  %v133 = vunpack.c.h.b16 %v41
  %v134 = vunpack.c.l.b16 %v42
  %v135 = vunpack.c.h.b16 %v42
  %v136 = vunpack.c.l.b16 %v43
  %v137 = vunpack.c.h.b16 %v43
  %v138 = vunpack.c.l.b16 %v44
  %v139 = vunpack.c.h.b16 %v44
  %v140 = vunpack.c.l.b16 %v45
  %v141 = vunpack.c.h.b16 %v45
  %v142 = vunpack.c.l.b16 %v46
  %v143 = vunpack.c.h.b16 %v46
  %v144 = vunpack.c.l.b16 %v47
  %v145 = vunpack.c.h.b16 %v47
  %v146 = vunpack.c.l.b16 %v48
  %v147 = vunpack.c.h.b16 %v48
  %v148 = vunpack.c.l.b16 %v49
  %v149 = vunpack.c.h.b16 %v49
  %v150 = vunpack.c.l.b16 %v50
  %v151 = vunpack.c.h.b16 %v50
  %v152 = vunpack.c.l.b16 %v51
  %v153 = vunpack.c.h.b16 %v51
  %v154 = vunpack.c.l.b16 %v52
  %v155 = vunpack.c.h.b16 %v52
  %v156 = vunpack.c.l.b16 %v53
  %v157 = vunpack.c.h.b16 %v53
  %v158 = vunpack.c.l.b16 %v54
  %v159 = vunpack.c.h.b16 %v54
  %v160 = vunpack.c.l.b16 %v55
  %v161 = vunpack.c.h.b16 %v55
  %v162 = vunpack.c.l.b16 %v56
  %v163 = vunpack.c.h.b16 %v56
  %v164 = vunpack.c.l.b16 %v57
  %v165 = vunpack.c.h.b16 %v57
  %v166 = vunpack.c.l.b16 %v58
  %v167 = vunpack.c.h.b16 %v58
  %v168 = vunpack.c.l.b16 %v59
  %v169 = vunpack.c.h.b16 %v59
  %v170 = vunpack.c.l.b16 %v60
  %v171 = vunpack.c.h.b16 %v60
  %v172 = vunpack.c.l.b16 %v61
  %v173 = vunpack.c.h.b16 %v61
  %v174 = vunpack.c.l.b16 %v62
  %v175 = vunpack.c.h.b16 %v62
  %v176 = vunpack.c.l.b16 %v63
  %v177 = vunpack.c.h.b16 %v63
  %v178 = vunpack.c.l.b16 %v64
  %v179 = vunpack.c.h.b16 %v64
  %v180 = vunpack.c.l.b16 %v65
  %v181 = vunpack.c.h.b16 %v65
  %v182 = vpack.c.b16 %v126, %v118
  %v183 = vpack.c.b16 %v127, %v119
  %v184 = vpack.c.b16 %v128, %v120
  %v185 = vpack.c.b16 %v129, %v121
  %v186 = vpack.c.b16 %v130, %v122
  %v187 = vpack.c.b16 %v131, %v123
  %v188 = vpack.c.b16 %v132, %v124
  %v189 = vpack.c.b16 %v133, %v125
  %v190 = vpack.c.b16 %v142, %v134
  %v191 = vpack.c.b16 %v143, %v135
  %v192 = vpack.c.b16 %v144, %v136
  %v193 = vpack.c.b16 %v145, %v137
  %v194 = vpack.c.b16 %v146, %v138
  %v195 = vpack.c.b16 %v147, %v139
  %v196 = vpack.c.b16 %v148, %v140
  %v197 = vpack.c.b16 %v149, %v141
  %v198 = vpack.c.b16 %v158, %v150
  %v199 = vpack.c.b16 %v159, %v151
  %v200 = vpack.c.b16 %v160, %v152
  %v201 = vpack.c.b16 %v161, %v153
  %v202 = vpack.c.b16 %v162, %v154
  %v203 = vpack.c.b16 %v163, %v155
  %v204 = vpack.c.b16 %v164, %v156
  %v205 = vpack.c.b16 %v165, %v157
  %v206 = vpack.c.b16 %v174, %v166
  %v207 = vpack.c.b16 %v175, %v167
  %v208 = vpack.c.b16 %v176, %v168
  %v209 = vpack.c.b16 %v177, %v169
  %v210 = vpack.c.b16 %v178, %v170
  %v211 = vpack.c.b16 %v179, %v171
  %v212 = vpack.c.b16 %v180, %v172
  %v213 = vpack.c.b16 %v181, %v173
  %vm246 = vcmask 523264
  %v248 = vsel %vm246, %v82, 0
  %v251 = vsel %vm246, %v83, 0
  %v254 = vsel %vm246, %v84, 0
  %v257 = vsel %vm246, %v85, 0
  %259 = vmatpush.bf16.msra.mxu0 0
  %260 = vmatpush.bf16.msra.mxu0 0
  %261 = vmatpush.bf16.msra.mxu0 0
  %262 = vmatpush.bf16.msra.mxu0 0
  %263 = vmatpush.bf16.msra.mxu0 %v206
  %264 = vmatpush.bf16.msra.mxu0 %v198
  %265 = vmatpush.bf16.msra.mxu0 %v190
  %266 = vmatpush.bf16.msra.mxu0 %v182
  %267 = vmatmul.bf16.gmra.mxu0 %v248
  %v268 = vpop.f32.mrf.mxu0
  %v269 = vadd.f32 0.0, %v268
  %v270 = vpop.f32.mrf.mxu0
  %v271 = vadd.f32 0.0, %v270
  %272 = vmatmul.bf16.gmra.mxu0 %v251
  %v273 = vpop.f32.mrf.mxu0
  %v274 = vadd.f32 0.0, %v273
  %v275 = vpop.f32.mrf.mxu0
  %v276 = vadd.f32 0.0, %v275
  %277 = vmatmul.bf16.gmra.mxu0 %v254
  %v278 = vpop.f32.mrf.mxu0
  %v279 = vadd.f32 0.0, %v278
  %v280 = vpop.f32.mrf.mxu0
  %v281 = vadd.f32 0.0, %v280
  %282 = vmatmul.bf16.gmra.mxu0 %v257
  %v283 = vpop.f32.mrf.mxu0
  %v284 = vadd.f32 0.0, %v283
  %v285 = vpop.f32.mrf.mxu0
  %v286 = vadd.f32 0.0, %v285
  %287 = vdwg.mxu0
  %288 = vmatpush.bf16.msra.mxu0 0
  %289 = vmatpush.bf16.msra.mxu0 0
  %290 = vmatpush.bf16.msra.mxu0 0
  %291 = vmatpush.bf16.msra.mxu0 0
  %292 = vmatpush.bf16.msra.mxu0 %v207
  %293 = vmatpush.bf16.msra.mxu0 %v199
  %294 = vmatpush.bf16.msra.mxu0 %v191
  %295 = vmatpush.bf16.msra.mxu0 %v183
  %296 = vmatmul.bf16.gmra.mxu0 %v248
  %v297 = vpop.f32.mrf.mxu0
  %v298 = vadd.f32 0.0, %v297
  %v299 = vpop.f32.mrf.mxu0
  %v300 = vadd.f32 0.0, %v299
  %301 = vmatmul.bf16.gmra.mxu0 %v251
  %v302 = vpop.f32.mrf.mxu0
  %v303 = vadd.f32 0.0, %v302
  %v304 = vpop.f32.mrf.mxu0
  %v305 = vadd.f32 0.0, %v304
  %306 = vmatmul.bf16.gmra.mxu0 %v254
  %v307 = vpop.f32.mrf.mxu0
  %v308 = vadd.f32 0.0, %v307
  %v309 = vpop.f32.mrf.mxu0
  %v310 = vadd.f32 0.0, %v309
  %311 = vmatmul.bf16.gmra.mxu0 %v257
  %v312 = vpop.f32.mrf.mxu0
  %v313 = vadd.f32 0.0, %v312
  %v314 = vpop.f32.mrf.mxu0
  %v315 = vadd.f32 0.0, %v314
  %316 = vdwg.mxu0
  %317 = vmatpush.bf16.msra.mxu0 0
  %318 = vmatpush.bf16.msra.mxu0 0
  %319 = vmatpush.bf16.msra.mxu0 0
  %320 = vmatpush.bf16.msra.mxu0 0
  %321 = vmatpush.bf16.msra.mxu0 %v208
  %322 = vmatpush.bf16.msra.mxu0 %v200
  %323 = vmatpush.bf16.msra.mxu0 %v192
  %324 = vmatpush.bf16.msra.mxu0 %v184
  %325 = vmatmul.bf16.gmra.mxu0 %v248
  %v326 = vpop.f32.mrf.mxu0
  %v327 = vadd.f32 0.0, %v326
  %v328 = vpop.f32.mrf.mxu0
  %v329 = vadd.f32 0.0, %v328
  %330 = vmatmul.bf16.gmra.mxu0 %v251
  %v331 = vpop.f32.mrf.mxu0
  %v332 = vadd.f32 0.0, %v331
  %v333 = vpop.f32.mrf.mxu0
  %v334 = vadd.f32 0.0, %v333
  %335 = vmatmul.bf16.gmra.mxu0 %v254
  %v336 = vpop.f32.mrf.mxu0
  %v337 = vadd.f32 0.0, %v336
  %v338 = vpop.f32.mrf.mxu0
  %v339 = vadd.f32 0.0, %v338
  %340 = vmatmul.bf16.gmra.mxu0 %v257
  %v341 = vpop.f32.mrf.mxu0
  %v342 = vadd.f32 0.0, %v341
  %v343 = vpop.f32.mrf.mxu0
  %v344 = vadd.f32 0.0, %v343
  %345 = vdwg.mxu0
  %346 = vmatpush.bf16.msra.mxu0 0
  %347 = vmatpush.bf16.msra.mxu0 0
  %348 = vmatpush.bf16.msra.mxu0 0
  %349 = vmatpush.bf16.msra.mxu0 0
  %350 = vmatpush.bf16.msra.mxu0 %v209
  %351 = vmatpush.bf16.msra.mxu0 %v201
  %352 = vmatpush.bf16.msra.mxu0 %v193
  %353 = vmatpush.bf16.msra.mxu0 %v185
  %354 = vmatmul.bf16.gmra.mxu0 %v248
  %v355 = vpop.f32.mrf.mxu0
  %v356 = vadd.f32 0.0, %v355
  %v357 = vpop.f32.mrf.mxu0
  %v358 = vadd.f32 0.0, %v357
  %359 = vmatmul.bf16.gmra.mxu0 %v251
  %v360 = vpop.f32.mrf.mxu0
  %v361 = vadd.f32 0.0, %v360
  %v362 = vpop.f32.mrf.mxu0
  %v363 = vadd.f32 0.0, %v362
  %364 = vmatmul.bf16.gmra.mxu0 %v254
  %v365 = vpop.f32.mrf.mxu0
  %v366 = vadd.f32 0.0, %v365
  %v367 = vpop.f32.mrf.mxu0
  %v368 = vadd.f32 0.0, %v367
  %369 = vmatmul.bf16.gmra.mxu0 %v257
  %v370 = vpop.f32.mrf.mxu0
  %v371 = vadd.f32 0.0, %v370
  %v372 = vpop.f32.mrf.mxu0
  %v373 = vadd.f32 0.0, %v372
  %374 = vdwg.mxu0
  %375 = vmatpush.bf16.msra.mxu0 0
  %376 = vmatpush.bf16.msra.mxu0 0
  %377 = vmatpush.bf16.msra.mxu0 0
  %378 = vmatpush.bf16.msra.mxu0 0
  %379 = vmatpush.bf16.msra.mxu0 %v210
  %380 = vmatpush.bf16.msra.mxu0 %v202
  %381 = vmatpush.bf16.msra.mxu0 %v194
  %382 = vmatpush.bf16.msra.mxu0 %v186
  %383 = vmatmul.bf16.gmra.mxu0 %v248
  %v384 = vpop.f32.mrf.mxu0
  %v385 = vadd.f32 0.0, %v384
  %v386 = vpop.f32.mrf.mxu0
  %v387 = vadd.f32 0.0, %v386
  %388 = vmatmul.bf16.gmra.mxu0 %v251
  %v389 = vpop.f32.mrf.mxu0
  %v390 = vadd.f32 0.0, %v389
  %v391 = vpop.f32.mrf.mxu0
  %v392 = vadd.f32 0.0, %v391
  %393 = vmatmul.bf16.gmra.mxu0 %v254
  %v394 = vpop.f32.mrf.mxu0
  %v395 = vadd.f32 0.0, %v394
  %v396 = vpop.f32.mrf.mxu0
  %v397 = vadd.f32 0.0, %v396
  %398 = vmatmul.bf16.gmra.mxu0 %v257
  %v399 = vpop.f32.mrf.mxu0
  %v400 = vadd.f32 0.0, %v399
  %v401 = vpop.f32.mrf.mxu0
  %v402 = vadd.f32 0.0, %v401
  %403 = vdwg.mxu0
  %404 = vmatpush.bf16.msra.mxu0 0
  %405 = vmatpush.bf16.msra.mxu0 0
  %406 = vmatpush.bf16.msra.mxu0 0
  %407 = vmatpush.bf16.msra.mxu0 0
  %408 = vmatpush.bf16.msra.mxu0 %v211
  %409 = vmatpush.bf16.msra.mxu0 %v203
  %410 = vmatpush.bf16.msra.mxu0 %v195
  %411 = vmatpush.bf16.msra.mxu0 %v187
  %412 = vmatmul.bf16.gmra.mxu0 %v248
  %v413 = vpop.f32.mrf.mxu0
  %v414 = vadd.f32 0.0, %v413
  %v415 = vpop.f32.mrf.mxu0
  %v416 = vadd.f32 0.0, %v415
  %417 = vmatmul.bf16.gmra.mxu0 %v251
  %v418 = vpop.f32.mrf.mxu0
  %v419 = vadd.f32 0.0, %v418
  %v420 = vpop.f32.mrf.mxu0
  %v421 = vadd.f32 0.0, %v420
  %422 = vmatmul.bf16.gmra.mxu0 %v254
  %v423 = vpop.f32.mrf.mxu0
  %v424 = vadd.f32 0.0, %v423
  %v425 = vpop.f32.mrf.mxu0
  %v426 = vadd.f32 0.0, %v425
  %427 = vmatmul.bf16.gmra.mxu0 %v257
  %v428 = vpop.f32.mrf.mxu0
  %v429 = vadd.f32 0.0, %v428
  %v430 = vpop.f32.mrf.mxu0
  %v431 = vadd.f32 0.0, %v430
  %432 = vdwg.mxu0
  %433 = vmatpush.bf16.msra.mxu0 0
  %434 = vmatpush.bf16.msra.mxu0 0
  %435 = vmatpush.bf16.msra.mxu0 0
  %436 = vmatpush.bf16.msra.mxu0 0
  %437 = vmatpush.bf16.msra.mxu0 %v212
  %438 = vmatpush.bf16.msra.mxu0 %v204
  %439 = vmatpush.bf16.msra.mxu0 %v196
  %440 = vmatpush.bf16.msra.mxu0 %v188
  %441 = vmatmul.bf16.gmra.mxu0 %v248
  %v442 = vpop.f32.mrf.mxu0
  %v443 = vadd.f32 0.0, %v442
  %v444 = vpop.f32.mrf.mxu0
  %v445 = vadd.f32 0.0, %v444
  %446 = vmatmul.bf16.gmra.mxu0 %v251
  %v447 = vpop.f32.mrf.mxu0
  %v448 = vadd.f32 0.0, %v447
  %v449 = vpop.f32.mrf.mxu0
  %v450 = vadd.f32 0.0, %v449
  %451 = vmatmul.bf16.gmra.mxu0 %v254
  %v452 = vpop.f32.mrf.mxu0
  %v453 = vadd.f32 0.0, %v452
  %v454 = vpop.f32.mrf.mxu0
  %v455 = vadd.f32 0.0, %v454
  %456 = vmatmul.bf16.gmra.mxu0 %v257
  %v457 = vpop.f32.mrf.mxu0
  %v458 = vadd.f32 0.0, %v457
  %v459 = vpop.f32.mrf.mxu0
  %v460 = vadd.f32 0.0, %v459
  %461 = vdwg.mxu0
  %462 = vmatpush.bf16.msra.mxu0 0
  %463 = vmatpush.bf16.msra.mxu0 0
  %464 = vmatpush.bf16.msra.mxu0 0
  %465 = vmatpush.bf16.msra.mxu0 0
  %466 = vmatpush.bf16.msra.mxu0 %v213
  %467 = vmatpush.bf16.msra.mxu0 %v205
  %468 = vmatpush.bf16.msra.mxu0 %v197
  %469 = vmatpush.bf16.msra.mxu0 %v189
  %470 = vmatmul.bf16.gmra.mxu0 %v248
  %v471 = vpop.f32.mrf.mxu0
  %v472 = vadd.f32 0.0, %v471
  %v473 = vpop.f32.mrf.mxu0
  %v474 = vadd.f32 0.0, %v473
  %475 = vmatmul.bf16.gmra.mxu0 %v251
  %v476 = vpop.f32.mrf.mxu0
  %v477 = vadd.f32 0.0, %v476
  %v478 = vpop.f32.mrf.mxu0
  %v479 = vadd.f32 0.0, %v478
  %480 = vmatmul.bf16.gmra.mxu0 %v254
  %v481 = vpop.f32.mrf.mxu0
  %v482 = vadd.f32 0.0, %v481
  %v483 = vpop.f32.mrf.mxu0
  %v484 = vadd.f32 0.0, %v483
  %485 = vmatmul.bf16.gmra.mxu0 %v257
  %v486 = vpop.f32.mrf.mxu0
  %v487 = vadd.f32 0.0, %v486
  %v488 = vpop.f32.mrf.mxu0
  %v489 = vadd.f32 0.0, %v488
  %490 = vdwg.mxu0
  %491 = vst [vmem:[#allocation2] sm:$0xff] %v269
  %492 = vst [vmem:[#allocation2 + $0x8] sm:$0xff] %v298
  %493 = vst [vmem:[#allocation2 + $0x10] sm:$0xff] %v327
  %494 = vst [vmem:[#allocation2 + $0x18] sm:$0xff] %v356
  %495 = vst [vmem:[#allocation2 + $0x20] sm:$0xff] %v385
  %496 = vst [vmem:[#allocation2 + $0x28] sm:$0xff] %v414
  %497 = vst [vmem:[#allocation2 + $0x30] sm:$0xff] %v443
  %498 = vst [vmem:[#allocation2 + $0x38] sm:$0xff] %v472
  %499 = vst [vmem:[#allocation2 + $0x40] sm:$0xff] %v271
  %500 = vst [vmem:[#allocation2 + $0x48] sm:$0xff] %v300
  %501 = vst [vmem:[#allocation2 + $0x50] sm:$0xff] %v329
  %502 = vst [vmem:[#allocation2 + $0x58] sm:$0xff] %v358
  %503 = vst [vmem:[#allocation2 + $0x60] sm:$0xff] %v387
  %504 = vst [vmem:[#allocation2 + $0x68] sm:$0xff] %v416
  %505 = vst [vmem:[#allocation2 + $0x70] sm:$0xff] %v445
  %506 = vst [vmem:[#allocation2 + $0x78] sm:$0xff] %v474
  %507 = vst [vmem:[#allocation2 + $0x80] sm:$0xff] %v274
  %508 = vst [vmem:[#allocation2 + $0x88] sm:$0xff] %v303
  %509 = vst [vmem:[#allocation2 + $0x90] sm:$0xff] %v332
  %510 = vst [vmem:[#allocation2 + $0x98] sm:$0xff] %v361
  %511 = vst [vmem:[#allocation2 + $0xa0] sm:$0xff] %v390
  %512 = vst [vmem:[#allocation2 + $0xa8] sm:$0xff] %v419
  %513 = vst [vmem:[#allocation2 + $0xb0] sm:$0xff] %v448
  %514 = vst [vmem:[#allocation2 + $0xb8] sm:$0xff] %v477
  %515 = vst [vmem:[#allocation2 + $0xc0] sm:$0xff] %v276
  %516 = vst [vmem:[#allocation2 + $0xc8] sm:$0xff] %v305
  %517 = vst [vmem:[#allocation2 + $0xd0] sm:$0xff] %v334
  %518 = vst [vmem:[#allocation2 + $0xd8] sm:$0xff] %v363
  %519 = vst [vmem:[#allocation2 + $0xe0] sm:$0xff] %v392
  %520 = vst [vmem:[#allocation2 + $0xe8] sm:$0xff] %v421
  %521 = vst [vmem:[#allocation2 + $0xf0] sm:$0xff] %v450
  %522 = vst [vmem:[#allocation2 + $0xf8] sm:$0xff] %v479
  %523 = vst [vmem:[#allocation2 + $0x100] sm:$0xff] %v279
  %524 = vst [vmem:[#allocation2 + $0x108] sm:$0xff] %v308
  %525 = vst [vmem:[#allocation2 + $0x110] sm:$0xff] %v337
  %526 = vst [vmem:[#allocation2 + $0x118] sm:$0xff] %v366
  %527 = vst [vmem:[#allocation2 + $0x120] sm:$0xff] %v395
  %528 = vst [vmem:[#allocation2 + $0x128] sm:$0xff] %v424
  %529 = vst [vmem:[#allocation2 + $0x130] sm:$0xff] %v453
  %530 = vst [vmem:[#allocation2 + $0x138] sm:$0xff] %v482
  %531 = vst [vmem:[#allocation2 + $0x140] sm:$0xff] %v281
  %532 = vst [vmem:[#allocation2 + $0x148] sm:$0xff] %v310
  %533 = vst [vmem:[#allocation2 + $0x150] sm:$0xff] %v339
  %534 = vst [vmem:[#allocation2 + $0x158] sm:$0xff] %v368
  %535 = vst [vmem:[#allocation2 + $0x160] sm:$0xff] %v397
  %536 = vst [vmem:[#allocation2 + $0x168] sm:$0xff] %v426
  %537 = vst [vmem:[#allocation2 + $0x170] sm:$0xff] %v455
  %538 = vst [vmem:[#allocation2 + $0x178] sm:$0xff] %v484
  %539 = vst [vmem:[#allocation2 + $0x180] sm:$0xff] %v284
  %540 = vst [vmem:[#allocation2 + $0x188] sm:$0xff] %v313
  %541 = vst [vmem:[#allocation2 + $0x190] sm:$0xff] %v342
  %542 = vst [vmem:[#allocation2 + $0x198] sm:$0xff] %v371
  %543 = vst [vmem:[#allocation2 + $0x1a0] sm:$0xff] %v400
  %544 = vst [vmem:[#allocation2 + $0x1a8] sm:$0xff] %v429
  %545 = vst [vmem:[#allocation2 + $0x1b0] sm:$0xff] %v458
  %546 = vst [vmem:[#allocation2 + $0x1b8] sm:$0xff] %v487
  %547 = vst [vmem:[#allocation2 + $0x1c0] sm:$0xff] %v286
  %548 = vst [vmem:[#allocation2 + $0x1c8] sm:$0xff] %v315
  %549 = vst [vmem:[#allocation2 + $0x1d0] sm:$0xff] %v344
  %550 = vst [vmem:[#allocation2 + $0x1d8] sm:$0xff] %v373
  %551 = vst [vmem:[#allocation2 + $0x1e0] sm:$0xff] %v402
  %552 = vst [vmem:[#allocation2 + $0x1e8] sm:$0xff] %v431
  %553 = vst [vmem:[#allocation2 + $0x1f0] sm:$0xff] %v460
  %554 = vst [vmem:[#allocation2 + $0x1f8] sm:$0xff] %v489
  %v555 = vld [vmem:[%s2] sm:$0xff]
  %v556 = vld [vmem:[%s2 + $0x8] sm:$0xff]
  %v557 = vld [vmem:[%s2 + $0x10] sm:$0xff]
  %v558 = vld [vmem:[%s2 + $0x18] sm:$0xff]
  %v559 = vld [vmem:[%s2 + $0x20] sm:$0xff]
  %v560 = vld [vmem:[%s2 + $0x28] sm:$0xff]
  %v561 = vld [vmem:[%s2 + $0x30] sm:$0xff]
  %v562 = vld [vmem:[%s2 + $0x38] sm:$0xff]
  %v563 = vld [vmem:[%s2 + $0x40] sm:$0xff]
  %v564 = vld [vmem:[%s2 + $0x48] sm:$0xff]
  %v565 = vld [vmem:[%s2 + $0x50] sm:$0xff]
  %v566 = vld [vmem:[%s2 + $0x58] sm:$0xff]
  %v567 = vld [vmem:[%s2 + $0x60] sm:$0xff]
  %v568 = vld [vmem:[%s2 + $0x68] sm:$0xff]
  %v569 = vld [vmem:[%s2 + $0x70] sm:$0xff]
  %v570 = vld [vmem:[%s2 + $0x78] sm:$0xff]
  %v571 = vld [vmem:[%s2 + $0x80] sm:$0xff]
  %v572 = vld [vmem:[%s2 + $0x88] sm:$0xff]
  %v573 = vld [vmem:[%s2 + $0x90] sm:$0xff]
  %v574 = vld [vmem:[%s2 + $0x98] sm:$0xff]
  %v575 = vld [vmem:[%s2 + $0xa0] sm:$0xff]
  %v576 = vld [vmem:[%s2 + $0xa8] sm:$0xff]
  %v577 = vld [vmem:[%s2 + $0xb0] sm:$0xff]
  %v578 = vld [vmem:[%s2 + $0xb8] sm:$0xff]
  %v579 = vld [vmem:[%s2 + $0xc0] sm:$0xff]
  %v580 = vld [vmem:[%s2 + $0xc8] sm:$0xff]
  %v581 = vld [vmem:[%s2 + $0xd0] sm:$0xff]
  %v582 = vld [vmem:[%s2 + $0xd8] sm:$0xff]
  %v583 = vld [vmem:[%s2 + $0xe0] sm:$0xff]
  %v584 = vld [vmem:[%s2 + $0xe8] sm:$0xff]
  %v585 = vld [vmem:[%s2 + $0xf0] sm:$0xff]
  %v586 = vld [vmem:[%s2 + $0xf8] sm:$0xff]
  %v587 = vld [vmem:[%s2 + $0x100] sm:$0xff]
  %v588 = vld [vmem:[%s2 + $0x108] sm:$0xff]
  %v589 = vld [vmem:[%s2 + $0x110] sm:$0xff]
  %v590 = vld [vmem:[%s2 + $0x118] sm:$0xff]
  %v591 = vld [vmem:[%s2 + $0x120] sm:$0xff]
  %v592 = vld [vmem:[%s2 + $0x128] sm:$0xff]
  %v593 = vld [vmem:[%s2 + $0x130] sm:$0xff]
  %v594 = vld [vmem:[%s2 + $0x138] sm:$0xff]
  %v595 = vld [vmem:[%s2 + $0x140] sm:$0xff]
  %v596 = vld [vmem:[%s2 + $0x148] sm:$0xff]
  %v597 = vld [vmem:[%s2 + $0x150] sm:$0xff]
  %v598 = vld [vmem:[%s2 + $0x158] sm:$0xff]
  %v599 = vld [vmem:[%s2 + $0x160] sm:$0xff]
  %v600 = vld [vmem:[%s2 + $0x168] sm:$0xff]
  %v601 = vld [vmem:[%s2 + $0x170] sm:$0xff]
  %v602 = vld [vmem:[%s2 + $0x178] sm:$0xff]
  %v603 = vld [vmem:[%s2 + $0x180] sm:$0xff]
  %v604 = vld [vmem:[%s2 + $0x188] sm:$0xff]
  %v605 = vld [vmem:[%s2 + $0x190] sm:$0xff]
  %v606 = vld [vmem:[%s2 + $0x198] sm:$0xff]
  %v607 = vld [vmem:[%s2 + $0x1a0] sm:$0xff]
  %v608 = vld [vmem:[%s2 + $0x1a8] sm:$0xff]
  %v609 = vld [vmem:[%s2 + $0x1b0] sm:$0xff]
  %v610 = vld [vmem:[%s2 + $0x1b8] sm:$0xff]
  %v611 = vld [vmem:[%s2 + $0x1c0] sm:$0xff]
  %v612 = vld [vmem:[%s2 + $0x1c8] sm:$0xff]
  %v613 = vld [vmem:[%s2 + $0x1d0] sm:$0xff]
  %v614 = vld [vmem:[%s2 + $0x1d8] sm:$0xff]
  %v615 = vld [vmem:[%s2 + $0x1e0] sm:$0xff]
  %v616 = vld [vmem:[%s2 + $0x1e8] sm:$0xff]
  %v617 = vld [vmem:[%s2 + $0x1f0] sm:$0xff]
  %v618 = vld [vmem:[%s2 + $0x1f8] sm:$0xff]
  %v619 = vld [vmem:[%s2 + $0x200] sm:$0xff]
  %v620 = vld [vmem:[%s2 + $0x208] sm:$0xff]
  %v621 = vld [vmem:[%s2 + $0x210] sm:$0xff]
  %v622 = vld [vmem:[%s2 + $0x218] sm:$0xff]
  %v623 = vld [vmem:[%s2 + $0x220] sm:$0xff]
  %v624 = vld [vmem:[%s2 + $0x228] sm:$0xff]
  %v625 = vld [vmem:[%s2 + $0x230] sm:$0xff]
  %v626 = vld [vmem:[%s2 + $0x238] sm:$0xff]
  %v627 = vld [vmem:[%s2 + $0x240] sm:$0xff]
  %v628 = vld [vmem:[%s2 + $0x248] sm:$0xff]
  %v629 = vld [vmem:[%s2 + $0x250] sm:$0xff]
  %v630 = vld [vmem:[%s2 + $0x258] sm:$0xff]
  %v631 = vld [vmem:[%s2 + $0x260] sm:$0xff]
  %v632 = vld [vmem:[%s2 + $0x268] sm:$0xff]
  %v633 = vld [vmem:[%s2 + $0x270] sm:$0xff]
  %v634 = vld [vmem:[%s2 + $0x278] sm:$0xff]
  %v635 = vld [vmem:[%s2 + $0x280] sm:$0xff]
  %v636 = vld [vmem:[%s2 + $0x288] sm:$0xff]
  %v637 = vld [vmem:[%s2 + $0x290] sm:$0xff]
  %v638 = vld [vmem:[%s2 + $0x298] sm:$0xff]
  %v639 = vld [vmem:[%s2 + $0x2a0] sm:$0xff]
  %v640 = vld [vmem:[%s2 + $0x2a8] sm:$0xff]
  %v641 = vld [vmem:[%s2 + $0x2b0] sm:$0xff]
  %v642 = vld [vmem:[%s2 + $0x2b8] sm:$0xff]
  %v643 = vld [vmem:[%s2 + $0x2c0] sm:$0xff]
  %v644 = vld [vmem:[%s2 + $0x2c8] sm:$0xff]
  %v645 = vld [vmem:[%s2 + $0x2d0] sm:$0xff]
  %v646 = vld [vmem:[%s2 + $0x2d8] sm:$0xff]
  %v647 = vld [vmem:[%s2 + $0x2e0] sm:$0xff]
  %v648 = vld [vmem:[%s2 + $0x2e8] sm:$0xff]
  %v649 = vld [vmem:[%s2 + $0x2f0] sm:$0xff]
  %v650 = vld [vmem:[%s2 + $0x2f8] sm:$0xff]
  %v651 = vld [vmem:[%s2 + $0x300] sm:$0xff]
  %v652 = vld [vmem:[%s2 + $0x308] sm:$0xff]
  %v653 = vld [vmem:[%s2 + $0x310] sm:$0xff]
  %v654 = vld [vmem:[%s2 + $0x318] sm:$0xff]
  %v655 = vld [vmem:[%s2 + $0x320] sm:$0xff]
  %v656 = vld [vmem:[%s2 + $0x328] sm:$0xff]
  %v657 = vld [vmem:[%s2 + $0x330] sm:$0xff]
  %v658 = vld [vmem:[%s2 + $0x338] sm:$0xff]
  %v659 = vld [vmem:[%s2 + $0x340] sm:$0xff]
  %v660 = vld [vmem:[%s2 + $0x348] sm:$0xff]
  %v661 = vld [vmem:[%s2 + $0x350] sm:$0xff]
  %v662 = vld [vmem:[%s2 + $0x358] sm:$0xff]
  %v663 = vld [vmem:[%s2 + $0x360] sm:$0xff]
  %v664 = vld [vmem:[%s2 + $0x368] sm:$0xff]
  %v665 = vld [vmem:[%s2 + $0x370] sm:$0xff]
  %v666 = vld [vmem:[%s2 + $0x378] sm:$0xff]
  %v667 = vld [vmem:[%s2 + $0x380] sm:$0xff]
  %v668 = vld [vmem:[%s2 + $0x388] sm:$0xff]
  %v669 = vld [vmem:[%s2 + $0x390] sm:$0xff]
  %v670 = vld [vmem:[%s2 + $0x398] sm:$0xff]
  %v671 = vld [vmem:[%s2 + $0x3a0] sm:$0xff]
  %v672 = vld [vmem:[%s2 + $0x3a8] sm:$0xff]
  %v673 = vld [vmem:[%s2 + $0x3b0] sm:$0xff]
  %v674 = vld [vmem:[%s2 + $0x3b8] sm:$0xff]
  %v675 = vld [vmem:[%s2 + $0x3c0] sm:$0xff]
  %v676 = vld [vmem:[%s2 + $0x3c8] sm:$0xff]
  %v677 = vld [vmem:[%s2 + $0x3d0] sm:$0xff]
  %v678 = vld [vmem:[%s2 + $0x3d8] sm:$0xff]
  %v679 = vld [vmem:[%s2 + $0x3e0] sm:$0xff]
  %v680 = vld [vmem:[%s2 + $0x3e8] sm:$0xff]
  %v681 = vld [vmem:[%s2 + $0x3f0] sm:$0xff]
  %v682 = vld [vmem:[%s2 + $0x3f8] sm:$0xff]
  %v683 = vld [vmem:[%s2 + $0x400] sm:$0xff]
  %v684 = vld [vmem:[%s2 + $0x408] sm:$0xff]
  %v685 = vld [vmem:[%s2 + $0x410] sm:$0xff]
  %v686 = vld [vmem:[%s2 + $0x418] sm:$0xff]
  %v687 = vld [vmem:[%s2 + $0x420] sm:$0xff]
  %v688 = vld [vmem:[%s2 + $0x428] sm:$0xff]
  %v689 = vld [vmem:[%s2 + $0x430] sm:$0xff]
  %v690 = vld [vmem:[%s2 + $0x438] sm:$0xff]
  %v691 = vld [vmem:[%s2 + $0x440] sm:$0xff]
  %v692 = vld [vmem:[%s2 + $0x448] sm:$0xff]
  %v693 = vld [vmem:[%s2 + $0x450] sm:$0xff]
  %v694 = vld [vmem:[%s2 + $0x458] sm:$0xff]
  %v695 = vld [vmem:[%s2 + $0x460] sm:$0xff]
  %v696 = vld [vmem:[%s2 + $0x468] sm:$0xff]
  %v697 = vld [vmem:[%s2 + $0x470] sm:$0xff]
  %v698 = vld [vmem:[%s2 + $0x478] sm:$0xff]
  %v699 = vld [vmem:[%s2 + $0x480] sm:$0xff]
  %v700 = vld [vmem:[%s2 + $0x488] sm:$0xff]
  %v701 = vld [vmem:[%s2 + $0x490] sm:$0xff]
  %v702 = vld [vmem:[%s2 + $0x498] sm:$0xff]
  %v703 = vld [vmem:[%s2 + $0x4a0] sm:$0xff]
  %v704 = vld [vmem:[%s2 + $0x4a8] sm:$0xff]
  %v705 = vld [vmem:[%s2 + $0x4b0] sm:$0xff]
  %v706 = vld [vmem:[%s2 + $0x4b8] sm:$0xff]
  %v707 = vld [vmem:[%s2 + $0x4c0] sm:$0xff]
  %v708 = vld [vmem:[%s2 + $0x4c8] sm:$0xff]
  %v709 = vld [vmem:[%s2 + $0x4d0] sm:$0xff]
  %v710 = vld [vmem:[%s2 + $0x4d8] sm:$0xff]
  %v711 = vld [vmem:[%s2 + $0x4e0] sm:$0xff]
  %v712 = vld [vmem:[%s2 + $0x4e8] sm:$0xff]
  %v713 = vld [vmem:[%s2 + $0x4f0] sm:$0xff]
  %v714 = vld [vmem:[%s2 + $0x4f8] sm:$0xff]
  %v715 = vld [vmem:[%s2 + $0x500] sm:$0xff]
  %v716 = vld [vmem:[%s2 + $0x508] sm:$0xff]
  %v717 = vld [vmem:[%s2 + $0x510] sm:$0xff]
  %v718 = vld [vmem:[%s2 + $0x518] sm:$0xff]
  %v719 = vld [vmem:[%s2 + $0x520] sm:$0xff]
  %v720 = vld [vmem:[%s2 + $0x528] sm:$0xff]
  %v721 = vld [vmem:[%s2 + $0x530] sm:$0xff]
  %v722 = vld [vmem:[%s2 + $0x538] sm:$0xff]
  %v723 = vld [vmem:[%s2 + $0x540] sm:$0xff]
  %v724 = vld [vmem:[%s2 + $0x548] sm:$0xff]
  %v725 = vld [vmem:[%s2 + $0x550] sm:$0xff]
  %v726 = vld [vmem:[%s2 + $0x558] sm:$0xff]
  %v727 = vld [vmem:[%s2 + $0x560] sm:$0xff]
  %v728 = vld [vmem:[%s2 + $0x568] sm:$0xff]
  %v729 = vld [vmem:[%s2 + $0x570] sm:$0xff]
  %v730 = vld [vmem:[%s2 + $0x578] sm:$0xff]
  %v731 = vld [vmem:[%s2 + $0x580] sm:$0xff]
  %v732 = vld [vmem:[%s2 + $0x588] sm:$0xff]
  %v733 = vld [vmem:[%s2 + $0x590] sm:$0xff]
  %v734 = vld [vmem:[%s2 + $0x598] sm:$0xff]
  %v735 = vld [vmem:[%s2 + $0x5a0] sm:$0xff]
  %v736 = vld [vmem:[%s2 + $0x5a8] sm:$0xff]
  %v737 = vld [vmem:[%s2 + $0x5b0] sm:$0xff]
  %v738 = vld [vmem:[%s2 + $0x5b8] sm:$0xff]
  %v739 = vld [vmem:[%s2 + $0x5c0] sm:$0xff]
  %v740 = vld [vmem:[%s2 + $0x5c8] sm:$0xff]
  %v741 = vld [vmem:[%s2 + $0x5d0] sm:$0xff]
  %v742 = vld [vmem:[%s2 + $0x5d8] sm:$0xff]
  %v743 = vld [vmem:[%s2 + $0x5e0] sm:$0xff]
  %v744 = vld [vmem:[%s2 + $0x5e8] sm:$0xff]
  %v745 = vld [vmem:[%s2 + $0x5f0] sm:$0xff]
  %v746 = vld [vmem:[%s2 + $0x5f8] sm:$0xff]
  %v747 = vld [vmem:[%s2 + $0x600] sm:$0xff]
  %v748 = vld [vmem:[%s2 + $0x608] sm:$0xff]
  %v749 = vld [vmem:[%s2 + $0x610] sm:$0xff]
  %v750 = vld [vmem:[%s2 + $0x618] sm:$0xff]
  %v751 = vld [vmem:[%s2 + $0x620] sm:$0xff]
  %v752 = vld [vmem:[%s2 + $0x628] sm:$0xff]
  %v753 = vld [vmem:[%s2 + $0x630] sm:$0xff]
  %v754 = vld [vmem:[%s2 + $0x638] sm:$0xff]
  %v755 = vld [vmem:[%s2 + $0x640] sm:$0xff]
  %v756 = vld [vmem:[%s2 + $0x648] sm:$0xff]
  %v757 = vld [vmem:[%s2 + $0x650] sm:$0xff]
  %v758 = vld [vmem:[%s2 + $0x658] sm:$0xff]
  %v759 = vld [vmem:[%s2 + $0x660] sm:$0xff]
  %v760 = vld [vmem:[%s2 + $0x668] sm:$0xff]
  %v761 = vld [vmem:[%s2 + $0x670] sm:$0xff]
  %v762 = vld [vmem:[%s2 + $0x678] sm:$0xff]
  %v763 = vld [vmem:[%s2 + $0x680] sm:$0xff]
  %v764 = vld [vmem:[%s2 + $0x688] sm:$0xff]
  %v765 = vld [vmem:[%s2 + $0x690] sm:$0xff]
  %v766 = vld [vmem:[%s2 + $0x698] sm:$0xff]
  %v767 = vld [vmem:[%s2 + $0x6a0] sm:$0xff]
  %v768 = vld [vmem:[%s2 + $0x6a8] sm:$0xff]
  %v769 = vld [vmem:[%s2 + $0x6b0] sm:$0xff]
  %v770 = vld [vmem:[%s2 + $0x6b8] sm:$0xff]
  %v771 = vld [vmem:[%s2 + $0x6c0] sm:$0xff]
  %v772 = vld [vmem:[%s2 + $0x6c8] sm:$0xff]
  %v773 = vld [vmem:[%s2 + $0x6d0] sm:$0xff]
  %v774 = vld [vmem:[%s2 + $0x6d8] sm:$0xff]
  %v775 = vld [vmem:[%s2 + $0x6e0] sm:$0xff]
  %v776 = vld [vmem:[%s2 + $0x6e8] sm:$0xff]
  %v777 = vld [vmem:[%s2 + $0x6f0] sm:$0xff]
  %v778 = vld [vmem:[%s2 + $0x6f8] sm:$0xff]
  %v779 = vld [vmem:[%s2 + $0x700] sm:$0xff]
  %v780 = vld [vmem:[%s2 + $0x708] sm:$0xff]
  %v781 = vld [vmem:[%s2 + $0x710] sm:$0xff]
  %v782 = vld [vmem:[%s2 + $0x718] sm:$0xff]
  %v783 = vld [vmem:[%s2 + $0x720] sm:$0xff]
  %v784 = vld [vmem:[%s2 + $0x728] sm:$0xff]
  %v785 = vld [vmem:[%s2 + $0x730] sm:$0xff]
  %v786 = vld [vmem:[%s2 + $0x738] sm:$0xff]
  %v787 = vld [vmem:[%s2 + $0x740] sm:$0xff]
  %v788 = vld [vmem:[%s2 + $0x748] sm:$0xff]
  %v789 = vld [vmem:[%s2 + $0x750] sm:$0xff]
  %v790 = vld [vmem:[%s2 + $0x758] sm:$0xff]
  %v791 = vld [vmem:[%s2 + $0x760] sm:$0xff]
  %v792 = vld [vmem:[%s2 + $0x768] sm:$0xff]
  %v793 = vld [vmem:[%s2 + $0x770] sm:$0xff]
  %v794 = vld [vmem:[%s2 + $0x778] sm:$0xff]
  %v795 = vld [vmem:[%s2 + $0x780] sm:$0xff]
  %v796 = vld [vmem:[%s2 + $0x788] sm:$0xff]
  %v797 = vld [vmem:[%s2 + $0x790] sm:$0xff]
  %v798 = vld [vmem:[%s2 + $0x798] sm:$0xff]
  %v799 = vld [vmem:[%s2 + $0x7a0] sm:$0xff]
  %v800 = vld [vmem:[%s2 + $0x7a8] sm:$0xff]
  %v801 = vld [vmem:[%s2 + $0x7b0] sm:$0xff]
  %v802 = vld [vmem:[%s2 + $0x7b8] sm:$0xff]
  %v803 = vld [vmem:[%s2 + $0x7c0] sm:$0xff]
  %v804 = vld [vmem:[%s2 + $0x7c8] sm:$0xff]
  %v805 = vld [vmem:[%s2 + $0x7d0] sm:$0xff]
  %v806 = vld [vmem:[%s2 + $0x7d8] sm:$0xff]
  %v807 = vld [vmem:[%s2 + $0x7e0] sm:$0xff]
  %v808 = vld [vmem:[%s2 + $0x7e8] sm:$0xff]
  %v809 = vld [vmem:[%s2 + $0x7f0] sm:$0xff]
  %v810 = vld [vmem:[%s2 + $0x7f8] sm:$0xff]
  %v811 = vld [vmem:[%s3] sm:$0xff]
  %v812 = vld [vmem:[%s3 + $0x8] sm:$0xff]
  %v813 = vld [vmem:[%s3 + $0x10] sm:$0xff]
  %v814 = vld [vmem:[%s3 + $0x18] sm:$0xff]
  %v815 = vld [vmem:[%s3 + $0x20] sm:$0xff]
  %v816 = vld [vmem:[%s3 + $0x28] sm:$0xff]
  %v817 = vld [vmem:[%s3 + $0x30] sm:$0xff]
  %v818 = vld [vmem:[%s3 + $0x38] sm:$0xff]
  %v819 = vlaneseq
  %v820 = vshrl.u32 %v819, 7
  %v821 = vlaneseq
  %v822 = vand.u32 %v821, 127
  %v823 = vadd.s32 %v822, 128
  %v824 = vadd.s32 %v822, 256
  %v825 = vadd.s32 %v822, 384
  %vm826 = vcmp.lt.s32.totalorder %v820, 4
  %vm827 = vcmp.lt.s32.totalorder %v822, 256
  %vm828 = vcmp.lt.s32.totalorder %v823, 256
  %vm829 = vcmp.lt.s32.totalorder %v824, 256
  %vm830 = vcmp.lt.s32.totalorder %v825, 256
  %vm831 = vmxor %vm826, %vm827
  %vm832 = vmxor %vm826, %vm828
  %vm833 = vmxor %vm826, %vm829
  %vm834 = vmxor %vm826, %vm830
  %vm835 = vmxor %vm831, 1
  %vm836 = vmxor %vm832, 1
  %vm837 = vmxor %vm833, 1
  %vm838 = vmxor %vm834, 1
  %v839 = vld [vmem:[#allocation3] sm:$0xff]
  %v840 = vld [vmem:[#allocation3 + $0x8] sm:$0xff]
  %v841 = vld [vmem:[#allocation4] sm:$0xff]
  %v842 = vld [vmem:[#allocation4 + $0x8] sm:$0xff]
  %v843 = vsel %vm835, %v839, 0.0
  %v844 = vsel %vm836, %v840, 0.0
  %v845 = vsel %vm837, %v839, 0.0
  %v846 = vsel %vm838, %v840, 0.0
  %v847 = vpack.c.bf16 %v843, %v843
  %v848 = vpack.c.bf16 %v844, %v844
  %v849 = vpack.c.bf16 %v845, %v845
  %v850 = vpack.c.bf16 %v846, %v846
  %v1107 = vunpack.c.l.b16 %v555
  %v1108 = vunpack.c.h.b16 %v555
  %v1109 = vunpack.c.l.b16 %v556
  %v1110 = vunpack.c.h.b16 %v556
  %v1111 = vunpack.c.l.b16 %v557
  %v1112 = vunpack.c.h.b16 %v557
  %v1113 = vunpack.c.l.b16 %v558
  %v1114 = vunpack.c.h.b16 %v558
  %v1115 = vunpack.c.l.b16 %v559
  %v1116 = vunpack.c.h.b16 %v559
  %v1117 = vunpack.c.l.b16 %v560
  %v1118 = vunpack.c.h.b16 %v560
  %v1119 = vunpack.c.l.b16 %v561
  %v1120 = vunpack.c.h.b16 %v561
  %v1121 = vunpack.c.l.b16 %v562
  %v1122 = vunpack.c.h.b16 %v562
  %v1123 = vunpack.c.l.b16 %v563
  %v1124 = vunpack.c.h.b16 %v563
  %v1125 = vunpack.c.l.b16 %v564
  %v1126 = vunpack.c.h.b16 %v564
  %v1127 = vunpack.c.l.b16 %v565
  %v1128 = vunpack.c.h.b16 %v565
  %v1129 = vunpack.c.l.b16 %v566
  %v1130 = vunpack.c.h.b16 %v566
  %v1131 = vunpack.c.l.b16 %v567
  %v1132 = vunpack.c.h.b16 %v567
  %v1133 = vunpack.c.l.b16 %v568
  %v1134 = vunpack.c.h.b16 %v568
  %v1135 = vunpack.c.l.b16 %v569
  %v1136 = vunpack.c.h.b16 %v569
  %v1137 = vunpack.c.l.b16 %v570
  %v1138 = vunpack.c.h.b16 %v570
  %v1139 = vunpack.c.l.b16 %v571
  %v1140 = vunpack.c.h.b16 %v571
  %v1141 = vunpack.c.l.b16 %v572
  %v1142 = vunpack.c.h.b16 %v572
  %v1143 = vunpack.c.l.b16 %v573
  %v1144 = vunpack.c.h.b16 %v573
  %v1145 = vunpack.c.l.b16 %v574
  %v1146 = vunpack.c.h.b16 %v574
  %v1147 = vunpack.c.l.b16 %v575
  %v1148 = vunpack.c.h.b16 %v575
  %v1149 = vunpack.c.l.b16 %v576
  %v1150 = vunpack.c.h.b16 %v576
  %v1151 = vunpack.c.l.b16 %v577
  %v1152 = vunpack.c.h.b16 %v577
  %v1153 = vunpack.c.l.b16 %v578
  %v1154 = vunpack.c.h.b16 %v578
  %v1155 = vunpack.c.l.b16 %v579
  %v1156 = vunpack.c.h.b16 %v579
  %v1157 = vunpack.c.l.b16 %v580
  %v1158 = vunpack.c.h.b16 %v580
  %v1159 = vunpack.c.l.b16 %v581
  %v1160 = vunpack.c.h.b16 %v581
  %v1161 = vunpack.c.l.b16 %v582
  %v1162 = vunpack.c.h.b16 %v582
  %v1163 = vunpack.c.l.b16 %v583
  %v1164 = vunpack.c.h.b16 %v583
  %v1165 = vunpack.c.l.b16 %v584
  %v1166 = vunpack.c.h.b16 %v584
  %v1167 = vunpack.c.l.b16 %v585
  %v1168 = vunpack.c.h.b16 %v585
  %v1169 = vunpack.c.l.b16 %v586
  %v1170 = vunpack.c.h.b16 %v586
  %v1171 = vunpack.c.l.b16 %v587
  %v1172 = vunpack.c.h.b16 %v587
  %v1173 = vunpack.c.l.b16 %v588
  %v1174 = vunpack.c.h.b16 %v588
  %v1175 = vunpack.c.l.b16 %v589
  %v1176 = vunpack.c.h.b16 %v589
  %v1177 = vunpack.c.l.b16 %v590
  %v1178 = vunpack.c.h.b16 %v590
  %v1179 = vunpack.c.l.b16 %v591
  %v1180 = vunpack.c.h.b16 %v591
  %v1181 = vunpack.c.l.b16 %v592
  %v1182 = vunpack.c.h.b16 %v592
  %v1183 = vunpack.c.l.b16 %v593
  %v1184 = vunpack.c.h.b16 %v593
  %v1185 = vunpack.c.l.b16 %v594
  %v1186 = vunpack.c.h.b16 %v594
  %v1187 = vunpack.c.l.b16 %v595
  %v1188 = vunpack.c.h.b16 %v595
  %v1189 = vunpack.c.l.b16 %v596
  %v1190 = vunpack.c.h.b16 %v596
  %v1191 = vunpack.c.l.b16 %v597
  %v1192 = vunpack.c.h.b16 %v597
  %v1193 = vunpack.c.l.b16 %v598
  %v1194 = vunpack.c.h.b16 %v598
  %v1195 = vunpack.c.l.b16 %v599
  %v1196 = vunpack.c.h.b16 %v599
  %v1197 = vunpack.c.l.b16 %v600
  %v1198 = vunpack.c.h.b16 %v600
  %v1199 = vunpack.c.l.b16 %v601
  %v1200 = vunpack.c.h.b16 %v601
  %v1201 = vunpack.c.l.b16 %v602
  %v1202 = vunpack.c.h.b16 %v602
  %v1203 = vunpack.c.l.b16 %v603
  %v1204 = vunpack.c.h.b16 %v603
  %v1205 = vunpack.c.l.b16 %v604
  %v1206 = vunpack.c.h.b16 %v604
  %v1207 = vunpack.c.l.b16 %v605
  %v1208 = vunpack.c.h.b16 %v605
  %v1209 = vunpack.c.l.b16 %v606
  %v1210 = vunpack.c.h.b16 %v606
  %v1211 = vunpack.c.l.b16 %v607
  %v1212 = vunpack.c.h.b16 %v607
  %v1213 = vunpack.c.l.b16 %v608
  %v1214 = vunpack.c.h.b16 %v608
  %v1215 = vunpack.c.l.b16 %v609
  %v1216 = vunpack.c.h.b16 %v609
  %v1217 = vunpack.c.l.b16 %v610
  %v1218 = vunpack.c.h.b16 %v610
  %v1219 = vunpack.c.l.b16 %v611
  %v1220 = vunpack.c.h.b16 %v611
  %v1221 = vunpack.c.l.b16 %v612
  %v1222 = vunpack.c.h.b16 %v612
  %v1223 = vunpack.c.l.b16 %v613
  %v1224 = vunpack.c.h.b16 %v613
  %v1225 = vunpack.c.l.b16 %v614
  %v1226 = vunpack.c.h.b16 %v614
  %v1227 = vunpack.c.l.b16 %v615
  %v1228 = vunpack.c.h.b16 %v615
  %v1229 = vunpack.c.l.b16 %v616
  %v1230 = vunpack.c.h.b16 %v616
  %v1231 = vunpack.c.l.b16 %v617
  %v1232 = vunpack.c.h.b16 %v617
  %v1233 = vunpack.c.l.b16 %v618
  %v1234 = vunpack.c.h.b16 %v618
  %v1235 = vunpack.c.l.b16 %v619
  %v1236 = vunpack.c.h.b16 %v619
  %v1237 = vunpack.c.l.b16 %v620
  %v1238 = vunpack.c.h.b16 %v620
  %v1239 = vunpack.c.l.b16 %v621
  %v1240 = vunpack.c.h.b16 %v621
  %v1241 = vunpack.c.l.b16 %v622
  %v1242 = vunpack.c.h.b16 %v622
  %v1243 = vunpack.c.l.b16 %v623
  %v1244 = vunpack.c.h.b16 %v623
  %v1245 = vunpack.c.l.b16 %v624
  %v1246 = vunpack.c.h.b16 %v624
  %v1247 = vunpack.c.l.b16 %v625
  %v1248 = vunpack.c.h.b16 %v625
  %v1249 = vunpack.c.l.b16 %v626
  %v1250 = vunpack.c.h.b16 %v626
  %v1251 = vunpack.c.l.b16 %v627
  %v1252 = vunpack.c.h.b16 %v627
  %v1253 = vunpack.c.l.b16 %v628
  %v1254 = vunpack.c.h.b16 %v628
  %v1255 = vunpack.c.l.b16 %v629
  %v1256 = vunpack.c.h.b16 %v629
  %v1257 = vunpack.c.l.b16 %v630
  %v1258 = vunpack.c.h.b16 %v630
  %v1259 = vunpack.c.l.b16 %v631
  %v1260 = vunpack.c.h.b16 %v631
  %v1261 = vunpack.c.l.b16 %v632
  %v1262 = vunpack.c.h.b16 %v632
  %v1263 = vunpack.c.l.b16 %v633
  %v1264 = vunpack.c.h.b16 %v633
  %v1265 = vunpack.c.l.b16 %v634
  %v1266 = vunpack.c.h.b16 %v634
  %v1267 = vunpack.c.l.b16 %v635
  %v1268 = vunpack.c.h.b16 %v635
  %v1269 = vunpack.c.l.b16 %v636
  %v1270 = vunpack.c.h.b16 %v636
  %v1271 = vunpack.c.l.b16 %v637
  %v1272 = vunpack.c.h.b16 %v637
  %v1273 = vunpack.c.l.b16 %v638
  %v1274 = vunpack.c.h.b16 %v638
  %v1275 = vunpack.c.l.b16 %v639
  %v1276 = vunpack.c.h.b16 %v639
  %v1277 = vunpack.c.l.b16 %v640
  %v1278 = vunpack.c.h.b16 %v640
  %v1279 = vunpack.c.l.b16 %v641
  %v1280 = vunpack.c.h.b16 %v641
  %v1281 = vunpack.c.l.b16 %v642
  %v1282 = vunpack.c.h.b16 %v642
  %v1283 = vunpack.c.l.b16 %v643
  %v1284 = vunpack.c.h.b16 %v643
  %v1285 = vunpack.c.l.b16 %v644
  %v1286 = vunpack.c.h.b16 %v644
  %v1287 = vunpack.c.l.b16 %v645
  %v1288 = vunpack.c.h.b16 %v645
  %v1289 = vunpack.c.l.b16 %v646
  %v1290 = vunpack.c.h.b16 %v646
  %v1291 = vunpack.c.l.b16 %v647
  %v1292 = vunpack.c.h.b16 %v647
  %v1293 = vunpack.c.l.b16 %v648
  %v1294 = vunpack.c.h.b16 %v648
  %v1295 = vunpack.c.l.b16 %v649
  %v1296 = vunpack.c.h.b16 %v649
  %v1297 = vunpack.c.l.b16 %v650
  %v1298 = vunpack.c.h.b16 %v650
  %v1299 = vunpack.c.l.b16 %v651
  %v1300 = vunpack.c.h.b16 %v651
  %v1301 = vunpack.c.l.b16 %v652
  %v1302 = vunpack.c.h.b16 %v652
  %v1303 = vunpack.c.l.b16 %v653
  %v1304 = vunpack.c.h.b16 %v653
  %v1305 = vunpack.c.l.b16 %v654
  %v1306 = vunpack.c.h.b16 %v654
  %v1307 = vunpack.c.l.b16 %v655
  %v1308 = vunpack.c.h.b16 %v655
  %v1309 = vunpack.c.l.b16 %v656
  %v1310 = vunpack.c.h.b16 %v656
  %v1311 = vunpack.c.l.b16 %v657
  %v1312 = vunpack.c.h.b16 %v657
  %v1313 = vunpack.c.l.b16 %v658
  %v1314 = vunpack.c.h.b16 %v658
  %v1315 = vunpack.c.l.b16 %v659
  %v1316 = vunpack.c.h.b16 %v659
  %v1317 = vunpack.c.l.b16 %v660
  %v1318 = vunpack.c.h.b16 %v660
  %v1319 = vunpack.c.l.b16 %v661
  %v1320 = vunpack.c.h.b16 %v661
  %v1321 = vunpack.c.l.b16 %v662
  %v1322 = vunpack.c.h.b16 %v662
  %v1323 = vunpack.c.l.b16 %v663
  %v1324 = vunpack.c.h.b16 %v663
  %v1325 = vunpack.c.l.b16 %v664
  %v1326 = vunpack.c.h.b16 %v664
  %v1327 = vunpack.c.l.b16 %v665
  %v1328 = vunpack.c.h.b16 %v665
  %v1329 = vunpack.c.l.b16 %v666
  %v1330 = vunpack.c.h.b16 %v666
  %v1331 = vunpack.c.l.b16 %v667
  %v1332 = vunpack.c.h.b16 %v667
  %v1333 = vunpack.c.l.b16 %v668
  %v1334 = vunpack.c.h.b16 %v668
  %v1335 = vunpack.c.l.b16 %v669
  %v1336 = vunpack.c.h.b16 %v669
  %v1337 = vunpack.c.l.b16 %v670
  %v1338 = vunpack.c.h.b16 %v670
  %v1339 = vunpack.c.l.b16 %v671
  %v1340 = vunpack.c.h.b16 %v671
  %v1341 = vunpack.c.l.b16 %v672
  %v1342 = vunpack.c.h.b16 %v672
  %v1343 = vunpack.c.l.b16 %v673
  %v1344 = vunpack.c.h.b16 %v673
  %v1345 = vunpack.c.l.b16 %v674
  %v1346 = vunpack.c.h.b16 %v674
  %v1347 = vunpack.c.l.b16 %v675
  %v1348 = vunpack.c.h.b16 %v675
  %v1349 = vunpack.c.l.b16 %v676
  %v1350 = vunpack.c.h.b16 %v676
  %v1351 = vunpack.c.l.b16 %v677
  %v1352 = vunpack.c.h.b16 %v677
  %v1353 = vunpack.c.l.b16 %v678
  %v1354 = vunpack.c.h.b16 %v678
  %v1355 = vunpack.c.l.b16 %v679
  %v1356 = vunpack.c.h.b16 %v679
  %v1357 = vunpack.c.l.b16 %v680
  %v1358 = vunpack.c.h.b16 %v680
  %v1359 = vunpack.c.l.b16 %v681
  %v1360 = vunpack.c.h.b16 %v681
  %v1361 = vunpack.c.l.b16 %v682
  %v1362 = vunpack.c.h.b16 %v682
  %v1363 = vunpack.c.l.b16 %v683
  %v1364 = vunpack.c.h.b16 %v683
  %v1365 = vunpack.c.l.b16 %v684
  %v1366 = vunpack.c.h.b16 %v684
  %v1367 = vunpack.c.l.b16 %v685
  %v1368 = vunpack.c.h.b16 %v685
  %v1369 = vunpack.c.l.b16 %v686
  %v1370 = vunpack.c.h.b16 %v686
  %v1371 = vunpack.c.l.b16 %v687
  %v1372 = vunpack.c.h.b16 %v687
  %v1373 = vunpack.c.l.b16 %v688
  %v1374 = vunpack.c.h.b16 %v688
  %v1375 = vunpack.c.l.b16 %v689
  %v1376 = vunpack.c.h.b16 %v689
  %v1377 = vunpack.c.l.b16 %v690
  %v1378 = vunpack.c.h.b16 %v690
  %v1379 = vunpack.c.l.b16 %v691
  %v1380 = vunpack.c.h.b16 %v691
  %v1381 = vunpack.c.l.b16 %v692
  %v1382 = vunpack.c.h.b16 %v692
  %v1383 = vunpack.c.l.b16 %v693
  %v1384 = vunpack.c.h.b16 %v693
  %v1385 = vunpack.c.l.b16 %v694
  %v1386 = vunpack.c.h.b16 %v694
  %v1387 = vunpack.c.l.b16 %v695
  %v1388 = vunpack.c.h.b16 %v695
  %v1389 = vunpack.c.l.b16 %v696
  %v1390 = vunpack.c.h.b16 %v696
  %v1391 = vunpack.c.l.b16 %v697
  %v1392 = vunpack.c.h.b16 %v697
  %v1393 = vunpack.c.l.b16 %v698
  %v1394 = vunpack.c.h.b16 %v698
  %v1395 = vunpack.c.l.b16 %v699
  %v1396 = vunpack.c.h.b16 %v699
  %v1397 = vunpack.c.l.b16 %v700
  %v1398 = vunpack.c.h.b16 %v700
  %v1399 = vunpack.c.l.b16 %v701
  %v1400 = vunpack.c.h.b16 %v701
  %v1401 = vunpack.c.l.b16 %v702
  %v1402 = vunpack.c.h.b16 %v702
  %v1403 = vunpack.c.l.b16 %v703
  %v1404 = vunpack.c.h.b16 %v703
  %v1405 = vunpack.c.l.b16 %v704
  %v1406 = vunpack.c.h.b16 %v704
  %v1407 = vunpack.c.l.b16 %v705
  %v1408 = vunpack.c.h.b16 %v705
  %v1409 = vunpack.c.l.b16 %v706
  %v1410 = vunpack.c.h.b16 %v706
  %v1411 = vunpack.c.l.b16 %v707
  %v1412 = vunpack.c.h.b16 %v707
  %v1413 = vunpack.c.l.b16 %v708
  %v1414 = vunpack.c.h.b16 %v708
  %v1415 = vunpack.c.l.b16 %v709
  %v1416 = vunpack.c.h.b16 %v709
  %v1417 = vunpack.c.l.b16 %v710
  %v1418 = vunpack.c.h.b16 %v710
  %v1419 = vunpack.c.l.b16 %v711
  %v1420 = vunpack.c.h.b16 %v711
  %v1421 = vunpack.c.l.b16 %v712
  %v1422 = vunpack.c.h.b16 %v712
  %v1423 = vunpack.c.l.b16 %v713
  %v1424 = vunpack.c.h.b16 %v713
  %v1425 = vunpack.c.l.b16 %v714
  %v1426 = vunpack.c.h.b16 %v714
  %v1427 = vunpack.c.l.b16 %v715
  %v1428 = vunpack.c.h.b16 %v715
  %v1429 = vunpack.c.l.b16 %v716
  %v1430 = vunpack.c.h.b16 %v716
  %v1431 = vunpack.c.l.b16 %v717
  %v1432 = vunpack.c.h.b16 %v717
  %v1433 = vunpack.c.l.b16 %v718
  %v1434 = vunpack.c.h.b16 %v718
  %v1435 = vunpack.c.l.b16 %v719
  %v1436 = vunpack.c.h.b16 %v719
  %v1437 = vunpack.c.l.b16 %v720
  %v1438 = vunpack.c.h.b16 %v720
  %v1439 = vunpack.c.l.b16 %v721
  %v1440 = vunpack.c.h.b16 %v721
  %v1441 = vunpack.c.l.b16 %v722
  %v1442 = vunpack.c.h.b16 %v722
  %v1443 = vunpack.c.l.b16 %v723
  %v1444 = vunpack.c.h.b16 %v723
  %v1445 = vunpack.c.l.b16 %v724
  %v1446 = vunpack.c.h.b16 %v724
  %v1447 = vunpack.c.l.b16 %v725
  %v1448 = vunpack.c.h.b16 %v725
  %v1449 = vunpack.c.l.b16 %v726
  %v1450 = vunpack.c.h.b16 %v726
  %v1451 = vunpack.c.l.b16 %v727
  %v1452 = vunpack.c.h.b16 %v727
  %v1453 = vunpack.c.l.b16 %v728
  %v1454 = vunpack.c.h.b16 %v728
  %v1455 = vunpack.c.l.b16 %v729
  %v1456 = vunpack.c.h.b16 %v729
  %v1457 = vunpack.c.l.b16 %v730
  %v1458 = vunpack.c.h.b16 %v730
  %v1459 = vunpack.c.l.b16 %v731
  %v1460 = vunpack.c.h.b16 %v731
  %v1461 = vunpack.c.l.b16 %v732
  %v1462 = vunpack.c.h.b16 %v732
  %v1463 = vunpack.c.l.b16 %v733
  %v1464 = vunpack.c.h.b16 %v733
  %v1465 = vunpack.c.l.b16 %v734
  %v1466 = vunpack.c.h.b16 %v734
  %v1467 = vunpack.c.l.b16 %v735
  %v1468 = vunpack.c.h.b16 %v735
  %v1469 = vunpack.c.l.b16 %v736
  %v1470 = vunpack.c.h.b16 %v736
  %v1471 = vunpack.c.l.b16 %v737
  %v1472 = vunpack.c.h.b16 %v737
  %v1473 = vunpack.c.l.b16 %v738
  %v1474 = vunpack.c.h.b16 %v738
  %v1475 = vunpack.c.l.b16 %v739
  %v1476 = vunpack.c.h.b16 %v739
  %v1477 = vunpack.c.l.b16 %v740
  %v1478 = vunpack.c.h.b16 %v740
  %v1479 = vunpack.c.l.b16 %v741
  %v1480 = vunpack.c.h.b16 %v741
  %v1481 = vunpack.c.l.b16 %v742
  %v1482 = vunpack.c.h.b16 %v742
  %v1483 = vunpack.c.l.b16 %v743
  %v1484 = vunpack.c.h.b16 %v743
  %v1485 = vunpack.c.l.b16 %v744
  %v1486 = vunpack.c.h.b16 %v744
  %v1487 = vunpack.c.l.b16 %v745
  %v1488 = vunpack.c.h.b16 %v745
  %v1489 = vunpack.c.l.b16 %v746
  %v1490 = vunpack.c.h.b16 %v746
  %v1491 = vunpack.c.l.b16 %v747
  %v1492 = vunpack.c.h.b16 %v747
  %v1493 = vunpack.c.l.b16 %v748
  %v1494 = vunpack.c.h.b16 %v748
  %v1495 = vunpack.c.l.b16 %v749
  %v1496 = vunpack.c.h.b16 %v749
  %v1497 = vunpack.c.l.b16 %v750
  %v1498 = vunpack.c.h.b16 %v750
  %v1499 = vunpack.c.l.b16 %v751
  %v1500 = vunpack.c.h.b16 %v751
  %v1501 = vunpack.c.l.b16 %v752
  %v1502 = vunpack.c.h.b16 %v752
  %v1503 = vunpack.c.l.b16 %v753
  %v1504 = vunpack.c.h.b16 %v753
  %v1505 = vunpack.c.l.b16 %v754
  %v1506 = vunpack.c.h.b16 %v754
  %v1507 = vunpack.c.l.b16 %v755
  %v1508 = vunpack.c.h.b16 %v755
  %v1509 = vunpack.c.l.b16 %v756
  %v1510 = vunpack.c.h.b16 %v756
  %v1511 = vunpack.c.l.b16 %v757
  %v1512 = vunpack.c.h.b16 %v757
  %v1513 = vunpack.c.l.b16 %v758
  %v1514 = vunpack.c.h.b16 %v758
  %v1515 = vunpack.c.l.b16 %v759
  %v1516 = vunpack.c.h.b16 %v759
  %v1517 = vunpack.c.l.b16 %v760
  %v1518 = vunpack.c.h.b16 %v760
  %v1519 = vunpack.c.l.b16 %v761
  %v1520 = vunpack.c.h.b16 %v761
  %v1521 = vunpack.c.l.b16 %v762
  %v1522 = vunpack.c.h.b16 %v762
  %v1523 = vunpack.c.l.b16 %v763
  %v1524 = vunpack.c.h.b16 %v763
  %v1525 = vunpack.c.l.b16 %v764
  %v1526 = vunpack.c.h.b16 %v764
  %v1527 = vunpack.c.l.b16 %v765
  %v1528 = vunpack.c.h.b16 %v765
  %v1529 = vunpack.c.l.b16 %v766
  %v1530 = vunpack.c.h.b16 %v766
  %v1531 = vunpack.c.l.b16 %v767
  %v1532 = vunpack.c.h.b16 %v767
  %v1533 = vunpack.c.l.b16 %v768
  %v1534 = vunpack.c.h.b16 %v768
  %v1535 = vunpack.c.l.b16 %v769
  %v1536 = vunpack.c.h.b16 %v769
  %v1537 = vunpack.c.l.b16 %v770
  %v1538 = vunpack.c.h.b16 %v770
  %v1539 = vunpack.c.l.b16 %v771
  %v1540 = vunpack.c.h.b16 %v771
  %v1541 = vunpack.c.l.b16 %v772
  %v1542 = vunpack.c.h.b16 %v772
  %v1543 = vunpack.c.l.b16 %v773
  %v1544 = vunpack.c.h.b16 %v773
  %v1545 = vunpack.c.l.b16 %v774
  %v1546 = vunpack.c.h.b16 %v774
  %v1547 = vunpack.c.l.b16 %v775
  %v1548 = vunpack.c.h.b16 %v775
  %v1549 = vunpack.c.l.b16 %v776
  %v1550 = vunpack.c.h.b16 %v776
  %v1551 = vunpack.c.l.b16 %v777
  %v1552 = vunpack.c.h.b16 %v777
  %v1553 = vunpack.c.l.b16 %v778
  %v1554 = vunpack.c.h.b16 %v778
  %v1555 = vunpack.c.l.b16 %v779
  %v1556 = vunpack.c.h.b16 %v779
  %v1557 = vunpack.c.l.b16 %v780
  %v1558 = vunpack.c.h.b16 %v780
  %v1559 = vunpack.c.l.b16 %v781
  %v1560 = vunpack.c.h.b16 %v781
  %v1561 = vunpack.c.l.b16 %v782
  %v1562 = vunpack.c.h.b16 %v782
  %v1563 = vunpack.c.l.b16 %v783
  %v1564 = vunpack.c.h.b16 %v783
  %v1565 = vunpack.c.l.b16 %v784
  %v1566 = vunpack.c.h.b16 %v784
  %v1567 = vunpack.c.l.b16 %v785
  %v1568 = vunpack.c.h.b16 %v785
  %v1569 = vunpack.c.l.b16 %v786
  %v1570 = vunpack.c.h.b16 %v786
  %v1571 = vunpack.c.l.b16 %v787
  %v1572 = vunpack.c.h.b16 %v787
  %v1573 = vunpack.c.l.b16 %v788
  %v1574 = vunpack.c.h.b16 %v788
  %v1575 = vunpack.c.l.b16 %v789
  %v1576 = vunpack.c.h.b16 %v789
  %v1577 = vunpack.c.l.b16 %v790
  %v1578 = vunpack.c.h.b16 %v790
  %v1579 = vunpack.c.l.b16 %v791
  %v1580 = vunpack.c.h.b16 %v791
  %v1581 = vunpack.c.l.b16 %v792
  %v1582 = vunpack.c.h.b16 %v792
  %v1583 = vunpack.c.l.b16 %v793
  %v1584 = vunpack.c.h.b16 %v793
  %v1585 = vunpack.c.l.b16 %v794
  %v1586 = vunpack.c.h.b16 %v794
  %v1587 = vunpack.c.l.b16 %v795
  %v1588 = vunpack.c.h.b16 %v795
  %v1589 = vunpack.c.l.b16 %v796
  %v1590 = vunpack.c.h.b16 %v796
  %v1591 = vunpack.c.l.b16 %v797
  %v1592 = vunpack.c.h.b16 %v797
  %v1593 = vunpack.c.l.b16 %v798
  %v1594 = vunpack.c.h.b16 %v798
  %v1595 = vunpack.c.l.b16 %v799
  %v1596 = vunpack.c.h.b16 %v799
  %v1597 = vunpack.c.l.b16 %v800
  %v1598 = vunpack.c.h.b16 %v800
  %v1599 = vunpack.c.l.b16 %v801
  %v1600 = vunpack.c.h.b16 %v801
  %v1601 = vunpack.c.l.b16 %v802
  %v1602 = vunpack.c.h.b16 %v802
  %v1603 = vunpack.c.l.b16 %v803
  %v1604 = vunpack.c.h.b16 %v803
  %v1605 = vunpack.c.l.b16 %v804
  %v1606 = vunpack.c.h.b16 %v804
  %v1607 = vunpack.c.l.b16 %v805
  %v1608 = vunpack.c.h.b16 %v805
  %v1609 = vunpack.c.l.b16 %v806
  %v1610 = vunpack.c.h.b16 %v806
  %v1611 = vunpack.c.l.b16 %v807
  %v1612 = vunpack.c.h.b16 %v807
  %v1613 = vunpack.c.l.b16 %v808
  %v1614 = vunpack.c.h.b16 %v808
  %v1615 = vunpack.c.l.b16 %v809
  %v1616 = vunpack.c.h.b16 %v809
  %v1617 = vunpack.c.l.b16 %v810
  %v1618 = vunpack.c.h.b16 %v810
  %v1619 = vpack.c.b16 %v1115, %v1107
  %v1620 = vpack.c.b16 %v1116, %v1108
  %v1621 = vpack.c.b16 %v1117, %v1109
  %v1622 = vpack.c.b16 %v1118, %v1110
  %v1623 = vpack.c.b16 %v1119, %v1111
  %v1624 = vpack.c.b16 %v1120, %v1112
  %v1625 = vpack.c.b16 %v1121, %v1113
  %v1626 = vpack.c.b16 %v1122, %v1114
  %v1627 = vpack.c.b16 %v1131, %v1123
  %v1628 = vpack.c.b16 %v1132, %v1124
  %v1629 = vpack.c.b16 %v1133, %v1125
  %v1630 = vpack.c.b16 %v1134, %v1126
  %v1631 = vpack.c.b16 %v1135, %v1127
  %v1632 = vpack.c.b16 %v1136, %v1128
  %v1633 = vpack.c.b16 %v1137, %v1129
  %v1634 = vpack.c.b16 %v1138, %v1130
  %v1635 = vpack.c.b16 %v1147, %v1139
  %v1636 = vpack.c.b16 %v1148, %v1140
  %v1637 = vpack.c.b16 %v1149, %v1141
  %v1638 = vpack.c.b16 %v1150, %v1142
  %v1639 = vpack.c.b16 %v1151, %v1143
  %v1640 = vpack.c.b16 %v1152, %v1144
  %v1641 = vpack.c.b16 %v1153, %v1145
  %v1642 = vpack.c.b16 %v1154, %v1146
  %v1643 = vpack.c.b16 %v1163, %v1155
  %v1644 = vpack.c.b16 %v1164, %v1156
  %v1645 = vpack.c.b16 %v1165, %v1157
  %v1646 = vpack.c.b16 %v1166, %v1158
  %v1647 = vpack.c.b16 %v1167, %v1159
  %v1648 = vpack.c.b16 %v1168, %v1160
  %v1649 = vpack.c.b16 %v1169, %v1161
  %v1650 = vpack.c.b16 %v1170, %v1162
  %v1651 = vpack.c.b16 %v1179, %v1171
  %v1652 = vpack.c.b16 %v1180, %v1172
  %v1653 = vpack.c.b16 %v1181, %v1173
  %v1654 = vpack.c.b16 %v1182, %v1174
  %v1655 = vpack.c.b16 %v1183, %v1175
  %v1656 = vpack.c.b16 %v1184, %v1176
  %v1657 = vpack.c.b16 %v1185, %v1177
  %v1658 = vpack.c.b16 %v1186, %v1178
  %v1659 = vpack.c.b16 %v1195, %v1187
  %v1660 = vpack.c.b16 %v1196, %v1188
  %v1661 = vpack.c.b16 %v1197, %v1189
  %v1662 = vpack.c.b16 %v1198, %v1190
  %v1663 = vpack.c.b16 %v1199, %v1191
  %v1664 = vpack.c.b16 %v1200, %v1192
  %v1665 = vpack.c.b16 %v1201, %v1193
  %v1666 = vpack.c.b16 %v1202, %v1194
  %v1667 = vpack.c.b16 %v1211, %v1203
  %v1668 = vpack.c.b16 %v1212, %v1204
  %v1669 = vpack.c.b16 %v1213, %v1205
  %v1670 = vpack.c.b16 %v1214, %v1206
  %v1671 = vpack.c.b16 %v1215, %v1207
  %v1672 = vpack.c.b16 %v1216, %v1208
  %v1673 = vpack.c.b16 %v1217, %v1209
  %v1674 = vpack.c.b16 %v1218, %v1210
  %v1675 = vpack.c.b16 %v1227, %v1219
  %v1676 = vpack.c.b16 %v1228, %v1220
  %v1677 = vpack.c.b16 %v1229, %v1221
  %v1678 = vpack.c.b16 %v1230, %v1222
  %v1679 = vpack.c.b16 %v1231, %v1223
  %v1680 = vpack.c.b16 %v1232, %v1224
  %v1681 = vpack.c.b16 %v1233, %v1225
  %v1682 = vpack.c.b16 %v1234, %v1226
  %v1683 = vpack.c.b16 %v1243, %v1235
  %v1684 = vpack.c.b16 %v1244, %v1236
  %v1685 = vpack.c.b16 %v1245, %v1237
  %v1686 = vpack.c.b16 %v1246, %v1238
  %v1687 = vpack.c.b16 %v1247, %v1239
  %v1688 = vpack.c.b16 %v1248, %v1240
  %v1689 = vpack.c.b16 %v1249, %v1241
  %v1690 = vpack.c.b16 %v1250, %v1242
  %v1691 = vpack.c.b16 %v1259, %v1251
  %v1692 = vpack.c.b16 %v1260, %v1252
  %v1693 = vpack.c.b16 %v1261, %v1253
  %v1694 = vpack.c.b16 %v1262, %v1254
  %v1695 = vpack.c.b16 %v1263, %v1255
  %v1696 = vpack.c.b16 %v1264, %v1256
  %v1697 = vpack.c.b16 %v1265, %v1257
  %v1698 = vpack.c.b16 %v1266, %v1258
  %v1699 = vpack.c.b16 %v1275, %v1267
  %v1700 = vpack.c.b16 %v1276, %v1268
  %v1701 = vpack.c.b16 %v1277, %v1269
  %v1702 = vpack.c.b16 %v1278, %v1270
  %v1703 = vpack.c.b16 %v1279, %v1271
  %v1704 = vpack.c.b16 %v1280, %v1272
  %v1705 = vpack.c.b16 %v1281, %v1273
  %v1706 = vpack.c.b16 %v1282, %v1274
  %v1707 = vpack.c.b16 %v1291, %v1283
  %v1708 = vpack.c.b16 %v1292, %v1284
  %v1709 = vpack.c.b16 %v1293, %v1285
  %v1710 = vpack.c.b16 %v1294, %v1286
  %v1711 = vpack.c.b16 %v1295, %v1287
  %v1712 = vpack.c.b16 %v1296, %v1288
  %v1713 = vpack.c.b16 %v1297, %v1289
  %v1714 = vpack.c.b16 %v1298, %v1290
  %v1715 = vpack.c.b16 %v1307, %v1299
  %v1716 = vpack.c.b16 %v1308, %v1300
  %v1717 = vpack.c.b16 %v1309, %v1301
  %v1718 = vpack.c.b16 %v1310, %v1302
  %v1719 = vpack.c.b16 %v1311, %v1303
  %v1720 = vpack.c.b16 %v1312, %v1304
  %v1721 = vpack.c.b16 %v1313, %v1305
  %v1722 = vpack.c.b16 %v1314, %v1306
  %v1723 = vpack.c.b16 %v1323, %v1315
  %v1724 = vpack.c.b16 %v1324, %v1316
  %v1725 = vpack.c.b16 %v1325, %v1317
  %v1726 = vpack.c.b16 %v1326, %v1318
  %v1727 = vpack.c.b16 %v1327, %v1319
  %v1728 = vpack.c.b16 %v1328, %v1320
  %v1729 = vpack.c.b16 %v1329, %v1321
  %v1730 = vpack.c.b16 %v1330, %v1322
  %v1731 = vpack.c.b16 %v1339, %v1331
  %v1732 = vpack.c.b16 %v1340, %v1332
  %v1733 = vpack.c.b16 %v1341, %v1333
  %v1734 = vpack.c.b16 %v1342, %v1334
  %v1735 = vpack.c.b16 %v1343, %v1335
  %v1736 = vpack.c.b16 %v1344, %v1336
  %v1737 = vpack.c.b16 %v1345, %v1337
  %v1738 = vpack.c.b16 %v1346, %v1338
  %v1739 = vpack.c.b16 %v1355, %v1347
  %v1740 = vpack.c.b16 %v1356, %v1348
  %v1741 = vpack.c.b16 %v1357, %v1349
  %v1742 = vpack.c.b16 %v1358, %v1350
  %v1743 = vpack.c.b16 %v1359, %v1351
  %v1744 = vpack.c.b16 %v1360, %v1352
  %v1745 = vpack.c.b16 %v1361, %v1353
  %v1746 = vpack.c.b16 %v1362, %v1354
  %v1747 = vpack.c.b16 %v1371, %v1363
  %v1748 = vpack.c.b16 %v1372, %v1364
  %v1749 = vpack.c.b16 %v1373, %v1365
  %v1750 = vpack.c.b16 %v1374, %v1366
  %v1751 = vpack.c.b16 %v1375, %v1367
  %v1752 = vpack.c.b16 %v1376, %v1368
  %v1753 = vpack.c.b16 %v1377, %v1369
  %v1754 = vpack.c.b16 %v1378, %v1370
  %v1755 = vpack.c.b16 %v1387, %v1379
  %v1756 = vpack.c.b16 %v1388, %v1380
  %v1757 = vpack.c.b16 %v1389, %v1381
  %v1758 = vpack.c.b16 %v1390, %v1382
  %v1759 = vpack.c.b16 %v1391, %v1383
  %v1760 = vpack.c.b16 %v1392, %v1384
  %v1761 = vpack.c.b16 %v1393, %v1385
  %v1762 = vpack.c.b16 %v1394, %v1386
  %v1763 = vpack.c.b16 %v1403, %v1395
  %v1764 = vpack.c.b16 %v1404, %v1396
  %v1765 = vpack.c.b16 %v1405, %v1397
  %v1766 = vpack.c.b16 %v1406, %v1398
  %v1767 = vpack.c.b16 %v1407, %v1399
  %v1768 = vpack.c.b16 %v1408, %v1400
  %v1769 = vpack.c.b16 %v1409, %v1401
  %v1770 = vpack.c.b16 %v1410, %v1402
  %v1771 = vpack.c.b16 %v1419, %v1411
  %v1772 = vpack.c.b16 %v1420, %v1412
  %v1773 = vpack.c.b16 %v1421, %v1413
  %v1774 = vpack.c.b16 %v1422, %v1414
  %v1775 = vpack.c.b16 %v1423, %v1415
  %v1776 = vpack.c.b16 %v1424, %v1416
  %v1777 = vpack.c.b16 %v1425, %v1417
  %v1778 = vpack.c.b16 %v1426, %v1418
  %v1779 = vpack.c.b16 %v1435, %v1427
  %v1780 = vpack.c.b16 %v1436, %v1428
  %v1781 = vpack.c.b16 %v1437, %v1429
  %v1782 = vpack.c.b16 %v1438, %v1430
  %v1783 = vpack.c.b16 %v1439, %v1431
  %v1784 = vpack.c.b16 %v1440, %v1432
  %v1785 = vpack.c.b16 %v1441, %v1433
  %v1786 = vpack.c.b16 %v1442, %v1434
  %v1787 = vpack.c.b16 %v1451, %v1443
  %v1788 = vpack.c.b16 %v1452, %v1444
  %v1789 = vpack.c.b16 %v1453, %v1445
  %v1790 = vpack.c.b16 %v1454, %v1446
  %v1791 = vpack.c.b16 %v1455, %v1447
  %v1792 = vpack.c.b16 %v1456, %v1448
  %v1793 = vpack.c.b16 %v1457, %v1449
  %v1794 = vpack.c.b16 %v1458, %v1450
  %v1795 = vpack.c.b16 %v1467, %v1459
  %v1796 = vpack.c.b16 %v1468, %v1460
  %v1797 = vpack.c.b16 %v1469, %v1461
  %v1798 = vpack.c.b16 %v1470, %v1462
  %v1799 = vpack.c.b16 %v1471, %v1463
  %v1800 = vpack.c.b16 %v1472, %v1464
  %v1801 = vpack.c.b16 %v1473, %v1465
  %v1802 = vpack.c.b16 %v1474, %v1466
  %v1803 = vpack.c.b16 %v1483, %v1475
  %v1804 = vpack.c.b16 %v1484, %v1476
  %v1805 = vpack.c.b16 %v1485, %v1477
  %v1806 = vpack.c.b16 %v1486, %v1478
  %v1807 = vpack.c.b16 %v1487, %v1479
  %v1808 = vpack.c.b16 %v1488, %v1480
  %v1809 = vpack.c.b16 %v1489, %v1481
  %v1810 = vpack.c.b16 %v1490, %v1482
  %v1811 = vpack.c.b16 %v1499, %v1491
  %v1812 = vpack.c.b16 %v1500, %v1492
  %v1813 = vpack.c.b16 %v1501, %v1493
  %v1814 = vpack.c.b16 %v1502, %v1494
  %v1815 = vpack.c.b16 %v1503, %v1495
  %v1816 = vpack.c.b16 %v1504, %v1496
  %v1817 = vpack.c.b16 %v1505, %v1497
  %v1818 = vpack.c.b16 %v1506, %v1498
  %v1819 = vpack.c.b16 %v1515, %v1507
  %v1820 = vpack.c.b16 %v1516, %v1508
  %v1821 = vpack.c.b16 %v1517, %v1509
  %v1822 = vpack.c.b16 %v1518, %v1510
  %v1823 = vpack.c.b16 %v1519, %v1511
  %v1824 = vpack.c.b16 %v1520, %v1512
  %v1825 = vpack.c.b16 %v1521, %v1513
  %v1826 = vpack.c.b16 %v1522, %v1514
  %v1827 = vpack.c.b16 %v1531, %v1523
  %v1828 = vpack.c.b16 %v1532, %v1524
  %v1829 = vpack.c.b16 %v1533, %v1525
  %v1830 = vpack.c.b16 %v1534, %v1526
  %v1831 = vpack.c.b16 %v1535, %v1527
  %v1832 = vpack.c.b16 %v1536, %v1528
  %v1833 = vpack.c.b16 %v1537, %v1529
  %v1834 = vpack.c.b16 %v1538, %v1530
  %v1835 = vpack.c.b16 %v1547, %v1539
  %v1836 = vpack.c.b16 %v1548, %v1540
  %v1837 = vpack.c.b16 %v1549, %v1541
  %v1838 = vpack.c.b16 %v1550, %v1542
  %v1839 = vpack.c.b16 %v1551, %v1543
  %v1840 = vpack.c.b16 %v1552, %v1544
  %v1841 = vpack.c.b16 %v1553, %v1545
  %v1842 = vpack.c.b16 %v1554, %v1546
  %v1843 = vpack.c.b16 %v1563, %v1555
  %v1844 = vpack.c.b16 %v1564, %v1556
  %v1845 = vpack.c.b16 %v1565, %v1557
  %v1846 = vpack.c.b16 %v1566, %v1558
  %v1847 = vpack.c.b16 %v1567, %v1559
  %v1848 = vpack.c.b16 %v1568, %v1560
  %v1849 = vpack.c.b16 %v1569, %v1561
  %v1850 = vpack.c.b16 %v1570, %v1562
  %v1851 = vpack.c.b16 %v1579, %v1571
  %v1852 = vpack.c.b16 %v1580, %v1572
  %v1853 = vpack.c.b16 %v1581, %v1573
  %v1854 = vpack.c.b16 %v1582, %v1574
  %v1855 = vpack.c.b16 %v1583, %v1575
  %v1856 = vpack.c.b16 %v1584, %v1576
  %v1857 = vpack.c.b16 %v1585, %v1577
  %v1858 = vpack.c.b16 %v1586, %v1578
  %v1859 = vpack.c.b16 %v1595, %v1587
  %v1860 = vpack.c.b16 %v1596, %v1588
  %v1861 = vpack.c.b16 %v1597, %v1589
  %v1862 = vpack.c.b16 %v1598, %v1590
  %v1863 = vpack.c.b16 %v1599, %v1591
  %v1864 = vpack.c.b16 %v1600, %v1592
  %v1865 = vpack.c.b16 %v1601, %v1593
  %v1866 = vpack.c.b16 %v1602, %v1594
  %v1867 = vpack.c.b16 %v1611, %v1603
  %v1868 = vpack.c.b16 %v1612, %v1604
  %v1869 = vpack.c.b16 %v1613, %v1605
  %v1870 = vpack.c.b16 %v1614, %v1606
  %v1871 = vpack.c.b16 %v1615, %v1607
  %v1872 = vpack.c.b16 %v1616, %v1608
  %v1873 = vpack.c.b16 %v1617, %v1609
  %v1874 = vpack.c.b16 %v1618, %v1610
  %2131 = vmatpush.bf16.msra.mxu0 %v1675
  %2132 = vmatpush.bf16.msra.mxu0 %v1667
  %2133 = vmatpush.bf16.msra.mxu0 %v1659
  %2134 = vmatpush.bf16.msra.mxu0 %v1651
  %2135 = vmatpush.bf16.msra.mxu0 %v1643
  %2136 = vmatpush.bf16.msra.mxu0 %v1635
  %2137 = vmatpush.bf16.msra.mxu0 %v1627
  %2138 = vmatpush.bf16.msra.mxu0 %v1619
  %2139 = vmatmul.bf16.gmra.mxu0 %v847
  %v2140 = vpop.f32.mrf.mxu0
  %v2141 = vadd.f32 0.0, %v2140
  %v2142 = vpop.f32.mrf.mxu0
  %2143 = vdwg.mxu0
  %2144 = vmatpush.bf16.msra.mxu0 %v1739
  %2145 = vmatpush.bf16.msra.mxu0 %v1731
  %2146 = vmatpush.bf16.msra.mxu0 %v1723
  %2147 = vmatpush.bf16.msra.mxu0 %v1715
  %2148 = vmatpush.bf16.msra.mxu0 %v1707
  %2149 = vmatpush.bf16.msra.mxu0 %v1699
  %2150 = vmatpush.bf16.msra.mxu0 %v1691
  %2151 = vmatpush.bf16.msra.mxu0 %v1683
  %2152 = vmatmul.bf16.gmra.mxu0 %v848
  %v2153 = vpop.f32.mrf.mxu0
  %v2154 = vadd.f32 %v2141, %v2153
  %v2155 = vpop.f32.mrf.mxu0
  %2156 = vdwg.mxu0
  %2157 = vmatpush.bf16.msra.mxu0 %v1803
  %2158 = vmatpush.bf16.msra.mxu0 %v1795
  %2159 = vmatpush.bf16.msra.mxu0 %v1787
  %2160 = vmatpush.bf16.msra.mxu0 %v1779
  %2161 = vmatpush.bf16.msra.mxu0 %v1771
  %2162 = vmatpush.bf16.msra.mxu0 %v1763
  %2163 = vmatpush.bf16.msra.mxu0 %v1755
  %2164 = vmatpush.bf16.msra.mxu0 %v1747
  %2165 = vmatmul.bf16.gmra.mxu0 %v849
  %v2166 = vpop.f32.mrf.mxu0
  %v2167 = vadd.f32 %v2154, %v2166
  %v2168 = vpop.f32.mrf.mxu0
  %2169 = vdwg.mxu0
  %2170 = vmatpush.bf16.msra.mxu0 %v1867
  %2171 = vmatpush.bf16.msra.mxu0 %v1859
  %2172 = vmatpush.bf16.msra.mxu0 %v1851
  %2173 = vmatpush.bf16.msra.mxu0 %v1843
  %2174 = vmatpush.bf16.msra.mxu0 %v1835
  %2175 = vmatpush.bf16.msra.mxu0 %v1827
  %2176 = vmatpush.bf16.msra.mxu0 %v1819
  %2177 = vmatpush.bf16.msra.mxu0 %v1811
  %2178 = vmatmul.bf16.gmra.mxu0 %v850
  %v2179 = vpop.f32.mrf.mxu0
  %v2180 = vadd.f32 %v2167, %v2179
  %v2181 = vpop.f32.mrf.mxu0
  %2182 = vdwg.mxu0
  %2183 = vmatpush.bf16.msra.mxu0 %v1676
  %2184 = vmatpush.bf16.msra.mxu0 %v1668
  %2185 = vmatpush.bf16.msra.mxu0 %v1660
  %2186 = vmatpush.bf16.msra.mxu0 %v1652
  %2187 = vmatpush.bf16.msra.mxu0 %v1644
  %2188 = vmatpush.bf16.msra.mxu0 %v1636
  %2189 = vmatpush.bf16.msra.mxu0 %v1628
  %2190 = vmatpush.bf16.msra.mxu0 %v1620
  %2191 = vmatmul.bf16.gmra.mxu0 %v847
  %v2192 = vpop.f32.mrf.mxu0
  %v2193 = vadd.f32 0.0, %v2192
  %v2194 = vpop.f32.mrf.mxu0
  %2195 = vdwg.mxu0
  %2196 = vmatpush.bf16.msra.mxu0 %v1740
  %2197 = vmatpush.bf16.msra.mxu0 %v1732
  %2198 = vmatpush.bf16.msra.mxu0 %v1724
  %2199 = vmatpush.bf16.msra.mxu0 %v1716
  %2200 = vmatpush.bf16.msra.mxu0 %v1708
  %2201 = vmatpush.bf16.msra.mxu0 %v1700
  %2202 = vmatpush.bf16.msra.mxu0 %v1692
  %2203 = vmatpush.bf16.msra.mxu0 %v1684
  %2204 = vmatmul.bf16.gmra.mxu0 %v848
  %v2205 = vpop.f32.mrf.mxu0
  %v2206 = vadd.f32 %v2193, %v2205
  %v2207 = vpop.f32.mrf.mxu0
  %2208 = vdwg.mxu0
  %2209 = vmatpush.bf16.msra.mxu0 %v1804
  %2210 = vmatpush.bf16.msra.mxu0 %v1796
  %2211 = vmatpush.bf16.msra.mxu0 %v1788
  %2212 = vmatpush.bf16.msra.mxu0 %v1780
  %2213 = vmatpush.bf16.msra.mxu0 %v1772
  %2214 = vmatpush.bf16.msra.mxu0 %v1764
  %2215 = vmatpush.bf16.msra.mxu0 %v1756
  %2216 = vmatpush.bf16.msra.mxu0 %v1748
  %2217 = vmatmul.bf16.gmra.mxu0 %v849
  %v2218 = vpop.f32.mrf.mxu0
  %v2219 = vadd.f32 %v2206, %v2218
  %v2220 = vpop.f32.mrf.mxu0
  %2221 = vdwg.mxu0
  %2222 = vmatpush.bf16.msra.mxu0 %v1868
  %2223 = vmatpush.bf16.msra.mxu0 %v1860
  %2224 = vmatpush.bf16.msra.mxu0 %v1852
  %2225 = vmatpush.bf16.msra.mxu0 %v1844
  %2226 = vmatpush.bf16.msra.mxu0 %v1836
  %2227 = vmatpush.bf16.msra.mxu0 %v1828
  %2228 = vmatpush.bf16.msra.mxu0 %v1820
  %2229 = vmatpush.bf16.msra.mxu0 %v1812
  %2230 = vmatmul.bf16.gmra.mxu0 %v850
  %v2231 = vpop.f32.mrf.mxu0
  %v2232 = vadd.f32 %v2219, %v2231
  %v2233 = vpop.f32.mrf.mxu0
  %2234 = vdwg.mxu0
  %2235 = vmatpush.bf16.msra.mxu0 %v1677
  %2236 = vmatpush.bf16.msra.mxu0 %v1669
  %2237 = vmatpush.bf16.msra.mxu0 %v1661
  %2238 = vmatpush.bf16.msra.mxu0 %v1653
  %2239 = vmatpush.bf16.msra.mxu0 %v1645
  %2240 = vmatpush.bf16.msra.mxu0 %v1637
  %2241 = vmatpush.bf16.msra.mxu0 %v1629
  %2242 = vmatpush.bf16.msra.mxu0 %v1621
  %2243 = vmatmul.bf16.gmra.mxu0 %v847
  %v2244 = vpop.f32.mrf.mxu0
  %v2245 = vadd.f32 0.0, %v2244
  %v2246 = vpop.f32.mrf.mxu0
  %2247 = vdwg.mxu0
  %2248 = vmatpush.bf16.msra.mxu0 %v1741
  %2249 = vmatpush.bf16.msra.mxu0 %v1733
  %2250 = vmatpush.bf16.msra.mxu0 %v1725
  %2251 = vmatpush.bf16.msra.mxu0 %v1717
  %2252 = vmatpush.bf16.msra.mxu0 %v1709
  %2253 = vmatpush.bf16.msra.mxu0 %v1701
  %2254 = vmatpush.bf16.msra.mxu0 %v1693
  %2255 = vmatpush.bf16.msra.mxu0 %v1685
  %2256 = vmatmul.bf16.gmra.mxu0 %v848
  %v2257 = vpop.f32.mrf.mxu0
  %v2258 = vadd.f32 %v2245, %v2257
  %v2259 = vpop.f32.mrf.mxu0
  %2260 = vdwg.mxu0
  %2261 = vmatpush.bf16.msra.mxu0 %v1805
  %2262 = vmatpush.bf16.msra.mxu0 %v1797
  %2263 = vmatpush.bf16.msra.mxu0 %v1789
  %2264 = vmatpush.bf16.msra.mxu0 %v1781
  %2265 = vmatpush.bf16.msra.mxu0 %v1773
  %2266 = vmatpush.bf16.msra.mxu0 %v1765
  %2267 = vmatpush.bf16.msra.mxu0 %v1757
  %2268 = vmatpush.bf16.msra.mxu0 %v1749
  %2269 = vmatmul.bf16.gmra.mxu0 %v849
  %v2270 = vpop.f32.mrf.mxu0
  %v2271 = vadd.f32 %v2258, %v2270
  %v2272 = vpop.f32.mrf.mxu0
  %2273 = vdwg.mxu0
  %2274 = vmatpush.bf16.msra.mxu0 %v1869
  %2275 = vmatpush.bf16.msra.mxu0 %v1861
  %2276 = vmatpush.bf16.msra.mxu0 %v1853
  %2277 = vmatpush.bf16.msra.mxu0 %v1845
  %2278 = vmatpush.bf16.msra.mxu0 %v1837
  %2279 = vmatpush.bf16.msra.mxu0 %v1829
  %2280 = vmatpush.bf16.msra.mxu0 %v1821
  %2281 = vmatpush.bf16.msra.mxu0 %v1813
  %2282 = vmatmul.bf16.gmra.mxu0 %v850
  %v2283 = vpop.f32.mrf.mxu0
  %v2284 = vadd.f32 %v2271, %v2283
  %v2285 = vpop.f32.mrf.mxu0
  %2286 = vdwg.mxu0
  %2287 = vmatpush.bf16.msra.mxu0 %v1678
  %2288 = vmatpush.bf16.msra.mxu0 %v1670
  %2289 = vmatpush.bf16.msra.mxu0 %v1662
  %2290 = vmatpush.bf16.msra.mxu0 %v1654
  %2291 = vmatpush.bf16.msra.mxu0 %v1646
  %2292 = vmatpush.bf16.msra.mxu0 %v1638
  %2293 = vmatpush.bf16.msra.mxu0 %v1630
  %2294 = vmatpush.bf16.msra.mxu0 %v1622
  %2295 = vmatmul.bf16.gmra.mxu0 %v847
  %v2296 = vpop.f32.mrf.mxu0
  %v2297 = vadd.f32 0.0, %v2296
  %v2298 = vpop.f32.mrf.mxu0
  %2299 = vdwg.mxu0
  %2300 = vmatpush.bf16.msra.mxu0 %v1742
  %2301 = vmatpush.bf16.msra.mxu0 %v1734
  %2302 = vmatpush.bf16.msra.mxu0 %v1726
  %2303 = vmatpush.bf16.msra.mxu0 %v1718
  %2304 = vmatpush.bf16.msra.mxu0 %v1710
  %2305 = vmatpush.bf16.msra.mxu0 %v1702
  %2306 = vmatpush.bf16.msra.mxu0 %v1694
  %2307 = vmatpush.bf16.msra.mxu0 %v1686
  %2308 = vmatmul.bf16.gmra.mxu0 %v848
  %v2309 = vpop.f32.mrf.mxu0
  %v2310 = vadd.f32 %v2297, %v2309
  %v2311 = vpop.f32.mrf.mxu0
  %2312 = vdwg.mxu0
  %2313 = vmatpush.bf16.msra.mxu0 %v1806
  %2314 = vmatpush.bf16.msra.mxu0 %v1798
  %2315 = vmatpush.bf16.msra.mxu0 %v1790
  %2316 = vmatpush.bf16.msra.mxu0 %v1782
  %2317 = vmatpush.bf16.msra.mxu0 %v1774
  %2318 = vmatpush.bf16.msra.mxu0 %v1766
  %2319 = vmatpush.bf16.msra.mxu0 %v1758
  %2320 = vmatpush.bf16.msra.mxu0 %v1750
  %2321 = vmatmul.bf16.gmra.mxu0 %v849
  %v2322 = vpop.f32.mrf.mxu0
  %v2323 = vadd.f32 %v2310, %v2322
  %v2324 = vpop.f32.mrf.mxu0
  %2325 = vdwg.mxu0
  %2326 = vmatpush.bf16.msra.mxu0 %v1870
  %2327 = vmatpush.bf16.msra.mxu0 %v1862
  %2328 = vmatpush.bf16.msra.mxu0 %v1854
  %2329 = vmatpush.bf16.msra.mxu0 %v1846
  %2330 = vmatpush.bf16.msra.mxu0 %v1838
  %2331 = vmatpush.bf16.msra.mxu0 %v1830
  %2332 = vmatpush.bf16.msra.mxu0 %v1822
  %2333 = vmatpush.bf16.msra.mxu0 %v1814
  %2334 = vmatmul.bf16.gmra.mxu0 %v850
  %v2335 = vpop.f32.mrf.mxu0
  %v2336 = vadd.f32 %v2323, %v2335
  %v2337 = vpop.f32.mrf.mxu0
  %2338 = vdwg.mxu0
  %2339 = vmatpush.bf16.msra.mxu0 %v1679
  %2340 = vmatpush.bf16.msra.mxu0 %v1671
  %2341 = vmatpush.bf16.msra.mxu0 %v1663
  %2342 = vmatpush.bf16.msra.mxu0 %v1655
  %2343 = vmatpush.bf16.msra.mxu0 %v1647
  %2344 = vmatpush.bf16.msra.mxu0 %v1639
  %2345 = vmatpush.bf16.msra.mxu0 %v1631
  %2346 = vmatpush.bf16.msra.mxu0 %v1623
  %2347 = vmatmul.bf16.gmra.mxu0 %v847
  %v2348 = vpop.f32.mrf.mxu0
  %v2349 = vadd.f32 0.0, %v2348
  %v2350 = vpop.f32.mrf.mxu0
  %2351 = vdwg.mxu0
  %2352 = vmatpush.bf16.msra.mxu0 %v1743
  %2353 = vmatpush.bf16.msra.mxu0 %v1735
  %2354 = vmatpush.bf16.msra.mxu0 %v1727
  %2355 = vmatpush.bf16.msra.mxu0 %v1719
  %2356 = vmatpush.bf16.msra.mxu0 %v1711
  %2357 = vmatpush.bf16.msra.mxu0 %v1703
  %2358 = vmatpush.bf16.msra.mxu0 %v1695
  %2359 = vmatpush.bf16.msra.mxu0 %v1687
  %2360 = vmatmul.bf16.gmra.mxu0 %v848
  %v2361 = vpop.f32.mrf.mxu0
  %v2362 = vadd.f32 %v2349, %v2361
  %v2363 = vpop.f32.mrf.mxu0
  %2364 = vdwg.mxu0
  %2365 = vmatpush.bf16.msra.mxu0 %v1807
  %2366 = vmatpush.bf16.msra.mxu0 %v1799
  %2367 = vmatpush.bf16.msra.mxu0 %v1791
  %2368 = vmatpush.bf16.msra.mxu0 %v1783
  %2369 = vmatpush.bf16.msra.mxu0 %v1775
  %2370 = vmatpush.bf16.msra.mxu0 %v1767
  %2371 = vmatpush.bf16.msra.mxu0 %v1759
  %2372 = vmatpush.bf16.msra.mxu0 %v1751
  %2373 = vmatmul.bf16.gmra.mxu0 %v849
  %v2374 = vpop.f32.mrf.mxu0
  %v2375 = vadd.f32 %v2362, %v2374
  %v2376 = vpop.f32.mrf.mxu0
  %2377 = vdwg.mxu0
  %2378 = vmatpush.bf16.msra.mxu0 %v1871
  %2379 = vmatpush.bf16.msra.mxu0 %v1863
  %2380 = vmatpush.bf16.msra.mxu0 %v1855
  %2381 = vmatpush.bf16.msra.mxu0 %v1847
  %2382 = vmatpush.bf16.msra.mxu0 %v1839
  %2383 = vmatpush.bf16.msra.mxu0 %v1831
  %2384 = vmatpush.bf16.msra.mxu0 %v1823
  %2385 = vmatpush.bf16.msra.mxu0 %v1815
  %2386 = vmatmul.bf16.gmra.mxu0 %v850
  %v2387 = vpop.f32.mrf.mxu0
  %v2388 = vadd.f32 %v2375, %v2387
  %v2389 = vpop.f32.mrf.mxu0
  %2390 = vdwg.mxu0
  %2391 = vmatpush.bf16.msra.mxu0 %v1680
  %2392 = vmatpush.bf16.msra.mxu0 %v1672
  %2393 = vmatpush.bf16.msra.mxu0 %v1664
  %2394 = vmatpush.bf16.msra.mxu0 %v1656
  %2395 = vmatpush.bf16.msra.mxu0 %v1648
  %2396 = vmatpush.bf16.msra.mxu0 %v1640
  %2397 = vmatpush.bf16.msra.mxu0 %v1632
  %2398 = vmatpush.bf16.msra.mxu0 %v1624
  %2399 = vmatmul.bf16.gmra.mxu0 %v847
  %v2400 = vpop.f32.mrf.mxu0
  %v2401 = vadd.f32 0.0, %v2400
  %v2402 = vpop.f32.mrf.mxu0
  %2403 = vdwg.mxu0
  %2404 = vmatpush.bf16.msra.mxu0 %v1744
  %2405 = vmatpush.bf16.msra.mxu0 %v1736
  %2406 = vmatpush.bf16.msra.mxu0 %v1728
  %2407 = vmatpush.bf16.msra.mxu0 %v1720
  %2408 = vmatpush.bf16.msra.mxu0 %v1712
  %2409 = vmatpush.bf16.msra.mxu0 %v1704
  %2410 = vmatpush.bf16.msra.mxu0 %v1696
  %2411 = vmatpush.bf16.msra.mxu0 %v1688
  %2412 = vmatmul.bf16.gmra.mxu0 %v848
  %v2413 = vpop.f32.mrf.mxu0
  %v2414 = vadd.f32 %v2401, %v2413
  %v2415 = vpop.f32.mrf.mxu0
  %2416 = vdwg.mxu0
  %2417 = vmatpush.bf16.msra.mxu0 %v1808
  %2418 = vmatpush.bf16.msra.mxu0 %v1800
  %2419 = vmatpush.bf16.msra.mxu0 %v1792
  %2420 = vmatpush.bf16.msra.mxu0 %v1784
  %2421 = vmatpush.bf16.msra.mxu0 %v1776
  %2422 = vmatpush.bf16.msra.mxu0 %v1768
  %2423 = vmatpush.bf16.msra.mxu0 %v1760
  %2424 = vmatpush.bf16.msra.mxu0 %v1752
  %2425 = vmatmul.bf16.gmra.mxu0 %v849
  %v2426 = vpop.f32.mrf.mxu0
  %v2427 = vadd.f32 %v2414, %v2426
  %v2428 = vpop.f32.mrf.mxu0
  %2429 = vdwg.mxu0
  %2430 = vmatpush.bf16.msra.mxu0 %v1872
  %2431 = vmatpush.bf16.msra.mxu0 %v1864
  %2432 = vmatpush.bf16.msra.mxu0 %v1856
  %2433 = vmatpush.bf16.msra.mxu0 %v1848
  %2434 = vmatpush.bf16.msra.mxu0 %v1840
  %2435 = vmatpush.bf16.msra.mxu0 %v1832
  %2436 = vmatpush.bf16.msra.mxu0 %v1824
  %2437 = vmatpush.bf16.msra.mxu0 %v1816
  %2438 = vmatmul.bf16.gmra.mxu0 %v850
  %v2439 = vpop.f32.mrf.mxu0
  %v2440 = vadd.f32 %v2427, %v2439
  %v2441 = vpop.f32.mrf.mxu0
  %2442 = vdwg.mxu0
  %2443 = vmatpush.bf16.msra.mxu0 %v1681
  %2444 = vmatpush.bf16.msra.mxu0 %v1673
  %2445 = vmatpush.bf16.msra.mxu0 %v1665
  %2446 = vmatpush.bf16.msra.mxu0 %v1657
  %2447 = vmatpush.bf16.msra.mxu0 %v1649
  %2448 = vmatpush.bf16.msra.mxu0 %v1641
  %2449 = vmatpush.bf16.msra.mxu0 %v1633
  %2450 = vmatpush.bf16.msra.mxu0 %v1625
  %2451 = vmatmul.bf16.gmra.mxu0 %v847
  %v2452 = vpop.f32.mrf.mxu0
  %v2453 = vadd.f32 0.0, %v2452
  %v2454 = vpop.f32.mrf.mxu0
  %2455 = vdwg.mxu0
  %2456 = vmatpush.bf16.msra.mxu0 %v1745
  %2457 = vmatpush.bf16.msra.mxu0 %v1737
  %2458 = vmatpush.bf16.msra.mxu0 %v1729
  %2459 = vmatpush.bf16.msra.mxu0 %v1721
  %2460 = vmatpush.bf16.msra.mxu0 %v1713
  %2461 = vmatpush.bf16.msra.mxu0 %v1705
  %2462 = vmatpush.bf16.msra.mxu0 %v1697
  %2463 = vmatpush.bf16.msra.mxu0 %v1689
  %2464 = vmatmul.bf16.gmra.mxu0 %v848
  %v2465 = vpop.f32.mrf.mxu0
  %v2466 = vadd.f32 %v2453, %v2465
  %v2467 = vpop.f32.mrf.mxu0
  %2468 = vdwg.mxu0
  %2469 = vmatpush.bf16.msra.mxu0 %v1809
  %2470 = vmatpush.bf16.msra.mxu0 %v1801
  %2471 = vmatpush.bf16.msra.mxu0 %v1793
  %2472 = vmatpush.bf16.msra.mxu0 %v1785
  %2473 = vmatpush.bf16.msra.mxu0 %v1777
  %2474 = vmatpush.bf16.msra.mxu0 %v1769
  %2475 = vmatpush.bf16.msra.mxu0 %v1761
  %2476 = vmatpush.bf16.msra.mxu0 %v1753
  %2477 = vmatmul.bf16.gmra.mxu0 %v849
  %v2478 = vpop.f32.mrf.mxu0
  %v2479 = vadd.f32 %v2466, %v2478
  %v2480 = vpop.f32.mrf.mxu0
  %2481 = vdwg.mxu0
  %2482 = vmatpush.bf16.msra.mxu0 %v1873
  %2483 = vmatpush.bf16.msra.mxu0 %v1865
  %2484 = vmatpush.bf16.msra.mxu0 %v1857
  %2485 = vmatpush.bf16.msra.mxu0 %v1849
  %2486 = vmatpush.bf16.msra.mxu0 %v1841
  %2487 = vmatpush.bf16.msra.mxu0 %v1833
  %2488 = vmatpush.bf16.msra.mxu0 %v1825
  %2489 = vmatpush.bf16.msra.mxu0 %v1817
  %2490 = vmatmul.bf16.gmra.mxu0 %v850
  %v2491 = vpop.f32.mrf.mxu0
  %v2492 = vadd.f32 %v2479, %v2491
  %v2493 = vpop.f32.mrf.mxu0
  %2494 = vdwg.mxu0
  %2495 = vmatpush.bf16.msra.mxu0 %v1682
  %2496 = vmatpush.bf16.msra.mxu0 %v1674
  %2497 = vmatpush.bf16.msra.mxu0 %v1666
  %2498 = vmatpush.bf16.msra.mxu0 %v1658
  %2499 = vmatpush.bf16.msra.mxu0 %v1650
  %2500 = vmatpush.bf16.msra.mxu0 %v1642
  %2501 = vmatpush.bf16.msra.mxu0 %v1634
  %2502 = vmatpush.bf16.msra.mxu0 %v1626
  %2503 = vmatmul.bf16.gmra.mxu0 %v847
  %v2504 = vpop.f32.mrf.mxu0
  %v2505 = vadd.f32 0.0, %v2504
  %v2506 = vpop.f32.mrf.mxu0
  %2507 = vdwg.mxu0
  %2508 = vmatpush.bf16.msra.mxu0 %v1746
  %2509 = vmatpush.bf16.msra.mxu0 %v1738
  %2510 = vmatpush.bf16.msra.mxu0 %v1730
  %2511 = vmatpush.bf16.msra.mxu0 %v1722
  %2512 = vmatpush.bf16.msra.mxu0 %v1714
  %2513 = vmatpush.bf16.msra.mxu0 %v1706
  %2514 = vmatpush.bf16.msra.mxu0 %v1698
  %2515 = vmatpush.bf16.msra.mxu0 %v1690
  %2516 = vmatmul.bf16.gmra.mxu0 %v848
  %v2517 = vpop.f32.mrf.mxu0
  %v2518 = vadd.f32 %v2505, %v2517
  %v2519 = vpop.f32.mrf.mxu0
  %2520 = vdwg.mxu0
  %2521 = vmatpush.bf16.msra.mxu0 %v1810
  %2522 = vmatpush.bf16.msra.mxu0 %v1802
  %2523 = vmatpush.bf16.msra.mxu0 %v1794
  %2524 = vmatpush.bf16.msra.mxu0 %v1786
  %2525 = vmatpush.bf16.msra.mxu0 %v1778
  %2526 = vmatpush.bf16.msra.mxu0 %v1770
  %2527 = vmatpush.bf16.msra.mxu0 %v1762
  %2528 = vmatpush.bf16.msra.mxu0 %v1754
  %2529 = vmatmul.bf16.gmra.mxu0 %v849
  %v2530 = vpop.f32.mrf.mxu0
  %v2531 = vadd.f32 %v2518, %v2530
  %v2532 = vpop.f32.mrf.mxu0
  %2533 = vdwg.mxu0
  %2534 = vmatpush.bf16.msra.mxu0 %v1874
  %2535 = vmatpush.bf16.msra.mxu0 %v1866
  %2536 = vmatpush.bf16.msra.mxu0 %v1858
  %2537 = vmatpush.bf16.msra.mxu0 %v1850
  %2538 = vmatpush.bf16.msra.mxu0 %v1842
  %2539 = vmatpush.bf16.msra.mxu0 %v1834
  %2540 = vmatpush.bf16.msra.mxu0 %v1826
  %2541 = vmatpush.bf16.msra.mxu0 %v1818
  %2542 = vmatmul.bf16.gmra.mxu0 %v850
  %v2543 = vpop.f32.mrf.mxu0
  %v2544 = vadd.f32 %v2531, %v2543
  %v2545 = vpop.f32.mrf.mxu0
  %2546 = vdwg.mxu0
  %s2547 = smul.u32 0, 8
  %s2548 = smul.addr %s2547, 8
  %s2549 = scalar_lea.vmem [#allocation2], %s2548
  %v2550 = vld [vmem:[%s2549] sm:$0xff]
  %v2551 = vld [vmem:[%s2549 + $0x8] sm:$0xff]
  %v2552 = vld [vmem:[%s2549 + $0x10] sm:$0xff]
  %v2553 = vld [vmem:[%s2549 + $0x18] sm:$0xff]
  %v2554 = vld [vmem:[%s2549 + $0x20] sm:$0xff]
  %v2555 = vld [vmem:[%s2549 + $0x28] sm:$0xff]
  %v2556 = vld [vmem:[%s2549 + $0x30] sm:$0xff]
  %v2557 = vld [vmem:[%s2549 + $0x38] sm:$0xff]
  %v2558 = vadd.f32 %v2550, %v2180
  %v2559 = vadd.f32 %v2551, %v2232
  %v2560 = vadd.f32 %v2552, %v2284
  %v2561 = vadd.f32 %v2553, %v2336
  %v2562 = vadd.f32 %v2554, %v2388
  %v2563 = vadd.f32 %v2555, %v2440
  %v2564 = vadd.f32 %v2556, %v2492
  %v2565 = vadd.f32 %v2557, %v2544
  %v2566 = vadd.f32 %v2558, %v811
  %v2567 = vadd.f32 %v2559, %v812
  %v2568 = vadd.f32 %v2560, %v813
  %v2569 = vadd.f32 %v2561, %v814
  %v2570 = vadd.f32 %v2562, %v815
  %v2571 = vadd.f32 %v2563, %v816
  %v2572 = vadd.f32 %v2564, %v817
  %v2573 = vadd.f32 %v2565, %v818
  %v2574 = vxor.u32 %v2566, 2147483648
  %v2575 = vxor.u32 %v2567, 2147483648
  %v2576 = vmul.f32 %v2574, 1.442695
  %v2577 = vpow.pop %v2576
  %v2578 = vmul.f32 %v2575, 1.442695
  %v2579 = vpow.pop %v2578
  %v2580 = vadd.f32 %v2577, 1.0
  %v2581 = vadd.f32 %v2579, 1.0
  %v2582 = vrcp.pop %v2580
  %v2583 = vmul.f32 %v2580, %v2582
  %v2584 = vsub.f32 1.0, %v2583
  %v2585 = vmul.f32 %v2582, %v2584
  %v2586 = vadd.f32 %v2582, %v2585
  %vm2587 = vweird.f32 %v2580
  %vm2588 = vweird.f32 %v2582
  %vm2589 = vmor %vm2587, %vm2588
  %v2590 = vsel %vm2589, %v2582, %v2586
  %v2591 = vand.u32 2147483647, %v2580
  %vm2592 = vcmp.eq.f32.partialorder %v2591, 8.507059e+37
  %v2593 = vand.u32 %v2580, 2147483648
  %v2594 = vor.u32 1.1754944e-38, %v2593
  %v2595 = vsel %vm2592, %v2594, %v2590
  %v2596 = vmul.f32 1.0, %v2595
  %v2597 = vrcp.pop %v2581
  %v2598 = vmul.f32 %v2581, %v2597
  %v2599 = vsub.f32 1.0, %v2598
  %v2600 = vmul.f32 %v2597, %v2599
  %v2601 = vadd.f32 %v2597, %v2600
  %vm2602 = vweird.f32 %v2581
  %vm2603 = vweird.f32 %v2597
  %vm2604 = vmor %vm2602, %vm2603
  %v2605 = vsel %vm2604, %v2597, %v2601
  %v2606 = vand.u32 2147483647, %v2581
  %vm2607 = vcmp.eq.f32.partialorder %v2606, 8.507059e+37
  %v2608 = vand.u32 %v2581, 2147483648
  %v2609 = vor.u32 1.1754944e-38, %v2608
  %v2610 = vsel %vm2607, %v2609, %v2605
  %v2611 = vmul.f32 1.0, %v2610
  %v2612 = vxor.u32 %v2568, 2147483648
  %v2613 = vxor.u32 %v2569, 2147483648
  %v2614 = vmul.f32 %v2612, 1.442695
  %v2615 = vpow.pop %v2614
  %v2616 = vmul.f32 %v2613, 1.442695
  %v2617 = vpow.pop %v2616
  %v2618 = vadd.f32 %v2615, 1.0
  %v2619 = vadd.f32 %v2617, 1.0
  %v2620 = vrcp.pop %v2618
  %v2621 = vmul.f32 %v2618, %v2620
  %v2622 = vsub.f32 1.0, %v2621
  %v2623 = vmul.f32 %v2620, %v2622
  %v2624 = vadd.f32 %v2620, %v2623
  %vm2625 = vweird.f32 %v2618
  %vm2626 = vweird.f32 %v2620
  %vm2627 = vmor %vm2625, %vm2626
  %v2628 = vsel %vm2627, %v2620, %v2624
  %v2629 = vand.u32 2147483647, %v2618
  %vm2630 = vcmp.eq.f32.partialorder %v2629, 8.507059e+37
  %v2631 = vand.u32 %v2618, 2147483648
  %v2632 = vor.u32 1.1754944e-38, %v2631
  %v2633 = vsel %vm2630, %v2632, %v2628
  %v2634 = vmul.f32 1.0, %v2633
  %v2635 = vrcp.pop %v2619
  %v2636 = vmul.f32 %v2619, %v2635
  %v2637 = vsub.f32 1.0, %v2636
  %v2638 = vmul.f32 %v2635, %v2637
  %v2639 = vadd.f32 %v2635, %v2638
  %vm2640 = vweird.f32 %v2619
  %vm2641 = vweird.f32 %v2635
  %vm2642 = vmor %vm2640, %vm2641
  %v2643 = vsel %vm2642, %v2635, %v2639
  %v2644 = vand.u32 2147483647, %v2619
  %vm2645 = vcmp.eq.f32.partialorder %v2644, 8.507059e+37
  %v2646 = vand.u32 %v2619, 2147483648
  %v2647 = vor.u32 1.1754944e-38, %v2646
  %v2648 = vsel %vm2645, %v2647, %v2643
  %v2649 = vmul.f32 1.0, %v2648
  %v2650 = vtanh.pop %v2570
  %v2651 = vtanh.pop %v2571
  %v2652 = vxor.u32 %v2572, 2147483648
  %v2653 = vxor.u32 %v2573, 2147483648
  %v2654 = vmul.f32 %v2652, 1.442695
  %v2655 = vpow.pop %v2654
  %v2656 = vmul.f32 %v2653, 1.442695
  %v2657 = vpow.pop %v2656
  %v2658 = vadd.f32 %v2655, 1.0
  %v2659 = vadd.f32 %v2657, 1.0
  %v2660 = vrcp.pop %v2658
  %v2661 = vmul.f32 %v2658, %v2660
  %v2662 = vsub.f32 1.0, %v2661
  %v2663 = vmul.f32 %v2660, %v2662
  %v2664 = vadd.f32 %v2660, %v2663
  %vm2665 = vweird.f32 %v2658
  %vm2666 = vweird.f32 %v2660
  %vm2667 = vmor %vm2665, %vm2666
  %v2668 = vsel %vm2667, %v2660, %v2664
  %v2669 = vand.u32 2147483647, %v2658
  %vm2670 = vcmp.eq.f32.partialorder %v2669, 8.507059e+37
  %v2671 = vand.u32 %v2658, 2147483648
  %v2672 = vor.u32 1.1754944e-38, %v2671
  %v2673 = vsel %vm2670, %v2672, %v2668
  %v2674 = vmul.f32 1.0, %v2673
  %v2675 = vrcp.pop %v2659
  %v2676 = vmul.f32 %v2659, %v2675
  %v2677 = vsub.f32 1.0, %v2676
  %v2678 = vmul.f32 %v2675, %v2677
  %v2679 = vadd.f32 %v2675, %v2678
  %vm2680 = vweird.f32 %v2659
  %vm2681 = vweird.f32 %v2675
  %vm2682 = vmor %vm2680, %vm2681
  %v2683 = vsel %vm2682, %v2675, %v2679
  %v2684 = vand.u32 2147483647, %v2659
  %vm2685 = vcmp.eq.f32.partialorder %v2684, 8.507059e+37
  %v2686 = vand.u32 %v2659, 2147483648
  %v2687 = vor.u32 1.1754944e-38, %v2686
  %v2688 = vsel %vm2685, %v2687, %v2683
  %v2689 = vmul.f32 1.0, %v2688
  %v2690 = vmul.f32 %v2634, %v841
  %v2691 = vmul.f32 %v2649, %v842
  %v2692 = vmul.f32 %v2596, %v2650
  %v2693 = vmul.f32 %v2611, %v2651
  %v2694 = vadd.f32 %v2690, %v2692
  %v2695 = vadd.f32 %v2691, %v2693
  %v2696 = vtanh.pop %v2694
  %v2697 = vtanh.pop %v2695
  %v2698 = vmul.f32 %v2674, %v2696
  %v2699 = vmul.f32 %v2689, %v2697
  %s2700 = smul.u32 0, 2
  %s2701 = smul.addr %s2700, 8
  %s2702 = scalar_lea.vmem %s4, %s2701
  %2703 = vst [vmem:[%s2702] sm:$0xff] %v2698
  %2704 = vst [vmem:[%s2702 + $0x8] sm:$0xff] %v2699
  %v2705 = vsel %vm835, %v2698, 0.0
  %v2706 = vsel %vm836, %v2699, 0.0
  %v2707 = vsel %vm837, %v2698, 0.0
  %v2708 = vsel %vm838, %v2699, 0.0
  %v2709 = vpack.c.bf16 %v2705, %v2705
  %v2710 = vpack.c.bf16 %v2706, %v2706
  %v2711 = vpack.c.bf16 %v2707, %v2707
  %v2712 = vpack.c.bf16 %v2708, %v2708
  %2713 = vmatpush.bf16.msra.mxu0 %v1675
  %2714 = vmatpush.bf16.msra.mxu0 %v1667
  %2715 = vmatpush.bf16.msra.mxu0 %v1659
  %2716 = vmatpush.bf16.msra.mxu0 %v1651
  %2717 = vmatpush.bf16.msra.mxu0 %v1643
  %2718 = vmatpush.bf16.msra.mxu0 %v1635
  %2719 = vmatpush.bf16.msra.mxu0 %v1627
  %2720 = vmatpush.bf16.msra.mxu0 %v1619
  %2721 = vmatmul.bf16.gmra.mxu0 %v2709
  %v2722 = vpop.f32.mrf.mxu0
  %v2723 = vadd.f32 0.0, %v2722
  %v2724 = vpop.f32.mrf.mxu0
  %2725 = vdwg.mxu0
  %2726 = vmatpush.bf16.msra.mxu0 %v1739
  %2727 = vmatpush.bf16.msra.mxu0 %v1731
  %2728 = vmatpush.bf16.msra.mxu0 %v1723
  %2729 = vmatpush.bf16.msra.mxu0 %v1715
  %2730 = vmatpush.bf16.msra.mxu0 %v1707
  %2731 = vmatpush.bf16.msra.mxu0 %v1699
  %2732 = vmatpush.bf16.msra.mxu0 %v1691
  %2733 = vmatpush.bf16.msra.mxu0 %v1683
  %2734 = vmatmul.bf16.gmra.mxu0 %v2710
  %v2735 = vpop.f32.mrf.mxu0
  %v2736 = vadd.f32 %v2723, %v2735
  %v2737 = vpop.f32.mrf.mxu0
  %2738 = vdwg.mxu0
  %2739 = vmatpush.bf16.msra.mxu0 %v1803
  %2740 = vmatpush.bf16.msra.mxu0 %v1795
  %2741 = vmatpush.bf16.msra.mxu0 %v1787
  %2742 = vmatpush.bf16.msra.mxu0 %v1779
  %2743 = vmatpush.bf16.msra.mxu0 %v1771
  %2744 = vmatpush.bf16.msra.mxu0 %v1763
  %2745 = vmatpush.bf16.msra.mxu0 %v1755
  %2746 = vmatpush.bf16.msra.mxu0 %v1747
  %2747 = vmatmul.bf16.gmra.mxu0 %v2711
  %v2748 = vpop.f32.mrf.mxu0
  %v2749 = vadd.f32 %v2736, %v2748
  %v2750 = vpop.f32.mrf.mxu0
  %2751 = vdwg.mxu0
  %2752 = vmatpush.bf16.msra.mxu0 %v1867
  %2753 = vmatpush.bf16.msra.mxu0 %v1859
  %2754 = vmatpush.bf16.msra.mxu0 %v1851
  %2755 = vmatpush.bf16.msra.mxu0 %v1843
  %2756 = vmatpush.bf16.msra.mxu0 %v1835
  %2757 = vmatpush.bf16.msra.mxu0 %v1827
  %2758 = vmatpush.bf16.msra.mxu0 %v1819
  %2759 = vmatpush.bf16.msra.mxu0 %v1811
  %2760 = vmatmul.bf16.gmra.mxu0 %v2712
  %v2761 = vpop.f32.mrf.mxu0
  %v2762 = vadd.f32 %v2749, %v2761
  %v2763 = vpop.f32.mrf.mxu0
  %2764 = vdwg.mxu0
  %2765 = vmatpush.bf16.msra.mxu0 %v1676
  %2766 = vmatpush.bf16.msra.mxu0 %v1668
  %2767 = vmatpush.bf16.msra.mxu0 %v1660
  %2768 = vmatpush.bf16.msra.mxu0 %v1652
  %2769 = vmatpush.bf16.msra.mxu0 %v1644
  %2770 = vmatpush.bf16.msra.mxu0 %v1636
  %2771 = vmatpush.bf16.msra.mxu0 %v1628
  %2772 = vmatpush.bf16.msra.mxu0 %v1620
  %2773 = vmatmul.bf16.gmra.mxu0 %v2709
  %v2774 = vpop.f32.mrf.mxu0
  %v2775 = vadd.f32 0.0, %v2774
  %v2776 = vpop.f32.mrf.mxu0
  %2777 = vdwg.mxu0
  %2778 = vmatpush.bf16.msra.mxu0 %v1740
  %2779 = vmatpush.bf16.msra.mxu0 %v1732
  %2780 = vmatpush.bf16.msra.mxu0 %v1724
  %2781 = vmatpush.bf16.msra.mxu0 %v1716
  %2782 = vmatpush.bf16.msra.mxu0 %v1708
  %2783 = vmatpush.bf16.msra.mxu0 %v1700
  %2784 = vmatpush.bf16.msra.mxu0 %v1692
  %2785 = vmatpush.bf16.msra.mxu0 %v1684
  %2786 = vmatmul.bf16.gmra.mxu0 %v2710
  %v2787 = vpop.f32.mrf.mxu0
  %v2788 = vadd.f32 %v2775, %v2787
  %v2789 = vpop.f32.mrf.mxu0
  %2790 = vdwg.mxu0
  %2791 = vmatpush.bf16.msra.mxu0 %v1804
  %2792 = vmatpush.bf16.msra.mxu0 %v1796
  %2793 = vmatpush.bf16.msra.mxu0 %v1788
  %2794 = vmatpush.bf16.msra.mxu0 %v1780
  %2795 = vmatpush.bf16.msra.mxu0 %v1772
  %2796 = vmatpush.bf16.msra.mxu0 %v1764
  %2797 = vmatpush.bf16.msra.mxu0 %v1756
  %2798 = vmatpush.bf16.msra.mxu0 %v1748
  %2799 = vmatmul.bf16.gmra.mxu0 %v2711
  %v2800 = vpop.f32.mrf.mxu0
  %v2801 = vadd.f32 %v2788, %v2800
  %v2802 = vpop.f32.mrf.mxu0
  %2803 = vdwg.mxu0
  %2804 = vmatpush.bf16.msra.mxu0 %v1868
  %2805 = vmatpush.bf16.msra.mxu0 %v1860
  %2806 = vmatpush.bf16.msra.mxu0 %v1852
  %2807 = vmatpush.bf16.msra.mxu0 %v1844
  %2808 = vmatpush.bf16.msra.mxu0 %v1836
  %2809 = vmatpush.bf16.msra.mxu0 %v1828
  %2810 = vmatpush.bf16.msra.mxu0 %v1820
  %2811 = vmatpush.bf16.msra.mxu0 %v1812
  %2812 = vmatmul.bf16.gmra.mxu0 %v2712
  %v2813 = vpop.f32.mrf.mxu0
  %v2814 = vadd.f32 %v2801, %v2813
  %v2815 = vpop.f32.mrf.mxu0
  %2816 = vdwg.mxu0
  %2817 = vmatpush.bf16.msra.mxu0 %v1677
  %2818 = vmatpush.bf16.msra.mxu0 %v1669
  %2819 = vmatpush.bf16.msra.mxu0 %v1661
  %2820 = vmatpush.bf16.msra.mxu0 %v1653
  %2821 = vmatpush.bf16.msra.mxu0 %v1645
  %2822 = vmatpush.bf16.msra.mxu0 %v1637
  %2823 = vmatpush.bf16.msra.mxu0 %v1629
  %2824 = vmatpush.bf16.msra.mxu0 %v1621
  %2825 = vmatmul.bf16.gmra.mxu0 %v2709
  %v2826 = vpop.f32.mrf.mxu0
  %v2827 = vadd.f32 0.0, %v2826
  %v2828 = vpop.f32.mrf.mxu0
  %2829 = vdwg.mxu0
  %2830 = vmatpush.bf16.msra.mxu0 %v1741
  %2831 = vmatpush.bf16.msra.mxu0 %v1733
  %2832 = vmatpush.bf16.msra.mxu0 %v1725
  %2833 = vmatpush.bf16.msra.mxu0 %v1717
  %2834 = vmatpush.bf16.msra.mxu0 %v1709
  %2835 = vmatpush.bf16.msra.mxu0 %v1701
  %2836 = vmatpush.bf16.msra.mxu0 %v1693
  %2837 = vmatpush.bf16.msra.mxu0 %v1685
  %2838 = vmatmul.bf16.gmra.mxu0 %v2710
  %v2839 = vpop.f32.mrf.mxu0
  %v2840 = vadd.f32 %v2827, %v2839
  %v2841 = vpop.f32.mrf.mxu0
  %2842 = vdwg.mxu0
  %2843 = vmatpush.bf16.msra.mxu0 %v1805
  %2844 = vmatpush.bf16.msra.mxu0 %v1797
  %2845 = vmatpush.bf16.msra.mxu0 %v1789
  %2846 = vmatpush.bf16.msra.mxu0 %v1781
  %2847 = vmatpush.bf16.msra.mxu0 %v1773
  %2848 = vmatpush.bf16.msra.mxu0 %v1765
  %2849 = vmatpush.bf16.msra.mxu0 %v1757
  %2850 = vmatpush.bf16.msra.mxu0 %v1749
  %2851 = vmatmul.bf16.gmra.mxu0 %v2711
  %v2852 = vpop.f32.mrf.mxu0
  %v2853 = vadd.f32 %v2840, %v2852
  %v2854 = vpop.f32.mrf.mxu0
  %2855 = vdwg.mxu0
  %2856 = vmatpush.bf16.msra.mxu0 %v1869
  %2857 = vmatpush.bf16.msra.mxu0 %v1861
  %2858 = vmatpush.bf16.msra.mxu0 %v1853
  %2859 = vmatpush.bf16.msra.mxu0 %v1845
  %2860 = vmatpush.bf16.msra.mxu0 %v1837
  %2861 = vmatpush.bf16.msra.mxu0 %v1829
  %2862 = vmatpush.bf16.msra.mxu0 %v1821
  %2863 = vmatpush.bf16.msra.mxu0 %v1813
  %2864 = vmatmul.bf16.gmra.mxu0 %v2712
  %v2865 = vpop.f32.mrf.mxu0
  %v2866 = vadd.f32 %v2853, %v2865
  %v2867 = vpop.f32.mrf.mxu0
  %2868 = vdwg.mxu0
  %2869 = vmatpush.bf16.msra.mxu0 %v1678
  %2870 = vmatpush.bf16.msra.mxu0 %v1670
  %2871 = vmatpush.bf16.msra.mxu0 %v1662
  %2872 = vmatpush.bf16.msra.mxu0 %v1654
  %2873 = vmatpush.bf16.msra.mxu0 %v1646
  %2874 = vmatpush.bf16.msra.mxu0 %v1638
  %2875 = vmatpush.bf16.msra.mxu0 %v1630
  %2876 = vmatpush.bf16.msra.mxu0 %v1622
  %2877 = vmatmul.bf16.gmra.mxu0 %v2709
  %v2878 = vpop.f32.mrf.mxu0
  %v2879 = vadd.f32 0.0, %v2878
  %v2880 = vpop.f32.mrf.mxu0
  %2881 = vdwg.mxu0
  %2882 = vmatpush.bf16.msra.mxu0 %v1742
  %2883 = vmatpush.bf16.msra.mxu0 %v1734
  %2884 = vmatpush.bf16.msra.mxu0 %v1726
  %2885 = vmatpush.bf16.msra.mxu0 %v1718
  %2886 = vmatpush.bf16.msra.mxu0 %v1710
  %2887 = vmatpush.bf16.msra.mxu0 %v1702
  %2888 = vmatpush.bf16.msra.mxu0 %v1694
  %2889 = vmatpush.bf16.msra.mxu0 %v1686
  %2890 = vmatmul.bf16.gmra.mxu0 %v2710
  %v2891 = vpop.f32.mrf.mxu0
  %v2892 = vadd.f32 %v2879, %v2891
  %v2893 = vpop.f32.mrf.mxu0
  %2894 = vdwg.mxu0
  %2895 = vmatpush.bf16.msra.mxu0 %v1806
  %2896 = vmatpush.bf16.msra.mxu0 %v1798
  %2897 = vmatpush.bf16.msra.mxu0 %v1790
  %2898 = vmatpush.bf16.msra.mxu0 %v1782
  %2899 = vmatpush.bf16.msra.mxu0 %v1774
  %2900 = vmatpush.bf16.msra.mxu0 %v1766
  %2901 = vmatpush.bf16.msra.mxu0 %v1758
  %2902 = vmatpush.bf16.msra.mxu0 %v1750
  %2903 = vmatmul.bf16.gmra.mxu0 %v2711
  %v2904 = vpop.f32.mrf.mxu0
  %v2905 = vadd.f32 %v2892, %v2904
  %v2906 = vpop.f32.mrf.mxu0
  %2907 = vdwg.mxu0
  %2908 = vmatpush.bf16.msra.mxu0 %v1870
  %2909 = vmatpush.bf16.msra.mxu0 %v1862
  %2910 = vmatpush.bf16.msra.mxu0 %v1854
  %2911 = vmatpush.bf16.msra.mxu0 %v1846
  %2912 = vmatpush.bf16.msra.mxu0 %v1838
  %2913 = vmatpush.bf16.msra.mxu0 %v1830
  %2914 = vmatpush.bf16.msra.mxu0 %v1822
  %2915 = vmatpush.bf16.msra.mxu0 %v1814
  %2916 = vmatmul.bf16.gmra.mxu0 %v2712
  %v2917 = vpop.f32.mrf.mxu0
  %v2918 = vadd.f32 %v2905, %v2917
  %v2919 = vpop.f32.mrf.mxu0
  %2920 = vdwg.mxu0
  %2921 = vmatpush.bf16.msra.mxu0 %v1679
  %2922 = vmatpush.bf16.msra.mxu0 %v1671
  %2923 = vmatpush.bf16.msra.mxu0 %v1663
  %2924 = vmatpush.bf16.msra.mxu0 %v1655
  %2925 = vmatpush.bf16.msra.mxu0 %v1647
  %2926 = vmatpush.bf16.msra.mxu0 %v1639
  %2927 = vmatpush.bf16.msra.mxu0 %v1631
  %2928 = vmatpush.bf16.msra.mxu0 %v1623
  %2929 = vmatmul.bf16.gmra.mxu0 %v2709
  %v2930 = vpop.f32.mrf.mxu0
  %v2931 = vadd.f32 0.0, %v2930
  %v2932 = vpop.f32.mrf.mxu0
  %2933 = vdwg.mxu0
  %2934 = vmatpush.bf16.msra.mxu0 %v1743
  %2935 = vmatpush.bf16.msra.mxu0 %v1735
  %2936 = vmatpush.bf16.msra.mxu0 %v1727
  %2937 = vmatpush.bf16.msra.mxu0 %v1719
  %2938 = vmatpush.bf16.msra.mxu0 %v1711
  %2939 = vmatpush.bf16.msra.mxu0 %v1703
  %2940 = vmatpush.bf16.msra.mxu0 %v1695
  %2941 = vmatpush.bf16.msra.mxu0 %v1687
  %2942 = vmatmul.bf16.gmra.mxu0 %v2710
  %v2943 = vpop.f32.mrf.mxu0
  %v2944 = vadd.f32 %v2931, %v2943
  %v2945 = vpop.f32.mrf.mxu0
  %2946 = vdwg.mxu0
  %2947 = vmatpush.bf16.msra.mxu0 %v1807
  %2948 = vmatpush.bf16.msra.mxu0 %v1799
  %2949 = vmatpush.bf16.msra.mxu0 %v1791
  %2950 = vmatpush.bf16.msra.mxu0 %v1783
  %2951 = vmatpush.bf16.msra.mxu0 %v1775
  %2952 = vmatpush.bf16.msra.mxu0 %v1767
  %2953 = vmatpush.bf16.msra.mxu0 %v1759
  %2954 = vmatpush.bf16.msra.mxu0 %v1751
  %2955 = vmatmul.bf16.gmra.mxu0 %v2711
  %v2956 = vpop.f32.mrf.mxu0
  %v2957 = vadd.f32 %v2944, %v2956
  %v2958 = vpop.f32.mrf.mxu0
  %2959 = vdwg.mxu0
  %2960 = vmatpush.bf16.msra.mxu0 %v1871
  %2961 = vmatpush.bf16.msra.mxu0 %v1863
  %2962 = vmatpush.bf16.msra.mxu0 %v1855
  %2963 = vmatpush.bf16.msra.mxu0 %v1847
  %2964 = vmatpush.bf16.msra.mxu0 %v1839
  %2965 = vmatpush.bf16.msra.mxu0 %v1831
  %2966 = vmatpush.bf16.msra.mxu0 %v1823
  %2967 = vmatpush.bf16.msra.mxu0 %v1815
  %2968 = vmatmul.bf16.gmra.mxu0 %v2712
  %v2969 = vpop.f32.mrf.mxu0
  %v2970 = vadd.f32 %v2957, %v2969
  %v2971 = vpop.f32.mrf.mxu0
  %2972 = vdwg.mxu0
  %2973 = vmatpush.bf16.msra.mxu0 %v1680
  %2974 = vmatpush.bf16.msra.mxu0 %v1672
  %2975 = vmatpush.bf16.msra.mxu0 %v1664
  %2976 = vmatpush.bf16.msra.mxu0 %v1656
  %2977 = vmatpush.bf16.msra.mxu0 %v1648
  %2978 = vmatpush.bf16.msra.mxu0 %v1640
  %2979 = vmatpush.bf16.msra.mxu0 %v1632
  %2980 = vmatpush.bf16.msra.mxu0 %v1624
  %2981 = vmatmul.bf16.gmra.mxu0 %v2709
  %v2982 = vpop.f32.mrf.mxu0
  %v2983 = vadd.f32 0.0, %v2982
  %v2984 = vpop.f32.mrf.mxu0
  %2985 = vdwg.mxu0
  %2986 = vmatpush.bf16.msra.mxu0 %v1744
  %2987 = vmatpush.bf16.msra.mxu0 %v1736
  %2988 = vmatpush.bf16.msra.mxu0 %v1728
  %2989 = vmatpush.bf16.msra.mxu0 %v1720
  %2990 = vmatpush.bf16.msra.mxu0 %v1712
  %2991 = vmatpush.bf16.msra.mxu0 %v1704
  %2992 = vmatpush.bf16.msra.mxu0 %v1696
  %2993 = vmatpush.bf16.msra.mxu0 %v1688
  %2994 = vmatmul.bf16.gmra.mxu0 %v2710
  %v2995 = vpop.f32.mrf.mxu0
  %v2996 = vadd.f32 %v2983, %v2995
  %v2997 = vpop.f32.mrf.mxu0
  %2998 = vdwg.mxu0
  %2999 = vmatpush.bf16.msra.mxu0 %v1808
  %3000 = vmatpush.bf16.msra.mxu0 %v1800
  %3001 = vmatpush.bf16.msra.mxu0 %v1792
  %3002 = vmatpush.bf16.msra.mxu0 %v1784
  %3003 = vmatpush.bf16.msra.mxu0 %v1776
  %3004 = vmatpush.bf16.msra.mxu0 %v1768
  %3005 = vmatpush.bf16.msra.mxu0 %v1760
  %3006 = vmatpush.bf16.msra.mxu0 %v1752
  %3007 = vmatmul.bf16.gmra.mxu0 %v2711
  %v3008 = vpop.f32.mrf.mxu0
  %v3009 = vadd.f32 %v2996, %v3008
  %v3010 = vpop.f32.mrf.mxu0
  %3011 = vdwg.mxu0
  %3012 = vmatpush.bf16.msra.mxu0 %v1872
  %3013 = vmatpush.bf16.msra.mxu0 %v1864
  %3014 = vmatpush.bf16.msra.mxu0 %v1856
  %3015 = vmatpush.bf16.msra.mxu0 %v1848
  %3016 = vmatpush.bf16.msra.mxu0 %v1840
  %3017 = vmatpush.bf16.msra.mxu0 %v1832
  %3018 = vmatpush.bf16.msra.mxu0 %v1824
  %3019 = vmatpush.bf16.msra.mxu0 %v1816
  %3020 = vmatmul.bf16.gmra.mxu0 %v2712
  %v3021 = vpop.f32.mrf.mxu0
  %v3022 = vadd.f32 %v3009, %v3021
  %v3023 = vpop.f32.mrf.mxu0
  %3024 = vdwg.mxu0
  %3025 = vmatpush.bf16.msra.mxu0 %v1681
  %3026 = vmatpush.bf16.msra.mxu0 %v1673
  %3027 = vmatpush.bf16.msra.mxu0 %v1665
  %3028 = vmatpush.bf16.msra.mxu0 %v1657
  %3029 = vmatpush.bf16.msra.mxu0 %v1649
  %3030 = vmatpush.bf16.msra.mxu0 %v1641
  %3031 = vmatpush.bf16.msra.mxu0 %v1633
  %3032 = vmatpush.bf16.msra.mxu0 %v1625
  %3033 = vmatmul.bf16.gmra.mxu0 %v2709
  %v3034 = vpop.f32.mrf.mxu0
  %v3035 = vadd.f32 0.0, %v3034
  %v3036 = vpop.f32.mrf.mxu0
  %3037 = vdwg.mxu0
  %3038 = vmatpush.bf16.msra.mxu0 %v1745
  %3039 = vmatpush.bf16.msra.mxu0 %v1737
  %3040 = vmatpush.bf16.msra.mxu0 %v1729
  %3041 = vmatpush.bf16.msra.mxu0 %v1721
  %3042 = vmatpush.bf16.msra.mxu0 %v1713
  %3043 = vmatpush.bf16.msra.mxu0 %v1705
  %3044 = vmatpush.bf16.msra.mxu0 %v1697
  %3045 = vmatpush.bf16.msra.mxu0 %v1689
  %3046 = vmatmul.bf16.gmra.mxu0 %v2710
  %v3047 = vpop.f32.mrf.mxu0
  %v3048 = vadd.f32 %v3035, %v3047
  %v3049 = vpop.f32.mrf.mxu0
  %3050 = vdwg.mxu0
  %3051 = vmatpush.bf16.msra.mxu0 %v1809
  %3052 = vmatpush.bf16.msra.mxu0 %v1801
  %3053 = vmatpush.bf16.msra.mxu0 %v1793
  %3054 = vmatpush.bf16.msra.mxu0 %v1785
  %3055 = vmatpush.bf16.msra.mxu0 %v1777
  %3056 = vmatpush.bf16.msra.mxu0 %v1769
  %3057 = vmatpush.bf16.msra.mxu0 %v1761
  %3058 = vmatpush.bf16.msra.mxu0 %v1753
  %3059 = vmatmul.bf16.gmra.mxu0 %v2711
  %v3060 = vpop.f32.mrf.mxu0
  %v3061 = vadd.f32 %v3048, %v3060
  %v3062 = vpop.f32.mrf.mxu0
  %3063 = vdwg.mxu0
  %3064 = vmatpush.bf16.msra.mxu0 %v1873
  %3065 = vmatpush.bf16.msra.mxu0 %v1865
  %3066 = vmatpush.bf16.msra.mxu0 %v1857
  %3067 = vmatpush.bf16.msra.mxu0 %v1849
  %3068 = vmatpush.bf16.msra.mxu0 %v1841
  %3069 = vmatpush.bf16.msra.mxu0 %v1833
  %3070 = vmatpush.bf16.msra.mxu0 %v1825
  %3071 = vmatpush.bf16.msra.mxu0 %v1817
  %3072 = vmatmul.bf16.gmra.mxu0 %v2712
  %v3073 = vpop.f32.mrf.mxu0
  %v3074 = vadd.f32 %v3061, %v3073
  %v3075 = vpop.f32.mrf.mxu0
  %3076 = vdwg.mxu0
  %3077 = vmatpush.bf16.msra.mxu0 %v1682
  %3078 = vmatpush.bf16.msra.mxu0 %v1674
  %3079 = vmatpush.bf16.msra.mxu0 %v1666
  %3080 = vmatpush.bf16.msra.mxu0 %v1658
  %3081 = vmatpush.bf16.msra.mxu0 %v1650
  %3082 = vmatpush.bf16.msra.mxu0 %v1642
  %3083 = vmatpush.bf16.msra.mxu0 %v1634
  %3084 = vmatpush.bf16.msra.mxu0 %v1626
  %3085 = vmatmul.bf16.gmra.mxu0 %v2709
  %v3086 = vpop.f32.mrf.mxu0
  %v3087 = vadd.f32 0.0, %v3086
  %v3088 = vpop.f32.mrf.mxu0
  %3089 = vdwg.mxu0
  %3090 = vmatpush.bf16.msra.mxu0 %v1746
  %3091 = vmatpush.bf16.msra.mxu0 %v1738
  %3092 = vmatpush.bf16.msra.mxu0 %v1730
  %3093 = vmatpush.bf16.msra.mxu0 %v1722
  %3094 = vmatpush.bf16.msra.mxu0 %v1714
  %3095 = vmatpush.bf16.msra.mxu0 %v1706
  %3096 = vmatpush.bf16.msra.mxu0 %v1698
  %3097 = vmatpush.bf16.msra.mxu0 %v1690
  %3098 = vmatmul.bf16.gmra.mxu0 %v2710
  %v3099 = vpop.f32.mrf.mxu0
  %v3100 = vadd.f32 %v3087, %v3099
  %v3101 = vpop.f32.mrf.mxu0
  %3102 = vdwg.mxu0
  %3103 = vmatpush.bf16.msra.mxu0 %v1810
  %3104 = vmatpush.bf16.msra.mxu0 %v1802
  %3105 = vmatpush.bf16.msra.mxu0 %v1794
  %3106 = vmatpush.bf16.msra.mxu0 %v1786
  %3107 = vmatpush.bf16.msra.mxu0 %v1778
  %3108 = vmatpush.bf16.msra.mxu0 %v1770
  %3109 = vmatpush.bf16.msra.mxu0 %v1762
  %3110 = vmatpush.bf16.msra.mxu0 %v1754
  %3111 = vmatmul.bf16.gmra.mxu0 %v2711
  %v3112 = vpop.f32.mrf.mxu0
  %v3113 = vadd.f32 %v3100, %v3112
  %v3114 = vpop.f32.mrf.mxu0
  %3115 = vdwg.mxu0
  %3116 = vmatpush.bf16.msra.mxu0 %v1874
  %3117 = vmatpush.bf16.msra.mxu0 %v1866
  %3118 = vmatpush.bf16.msra.mxu0 %v1858
  %3119 = vmatpush.bf16.msra.mxu0 %v1850
  %3120 = vmatpush.bf16.msra.mxu0 %v1842
  %3121 = vmatpush.bf16.msra.mxu0 %v1834
  %3122 = vmatpush.bf16.msra.mxu0 %v1826
  %3123 = vmatpush.bf16.msra.mxu0 %v1818
  %3124 = vmatmul.bf16.gmra.mxu0 %v2712
  %v3125 = vpop.f32.mrf.mxu0
  %v3126 = vadd.f32 %v3113, %v3125
  %v3127 = vpop.f32.mrf.mxu0
  %3128 = vdwg.mxu0
  %s3129 = smul.u32 1, 8
  %s3130 = smul.addr %s3129, 8
  %s3131 = scalar_lea.vmem [#allocation2], %s3130
  %v3132 = vld [vmem:[%s3131] sm:$0xff]
  %v3133 = vld [vmem:[%s3131 + $0x8] sm:$0xff]
  %v3134 = vld [vmem:[%s3131 + $0x10] sm:$0xff]
  %v3135 = vld [vmem:[%s3131 + $0x18] sm:$0xff]
  %v3136 = vld [vmem:[%s3131 + $0x20] sm:$0xff]
  %v3137 = vld [vmem:[%s3131 + $0x28] sm:$0xff]
  %v3138 = vld [vmem:[%s3131 + $0x30] sm:$0xff]
  %v3139 = vld [vmem:[%s3131 + $0x38] sm:$0xff]
  %v3140 = vadd.f32 %v3132, %v2762
  %v3141 = vadd.f32 %v3133, %v2814
  %v3142 = vadd.f32 %v3134, %v2866
  %v3143 = vadd.f32 %v3135, %v2918
  %v3144 = vadd.f32 %v3136, %v2970
  %v3145 = vadd.f32 %v3137, %v3022
  %v3146 = vadd.f32 %v3138, %v3074
  %v3147 = vadd.f32 %v3139, %v3126
  %v3148 = vadd.f32 %v3140, %v811
  %v3149 = vadd.f32 %v3141, %v812
  %v3150 = vadd.f32 %v3142, %v813
  %v3151 = vadd.f32 %v3143, %v814
  %v3152 = vadd.f32 %v3144, %v815
  %v3153 = vadd.f32 %v3145, %v816
  %v3154 = vadd.f32 %v3146, %v817
  %v3155 = vadd.f32 %v3147, %v818
  %v3156 = vxor.u32 %v3148, 2147483648
  %v3157 = vxor.u32 %v3149, 2147483648
  %v3158 = vmul.f32 %v3156, 1.442695
  %v3159 = vpow.pop %v3158
  %v3160 = vmul.f32 %v3157, 1.442695
  %v3161 = vpow.pop %v3160
  %v3162 = vadd.f32 %v3159, 1.0
  %v3163 = vadd.f32 %v3161, 1.0
  %v3164 = vrcp.pop %v3162
  %v3165 = vmul.f32 %v3162, %v3164
  %v3166 = vsub.f32 1.0, %v3165
  %v3167 = vmul.f32 %v3164, %v3166
  %v3168 = vadd.f32 %v3164, %v3167
  %vm3169 = vweird.f32 %v3162
  %vm3170 = vweird.f32 %v3164
  %vm3171 = vmor %vm3169, %vm3170
  %v3172 = vsel %vm3171, %v3164, %v3168
  %v3173 = vand.u32 2147483647, %v3162
  %vm3174 = vcmp.eq.f32.partialorder %v3173, 8.507059e+37
  %v3175 = vand.u32 %v3162, 2147483648
  %v3176 = vor.u32 1.1754944e-38, %v3175
  %v3177 = vsel %vm3174, %v3176, %v3172
  %v3178 = vmul.f32 1.0, %v3177
  %v3179 = vrcp.pop %v3163
  %v3180 = vmul.f32 %v3163, %v3179
  %v3181 = vsub.f32 1.0, %v3180
  %v3182 = vmul.f32 %v3179, %v3181
  %v3183 = vadd.f32 %v3179, %v3182
  %vm3184 = vweird.f32 %v3163
  %vm3185 = vweird.f32 %v3179
  %vm3186 = vmor %vm3184, %vm3185
  %v3187 = vsel %vm3186, %v3179, %v3183
  %v3188 = vand.u32 2147483647, %v3163
  %vm3189 = vcmp.eq.f32.partialorder %v3188, 8.507059e+37
  %v3190 = vand.u32 %v3163, 2147483648
  %v3191 = vor.u32 1.1754944e-38, %v3190
  %v3192 = vsel %vm3189, %v3191, %v3187
  %v3193 = vmul.f32 1.0, %v3192
  %v3194 = vxor.u32 %v3150, 2147483648
  %v3195 = vxor.u32 %v3151, 2147483648
  %v3196 = vmul.f32 %v3194, 1.442695
  %v3197 = vpow.pop %v3196
  %v3198 = vmul.f32 %v3195, 1.442695
  %v3199 = vpow.pop %v3198
  %v3200 = vadd.f32 %v3197, 1.0
  %v3201 = vadd.f32 %v3199, 1.0
  %v3202 = vrcp.pop %v3200
  %v3203 = vmul.f32 %v3200, %v3202
  %v3204 = vsub.f32 1.0, %v3203
  %v3205 = vmul.f32 %v3202, %v3204
  %v3206 = vadd.f32 %v3202, %v3205
  %vm3207 = vweird.f32 %v3200
  %vm3208 = vweird.f32 %v3202
  %vm3209 = vmor %vm3207, %vm3208
  %v3210 = vsel %vm3209, %v3202, %v3206
  %v3211 = vand.u32 2147483647, %v3200
  %vm3212 = vcmp.eq.f32.partialorder %v3211, 8.507059e+37
  %v3213 = vand.u32 %v3200, 2147483648
  %v3214 = vor.u32 1.1754944e-38, %v3213
  %v3215 = vsel %vm3212, %v3214, %v3210
  %v3216 = vmul.f32 1.0, %v3215
  %v3217 = vrcp.pop %v3201
  %v3218 = vmul.f32 %v3201, %v3217
  %v3219 = vsub.f32 1.0, %v3218
  %v3220 = vmul.f32 %v3217, %v3219
  %v3221 = vadd.f32 %v3217, %v3220
  %vm3222 = vweird.f32 %v3201
  %vm3223 = vweird.f32 %v3217
  %vm3224 = vmor %vm3222, %vm3223
  %v3225 = vsel %vm3224, %v3217, %v3221
  %v3226 = vand.u32 2147483647, %v3201
  %vm3227 = vcmp.eq.f32.partialorder %v3226, 8.507059e+37
  %v3228 = vand.u32 %v3201, 2147483648
  %v3229 = vor.u32 1.1754944e-38, %v3228
  %v3230 = vsel %vm3227, %v3229, %v3225
  %v3231 = vmul.f32 1.0, %v3230
  %v3232 = vtanh.pop %v3152
  %v3233 = vtanh.pop %v3153
  %v3234 = vxor.u32 %v3154, 2147483648
  %v3235 = vxor.u32 %v3155, 2147483648
  %v3236 = vmul.f32 %v3234, 1.442695
  %v3237 = vpow.pop %v3236
  %v3238 = vmul.f32 %v3235, 1.442695
  %v3239 = vpow.pop %v3238
  %v3240 = vadd.f32 %v3237, 1.0
  %v3241 = vadd.f32 %v3239, 1.0
  %v3242 = vrcp.pop %v3240
  %v3243 = vmul.f32 %v3240, %v3242
  %v3244 = vsub.f32 1.0, %v3243
  %v3245 = vmul.f32 %v3242, %v3244
  %v3246 = vadd.f32 %v3242, %v3245
  %vm3247 = vweird.f32 %v3240
  %vm3248 = vweird.f32 %v3242
  %vm3249 = vmor %vm3247, %vm3248
  %v3250 = vsel %vm3249, %v3242, %v3246
  %v3251 = vand.u32 2147483647, %v3240
  %vm3252 = vcmp.eq.f32.partialorder %v3251, 8.507059e+37
  %v3253 = vand.u32 %v3240, 2147483648
  %v3254 = vor.u32 1.1754944e-38, %v3253
  %v3255 = vsel %vm3252, %v3254, %v3250
  %v3256 = vmul.f32 1.0, %v3255
  %v3257 = vrcp.pop %v3241
  %v3258 = vmul.f32 %v3241, %v3257
  %v3259 = vsub.f32 1.0, %v3258
  %v3260 = vmul.f32 %v3257, %v3259
  %v3261 = vadd.f32 %v3257, %v3260
  %vm3262 = vweird.f32 %v3241
  %vm3263 = vweird.f32 %v3257
  %vm3264 = vmor %vm3262, %vm3263
  %v3265 = vsel %vm3264, %v3257, %v3261
  %v3266 = vand.u32 2147483647, %v3241
  %vm3267 = vcmp.eq.f32.partialorder %v3266, 8.507059e+37
  %v3268 = vand.u32 %v3241, 2147483648
  %v3269 = vor.u32 1.1754944e-38, %v3268
  %v3270 = vsel %vm3267, %v3269, %v3265
  %v3271 = vmul.f32 1.0, %v3270
  %v3272 = vmul.f32 %v3216, %v2694
  %v3273 = vmul.f32 %v3231, %v2695
  %v3274 = vmul.f32 %v3178, %v3232
  %v3275 = vmul.f32 %v3193, %v3233
  %v3276 = vadd.f32 %v3272, %v3274
  %v3277 = vadd.f32 %v3273, %v3275
  %v3278 = vtanh.pop %v3276
  %v3279 = vtanh.pop %v3277
  %v3280 = vmul.f32 %v3256, %v3278
  %v3281 = vmul.f32 %v3271, %v3279
  %s3282 = smul.u32 1, 2
  %s3283 = smul.addr %s3282, 8
  %s3284 = scalar_lea.vmem %s4, %s3283
  %3285 = vst [vmem:[%s3284] sm:$0xff] %v3280
  %3286 = vst [vmem:[%s3284 + $0x8] sm:$0xff] %v3281
  %v3287 = vsel %vm835, %v3280, 0.0
  %v3288 = vsel %vm836, %v3281, 0.0
  %v3289 = vsel %vm837, %v3280, 0.0
  %v3290 = vsel %vm838, %v3281, 0.0
  %v3291 = vpack.c.bf16 %v3287, %v3287
  %v3292 = vpack.c.bf16 %v3288, %v3288
  %v3293 = vpack.c.bf16 %v3289, %v3289
  %v3294 = vpack.c.bf16 %v3290, %v3290
  %3295 = vmatpush.bf16.msra.mxu0 %v1675
  %3296 = vmatpush.bf16.msra.mxu0 %v1667
  %3297 = vmatpush.bf16.msra.mxu0 %v1659
  %3298 = vmatpush.bf16.msra.mxu0 %v1651
  %3299 = vmatpush.bf16.msra.mxu0 %v1643
  %3300 = vmatpush.bf16.msra.mxu0 %v1635
  %3301 = vmatpush.bf16.msra.mxu0 %v1627
  %3302 = vmatpush.bf16.msra.mxu0 %v1619
  %3303 = vmatmul.bf16.gmra.mxu0 %v3291
  %v3304 = vpop.f32.mrf.mxu0
  %v3305 = vadd.f32 0.0, %v3304
  %v3306 = vpop.f32.mrf.mxu0
  %3307 = vdwg.mxu0
  %3308 = vmatpush.bf16.msra.mxu0 %v1739
  %3309 = vmatpush.bf16.msra.mxu0 %v1731
  %3310 = vmatpush.bf16.msra.mxu0 %v1723
  %3311 = vmatpush.bf16.msra.mxu0 %v1715
  %3312 = vmatpush.bf16.msra.mxu0 %v1707
  %3313 = vmatpush.bf16.msra.mxu0 %v1699
  %3314 = vmatpush.bf16.msra.mxu0 %v1691
  %3315 = vmatpush.bf16.msra.mxu0 %v1683
  %3316 = vmatmul.bf16.gmra.mxu0 %v3292
  %v3317 = vpop.f32.mrf.mxu0
  %v3318 = vadd.f32 %v3305, %v3317
  %v3319 = vpop.f32.mrf.mxu0
  %3320 = vdwg.mxu0
  %3321 = vmatpush.bf16.msra.mxu0 %v1803
  %3322 = vmatpush.bf16.msra.mxu0 %v1795
  %3323 = vmatpush.bf16.msra.mxu0 %v1787
  %3324 = vmatpush.bf16.msra.mxu0 %v1779
  %3325 = vmatpush.bf16.msra.mxu0 %v1771
  %3326 = vmatpush.bf16.msra.mxu0 %v1763
  %3327 = vmatpush.bf16.msra.mxu0 %v1755
  %3328 = vmatpush.bf16.msra.mxu0 %v1747
  %3329 = vmatmul.bf16.gmra.mxu0 %v3293
  %v3330 = vpop.f32.mrf.mxu0
  %v3331 = vadd.f32 %v3318, %v3330
  %v3332 = vpop.f32.mrf.mxu0
  %3333 = vdwg.mxu0
  %3334 = vmatpush.bf16.msra.mxu0 %v1867
  %3335 = vmatpush.bf16.msra.mxu0 %v1859
  %3336 = vmatpush.bf16.msra.mxu0 %v1851
  %3337 = vmatpush.bf16.msra.mxu0 %v1843
  %3338 = vmatpush.bf16.msra.mxu0 %v1835
  %3339 = vmatpush.bf16.msra.mxu0 %v1827
  %3340 = vmatpush.bf16.msra.mxu0 %v1819
  %3341 = vmatpush.bf16.msra.mxu0 %v1811
  %3342 = vmatmul.bf16.gmra.mxu0 %v3294
  %v3343 = vpop.f32.mrf.mxu0
  %v3344 = vadd.f32 %v3331, %v3343
  %v3345 = vpop.f32.mrf.mxu0
  %3346 = vdwg.mxu0
  %3347 = vmatpush.bf16.msra.mxu0 %v1676
  %3348 = vmatpush.bf16.msra.mxu0 %v1668
  %3349 = vmatpush.bf16.msra.mxu0 %v1660
  %3350 = vmatpush.bf16.msra.mxu0 %v1652
  %3351 = vmatpush.bf16.msra.mxu0 %v1644
  %3352 = vmatpush.bf16.msra.mxu0 %v1636
  %3353 = vmatpush.bf16.msra.mxu0 %v1628
  %3354 = vmatpush.bf16.msra.mxu0 %v1620
  %3355 = vmatmul.bf16.gmra.mxu0 %v3291
  %v3356 = vpop.f32.mrf.mxu0
  %v3357 = vadd.f32 0.0, %v3356
  %v3358 = vpop.f32.mrf.mxu0
  %3359 = vdwg.mxu0
  %3360 = vmatpush.bf16.msra.mxu0 %v1740
  %3361 = vmatpush.bf16.msra.mxu0 %v1732
  %3362 = vmatpush.bf16.msra.mxu0 %v1724
  %3363 = vmatpush.bf16.msra.mxu0 %v1716
  %3364 = vmatpush.bf16.msra.mxu0 %v1708
  %3365 = vmatpush.bf16.msra.mxu0 %v1700
  %3366 = vmatpush.bf16.msra.mxu0 %v1692
  %3367 = vmatpush.bf16.msra.mxu0 %v1684
  %3368 = vmatmul.bf16.gmra.mxu0 %v3292
  %v3369 = vpop.f32.mrf.mxu0
  %v3370 = vadd.f32 %v3357, %v3369
  %v3371 = vpop.f32.mrf.mxu0
  %3372 = vdwg.mxu0
  %3373 = vmatpush.bf16.msra.mxu0 %v1804
  %3374 = vmatpush.bf16.msra.mxu0 %v1796
  %3375 = vmatpush.bf16.msra.mxu0 %v1788
  %3376 = vmatpush.bf16.msra.mxu0 %v1780
  %3377 = vmatpush.bf16.msra.mxu0 %v1772
  %3378 = vmatpush.bf16.msra.mxu0 %v1764
  %3379 = vmatpush.bf16.msra.mxu0 %v1756
  %3380 = vmatpush.bf16.msra.mxu0 %v1748
  %3381 = vmatmul.bf16.gmra.mxu0 %v3293
  %v3382 = vpop.f32.mrf.mxu0
  %v3383 = vadd.f32 %v3370, %v3382
  %v3384 = vpop.f32.mrf.mxu0
  %3385 = vdwg.mxu0
  %3386 = vmatpush.bf16.msra.mxu0 %v1868
  %3387 = vmatpush.bf16.msra.mxu0 %v1860
  %3388 = vmatpush.bf16.msra.mxu0 %v1852
  %3389 = vmatpush.bf16.msra.mxu0 %v1844
  %3390 = vmatpush.bf16.msra.mxu0 %v1836
  %3391 = vmatpush.bf16.msra.mxu0 %v1828
  %3392 = vmatpush.bf16.msra.mxu0 %v1820
  %3393 = vmatpush.bf16.msra.mxu0 %v1812
  %3394 = vmatmul.bf16.gmra.mxu0 %v3294
  %v3395 = vpop.f32.mrf.mxu0
  %v3396 = vadd.f32 %v3383, %v3395
  %v3397 = vpop.f32.mrf.mxu0
  %3398 = vdwg.mxu0
  %3399 = vmatpush.bf16.msra.mxu0 %v1677
  %3400 = vmatpush.bf16.msra.mxu0 %v1669
  %3401 = vmatpush.bf16.msra.mxu0 %v1661
  %3402 = vmatpush.bf16.msra.mxu0 %v1653
  %3403 = vmatpush.bf16.msra.mxu0 %v1645
  %3404 = vmatpush.bf16.msra.mxu0 %v1637
  %3405 = vmatpush.bf16.msra.mxu0 %v1629
  %3406 = vmatpush.bf16.msra.mxu0 %v1621
  %3407 = vmatmul.bf16.gmra.mxu0 %v3291
  %v3408 = vpop.f32.mrf.mxu0
  %v3409 = vadd.f32 0.0, %v3408
  %v3410 = vpop.f32.mrf.mxu0
  %3411 = vdwg.mxu0
  %3412 = vmatpush.bf16.msra.mxu0 %v1741
  %3413 = vmatpush.bf16.msra.mxu0 %v1733
  %3414 = vmatpush.bf16.msra.mxu0 %v1725
  %3415 = vmatpush.bf16.msra.mxu0 %v1717
  %3416 = vmatpush.bf16.msra.mxu0 %v1709
  %3417 = vmatpush.bf16.msra.mxu0 %v1701
  %3418 = vmatpush.bf16.msra.mxu0 %v1693
  %3419 = vmatpush.bf16.msra.mxu0 %v1685
  %3420 = vmatmul.bf16.gmra.mxu0 %v3292
  %v3421 = vpop.f32.mrf.mxu0
  %v3422 = vadd.f32 %v3409, %v3421
  %v3423 = vpop.f32.mrf.mxu0
  %3424 = vdwg.mxu0
  %3425 = vmatpush.bf16.msra.mxu0 %v1805
  %3426 = vmatpush.bf16.msra.mxu0 %v1797
  %3427 = vmatpush.bf16.msra.mxu0 %v1789
  %3428 = vmatpush.bf16.msra.mxu0 %v1781
  %3429 = vmatpush.bf16.msra.mxu0 %v1773
  %3430 = vmatpush.bf16.msra.mxu0 %v1765
  %3431 = vmatpush.bf16.msra.mxu0 %v1757
  %3432 = vmatpush.bf16.msra.mxu0 %v1749
  %3433 = vmatmul.bf16.gmra.mxu0 %v3293
  %v3434 = vpop.f32.mrf.mxu0
  %v3435 = vadd.f32 %v3422, %v3434
  %v3436 = vpop.f32.mrf.mxu0
  %3437 = vdwg.mxu0
  %3438 = vmatpush.bf16.msra.mxu0 %v1869
  %3439 = vmatpush.bf16.msra.mxu0 %v1861
  %3440 = vmatpush.bf16.msra.mxu0 %v1853
  %3441 = vmatpush.bf16.msra.mxu0 %v1845
  %3442 = vmatpush.bf16.msra.mxu0 %v1837
  %3443 = vmatpush.bf16.msra.mxu0 %v1829
  %3444 = vmatpush.bf16.msra.mxu0 %v1821
  %3445 = vmatpush.bf16.msra.mxu0 %v1813
  %3446 = vmatmul.bf16.gmra.mxu0 %v3294
  %v3447 = vpop.f32.mrf.mxu0
  %v3448 = vadd.f32 %v3435, %v3447
  %v3449 = vpop.f32.mrf.mxu0
  %3450 = vdwg.mxu0
  %3451 = vmatpush.bf16.msra.mxu0 %v1678
  %3452 = vmatpush.bf16.msra.mxu0 %v1670
  %3453 = vmatpush.bf16.msra.mxu0 %v1662
  %3454 = vmatpush.bf16.msra.mxu0 %v1654
  %3455 = vmatpush.bf16.msra.mxu0 %v1646
  %3456 = vmatpush.bf16.msra.mxu0 %v1638
  %3457 = vmatpush.bf16.msra.mxu0 %v1630
  %3458 = vmatpush.bf16.msra.mxu0 %v1622
  %3459 = vmatmul.bf16.gmra.mxu0 %v3291
  %v3460 = vpop.f32.mrf.mxu0
  %v3461 = vadd.f32 0.0, %v3460
  %v3462 = vpop.f32.mrf.mxu0
  %3463 = vdwg.mxu0
  %3464 = vmatpush.bf16.msra.mxu0 %v1742
  %3465 = vmatpush.bf16.msra.mxu0 %v1734
  %3466 = vmatpush.bf16.msra.mxu0 %v1726
  %3467 = vmatpush.bf16.msra.mxu0 %v1718
  %3468 = vmatpush.bf16.msra.mxu0 %v1710
  %3469 = vmatpush.bf16.msra.mxu0 %v1702
  %3470 = vmatpush.bf16.msra.mxu0 %v1694
  %3471 = vmatpush.bf16.msra.mxu0 %v1686
  %3472 = vmatmul.bf16.gmra.mxu0 %v3292
  %v3473 = vpop.f32.mrf.mxu0
  %v3474 = vadd.f32 %v3461, %v3473
  %v3475 = vpop.f32.mrf.mxu0
  %3476 = vdwg.mxu0
  %3477 = vmatpush.bf16.msra.mxu0 %v1806
  %3478 = vmatpush.bf16.msra.mxu0 %v1798
  %3479 = vmatpush.bf16.msra.mxu0 %v1790
  %3480 = vmatpush.bf16.msra.mxu0 %v1782
  %3481 = vmatpush.bf16.msra.mxu0 %v1774
  %3482 = vmatpush.bf16.msra.mxu0 %v1766
  %3483 = vmatpush.bf16.msra.mxu0 %v1758
  %3484 = vmatpush.bf16.msra.mxu0 %v1750
  %3485 = vmatmul.bf16.gmra.mxu0 %v3293
  %v3486 = vpop.f32.mrf.mxu0
  %v3487 = vadd.f32 %v3474, %v3486
  %v3488 = vpop.f32.mrf.mxu0
  %3489 = vdwg.mxu0
  %3490 = vmatpush.bf16.msra.mxu0 %v1870
  %3491 = vmatpush.bf16.msra.mxu0 %v1862
  %3492 = vmatpush.bf16.msra.mxu0 %v1854
  %3493 = vmatpush.bf16.msra.mxu0 %v1846
  %3494 = vmatpush.bf16.msra.mxu0 %v1838
  %3495 = vmatpush.bf16.msra.mxu0 %v1830
  %3496 = vmatpush.bf16.msra.mxu0 %v1822
  %3497 = vmatpush.bf16.msra.mxu0 %v1814
  %3498 = vmatmul.bf16.gmra.mxu0 %v3294
  %v3499 = vpop.f32.mrf.mxu0
  %v3500 = vadd.f32 %v3487, %v3499
  %v3501 = vpop.f32.mrf.mxu0
  %3502 = vdwg.mxu0
  %3503 = vmatpush.bf16.msra.mxu0 %v1679
  %3504 = vmatpush.bf16.msra.mxu0 %v1671
  %3505 = vmatpush.bf16.msra.mxu0 %v1663
  %3506 = vmatpush.bf16.msra.mxu0 %v1655
  %3507 = vmatpush.bf16.msra.mxu0 %v1647
  %3508 = vmatpush.bf16.msra.mxu0 %v1639
  %3509 = vmatpush.bf16.msra.mxu0 %v1631
  %3510 = vmatpush.bf16.msra.mxu0 %v1623
  %3511 = vmatmul.bf16.gmra.mxu0 %v3291
  %v3512 = vpop.f32.mrf.mxu0
  %v3513 = vadd.f32 0.0, %v3512
  %v3514 = vpop.f32.mrf.mxu0
  %3515 = vdwg.mxu0
  %3516 = vmatpush.bf16.msra.mxu0 %v1743
  %3517 = vmatpush.bf16.msra.mxu0 %v1735
  %3518 = vmatpush.bf16.msra.mxu0 %v1727
  %3519 = vmatpush.bf16.msra.mxu0 %v1719
  %3520 = vmatpush.bf16.msra.mxu0 %v1711
  %3521 = vmatpush.bf16.msra.mxu0 %v1703
  %3522 = vmatpush.bf16.msra.mxu0 %v1695
  %3523 = vmatpush.bf16.msra.mxu0 %v1687
  %3524 = vmatmul.bf16.gmra.mxu0 %v3292
  %v3525 = vpop.f32.mrf.mxu0
  %v3526 = vadd.f32 %v3513, %v3525
  %v3527 = vpop.f32.mrf.mxu0
  %3528 = vdwg.mxu0
  %3529 = vmatpush.bf16.msra.mxu0 %v1807
  %3530 = vmatpush.bf16.msra.mxu0 %v1799
  %3531 = vmatpush.bf16.msra.mxu0 %v1791
  %3532 = vmatpush.bf16.msra.mxu0 %v1783
  %3533 = vmatpush.bf16.msra.mxu0 %v1775
  %3534 = vmatpush.bf16.msra.mxu0 %v1767
  %3535 = vmatpush.bf16.msra.mxu0 %v1759
  %3536 = vmatpush.bf16.msra.mxu0 %v1751
  %3537 = vmatmul.bf16.gmra.mxu0 %v3293
  %v3538 = vpop.f32.mrf.mxu0
  %v3539 = vadd.f32 %v3526, %v3538
  %v3540 = vpop.f32.mrf.mxu0
  %3541 = vdwg.mxu0
  %3542 = vmatpush.bf16.msra.mxu0 %v1871
  %3543 = vmatpush.bf16.msra.mxu0 %v1863
  %3544 = vmatpush.bf16.msra.mxu0 %v1855
  %3545 = vmatpush.bf16.msra.mxu0 %v1847
  %3546 = vmatpush.bf16.msra.mxu0 %v1839
  %3547 = vmatpush.bf16.msra.mxu0 %v1831
  %3548 = vmatpush.bf16.msra.mxu0 %v1823
  %3549 = vmatpush.bf16.msra.mxu0 %v1815
  %3550 = vmatmul.bf16.gmra.mxu0 %v3294
  %v3551 = vpop.f32.mrf.mxu0
  %v3552 = vadd.f32 %v3539, %v3551
  %v3553 = vpop.f32.mrf.mxu0
  %3554 = vdwg.mxu0
  %3555 = vmatpush.bf16.msra.mxu0 %v1680
  %3556 = vmatpush.bf16.msra.mxu0 %v1672
  %3557 = vmatpush.bf16.msra.mxu0 %v1664
  %3558 = vmatpush.bf16.msra.mxu0 %v1656
  %3559 = vmatpush.bf16.msra.mxu0 %v1648
  %3560 = vmatpush.bf16.msra.mxu0 %v1640
  %3561 = vmatpush.bf16.msra.mxu0 %v1632
  %3562 = vmatpush.bf16.msra.mxu0 %v1624
  %3563 = vmatmul.bf16.gmra.mxu0 %v3291
  %v3564 = vpop.f32.mrf.mxu0
  %v3565 = vadd.f32 0.0, %v3564
  %v3566 = vpop.f32.mrf.mxu0
  %3567 = vdwg.mxu0
  %3568 = vmatpush.bf16.msra.mxu0 %v1744
  %3569 = vmatpush.bf16.msra.mxu0 %v1736
  %3570 = vmatpush.bf16.msra.mxu0 %v1728
  %3571 = vmatpush.bf16.msra.mxu0 %v1720
  %3572 = vmatpush.bf16.msra.mxu0 %v1712
  %3573 = vmatpush.bf16.msra.mxu0 %v1704
  %3574 = vmatpush.bf16.msra.mxu0 %v1696
  %3575 = vmatpush.bf16.msra.mxu0 %v1688
  %3576 = vmatmul.bf16.gmra.mxu0 %v3292
  %v3577 = vpop.f32.mrf.mxu0
  %v3578 = vadd.f32 %v3565, %v3577
  %v3579 = vpop.f32.mrf.mxu0
  %3580 = vdwg.mxu0
  %3581 = vmatpush.bf16.msra.mxu0 %v1808
  %3582 = vmatpush.bf16.msra.mxu0 %v1800
  %3583 = vmatpush.bf16.msra.mxu0 %v1792
  %3584 = vmatpush.bf16.msra.mxu0 %v1784
  %3585 = vmatpush.bf16.msra.mxu0 %v1776
  %3586 = vmatpush.bf16.msra.mxu0 %v1768
  %3587 = vmatpush.bf16.msra.mxu0 %v1760
  %3588 = vmatpush.bf16.msra.mxu0 %v1752
  %3589 = vmatmul.bf16.gmra.mxu0 %v3293
  %v3590 = vpop.f32.mrf.mxu0
  %v3591 = vadd.f32 %v3578, %v3590
  %v3592 = vpop.f32.mrf.mxu0
  %3593 = vdwg.mxu0
  %3594 = vmatpush.bf16.msra.mxu0 %v1872
  %3595 = vmatpush.bf16.msra.mxu0 %v1864
  %3596 = vmatpush.bf16.msra.mxu0 %v1856
  %3597 = vmatpush.bf16.msra.mxu0 %v1848
  %3598 = vmatpush.bf16.msra.mxu0 %v1840
  %3599 = vmatpush.bf16.msra.mxu0 %v1832
  %3600 = vmatpush.bf16.msra.mxu0 %v1824
  %3601 = vmatpush.bf16.msra.mxu0 %v1816
  %3602 = vmatmul.bf16.gmra.mxu0 %v3294
  %v3603 = vpop.f32.mrf.mxu0
  %v3604 = vadd.f32 %v3591, %v3603
  %v3605 = vpop.f32.mrf.mxu0
  %3606 = vdwg.mxu0
  %3607 = vmatpush.bf16.msra.mxu0 %v1681
  %3608 = vmatpush.bf16.msra.mxu0 %v1673
  %3609 = vmatpush.bf16.msra.mxu0 %v1665
  %3610 = vmatpush.bf16.msra.mxu0 %v1657
  %3611 = vmatpush.bf16.msra.mxu0 %v1649
  %3612 = vmatpush.bf16.msra.mxu0 %v1641
  %3613 = vmatpush.bf16.msra.mxu0 %v1633
  %3614 = vmatpush.bf16.msra.mxu0 %v1625
  %3615 = vmatmul.bf16.gmra.mxu0 %v3291
  %v3616 = vpop.f32.mrf.mxu0
  %v3617 = vadd.f32 0.0, %v3616
  %v3618 = vpop.f32.mrf.mxu0
  %3619 = vdwg.mxu0
  %3620 = vmatpush.bf16.msra.mxu0 %v1745
  %3621 = vmatpush.bf16.msra.mxu0 %v1737
  %3622 = vmatpush.bf16.msra.mxu0 %v1729
  %3623 = vmatpush.bf16.msra.mxu0 %v1721
  %3624 = vmatpush.bf16.msra.mxu0 %v1713
  %3625 = vmatpush.bf16.msra.mxu0 %v1705
  %3626 = vmatpush.bf16.msra.mxu0 %v1697
  %3627 = vmatpush.bf16.msra.mxu0 %v1689
  %3628 = vmatmul.bf16.gmra.mxu0 %v3292
  %v3629 = vpop.f32.mrf.mxu0
  %v3630 = vadd.f32 %v3617, %v3629
  %v3631 = vpop.f32.mrf.mxu0
  %3632 = vdwg.mxu0
  %3633 = vmatpush.bf16.msra.mxu0 %v1809
  %3634 = vmatpush.bf16.msra.mxu0 %v1801
  %3635 = vmatpush.bf16.msra.mxu0 %v1793
  %3636 = vmatpush.bf16.msra.mxu0 %v1785
  %3637 = vmatpush.bf16.msra.mxu0 %v1777
  %3638 = vmatpush.bf16.msra.mxu0 %v1769
  %3639 = vmatpush.bf16.msra.mxu0 %v1761
  %3640 = vmatpush.bf16.msra.mxu0 %v1753
  %3641 = vmatmul.bf16.gmra.mxu0 %v3293
  %v3642 = vpop.f32.mrf.mxu0
  %v3643 = vadd.f32 %v3630, %v3642
  %v3644 = vpop.f32.mrf.mxu0
  %3645 = vdwg.mxu0
  %3646 = vmatpush.bf16.msra.mxu0 %v1873
  %3647 = vmatpush.bf16.msra.mxu0 %v1865
  %3648 = vmatpush.bf16.msra.mxu0 %v1857
  %3649 = vmatpush.bf16.msra.mxu0 %v1849
  %3650 = vmatpush.bf16.msra.mxu0 %v1841
  %3651 = vmatpush.bf16.msra.mxu0 %v1833
  %3652 = vmatpush.bf16.msra.mxu0 %v1825
  %3653 = vmatpush.bf16.msra.mxu0 %v1817
  %3654 = vmatmul.bf16.gmra.mxu0 %v3294
  %v3655 = vpop.f32.mrf.mxu0
  %v3656 = vadd.f32 %v3643, %v3655
  %v3657 = vpop.f32.mrf.mxu0
  %3658 = vdwg.mxu0
  %3659 = vmatpush.bf16.msra.mxu0 %v1682
  %3660 = vmatpush.bf16.msra.mxu0 %v1674
  %3661 = vmatpush.bf16.msra.mxu0 %v1666
  %3662 = vmatpush.bf16.msra.mxu0 %v1658
  %3663 = vmatpush.bf16.msra.mxu0 %v1650
  %3664 = vmatpush.bf16.msra.mxu0 %v1642
  %3665 = vmatpush.bf16.msra.mxu0 %v1634
  %3666 = vmatpush.bf16.msra.mxu0 %v1626
  %3667 = vmatmul.bf16.gmra.mxu0 %v3291
  %v3668 = vpop.f32.mrf.mxu0
  %v3669 = vadd.f32 0.0, %v3668
  %v3670 = vpop.f32.mrf.mxu0
  %3671 = vdwg.mxu0
  %3672 = vmatpush.bf16.msra.mxu0 %v1746
  %3673 = vmatpush.bf16.msra.mxu0 %v1738
  %3674 = vmatpush.bf16.msra.mxu0 %v1730
  %3675 = vmatpush.bf16.msra.mxu0 %v1722
  %3676 = vmatpush.bf16.msra.mxu0 %v1714
  %3677 = vmatpush.bf16.msra.mxu0 %v1706
  %3678 = vmatpush.bf16.msra.mxu0 %v1698
  %3679 = vmatpush.bf16.msra.mxu0 %v1690
  %3680 = vmatmul.bf16.gmra.mxu0 %v3292
  %v3681 = vpop.f32.mrf.mxu0
  %v3682 = vadd.f32 %v3669, %v3681
  %v3683 = vpop.f32.mrf.mxu0
  %3684 = vdwg.mxu0
  %3685 = vmatpush.bf16.msra.mxu0 %v1810
  %3686 = vmatpush.bf16.msra.mxu0 %v1802
  %3687 = vmatpush.bf16.msra.mxu0 %v1794
  %3688 = vmatpush.bf16.msra.mxu0 %v1786
  %3689 = vmatpush.bf16.msra.mxu0 %v1778
  %3690 = vmatpush.bf16.msra.mxu0 %v1770
  %3691 = vmatpush.bf16.msra.mxu0 %v1762
  %3692 = vmatpush.bf16.msra.mxu0 %v1754
  %3693 = vmatmul.bf16.gmra.mxu0 %v3293
  %v3694 = vpop.f32.mrf.mxu0
  %v3695 = vadd.f32 %v3682, %v3694
  %v3696 = vpop.f32.mrf.mxu0
  %3697 = vdwg.mxu0
  %3698 = vmatpush.bf16.msra.mxu0 %v1874
  %3699 = vmatpush.bf16.msra.mxu0 %v1866
  %3700 = vmatpush.bf16.msra.mxu0 %v1858
  %3701 = vmatpush.bf16.msra.mxu0 %v1850
  %3702 = vmatpush.bf16.msra.mxu0 %v1842
  %3703 = vmatpush.bf16.msra.mxu0 %v1834
  %3704 = vmatpush.bf16.msra.mxu0 %v1826
  %3705 = vmatpush.bf16.msra.mxu0 %v1818
  %3706 = vmatmul.bf16.gmra.mxu0 %v3294
  %v3707 = vpop.f32.mrf.mxu0
  %v3708 = vadd.f32 %v3695, %v3707
  %v3709 = vpop.f32.mrf.mxu0
  %3710 = vdwg.mxu0
  %s3711 = smul.u32 2, 8
  %s3712 = smul.addr %s3711, 8
  %s3713 = scalar_lea.vmem [#allocation2], %s3712
  %v3714 = vld [vmem:[%s3713] sm:$0xff]
  %v3715 = vld [vmem:[%s3713 + $0x8] sm:$0xff]
  %v3716 = vld [vmem:[%s3713 + $0x10] sm:$0xff]
  %v3717 = vld [vmem:[%s3713 + $0x18] sm:$0xff]
  %v3718 = vld [vmem:[%s3713 + $0x20] sm:$0xff]
  %v3719 = vld [vmem:[%s3713 + $0x28] sm:$0xff]
  %v3720 = vld [vmem:[%s3713 + $0x30] sm:$0xff]
  %v3721 = vld [vmem:[%s3713 + $0x38] sm:$0xff]
  %v3722 = vadd.f32 %v3714, %v3344
  %v3723 = vadd.f32 %v3715, %v3396
  %v3724 = vadd.f32 %v3716, %v3448
  %v3725 = vadd.f32 %v3717, %v3500
  %v3726 = vadd.f32 %v3718, %v3552
  %v3727 = vadd.f32 %v3719, %v3604
  %v3728 = vadd.f32 %v3720, %v3656
  %v3729 = vadd.f32 %v3721, %v3708
  %v3730 = vadd.f32 %v3722, %v811
  %v3731 = vadd.f32 %v3723, %v812
  %v3732 = vadd.f32 %v3724, %v813
  %v3733 = vadd.f32 %v3725, %v814
  %v3734 = vadd.f32 %v3726, %v815
  %v3735 = vadd.f32 %v3727, %v816
  %v3736 = vadd.f32 %v3728, %v817
  %v3737 = vadd.f32 %v3729, %v818
  %v3738 = vxor.u32 %v3730, 2147483648
  %v3739 = vxor.u32 %v3731, 2147483648
  %v3740 = vmul.f32 %v3738, 1.442695
  %v3741 = vpow.pop %v3740
  %v3742 = vmul.f32 %v3739, 1.442695
  %v3743 = vpow.pop %v3742
  %v3744 = vadd.f32 %v3741, 1.0
  %v3745 = vadd.f32 %v3743, 1.0
  %v3746 = vrcp.pop %v3744
  %v3747 = vmul.f32 %v3744, %v3746
  %v3748 = vsub.f32 1.0, %v3747
  %v3749 = vmul.f32 %v3746, %v3748
  %v3750 = vadd.f32 %v3746, %v3749
  %vm3751 = vweird.f32 %v3744
  %vm3752 = vweird.f32 %v3746
  %vm3753 = vmor %vm3751, %vm3752
  %v3754 = vsel %vm3753, %v3746, %v3750
  %v3755 = vand.u32 2147483647, %v3744
  %vm3756 = vcmp.eq.f32.partialorder %v3755, 8.507059e+37
  %v3757 = vand.u32 %v3744, 2147483648
  %v3758 = vor.u32 1.1754944e-38, %v3757
  %v3759 = vsel %vm3756, %v3758, %v3754
  %v3760 = vmul.f32 1.0, %v3759
  %v3761 = vrcp.pop %v3745
  %v3762 = vmul.f32 %v3745, %v3761
  %v3763 = vsub.f32 1.0, %v3762
  %v3764 = vmul.f32 %v3761, %v3763
  %v3765 = vadd.f32 %v3761, %v3764
  %vm3766 = vweird.f32 %v3745
  %vm3767 = vweird.f32 %v3761
  %vm3768 = vmor %vm3766, %vm3767
  %v3769 = vsel %vm3768, %v3761, %v3765
  %v3770 = vand.u32 2147483647, %v3745
  %vm3771 = vcmp.eq.f32.partialorder %v3770, 8.507059e+37
  %v3772 = vand.u32 %v3745, 2147483648
  %v3773 = vor.u32 1.1754944e-38, %v3772
  %v3774 = vsel %vm3771, %v3773, %v3769
  %v3775 = vmul.f32 1.0, %v3774
  %v3776 = vxor.u32 %v3732, 2147483648
  %v3777 = vxor.u32 %v3733, 2147483648
  %v3778 = vmul.f32 %v3776, 1.442695
  %v3779 = vpow.pop %v3778
  %v3780 = vmul.f32 %v3777, 1.442695
  %v3781 = vpow.pop %v3780
  %v3782 = vadd.f32 %v3779, 1.0
  %v3783 = vadd.f32 %v3781, 1.0
  %v3784 = vrcp.pop %v3782
  %v3785 = vmul.f32 %v3782, %v3784
  %v3786 = vsub.f32 1.0, %v3785
  %v3787 = vmul.f32 %v3784, %v3786
  %v3788 = vadd.f32 %v3784, %v3787
  %vm3789 = vweird.f32 %v3782
  %vm3790 = vweird.f32 %v3784
  %vm3791 = vmor %vm3789, %vm3790
  %v3792 = vsel %vm3791, %v3784, %v3788
  %v3793 = vand.u32 2147483647, %v3782
  %vm3794 = vcmp.eq.f32.partialorder %v3793, 8.507059e+37
  %v3795 = vand.u32 %v3782, 2147483648
  %v3796 = vor.u32 1.1754944e-38, %v3795
  %v3797 = vsel %vm3794, %v3796, %v3792
  %v3798 = vmul.f32 1.0, %v3797
  %v3799 = vrcp.pop %v3783
  %v3800 = vmul.f32 %v3783, %v3799
  %v3801 = vsub.f32 1.0, %v3800
  %v3802 = vmul.f32 %v3799, %v3801
  %v3803 = vadd.f32 %v3799, %v3802
  %vm3804 = vweird.f32 %v3783
  %vm3805 = vweird.f32 %v3799
  %vm3806 = vmor %vm3804, %vm3805
  %v3807 = vsel %vm3806, %v3799, %v3803
  %v3808 = vand.u32 2147483647, %v3783
  %vm3809 = vcmp.eq.f32.partialorder %v3808, 8.507059e+37
  %v3810 = vand.u32 %v3783, 2147483648
  %v3811 = vor.u32 1.1754944e-38, %v3810
  %v3812 = vsel %vm3809, %v3811, %v3807
  %v3813 = vmul.f32 1.0, %v3812
  %v3814 = vtanh.pop %v3734
  %v3815 = vtanh.pop %v3735
  %v3816 = vxor.u32 %v3736, 2147483648
  %v3817 = vxor.u32 %v3737, 2147483648
  %v3818 = vmul.f32 %v3816, 1.442695
  %v3819 = vpow.pop %v3818
  %v3820 = vmul.f32 %v3817, 1.442695
  %v3821 = vpow.pop %v3820
  %v3822 = vadd.f32 %v3819, 1.0
  %v3823 = vadd.f32 %v3821, 1.0
  %v3824 = vrcp.pop %v3822
  %v3825 = vmul.f32 %v3822, %v3824
  %v3826 = vsub.f32 1.0, %v3825
  %v3827 = vmul.f32 %v3824, %v3826
  %v3828 = vadd.f32 %v3824, %v3827
  %vm3829 = vweird.f32 %v3822
  %vm3830 = vweird.f32 %v3824
  %vm3831 = vmor %vm3829, %vm3830
  %v3832 = vsel %vm3831, %v3824, %v3828
  %v3833 = vand.u32 2147483647, %v3822
  %vm3834 = vcmp.eq.f32.partialorder %v3833, 8.507059e+37
  %v3835 = vand.u32 %v3822, 2147483648
  %v3836 = vor.u32 1.1754944e-38, %v3835
  %v3837 = vsel %vm3834, %v3836, %v3832
  %v3838 = vmul.f32 1.0, %v3837
  %v3839 = vrcp.pop %v3823
  %v3840 = vmul.f32 %v3823, %v3839
  %v3841 = vsub.f32 1.0, %v3840
  %v3842 = vmul.f32 %v3839, %v3841
  %v3843 = vadd.f32 %v3839, %v3842
  %vm3844 = vweird.f32 %v3823
  %vm3845 = vweird.f32 %v3839
  %vm3846 = vmor %vm3844, %vm3845
  %v3847 = vsel %vm3846, %v3839, %v3843
  %v3848 = vand.u32 2147483647, %v3823
  %vm3849 = vcmp.eq.f32.partialorder %v3848, 8.507059e+37
  %v3850 = vand.u32 %v3823, 2147483648
  %v3851 = vor.u32 1.1754944e-38, %v3850
  %v3852 = vsel %vm3849, %v3851, %v3847
  %v3853 = vmul.f32 1.0, %v3852
  %v3854 = vmul.f32 %v3798, %v3276
  %v3855 = vmul.f32 %v3813, %v3277
  %v3856 = vmul.f32 %v3760, %v3814
  %v3857 = vmul.f32 %v3775, %v3815
  %v3858 = vadd.f32 %v3854, %v3856
  %v3859 = vadd.f32 %v3855, %v3857
  %v3860 = vtanh.pop %v3858
  %v3861 = vtanh.pop %v3859
  %v3862 = vmul.f32 %v3838, %v3860
  %v3863 = vmul.f32 %v3853, %v3861
  %s3864 = smul.u32 2, 2
  %s3865 = smul.addr %s3864, 8
  %s3866 = scalar_lea.vmem %s4, %s3865
  %3867 = vst [vmem:[%s3866] sm:$0xff] %v3862
  %3868 = vst [vmem:[%s3866 + $0x8] sm:$0xff] %v3863
  %v3869 = vsel %vm835, %v3862, 0.0
  %v3870 = vsel %vm836, %v3863, 0.0
  %v3871 = vsel %vm837, %v3862, 0.0
  %v3872 = vsel %vm838, %v3863, 0.0
  %v3873 = vpack.c.bf16 %v3869, %v3869
  %v3874 = vpack.c.bf16 %v3870, %v3870
  %v3875 = vpack.c.bf16 %v3871, %v3871
  %v3876 = vpack.c.bf16 %v3872, %v3872
  %3877 = vmatpush.bf16.msra.mxu0 %v1675
  %3878 = vmatpush.bf16.msra.mxu0 %v1667
  %3879 = vmatpush.bf16.msra.mxu0 %v1659
  %3880 = vmatpush.bf16.msra.mxu0 %v1651
  %3881 = vmatpush.bf16.msra.mxu0 %v1643
  %3882 = vmatpush.bf16.msra.mxu0 %v1635
  %3883 = vmatpush.bf16.msra.mxu0 %v1627
  %3884 = vmatpush.bf16.msra.mxu0 %v1619
  %3885 = vmatmul.bf16.gmra.mxu0 %v3873
  %v3886 = vpop.f32.mrf.mxu0
  %v3887 = vadd.f32 0.0, %v3886
  %v3888 = vpop.f32.mrf.mxu0
  %3889 = vdwg.mxu0
  %3890 = vmatpush.bf16.msra.mxu0 %v1739
  %3891 = vmatpush.bf16.msra.mxu0 %v1731
  %3892 = vmatpush.bf16.msra.mxu0 %v1723
  %3893 = vmatpush.bf16.msra.mxu0 %v1715
  %3894 = vmatpush.bf16.msra.mxu0 %v1707
  %3895 = vmatpush.bf16.msra.mxu0 %v1699
  %3896 = vmatpush.bf16.msra.mxu0 %v1691
  %3897 = vmatpush.bf16.msra.mxu0 %v1683
  %3898 = vmatmul.bf16.gmra.mxu0 %v3874
  %v3899 = vpop.f32.mrf.mxu0
  %v3900 = vadd.f32 %v3887, %v3899
  %v3901 = vpop.f32.mrf.mxu0
  %3902 = vdwg.mxu0
  %3903 = vmatpush.bf16.msra.mxu0 %v1803
  %3904 = vmatpush.bf16.msra.mxu0 %v1795
  %3905 = vmatpush.bf16.msra.mxu0 %v1787
  %3906 = vmatpush.bf16.msra.mxu0 %v1779
  %3907 = vmatpush.bf16.msra.mxu0 %v1771
  %3908 = vmatpush.bf16.msra.mxu0 %v1763
  %3909 = vmatpush.bf16.msra.mxu0 %v1755
  %3910 = vmatpush.bf16.msra.mxu0 %v1747
  %3911 = vmatmul.bf16.gmra.mxu0 %v3875
  %v3912 = vpop.f32.mrf.mxu0
  %v3913 = vadd.f32 %v3900, %v3912
  %v3914 = vpop.f32.mrf.mxu0
  %3915 = vdwg.mxu0
  %3916 = vmatpush.bf16.msra.mxu0 %v1867
  %3917 = vmatpush.bf16.msra.mxu0 %v1859
  %3918 = vmatpush.bf16.msra.mxu0 %v1851
  %3919 = vmatpush.bf16.msra.mxu0 %v1843
  %3920 = vmatpush.bf16.msra.mxu0 %v1835
  %3921 = vmatpush.bf16.msra.mxu0 %v1827
  %3922 = vmatpush.bf16.msra.mxu0 %v1819
  %3923 = vmatpush.bf16.msra.mxu0 %v1811
  %3924 = vmatmul.bf16.gmra.mxu0 %v3876
  %v3925 = vpop.f32.mrf.mxu0
  %v3926 = vadd.f32 %v3913, %v3925
  %v3927 = vpop.f32.mrf.mxu0
  %3928 = vdwg.mxu0
  %3929 = vmatpush.bf16.msra.mxu0 %v1676
  %3930 = vmatpush.bf16.msra.mxu0 %v1668
  %3931 = vmatpush.bf16.msra.mxu0 %v1660
  %3932 = vmatpush.bf16.msra.mxu0 %v1652
  %3933 = vmatpush.bf16.msra.mxu0 %v1644
  %3934 = vmatpush.bf16.msra.mxu0 %v1636
  %3935 = vmatpush.bf16.msra.mxu0 %v1628
  %3936 = vmatpush.bf16.msra.mxu0 %v1620
  %3937 = vmatmul.bf16.gmra.mxu0 %v3873
  %v3938 = vpop.f32.mrf.mxu0
  %v3939 = vadd.f32 0.0, %v3938
  %v3940 = vpop.f32.mrf.mxu0
  %3941 = vdwg.mxu0
  %3942 = vmatpush.bf16.msra.mxu0 %v1740
  %3943 = vmatpush.bf16.msra.mxu0 %v1732
  %3944 = vmatpush.bf16.msra.mxu0 %v1724
  %3945 = vmatpush.bf16.msra.mxu0 %v1716
  %3946 = vmatpush.bf16.msra.mxu0 %v1708
  %3947 = vmatpush.bf16.msra.mxu0 %v1700
  %3948 = vmatpush.bf16.msra.mxu0 %v1692
  %3949 = vmatpush.bf16.msra.mxu0 %v1684
  %3950 = vmatmul.bf16.gmra.mxu0 %v3874
  %v3951 = vpop.f32.mrf.mxu0
  %v3952 = vadd.f32 %v3939, %v3951
  %v3953 = vpop.f32.mrf.mxu0
  %3954 = vdwg.mxu0
  %3955 = vmatpush.bf16.msra.mxu0 %v1804
  %3956 = vmatpush.bf16.msra.mxu0 %v1796
  %3957 = vmatpush.bf16.msra.mxu0 %v1788
  %3958 = vmatpush.bf16.msra.mxu0 %v1780
  %3959 = vmatpush.bf16.msra.mxu0 %v1772
  %3960 = vmatpush.bf16.msra.mxu0 %v1764
  %3961 = vmatpush.bf16.msra.mxu0 %v1756
  %3962 = vmatpush.bf16.msra.mxu0 %v1748
  %3963 = vmatmul.bf16.gmra.mxu0 %v3875
  %v3964 = vpop.f32.mrf.mxu0
  %v3965 = vadd.f32 %v3952, %v3964
  %v3966 = vpop.f32.mrf.mxu0
  %3967 = vdwg.mxu0
  %3968 = vmatpush.bf16.msra.mxu0 %v1868
  %3969 = vmatpush.bf16.msra.mxu0 %v1860
  %3970 = vmatpush.bf16.msra.mxu0 %v1852
  %3971 = vmatpush.bf16.msra.mxu0 %v1844
  %3972 = vmatpush.bf16.msra.mxu0 %v1836
  %3973 = vmatpush.bf16.msra.mxu0 %v1828
  %3974 = vmatpush.bf16.msra.mxu0 %v1820
  %3975 = vmatpush.bf16.msra.mxu0 %v1812
  %3976 = vmatmul.bf16.gmra.mxu0 %v3876
  %v3977 = vpop.f32.mrf.mxu0
  %v3978 = vadd.f32 %v3965, %v3977
  %v3979 = vpop.f32.mrf.mxu0
  %3980 = vdwg.mxu0
  %3981 = vmatpush.bf16.msra.mxu0 %v1677
  %3982 = vmatpush.bf16.msra.mxu0 %v1669
  %3983 = vmatpush.bf16.msra.mxu0 %v1661
  %3984 = vmatpush.bf16.msra.mxu0 %v1653
  %3985 = vmatpush.bf16.msra.mxu0 %v1645
  %3986 = vmatpush.bf16.msra.mxu0 %v1637
  %3987 = vmatpush.bf16.msra.mxu0 %v1629
  %3988 = vmatpush.bf16.msra.mxu0 %v1621
  %3989 = vmatmul.bf16.gmra.mxu0 %v3873
  %v3990 = vpop.f32.mrf.mxu0
  %v3991 = vadd.f32 0.0, %v3990
  %v3992 = vpop.f32.mrf.mxu0
  %3993 = vdwg.mxu0
  %3994 = vmatpush.bf16.msra.mxu0 %v1741
  %3995 = vmatpush.bf16.msra.mxu0 %v1733
  %3996 = vmatpush.bf16.msra.mxu0 %v1725
  %3997 = vmatpush.bf16.msra.mxu0 %v1717
  %3998 = vmatpush.bf16.msra.mxu0 %v1709
  %3999 = vmatpush.bf16.msra.mxu0 %v1701
  %4000 = vmatpush.bf16.msra.mxu0 %v1693
  %4001 = vmatpush.bf16.msra.mxu0 %v1685
  %4002 = vmatmul.bf16.gmra.mxu0 %v3874
  %v4003 = vpop.f32.mrf.mxu0
  %v4004 = vadd.f32 %v3991, %v4003
  %v4005 = vpop.f32.mrf.mxu0
  %4006 = vdwg.mxu0
  %4007 = vmatpush.bf16.msra.mxu0 %v1805
  %4008 = vmatpush.bf16.msra.mxu0 %v1797
  %4009 = vmatpush.bf16.msra.mxu0 %v1789
  %4010 = vmatpush.bf16.msra.mxu0 %v1781
  %4011 = vmatpush.bf16.msra.mxu0 %v1773
  %4012 = vmatpush.bf16.msra.mxu0 %v1765
  %4013 = vmatpush.bf16.msra.mxu0 %v1757
  %4014 = vmatpush.bf16.msra.mxu0 %v1749
  %4015 = vmatmul.bf16.gmra.mxu0 %v3875
  %v4016 = vpop.f32.mrf.mxu0
  %v4017 = vadd.f32 %v4004, %v4016
  %v4018 = vpop.f32.mrf.mxu0
  %4019 = vdwg.mxu0
  %4020 = vmatpush.bf16.msra.mxu0 %v1869
  %4021 = vmatpush.bf16.msra.mxu0 %v1861
  %4022 = vmatpush.bf16.msra.mxu0 %v1853
  %4023 = vmatpush.bf16.msra.mxu0 %v1845
  %4024 = vmatpush.bf16.msra.mxu0 %v1837
  %4025 = vmatpush.bf16.msra.mxu0 %v1829
  %4026 = vmatpush.bf16.msra.mxu0 %v1821
  %4027 = vmatpush.bf16.msra.mxu0 %v1813
  %4028 = vmatmul.bf16.gmra.mxu0 %v3876
  %v4029 = vpop.f32.mrf.mxu0
  %v4030 = vadd.f32 %v4017, %v4029
  %v4031 = vpop.f32.mrf.mxu0
  %4032 = vdwg.mxu0
  %4033 = vmatpush.bf16.msra.mxu0 %v1678
  %4034 = vmatpush.bf16.msra.mxu0 %v1670
  %4035 = vmatpush.bf16.msra.mxu0 %v1662
  %4036 = vmatpush.bf16.msra.mxu0 %v1654
  %4037 = vmatpush.bf16.msra.mxu0 %v1646
  %4038 = vmatpush.bf16.msra.mxu0 %v1638
  %4039 = vmatpush.bf16.msra.mxu0 %v1630
  %4040 = vmatpush.bf16.msra.mxu0 %v1622
  %4041 = vmatmul.bf16.gmra.mxu0 %v3873
  %v4042 = vpop.f32.mrf.mxu0
  %v4043 = vadd.f32 0.0, %v4042
  %v4044 = vpop.f32.mrf.mxu0
  %4045 = vdwg.mxu0
  %4046 = vmatpush.bf16.msra.mxu0 %v1742
  %4047 = vmatpush.bf16.msra.mxu0 %v1734
  %4048 = vmatpush.bf16.msra.mxu0 %v1726
  %4049 = vmatpush.bf16.msra.mxu0 %v1718
  %4050 = vmatpush.bf16.msra.mxu0 %v1710
  %4051 = vmatpush.bf16.msra.mxu0 %v1702
  %4052 = vmatpush.bf16.msra.mxu0 %v1694
  %4053 = vmatpush.bf16.msra.mxu0 %v1686
  %4054 = vmatmul.bf16.gmra.mxu0 %v3874
  %v4055 = vpop.f32.mrf.mxu0
  %v4056 = vadd.f32 %v4043, %v4055
  %v4057 = vpop.f32.mrf.mxu0
  %4058 = vdwg.mxu0
  %4059 = vmatpush.bf16.msra.mxu0 %v1806
  %4060 = vmatpush.bf16.msra.mxu0 %v1798
  %4061 = vmatpush.bf16.msra.mxu0 %v1790
  %4062 = vmatpush.bf16.msra.mxu0 %v1782
  %4063 = vmatpush.bf16.msra.mxu0 %v1774
  %4064 = vmatpush.bf16.msra.mxu0 %v1766
  %4065 = vmatpush.bf16.msra.mxu0 %v1758
  %4066 = vmatpush.bf16.msra.mxu0 %v1750
  %4067 = vmatmul.bf16.gmra.mxu0 %v3875
  %v4068 = vpop.f32.mrf.mxu0
  %v4069 = vadd.f32 %v4056, %v4068
  %v4070 = vpop.f32.mrf.mxu0
  %4071 = vdwg.mxu0
  %4072 = vmatpush.bf16.msra.mxu0 %v1870
  %4073 = vmatpush.bf16.msra.mxu0 %v1862
  %4074 = vmatpush.bf16.msra.mxu0 %v1854
  %4075 = vmatpush.bf16.msra.mxu0 %v1846
  %4076 = vmatpush.bf16.msra.mxu0 %v1838
  %4077 = vmatpush.bf16.msra.mxu0 %v1830
  %4078 = vmatpush.bf16.msra.mxu0 %v1822
  %4079 = vmatpush.bf16.msra.mxu0 %v1814
  %4080 = vmatmul.bf16.gmra.mxu0 %v3876
  %v4081 = vpop.f32.mrf.mxu0
  %v4082 = vadd.f32 %v4069, %v4081
  %v4083 = vpop.f32.mrf.mxu0
  %4084 = vdwg.mxu0
  %4085 = vmatpush.bf16.msra.mxu0 %v1679
  %4086 = vmatpush.bf16.msra.mxu0 %v1671
  %4087 = vmatpush.bf16.msra.mxu0 %v1663
  %4088 = vmatpush.bf16.msra.mxu0 %v1655
  %4089 = vmatpush.bf16.msra.mxu0 %v1647
  %4090 = vmatpush.bf16.msra.mxu0 %v1639
  %4091 = vmatpush.bf16.msra.mxu0 %v1631
  %4092 = vmatpush.bf16.msra.mxu0 %v1623
  %4093 = vmatmul.bf16.gmra.mxu0 %v3873
  %v4094 = vpop.f32.mrf.mxu0
  %v4095 = vadd.f32 0.0, %v4094
  %v4096 = vpop.f32.mrf.mxu0
  %4097 = vdwg.mxu0
  %4098 = vmatpush.bf16.msra.mxu0 %v1743
  %4099 = vmatpush.bf16.msra.mxu0 %v1735
  %4100 = vmatpush.bf16.msra.mxu0 %v1727
  %4101 = vmatpush.bf16.msra.mxu0 %v1719
  %4102 = vmatpush.bf16.msra.mxu0 %v1711
  %4103 = vmatpush.bf16.msra.mxu0 %v1703
  %4104 = vmatpush.bf16.msra.mxu0 %v1695
  %4105 = vmatpush.bf16.msra.mxu0 %v1687
  %4106 = vmatmul.bf16.gmra.mxu0 %v3874
  %v4107 = vpop.f32.mrf.mxu0
  %v4108 = vadd.f32 %v4095, %v4107
  %v4109 = vpop.f32.mrf.mxu0
  %4110 = vdwg.mxu0
  %4111 = vmatpush.bf16.msra.mxu0 %v1807
  %4112 = vmatpush.bf16.msra.mxu0 %v1799
  %4113 = vmatpush.bf16.msra.mxu0 %v1791
  %4114 = vmatpush.bf16.msra.mxu0 %v1783
  %4115 = vmatpush.bf16.msra.mxu0 %v1775
  %4116 = vmatpush.bf16.msra.mxu0 %v1767
  %4117 = vmatpush.bf16.msra.mxu0 %v1759
  %4118 = vmatpush.bf16.msra.mxu0 %v1751
  %4119 = vmatmul.bf16.gmra.mxu0 %v3875
  %v4120 = vpop.f32.mrf.mxu0
  %v4121 = vadd.f32 %v4108, %v4120
  %v4122 = vpop.f32.mrf.mxu0
  %4123 = vdwg.mxu0
  %4124 = vmatpush.bf16.msra.mxu0 %v1871
  %4125 = vmatpush.bf16.msra.mxu0 %v1863
  %4126 = vmatpush.bf16.msra.mxu0 %v1855
  %4127 = vmatpush.bf16.msra.mxu0 %v1847
  %4128 = vmatpush.bf16.msra.mxu0 %v1839
  %4129 = vmatpush.bf16.msra.mxu0 %v1831
  %4130 = vmatpush.bf16.msra.mxu0 %v1823
  %4131 = vmatpush.bf16.msra.mxu0 %v1815
  %4132 = vmatmul.bf16.gmra.mxu0 %v3876
  %v4133 = vpop.f32.mrf.mxu0
  %v4134 = vadd.f32 %v4121, %v4133
  %v4135 = vpop.f32.mrf.mxu0
  %4136 = vdwg.mxu0
  %4137 = vmatpush.bf16.msra.mxu0 %v1680
  %4138 = vmatpush.bf16.msra.mxu0 %v1672
  %4139 = vmatpush.bf16.msra.mxu0 %v1664
  %4140 = vmatpush.bf16.msra.mxu0 %v1656
  %4141 = vmatpush.bf16.msra.mxu0 %v1648
  %4142 = vmatpush.bf16.msra.mxu0 %v1640
  %4143 = vmatpush.bf16.msra.mxu0 %v1632
  %4144 = vmatpush.bf16.msra.mxu0 %v1624
  %4145 = vmatmul.bf16.gmra.mxu0 %v3873
  %v4146 = vpop.f32.mrf.mxu0
  %v4147 = vadd.f32 0.0, %v4146
  %v4148 = vpop.f32.mrf.mxu0
  %4149 = vdwg.mxu0
  %4150 = vmatpush.bf16.msra.mxu0 %v1744
  %4151 = vmatpush.bf16.msra.mxu0 %v1736
  %4152 = vmatpush.bf16.msra.mxu0 %v1728
  %4153 = vmatpush.bf16.msra.mxu0 %v1720
  %4154 = vmatpush.bf16.msra.mxu0 %v1712
  %4155 = vmatpush.bf16.msra.mxu0 %v1704
  %4156 = vmatpush.bf16.msra.mxu0 %v1696
  %4157 = vmatpush.bf16.msra.mxu0 %v1688
  %4158 = vmatmul.bf16.gmra.mxu0 %v3874
  %v4159 = vpop.f32.mrf.mxu0
  %v4160 = vadd.f32 %v4147, %v4159
  %v4161 = vpop.f32.mrf.mxu0
  %4162 = vdwg.mxu0
  %4163 = vmatpush.bf16.msra.mxu0 %v1808
  %4164 = vmatpush.bf16.msra.mxu0 %v1800
  %4165 = vmatpush.bf16.msra.mxu0 %v1792
  %4166 = vmatpush.bf16.msra.mxu0 %v1784
  %4167 = vmatpush.bf16.msra.mxu0 %v1776
  %4168 = vmatpush.bf16.msra.mxu0 %v1768
  %4169 = vmatpush.bf16.msra.mxu0 %v1760
  %4170 = vmatpush.bf16.msra.mxu0 %v1752
  %4171 = vmatmul.bf16.gmra.mxu0 %v3875
  %v4172 = vpop.f32.mrf.mxu0
  %v4173 = vadd.f32 %v4160, %v4172
  %v4174 = vpop.f32.mrf.mxu0
  %4175 = vdwg.mxu0
  %4176 = vmatpush.bf16.msra.mxu0 %v1872
  %4177 = vmatpush.bf16.msra.mxu0 %v1864
  %4178 = vmatpush.bf16.msra.mxu0 %v1856
  %4179 = vmatpush.bf16.msra.mxu0 %v1848
  %4180 = vmatpush.bf16.msra.mxu0 %v1840
  %4181 = vmatpush.bf16.msra.mxu0 %v1832
  %4182 = vmatpush.bf16.msra.mxu0 %v1824
  %4183 = vmatpush.bf16.msra.mxu0 %v1816
  %4184 = vmatmul.bf16.gmra.mxu0 %v3876
  %v4185 = vpop.f32.mrf.mxu0
  %v4186 = vadd.f32 %v4173, %v4185
  %v4187 = vpop.f32.mrf.mxu0
  %4188 = vdwg.mxu0
  %4189 = vmatpush.bf16.msra.mxu0 %v1681
  %4190 = vmatpush.bf16.msra.mxu0 %v1673
  %4191 = vmatpush.bf16.msra.mxu0 %v1665
  %4192 = vmatpush.bf16.msra.mxu0 %v1657
  %4193 = vmatpush.bf16.msra.mxu0 %v1649
  %4194 = vmatpush.bf16.msra.mxu0 %v1641
  %4195 = vmatpush.bf16.msra.mxu0 %v1633
  %4196 = vmatpush.bf16.msra.mxu0 %v1625
  %4197 = vmatmul.bf16.gmra.mxu0 %v3873
  %v4198 = vpop.f32.mrf.mxu0
  %v4199 = vadd.f32 0.0, %v4198
  %v4200 = vpop.f32.mrf.mxu0
  %4201 = vdwg.mxu0
  %4202 = vmatpush.bf16.msra.mxu0 %v1745
  %4203 = vmatpush.bf16.msra.mxu0 %v1737
  %4204 = vmatpush.bf16.msra.mxu0 %v1729
  %4205 = vmatpush.bf16.msra.mxu0 %v1721
  %4206 = vmatpush.bf16.msra.mxu0 %v1713
  %4207 = vmatpush.bf16.msra.mxu0 %v1705
  %4208 = vmatpush.bf16.msra.mxu0 %v1697
  %4209 = vmatpush.bf16.msra.mxu0 %v1689
  %4210 = vmatmul.bf16.gmra.mxu0 %v3874
  %v4211 = vpop.f32.mrf.mxu0
  %v4212 = vadd.f32 %v4199, %v4211
  %v4213 = vpop.f32.mrf.mxu0
  %4214 = vdwg.mxu0
  %4215 = vmatpush.bf16.msra.mxu0 %v1809
  %4216 = vmatpush.bf16.msra.mxu0 %v1801
  %4217 = vmatpush.bf16.msra.mxu0 %v1793
  %4218 = vmatpush.bf16.msra.mxu0 %v1785
  %4219 = vmatpush.bf16.msra.mxu0 %v1777
  %4220 = vmatpush.bf16.msra.mxu0 %v1769
  %4221 = vmatpush.bf16.msra.mxu0 %v1761
  %4222 = vmatpush.bf16.msra.mxu0 %v1753
  %4223 = vmatmul.bf16.gmra.mxu0 %v3875
  %v4224 = vpop.f32.mrf.mxu0
  %v4225 = vadd.f32 %v4212, %v4224
  %v4226 = vpop.f32.mrf.mxu0
  %4227 = vdwg.mxu0
  %4228 = vmatpush.bf16.msra.mxu0 %v1873
  %4229 = vmatpush.bf16.msra.mxu0 %v1865
  %4230 = vmatpush.bf16.msra.mxu0 %v1857
  %4231 = vmatpush.bf16.msra.mxu0 %v1849
  %4232 = vmatpush.bf16.msra.mxu0 %v1841
  %4233 = vmatpush.bf16.msra.mxu0 %v1833
  %4234 = vmatpush.bf16.msra.mxu0 %v1825
  %4235 = vmatpush.bf16.msra.mxu0 %v1817
  %4236 = vmatmul.bf16.gmra.mxu0 %v3876
  %v4237 = vpop.f32.mrf.mxu0
  %v4238 = vadd.f32 %v4225, %v4237
  %v4239 = vpop.f32.mrf.mxu0
  %4240 = vdwg.mxu0
  %4241 = vmatpush.bf16.msra.mxu0 %v1682
  %4242 = vmatpush.bf16.msra.mxu0 %v1674
  %4243 = vmatpush.bf16.msra.mxu0 %v1666
  %4244 = vmatpush.bf16.msra.mxu0 %v1658
  %4245 = vmatpush.bf16.msra.mxu0 %v1650
  %4246 = vmatpush.bf16.msra.mxu0 %v1642
  %4247 = vmatpush.bf16.msra.mxu0 %v1634
  %4248 = vmatpush.bf16.msra.mxu0 %v1626
  %4249 = vmatmul.bf16.gmra.mxu0 %v3873
  %v4250 = vpop.f32.mrf.mxu0
  %v4251 = vadd.f32 0.0, %v4250
  %v4252 = vpop.f32.mrf.mxu0
  %4253 = vdwg.mxu0
  %4254 = vmatpush.bf16.msra.mxu0 %v1746
  %4255 = vmatpush.bf16.msra.mxu0 %v1738
  %4256 = vmatpush.bf16.msra.mxu0 %v1730
  %4257 = vmatpush.bf16.msra.mxu0 %v1722
  %4258 = vmatpush.bf16.msra.mxu0 %v1714
  %4259 = vmatpush.bf16.msra.mxu0 %v1706
  %4260 = vmatpush.bf16.msra.mxu0 %v1698
  %4261 = vmatpush.bf16.msra.mxu0 %v1690
  %4262 = vmatmul.bf16.gmra.mxu0 %v3874
  %v4263 = vpop.f32.mrf.mxu0
  %v4264 = vadd.f32 %v4251, %v4263
  %v4265 = vpop.f32.mrf.mxu0
  %4266 = vdwg.mxu0
  %4267 = vmatpush.bf16.msra.mxu0 %v1810
  %4268 = vmatpush.bf16.msra.mxu0 %v1802
  %4269 = vmatpush.bf16.msra.mxu0 %v1794
  %4270 = vmatpush.bf16.msra.mxu0 %v1786
  %4271 = vmatpush.bf16.msra.mxu0 %v1778
  %4272 = vmatpush.bf16.msra.mxu0 %v1770
  %4273 = vmatpush.bf16.msra.mxu0 %v1762
  %4274 = vmatpush.bf16.msra.mxu0 %v1754
  %4275 = vmatmul.bf16.gmra.mxu0 %v3875
  %v4276 = vpop.f32.mrf.mxu0
  %v4277 = vadd.f32 %v4264, %v4276
  %v4278 = vpop.f32.mrf.mxu0
  %4279 = vdwg.mxu0
  %4280 = vmatpush.bf16.msra.mxu0 %v1874
  %4281 = vmatpush.bf16.msra.mxu0 %v1866
  %4282 = vmatpush.bf16.msra.mxu0 %v1858
  %4283 = vmatpush.bf16.msra.mxu0 %v1850
  %4284 = vmatpush.bf16.msra.mxu0 %v1842
  %4285 = vmatpush.bf16.msra.mxu0 %v1834
  %4286 = vmatpush.bf16.msra.mxu0 %v1826
  %4287 = vmatpush.bf16.msra.mxu0 %v1818
  %4288 = vmatmul.bf16.gmra.mxu0 %v3876
  %v4289 = vpop.f32.mrf.mxu0
  %v4290 = vadd.f32 %v4277, %v4289
  %v4291 = vpop.f32.mrf.mxu0
  %4292 = vdwg.mxu0
  %s4293 = smul.u32 3, 8
  %s4294 = smul.addr %s4293, 8
  %s4295 = scalar_lea.vmem [#allocation2], %s4294
  %v4296 = vld [vmem:[%s4295] sm:$0xff]
  %v4297 = vld [vmem:[%s4295 + $0x8] sm:$0xff]
  %v4298 = vld [vmem:[%s4295 + $0x10] sm:$0xff]
  %v4299 = vld [vmem:[%s4295 + $0x18] sm:$0xff]
  %v4300 = vld [vmem:[%s4295 + $0x20] sm:$0xff]
  %v4301 = vld [vmem:[%s4295 + $0x28] sm:$0xff]
  %v4302 = vld [vmem:[%s4295 + $0x30] sm:$0xff]
  %v4303 = vld [vmem:[%s4295 + $0x38] sm:$0xff]
  %v4304 = vadd.f32 %v4296, %v3926
  %v4305 = vadd.f32 %v4297, %v3978
  %v4306 = vadd.f32 %v4298, %v4030
  %v4307 = vadd.f32 %v4299, %v4082
  %v4308 = vadd.f32 %v4300, %v4134
  %v4309 = vadd.f32 %v4301, %v4186
  %v4310 = vadd.f32 %v4302, %v4238
  %v4311 = vadd.f32 %v4303, %v4290
  %v4312 = vadd.f32 %v4304, %v811
  %v4313 = vadd.f32 %v4305, %v812
  %v4314 = vadd.f32 %v4306, %v813
  %v4315 = vadd.f32 %v4307, %v814
  %v4316 = vadd.f32 %v4308, %v815
  %v4317 = vadd.f32 %v4309, %v816
  %v4318 = vadd.f32 %v4310, %v817
  %v4319 = vadd.f32 %v4311, %v818
  %v4320 = vxor.u32 %v4312, 2147483648
  %v4321 = vxor.u32 %v4313, 2147483648
  %v4322 = vmul.f32 %v4320, 1.442695
  %v4323 = vpow.pop %v4322
  %v4324 = vmul.f32 %v4321, 1.442695
  %v4325 = vpow.pop %v4324
  %v4326 = vadd.f32 %v4323, 1.0
  %v4327 = vadd.f32 %v4325, 1.0
  %v4328 = vrcp.pop %v4326
  %v4329 = vmul.f32 %v4326, %v4328
  %v4330 = vsub.f32 1.0, %v4329
  %v4331 = vmul.f32 %v4328, %v4330
  %v4332 = vadd.f32 %v4328, %v4331
  %vm4333 = vweird.f32 %v4326
  %vm4334 = vweird.f32 %v4328
  %vm4335 = vmor %vm4333, %vm4334
  %v4336 = vsel %vm4335, %v4328, %v4332
  %v4337 = vand.u32 2147483647, %v4326
  %vm4338 = vcmp.eq.f32.partialorder %v4337, 8.507059e+37
  %v4339 = vand.u32 %v4326, 2147483648
  %v4340 = vor.u32 1.1754944e-38, %v4339
  %v4341 = vsel %vm4338, %v4340, %v4336
  %v4342 = vmul.f32 1.0, %v4341
  %v4343 = vrcp.pop %v4327
  %v4344 = vmul.f32 %v4327, %v4343
  %v4345 = vsub.f32 1.0, %v4344
  %v4346 = vmul.f32 %v4343, %v4345
  %v4347 = vadd.f32 %v4343, %v4346
  %vm4348 = vweird.f32 %v4327
  %vm4349 = vweird.f32 %v4343
  %vm4350 = vmor %vm4348, %vm4349
  %v4351 = vsel %vm4350, %v4343, %v4347
  %v4352 = vand.u32 2147483647, %v4327
  %vm4353 = vcmp.eq.f32.partialorder %v4352, 8.507059e+37
  %v4354 = vand.u32 %v4327, 2147483648
  %v4355 = vor.u32 1.1754944e-38, %v4354
  %v4356 = vsel %vm4353, %v4355, %v4351
  %v4357 = vmul.f32 1.0, %v4356
  %v4358 = vxor.u32 %v4314, 2147483648
  %v4359 = vxor.u32 %v4315, 2147483648
  %v4360 = vmul.f32 %v4358, 1.442695
  %v4361 = vpow.pop %v4360
  %v4362 = vmul.f32 %v4359, 1.442695
  %v4363 = vpow.pop %v4362
  %v4364 = vadd.f32 %v4361, 1.0
  %v4365 = vadd.f32 %v4363, 1.0
  %v4366 = vrcp.pop %v4364
  %v4367 = vmul.f32 %v4364, %v4366
  %v4368 = vsub.f32 1.0, %v4367
  %v4369 = vmul.f32 %v4366, %v4368
  %v4370 = vadd.f32 %v4366, %v4369
  %vm4371 = vweird.f32 %v4364
  %vm4372 = vweird.f32 %v4366
  %vm4373 = vmor %vm4371, %vm4372
  %v4374 = vsel %vm4373, %v4366, %v4370
  %v4375 = vand.u32 2147483647, %v4364
  %vm4376 = vcmp.eq.f32.partialorder %v4375, 8.507059e+37
  %v4377 = vand.u32 %v4364, 2147483648
  %v4378 = vor.u32 1.1754944e-38, %v4377
  %v4379 = vsel %vm4376, %v4378, %v4374
  %v4380 = vmul.f32 1.0, %v4379
  %v4381 = vrcp.pop %v4365
  %v4382 = vmul.f32 %v4365, %v4381
  %v4383 = vsub.f32 1.0, %v4382
  %v4384 = vmul.f32 %v4381, %v4383
  %v4385 = vadd.f32 %v4381, %v4384
  %vm4386 = vweird.f32 %v4365
  %vm4387 = vweird.f32 %v4381
  %vm4388 = vmor %vm4386, %vm4387
  %v4389 = vsel %vm4388, %v4381, %v4385
  %v4390 = vand.u32 2147483647, %v4365
  %vm4391 = vcmp.eq.f32.partialorder %v4390, 8.507059e+37
  %v4392 = vand.u32 %v4365, 2147483648
  %v4393 = vor.u32 1.1754944e-38, %v4392
  %v4394 = vsel %vm4391, %v4393, %v4389
  %v4395 = vmul.f32 1.0, %v4394
  %v4396 = vtanh.pop %v4316
  %v4397 = vtanh.pop %v4317
  %v4398 = vxor.u32 %v4318, 2147483648
  %v4399 = vxor.u32 %v4319, 2147483648
  %v4400 = vmul.f32 %v4398, 1.442695
  %v4401 = vpow.pop %v4400
  %v4402 = vmul.f32 %v4399, 1.442695
  %v4403 = vpow.pop %v4402
  %v4404 = vadd.f32 %v4401, 1.0
  %v4405 = vadd.f32 %v4403, 1.0
  %v4406 = vrcp.pop %v4404
  %v4407 = vmul.f32 %v4404, %v4406
  %v4408 = vsub.f32 1.0, %v4407
  %v4409 = vmul.f32 %v4406, %v4408
  %v4410 = vadd.f32 %v4406, %v4409
  %vm4411 = vweird.f32 %v4404
  %vm4412 = vweird.f32 %v4406
  %vm4413 = vmor %vm4411, %vm4412
  %v4414 = vsel %vm4413, %v4406, %v4410
  %v4415 = vand.u32 2147483647, %v4404
  %vm4416 = vcmp.eq.f32.partialorder %v4415, 8.507059e+37
  %v4417 = vand.u32 %v4404, 2147483648
  %v4418 = vor.u32 1.1754944e-38, %v4417
  %v4419 = vsel %vm4416, %v4418, %v4414
  %v4420 = vmul.f32 1.0, %v4419
  %v4421 = vrcp.pop %v4405
  %v4422 = vmul.f32 %v4405, %v4421
  %v4423 = vsub.f32 1.0, %v4422
  %v4424 = vmul.f32 %v4421, %v4423
  %v4425 = vadd.f32 %v4421, %v4424
  %vm4426 = vweird.f32 %v4405
  %vm4427 = vweird.f32 %v4421
  %vm4428 = vmor %vm4426, %vm4427
  %v4429 = vsel %vm4428, %v4421, %v4425
  %v4430 = vand.u32 2147483647, %v4405
  %vm4431 = vcmp.eq.f32.partialorder %v4430, 8.507059e+37
  %v4432 = vand.u32 %v4405, 2147483648
  %v4433 = vor.u32 1.1754944e-38, %v4432
  %v4434 = vsel %vm4431, %v4433, %v4429
  %v4435 = vmul.f32 1.0, %v4434
  %v4436 = vmul.f32 %v4380, %v3858
  %v4437 = vmul.f32 %v4395, %v3859
  %v4438 = vmul.f32 %v4342, %v4396
  %v4439 = vmul.f32 %v4357, %v4397
  %v4440 = vadd.f32 %v4436, %v4438
  %v4441 = vadd.f32 %v4437, %v4439
  %v4442 = vtanh.pop %v4440
  %v4443 = vtanh.pop %v4441
  %v4444 = vmul.f32 %v4420, %v4442
  %v4445 = vmul.f32 %v4435, %v4443
  %s4446 = smul.u32 3, 2
  %s4447 = smul.addr %s4446, 8
  %s4448 = scalar_lea.vmem %s4, %s4447
  %4449 = vst [vmem:[%s4448] sm:$0xff] %v4444
  %4450 = vst [vmem:[%s4448 + $0x8] sm:$0xff] %v4445
  %v4451 = vsel %vm835, %v4444, 0.0
  %v4452 = vsel %vm836, %v4445, 0.0
  %v4453 = vsel %vm837, %v4444, 0.0
  %v4454 = vsel %vm838, %v4445, 0.0
  %v4455 = vpack.c.bf16 %v4451, %v4451
  %v4456 = vpack.c.bf16 %v4452, %v4452
  %v4457 = vpack.c.bf16 %v4453, %v4453
  %v4458 = vpack.c.bf16 %v4454, %v4454
  %4459 = vmatpush.bf16.msra.mxu0 %v1675
  %4460 = vmatpush.bf16.msra.mxu0 %v1667
  %4461 = vmatpush.bf16.msra.mxu0 %v1659
  %4462 = vmatpush.bf16.msra.mxu0 %v1651
  %4463 = vmatpush.bf16.msra.mxu0 %v1643
  %4464 = vmatpush.bf16.msra.mxu0 %v1635
  %4465 = vmatpush.bf16.msra.mxu0 %v1627
  %4466 = vmatpush.bf16.msra.mxu0 %v1619
  %4467 = vmatmul.bf16.gmra.mxu0 %v4455
  %v4468 = vpop.f32.mrf.mxu0
  %v4469 = vadd.f32 0.0, %v4468
  %v4470 = vpop.f32.mrf.mxu0
  %4471 = vdwg.mxu0
  %4472 = vmatpush.bf16.msra.mxu0 %v1739
  %4473 = vmatpush.bf16.msra.mxu0 %v1731
  %4474 = vmatpush.bf16.msra.mxu0 %v1723
  %4475 = vmatpush.bf16.msra.mxu0 %v1715
  %4476 = vmatpush.bf16.msra.mxu0 %v1707
  %4477 = vmatpush.bf16.msra.mxu0 %v1699
  %4478 = vmatpush.bf16.msra.mxu0 %v1691
  %4479 = vmatpush.bf16.msra.mxu0 %v1683
  %4480 = vmatmul.bf16.gmra.mxu0 %v4456
  %v4481 = vpop.f32.mrf.mxu0
  %v4482 = vadd.f32 %v4469, %v4481
  %v4483 = vpop.f32.mrf.mxu0
  %4484 = vdwg.mxu0
  %4485 = vmatpush.bf16.msra.mxu0 %v1803
  %4486 = vmatpush.bf16.msra.mxu0 %v1795
  %4487 = vmatpush.bf16.msra.mxu0 %v1787
  %4488 = vmatpush.bf16.msra.mxu0 %v1779
  %4489 = vmatpush.bf16.msra.mxu0 %v1771
  %4490 = vmatpush.bf16.msra.mxu0 %v1763
  %4491 = vmatpush.bf16.msra.mxu0 %v1755
  %4492 = vmatpush.bf16.msra.mxu0 %v1747
  %4493 = vmatmul.bf16.gmra.mxu0 %v4457
  %v4494 = vpop.f32.mrf.mxu0
  %v4495 = vadd.f32 %v4482, %v4494
  %v4496 = vpop.f32.mrf.mxu0
  %4497 = vdwg.mxu0
  %4498 = vmatpush.bf16.msra.mxu0 %v1867
  %4499 = vmatpush.bf16.msra.mxu0 %v1859
  %4500 = vmatpush.bf16.msra.mxu0 %v1851
  %4501 = vmatpush.bf16.msra.mxu0 %v1843
  %4502 = vmatpush.bf16.msra.mxu0 %v1835
  %4503 = vmatpush.bf16.msra.mxu0 %v1827
  %4504 = vmatpush.bf16.msra.mxu0 %v1819
  %4505 = vmatpush.bf16.msra.mxu0 %v1811
  %4506 = vmatmul.bf16.gmra.mxu0 %v4458
  %v4507 = vpop.f32.mrf.mxu0
  %v4508 = vadd.f32 %v4495, %v4507
  %v4509 = vpop.f32.mrf.mxu0
  %4510 = vdwg.mxu0
  %4511 = vmatpush.bf16.msra.mxu0 %v1676
  %4512 = vmatpush.bf16.msra.mxu0 %v1668
  %4513 = vmatpush.bf16.msra.mxu0 %v1660
  %4514 = vmatpush.bf16.msra.mxu0 %v1652
  %4515 = vmatpush.bf16.msra.mxu0 %v1644
  %4516 = vmatpush.bf16.msra.mxu0 %v1636
  %4517 = vmatpush.bf16.msra.mxu0 %v1628
  %4518 = vmatpush.bf16.msra.mxu0 %v1620
  %4519 = vmatmul.bf16.gmra.mxu0 %v4455
  %v4520 = vpop.f32.mrf.mxu0
  %v4521 = vadd.f32 0.0, %v4520
  %v4522 = vpop.f32.mrf.mxu0
  %4523 = vdwg.mxu0
  %4524 = vmatpush.bf16.msra.mxu0 %v1740
  %4525 = vmatpush.bf16.msra.mxu0 %v1732
  %4526 = vmatpush.bf16.msra.mxu0 %v1724
  %4527 = vmatpush.bf16.msra.mxu0 %v1716
  %4528 = vmatpush.bf16.msra.mxu0 %v1708
  %4529 = vmatpush.bf16.msra.mxu0 %v1700
  %4530 = vmatpush.bf16.msra.mxu0 %v1692
  %4531 = vmatpush.bf16.msra.mxu0 %v1684
  %4532 = vmatmul.bf16.gmra.mxu0 %v4456
  %v4533 = vpop.f32.mrf.mxu0
  %v4534 = vadd.f32 %v4521, %v4533
  %v4535 = vpop.f32.mrf.mxu0
  %4536 = vdwg.mxu0
  %4537 = vmatpush.bf16.msra.mxu0 %v1804
  %4538 = vmatpush.bf16.msra.mxu0 %v1796
  %4539 = vmatpush.bf16.msra.mxu0 %v1788
  %4540 = vmatpush.bf16.msra.mxu0 %v1780
  %4541 = vmatpush.bf16.msra.mxu0 %v1772
  %4542 = vmatpush.bf16.msra.mxu0 %v1764
  %4543 = vmatpush.bf16.msra.mxu0 %v1756
  %4544 = vmatpush.bf16.msra.mxu0 %v1748
  %4545 = vmatmul.bf16.gmra.mxu0 %v4457
  %v4546 = vpop.f32.mrf.mxu0
  %v4547 = vadd.f32 %v4534, %v4546
  %v4548 = vpop.f32.mrf.mxu0
  %4549 = vdwg.mxu0
  %4550 = vmatpush.bf16.msra.mxu0 %v1868
  %4551 = vmatpush.bf16.msra.mxu0 %v1860
  %4552 = vmatpush.bf16.msra.mxu0 %v1852
  %4553 = vmatpush.bf16.msra.mxu0 %v1844
  %4554 = vmatpush.bf16.msra.mxu0 %v1836
  %4555 = vmatpush.bf16.msra.mxu0 %v1828
  %4556 = vmatpush.bf16.msra.mxu0 %v1820
  %4557 = vmatpush.bf16.msra.mxu0 %v1812
  %4558 = vmatmul.bf16.gmra.mxu0 %v4458
  %v4559 = vpop.f32.mrf.mxu0
  %v4560 = vadd.f32 %v4547, %v4559
  %v4561 = vpop.f32.mrf.mxu0
  %4562 = vdwg.mxu0
  %4563 = vmatpush.bf16.msra.mxu0 %v1677
  %4564 = vmatpush.bf16.msra.mxu0 %v1669
  %4565 = vmatpush.bf16.msra.mxu0 %v1661
  %4566 = vmatpush.bf16.msra.mxu0 %v1653
  %4567 = vmatpush.bf16.msra.mxu0 %v1645
  %4568 = vmatpush.bf16.msra.mxu0 %v1637
  %4569 = vmatpush.bf16.msra.mxu0 %v1629
  %4570 = vmatpush.bf16.msra.mxu0 %v1621
  %4571 = vmatmul.bf16.gmra.mxu0 %v4455
  %v4572 = vpop.f32.mrf.mxu0
  %v4573 = vadd.f32 0.0, %v4572
  %v4574 = vpop.f32.mrf.mxu0
  %4575 = vdwg.mxu0
  %4576 = vmatpush.bf16.msra.mxu0 %v1741
  %4577 = vmatpush.bf16.msra.mxu0 %v1733
  %4578 = vmatpush.bf16.msra.mxu0 %v1725
  %4579 = vmatpush.bf16.msra.mxu0 %v1717
  %4580 = vmatpush.bf16.msra.mxu0 %v1709
  %4581 = vmatpush.bf16.msra.mxu0 %v1701
  %4582 = vmatpush.bf16.msra.mxu0 %v1693
  %4583 = vmatpush.bf16.msra.mxu0 %v1685
  %4584 = vmatmul.bf16.gmra.mxu0 %v4456
  %v4585 = vpop.f32.mrf.mxu0
  %v4586 = vadd.f32 %v4573, %v4585
  %v4587 = vpop.f32.mrf.mxu0
  %4588 = vdwg.mxu0
  %4589 = vmatpush.bf16.msra.mxu0 %v1805
  %4590 = vmatpush.bf16.msra.mxu0 %v1797
  %4591 = vmatpush.bf16.msra.mxu0 %v1789
  %4592 = vmatpush.bf16.msra.mxu0 %v1781
  %4593 = vmatpush.bf16.msra.mxu0 %v1773
  %4594 = vmatpush.bf16.msra.mxu0 %v1765
  %4595 = vmatpush.bf16.msra.mxu0 %v1757
  %4596 = vmatpush.bf16.msra.mxu0 %v1749
  %4597 = vmatmul.bf16.gmra.mxu0 %v4457
  %v4598 = vpop.f32.mrf.mxu0
  %v4599 = vadd.f32 %v4586, %v4598
  %v4600 = vpop.f32.mrf.mxu0
  %4601 = vdwg.mxu0
  %4602 = vmatpush.bf16.msra.mxu0 %v1869
  %4603 = vmatpush.bf16.msra.mxu0 %v1861
  %4604 = vmatpush.bf16.msra.mxu0 %v1853
  %4605 = vmatpush.bf16.msra.mxu0 %v1845
  %4606 = vmatpush.bf16.msra.mxu0 %v1837
  %4607 = vmatpush.bf16.msra.mxu0 %v1829
  %4608 = vmatpush.bf16.msra.mxu0 %v1821
  %4609 = vmatpush.bf16.msra.mxu0 %v1813
  %4610 = vmatmul.bf16.gmra.mxu0 %v4458
  %v4611 = vpop.f32.mrf.mxu0
  %v4612 = vadd.f32 %v4599, %v4611
  %v4613 = vpop.f32.mrf.mxu0
  %4614 = vdwg.mxu0
  %4615 = vmatpush.bf16.msra.mxu0 %v1678
  %4616 = vmatpush.bf16.msra.mxu0 %v1670
  %4617 = vmatpush.bf16.msra.mxu0 %v1662
  %4618 = vmatpush.bf16.msra.mxu0 %v1654
  %4619 = vmatpush.bf16.msra.mxu0 %v1646
  %4620 = vmatpush.bf16.msra.mxu0 %v1638
  %4621 = vmatpush.bf16.msra.mxu0 %v1630
  %4622 = vmatpush.bf16.msra.mxu0 %v1622
  %4623 = vmatmul.bf16.gmra.mxu0 %v4455
  %v4624 = vpop.f32.mrf.mxu0
  %v4625 = vadd.f32 0.0, %v4624
  %v4626 = vpop.f32.mrf.mxu0
  %4627 = vdwg.mxu0
  %4628 = vmatpush.bf16.msra.mxu0 %v1742
  %4629 = vmatpush.bf16.msra.mxu0 %v1734
  %4630 = vmatpush.bf16.msra.mxu0 %v1726
  %4631 = vmatpush.bf16.msra.mxu0 %v1718
  %4632 = vmatpush.bf16.msra.mxu0 %v1710
  %4633 = vmatpush.bf16.msra.mxu0 %v1702
  %4634 = vmatpush.bf16.msra.mxu0 %v1694
  %4635 = vmatpush.bf16.msra.mxu0 %v1686
  %4636 = vmatmul.bf16.gmra.mxu0 %v4456
  %v4637 = vpop.f32.mrf.mxu0
  %v4638 = vadd.f32 %v4625, %v4637
  %v4639 = vpop.f32.mrf.mxu0
  %4640 = vdwg.mxu0
  %4641 = vmatpush.bf16.msra.mxu0 %v1806
  %4642 = vmatpush.bf16.msra.mxu0 %v1798
  %4643 = vmatpush.bf16.msra.mxu0 %v1790
  %4644 = vmatpush.bf16.msra.mxu0 %v1782
  %4645 = vmatpush.bf16.msra.mxu0 %v1774
  %4646 = vmatpush.bf16.msra.mxu0 %v1766
  %4647 = vmatpush.bf16.msra.mxu0 %v1758
  %4648 = vmatpush.bf16.msra.mxu0 %v1750
  %4649 = vmatmul.bf16.gmra.mxu0 %v4457
  %v4650 = vpop.f32.mrf.mxu0
  %v4651 = vadd.f32 %v4638, %v4650
  %v4652 = vpop.f32.mrf.mxu0
  %4653 = vdwg.mxu0
  %4654 = vmatpush.bf16.msra.mxu0 %v1870
  %4655 = vmatpush.bf16.msra.mxu0 %v1862
  %4656 = vmatpush.bf16.msra.mxu0 %v1854
  %4657 = vmatpush.bf16.msra.mxu0 %v1846
  %4658 = vmatpush.bf16.msra.mxu0 %v1838
  %4659 = vmatpush.bf16.msra.mxu0 %v1830
  %4660 = vmatpush.bf16.msra.mxu0 %v1822
  %4661 = vmatpush.bf16.msra.mxu0 %v1814
  %4662 = vmatmul.bf16.gmra.mxu0 %v4458
  %v4663 = vpop.f32.mrf.mxu0
  %v4664 = vadd.f32 %v4651, %v4663
  %v4665 = vpop.f32.mrf.mxu0
  %4666 = vdwg.mxu0
  %4667 = vmatpush.bf16.msra.mxu0 %v1679
  %4668 = vmatpush.bf16.msra.mxu0 %v1671
  %4669 = vmatpush.bf16.msra.mxu0 %v1663
  %4670 = vmatpush.bf16.msra.mxu0 %v1655
  %4671 = vmatpush.bf16.msra.mxu0 %v1647
  %4672 = vmatpush.bf16.msra.mxu0 %v1639
  %4673 = vmatpush.bf16.msra.mxu0 %v1631
  %4674 = vmatpush.bf16.msra.mxu0 %v1623
  %4675 = vmatmul.bf16.gmra.mxu0 %v4455
  %v4676 = vpop.f32.mrf.mxu0
  %v4677 = vadd.f32 0.0, %v4676
  %v4678 = vpop.f32.mrf.mxu0
  %4679 = vdwg.mxu0
  %4680 = vmatpush.bf16.msra.mxu0 %v1743
  %4681 = vmatpush.bf16.msra.mxu0 %v1735
  %4682 = vmatpush.bf16.msra.mxu0 %v1727
  %4683 = vmatpush.bf16.msra.mxu0 %v1719
  %4684 = vmatpush.bf16.msra.mxu0 %v1711
  %4685 = vmatpush.bf16.msra.mxu0 %v1703
  %4686 = vmatpush.bf16.msra.mxu0 %v1695
  %4687 = vmatpush.bf16.msra.mxu0 %v1687
  %4688 = vmatmul.bf16.gmra.mxu0 %v4456
  %v4689 = vpop.f32.mrf.mxu0
  %v4690 = vadd.f32 %v4677, %v4689
  %v4691 = vpop.f32.mrf.mxu0
  %4692 = vdwg.mxu0
  %4693 = vmatpush.bf16.msra.mxu0 %v1807
  %4694 = vmatpush.bf16.msra.mxu0 %v1799
  %4695 = vmatpush.bf16.msra.mxu0 %v1791
  %4696 = vmatpush.bf16.msra.mxu0 %v1783
  %4697 = vmatpush.bf16.msra.mxu0 %v1775
  %4698 = vmatpush.bf16.msra.mxu0 %v1767
  %4699 = vmatpush.bf16.msra.mxu0 %v1759
  %4700 = vmatpush.bf16.msra.mxu0 %v1751
  %4701 = vmatmul.bf16.gmra.mxu0 %v4457
  %v4702 = vpop.f32.mrf.mxu0
  %v4703 = vadd.f32 %v4690, %v4702
  %v4704 = vpop.f32.mrf.mxu0
  %4705 = vdwg.mxu0
  %4706 = vmatpush.bf16.msra.mxu0 %v1871
  %4707 = vmatpush.bf16.msra.mxu0 %v1863
  %4708 = vmatpush.bf16.msra.mxu0 %v1855
  %4709 = vmatpush.bf16.msra.mxu0 %v1847
  %4710 = vmatpush.bf16.msra.mxu0 %v1839
  %4711 = vmatpush.bf16.msra.mxu0 %v1831
  %4712 = vmatpush.bf16.msra.mxu0 %v1823
  %4713 = vmatpush.bf16.msra.mxu0 %v1815
  %4714 = vmatmul.bf16.gmra.mxu0 %v4458
  %v4715 = vpop.f32.mrf.mxu0
  %v4716 = vadd.f32 %v4703, %v4715
  %v4717 = vpop.f32.mrf.mxu0
  %4718 = vdwg.mxu0
  %4719 = vmatpush.bf16.msra.mxu0 %v1680
  %4720 = vmatpush.bf16.msra.mxu0 %v1672
  %4721 = vmatpush.bf16.msra.mxu0 %v1664
  %4722 = vmatpush.bf16.msra.mxu0 %v1656
  %4723 = vmatpush.bf16.msra.mxu0 %v1648
  %4724 = vmatpush.bf16.msra.mxu0 %v1640
  %4725 = vmatpush.bf16.msra.mxu0 %v1632
  %4726 = vmatpush.bf16.msra.mxu0 %v1624
  %4727 = vmatmul.bf16.gmra.mxu0 %v4455
  %v4728 = vpop.f32.mrf.mxu0
  %v4729 = vadd.f32 0.0, %v4728
  %v4730 = vpop.f32.mrf.mxu0
  %4731 = vdwg.mxu0
  %4732 = vmatpush.bf16.msra.mxu0 %v1744
  %4733 = vmatpush.bf16.msra.mxu0 %v1736
  %4734 = vmatpush.bf16.msra.mxu0 %v1728
  %4735 = vmatpush.bf16.msra.mxu0 %v1720
  %4736 = vmatpush.bf16.msra.mxu0 %v1712
  %4737 = vmatpush.bf16.msra.mxu0 %v1704
  %4738 = vmatpush.bf16.msra.mxu0 %v1696
  %4739 = vmatpush.bf16.msra.mxu0 %v1688
  %4740 = vmatmul.bf16.gmra.mxu0 %v4456
  %v4741 = vpop.f32.mrf.mxu0
  %v4742 = vadd.f32 %v4729, %v4741
  %v4743 = vpop.f32.mrf.mxu0
  %4744 = vdwg.mxu0
  %4745 = vmatpush.bf16.msra.mxu0 %v1808
  %4746 = vmatpush.bf16.msra.mxu0 %v1800
  %4747 = vmatpush.bf16.msra.mxu0 %v1792
  %4748 = vmatpush.bf16.msra.mxu0 %v1784
  %4749 = vmatpush.bf16.msra.mxu0 %v1776
  %4750 = vmatpush.bf16.msra.mxu0 %v1768
  %4751 = vmatpush.bf16.msra.mxu0 %v1760
  %4752 = vmatpush.bf16.msra.mxu0 %v1752
  %4753 = vmatmul.bf16.gmra.mxu0 %v4457
  %v4754 = vpop.f32.mrf.mxu0
  %v4755 = vadd.f32 %v4742, %v4754
  %v4756 = vpop.f32.mrf.mxu0
  %4757 = vdwg.mxu0
  %4758 = vmatpush.bf16.msra.mxu0 %v1872
  %4759 = vmatpush.bf16.msra.mxu0 %v1864
  %4760 = vmatpush.bf16.msra.mxu0 %v1856
  %4761 = vmatpush.bf16.msra.mxu0 %v1848
  %4762 = vmatpush.bf16.msra.mxu0 %v1840
  %4763 = vmatpush.bf16.msra.mxu0 %v1832
  %4764 = vmatpush.bf16.msra.mxu0 %v1824
  %4765 = vmatpush.bf16.msra.mxu0 %v1816
  %4766 = vmatmul.bf16.gmra.mxu0 %v4458
  %v4767 = vpop.f32.mrf.mxu0
  %v4768 = vadd.f32 %v4755, %v4767
  %v4769 = vpop.f32.mrf.mxu0
  %4770 = vdwg.mxu0
  %4771 = vmatpush.bf16.msra.mxu0 %v1681
  %4772 = vmatpush.bf16.msra.mxu0 %v1673
  %4773 = vmatpush.bf16.msra.mxu0 %v1665
  %4774 = vmatpush.bf16.msra.mxu0 %v1657
  %4775 = vmatpush.bf16.msra.mxu0 %v1649
  %4776 = vmatpush.bf16.msra.mxu0 %v1641
  %4777 = vmatpush.bf16.msra.mxu0 %v1633
  %4778 = vmatpush.bf16.msra.mxu0 %v1625
  %4779 = vmatmul.bf16.gmra.mxu0 %v4455
  %v4780 = vpop.f32.mrf.mxu0
  %v4781 = vadd.f32 0.0, %v4780
  %v4782 = vpop.f32.mrf.mxu0
  %4783 = vdwg.mxu0
  %4784 = vmatpush.bf16.msra.mxu0 %v1745
  %4785 = vmatpush.bf16.msra.mxu0 %v1737
  %4786 = vmatpush.bf16.msra.mxu0 %v1729
  %4787 = vmatpush.bf16.msra.mxu0 %v1721
  %4788 = vmatpush.bf16.msra.mxu0 %v1713
  %4789 = vmatpush.bf16.msra.mxu0 %v1705
  %4790 = vmatpush.bf16.msra.mxu0 %v1697
  %4791 = vmatpush.bf16.msra.mxu0 %v1689
  %4792 = vmatmul.bf16.gmra.mxu0 %v4456
  %v4793 = vpop.f32.mrf.mxu0
  %v4794 = vadd.f32 %v4781, %v4793
  %v4795 = vpop.f32.mrf.mxu0
  %4796 = vdwg.mxu0
  %4797 = vmatpush.bf16.msra.mxu0 %v1809
  %4798 = vmatpush.bf16.msra.mxu0 %v1801
  %4799 = vmatpush.bf16.msra.mxu0 %v1793
  %4800 = vmatpush.bf16.msra.mxu0 %v1785
  %4801 = vmatpush.bf16.msra.mxu0 %v1777
  %4802 = vmatpush.bf16.msra.mxu0 %v1769
  %4803 = vmatpush.bf16.msra.mxu0 %v1761
  %4804 = vmatpush.bf16.msra.mxu0 %v1753
  %4805 = vmatmul.bf16.gmra.mxu0 %v4457
  %v4806 = vpop.f32.mrf.mxu0
  %v4807 = vadd.f32 %v4794, %v4806
  %v4808 = vpop.f32.mrf.mxu0
  %4809 = vdwg.mxu0
  %4810 = vmatpush.bf16.msra.mxu0 %v1873
  %4811 = vmatpush.bf16.msra.mxu0 %v1865
  %4812 = vmatpush.bf16.msra.mxu0 %v1857
  %4813 = vmatpush.bf16.msra.mxu0 %v1849
  %4814 = vmatpush.bf16.msra.mxu0 %v1841
  %4815 = vmatpush.bf16.msra.mxu0 %v1833
  %4816 = vmatpush.bf16.msra.mxu0 %v1825
  %4817 = vmatpush.bf16.msra.mxu0 %v1817
  %4818 = vmatmul.bf16.gmra.mxu0 %v4458
  %v4819 = vpop.f32.mrf.mxu0
  %v4820 = vadd.f32 %v4807, %v4819
  %v4821 = vpop.f32.mrf.mxu0
  %4822 = vdwg.mxu0
  %4823 = vmatpush.bf16.msra.mxu0 %v1682
  %4824 = vmatpush.bf16.msra.mxu0 %v1674
  %4825 = vmatpush.bf16.msra.mxu0 %v1666
  %4826 = vmatpush.bf16.msra.mxu0 %v1658
  %4827 = vmatpush.bf16.msra.mxu0 %v1650
  %4828 = vmatpush.bf16.msra.mxu0 %v1642
  %4829 = vmatpush.bf16.msra.mxu0 %v1634
  %4830 = vmatpush.bf16.msra.mxu0 %v1626
  %4831 = vmatmul.bf16.gmra.mxu0 %v4455
  %v4832 = vpop.f32.mrf.mxu0
  %v4833 = vadd.f32 0.0, %v4832
  %v4834 = vpop.f32.mrf.mxu0
  %4835 = vdwg.mxu0
  %4836 = vmatpush.bf16.msra.mxu0 %v1746
  %4837 = vmatpush.bf16.msra.mxu0 %v1738
  %4838 = vmatpush.bf16.msra.mxu0 %v1730
  %4839 = vmatpush.bf16.msra.mxu0 %v1722
  %4840 = vmatpush.bf16.msra.mxu0 %v1714
  %4841 = vmatpush.bf16.msra.mxu0 %v1706
  %4842 = vmatpush.bf16.msra.mxu0 %v1698
  %4843 = vmatpush.bf16.msra.mxu0 %v1690
  %4844 = vmatmul.bf16.gmra.mxu0 %v4456
  %v4845 = vpop.f32.mrf.mxu0
  %v4846 = vadd.f32 %v4833, %v4845
  %v4847 = vpop.f32.mrf.mxu0
  %4848 = vdwg.mxu0
  %4849 = vmatpush.bf16.msra.mxu0 %v1810
  %4850 = vmatpush.bf16.msra.mxu0 %v1802
  %4851 = vmatpush.bf16.msra.mxu0 %v1794
  %4852 = vmatpush.bf16.msra.mxu0 %v1786
  %4853 = vmatpush.bf16.msra.mxu0 %v1778
  %4854 = vmatpush.bf16.msra.mxu0 %v1770
  %4855 = vmatpush.bf16.msra.mxu0 %v1762
  %4856 = vmatpush.bf16.msra.mxu0 %v1754
  %4857 = vmatmul.bf16.gmra.mxu0 %v4457
  %v4858 = vpop.f32.mrf.mxu0
  %v4859 = vadd.f32 %v4846, %v4858
  %v4860 = vpop.f32.mrf.mxu0
  %4861 = vdwg.mxu0
  %4862 = vmatpush.bf16.msra.mxu0 %v1874
  %4863 = vmatpush.bf16.msra.mxu0 %v1866
  %4864 = vmatpush.bf16.msra.mxu0 %v1858
  %4865 = vmatpush.bf16.msra.mxu0 %v1850
  %4866 = vmatpush.bf16.msra.mxu0 %v1842
  %4867 = vmatpush.bf16.msra.mxu0 %v1834
  %4868 = vmatpush.bf16.msra.mxu0 %v1826
  %4869 = vmatpush.bf16.msra.mxu0 %v1818
  %4870 = vmatmul.bf16.gmra.mxu0 %v4458
  %v4871 = vpop.f32.mrf.mxu0
  %v4872 = vadd.f32 %v4859, %v4871
  %v4873 = vpop.f32.mrf.mxu0
  %4874 = vdwg.mxu0
  %s4875 = smul.u32 4, 8
  %s4876 = smul.addr %s4875, 8
  %s4877 = scalar_lea.vmem [#allocation2], %s4876
  %v4878 = vld [vmem:[%s4877] sm:$0xff]
  %v4879 = vld [vmem:[%s4877 + $0x8] sm:$0xff]
  %v4880 = vld [vmem:[%s4877 + $0x10] sm:$0xff]
  %v4881 = vld [vmem:[%s4877 + $0x18] sm:$0xff]
  %v4882 = vld [vmem:[%s4877 + $0x20] sm:$0xff]
  %v4883 = vld [vmem:[%s4877 + $0x28] sm:$0xff]
  %v4884 = vld [vmem:[%s4877 + $0x30] sm:$0xff]
  %v4885 = vld [vmem:[%s4877 + $0x38] sm:$0xff]
  %v4886 = vadd.f32 %v4878, %v4508
  %v4887 = vadd.f32 %v4879, %v4560
  %v4888 = vadd.f32 %v4880, %v4612
  %v4889 = vadd.f32 %v4881, %v4664
  %v4890 = vadd.f32 %v4882, %v4716
  %v4891 = vadd.f32 %v4883, %v4768
  %v4892 = vadd.f32 %v4884, %v4820
  %v4893 = vadd.f32 %v4885, %v4872
  %v4894 = vadd.f32 %v4886, %v811
  %v4895 = vadd.f32 %v4887, %v812
  %v4896 = vadd.f32 %v4888, %v813
  %v4897 = vadd.f32 %v4889, %v814
  %v4898 = vadd.f32 %v4890, %v815
  %v4899 = vadd.f32 %v4891, %v816
  %v4900 = vadd.f32 %v4892, %v817
  %v4901 = vadd.f32 %v4893, %v818
  %v4902 = vxor.u32 %v4894, 2147483648
  %v4903 = vxor.u32 %v4895, 2147483648
  %v4904 = vmul.f32 %v4902, 1.442695
  %v4905 = vpow.pop %v4904
  %v4906 = vmul.f32 %v4903, 1.442695
  %v4907 = vpow.pop %v4906
  %v4908 = vadd.f32 %v4905, 1.0
  %v4909 = vadd.f32 %v4907, 1.0
  %v4910 = vrcp.pop %v4908
  %v4911 = vmul.f32 %v4908, %v4910
  %v4912 = vsub.f32 1.0, %v4911
  %v4913 = vmul.f32 %v4910, %v4912
  %v4914 = vadd.f32 %v4910, %v4913
  %vm4915 = vweird.f32 %v4908
  %vm4916 = vweird.f32 %v4910
  %vm4917 = vmor %vm4915, %vm4916
  %v4918 = vsel %vm4917, %v4910, %v4914
  %v4919 = vand.u32 2147483647, %v4908
  %vm4920 = vcmp.eq.f32.partialorder %v4919, 8.507059e+37
  %v4921 = vand.u32 %v4908, 2147483648
  %v4922 = vor.u32 1.1754944e-38, %v4921
  %v4923 = vsel %vm4920, %v4922, %v4918
  %v4924 = vmul.f32 1.0, %v4923
  %v4925 = vrcp.pop %v4909
  %v4926 = vmul.f32 %v4909, %v4925
  %v4927 = vsub.f32 1.0, %v4926
  %v4928 = vmul.f32 %v4925, %v4927
  %v4929 = vadd.f32 %v4925, %v4928
  %vm4930 = vweird.f32 %v4909
  %vm4931 = vweird.f32 %v4925
  %vm4932 = vmor %vm4930, %vm4931
  %v4933 = vsel %vm4932, %v4925, %v4929
  %v4934 = vand.u32 2147483647, %v4909
  %vm4935 = vcmp.eq.f32.partialorder %v4934, 8.507059e+37
  %v4936 = vand.u32 %v4909, 2147483648
  %v4937 = vor.u32 1.1754944e-38, %v4936
  %v4938 = vsel %vm4935, %v4937, %v4933
  %v4939 = vmul.f32 1.0, %v4938
  %v4940 = vxor.u32 %v4896, 2147483648
  %v4941 = vxor.u32 %v4897, 2147483648
  %v4942 = vmul.f32 %v4940, 1.442695
  %v4943 = vpow.pop %v4942
  %v4944 = vmul.f32 %v4941, 1.442695
  %v4945 = vpow.pop %v4944
  %v4946 = vadd.f32 %v4943, 1.0
  %v4947 = vadd.f32 %v4945, 1.0
  %v4948 = vrcp.pop %v4946
  %v4949 = vmul.f32 %v4946, %v4948
  %v4950 = vsub.f32 1.0, %v4949
  %v4951 = vmul.f32 %v4948, %v4950
  %v4952 = vadd.f32 %v4948, %v4951
  %vm4953 = vweird.f32 %v4946
  %vm4954 = vweird.f32 %v4948
  %vm4955 = vmor %vm4953, %vm4954
  %v4956 = vsel %vm4955, %v4948, %v4952
  %v4957 = vand.u32 2147483647, %v4946
  %vm4958 = vcmp.eq.f32.partialorder %v4957, 8.507059e+37
  %v4959 = vand.u32 %v4946, 2147483648
  %v4960 = vor.u32 1.1754944e-38, %v4959
  %v4961 = vsel %vm4958, %v4960, %v4956
  %v4962 = vmul.f32 1.0, %v4961
  %v4963 = vrcp.pop %v4947
  %v4964 = vmul.f32 %v4947, %v4963
  %v4965 = vsub.f32 1.0, %v4964
  %v4966 = vmul.f32 %v4963, %v4965
  %v4967 = vadd.f32 %v4963, %v4966
  %vm4968 = vweird.f32 %v4947
  %vm4969 = vweird.f32 %v4963
  %vm4970 = vmor %vm4968, %vm4969
  %v4971 = vsel %vm4970, %v4963, %v4967
  %v4972 = vand.u32 2147483647, %v4947
  %vm4973 = vcmp.eq.f32.partialorder %v4972, 8.507059e+37
  %v4974 = vand.u32 %v4947, 2147483648
  %v4975 = vor.u32 1.1754944e-38, %v4974
  %v4976 = vsel %vm4973, %v4975, %v4971
  %v4977 = vmul.f32 1.0, %v4976
  %v4978 = vtanh.pop %v4898
  %v4979 = vtanh.pop %v4899
  %v4980 = vxor.u32 %v4900, 2147483648
  %v4981 = vxor.u32 %v4901, 2147483648
  %v4982 = vmul.f32 %v4980, 1.442695
  %v4983 = vpow.pop %v4982
  %v4984 = vmul.f32 %v4981, 1.442695
  %v4985 = vpow.pop %v4984
  %v4986 = vadd.f32 %v4983, 1.0
  %v4987 = vadd.f32 %v4985, 1.0
  %v4988 = vrcp.pop %v4986
  %v4989 = vmul.f32 %v4986, %v4988
  %v4990 = vsub.f32 1.0, %v4989
  %v4991 = vmul.f32 %v4988, %v4990
  %v4992 = vadd.f32 %v4988, %v4991
  %vm4993 = vweird.f32 %v4986
  %vm4994 = vweird.f32 %v4988
  %vm4995 = vmor %vm4993, %vm4994
  %v4996 = vsel %vm4995, %v4988, %v4992
  %v4997 = vand.u32 2147483647, %v4986
  %vm4998 = vcmp.eq.f32.partialorder %v4997, 8.507059e+37
  %v4999 = vand.u32 %v4986, 2147483648
  %v5000 = vor.u32 1.1754944e-38, %v4999
  %v5001 = vsel %vm4998, %v5000, %v4996
  %v5002 = vmul.f32 1.0, %v5001
  %v5003 = vrcp.pop %v4987
  %v5004 = vmul.f32 %v4987, %v5003
  %v5005 = vsub.f32 1.0, %v5004
  %v5006 = vmul.f32 %v5003, %v5005
  %v5007 = vadd.f32 %v5003, %v5006
  %vm5008 = vweird.f32 %v4987
  %vm5009 = vweird.f32 %v5003
  %vm5010 = vmor %vm5008, %vm5009
  %v5011 = vsel %vm5010, %v5003, %v5007
  %v5012 = vand.u32 2147483647, %v4987
  %vm5013 = vcmp.eq.f32.partialorder %v5012, 8.507059e+37
  %v5014 = vand.u32 %v4987, 2147483648
  %v5015 = vor.u32 1.1754944e-38, %v5014
  %v5016 = vsel %vm5013, %v5015, %v5011
  %v5017 = vmul.f32 1.0, %v5016
  %v5018 = vmul.f32 %v4962, %v4440
  %v5019 = vmul.f32 %v4977, %v4441
  %v5020 = vmul.f32 %v4924, %v4978
  %v5021 = vmul.f32 %v4939, %v4979
  %v5022 = vadd.f32 %v5018, %v5020
  %v5023 = vadd.f32 %v5019, %v5021
  %v5024 = vtanh.pop %v5022
  %v5025 = vtanh.pop %v5023
  %v5026 = vmul.f32 %v5002, %v5024
  %v5027 = vmul.f32 %v5017, %v5025
  %s5028 = smul.u32 4, 2
  %s5029 = smul.addr %s5028, 8
  %s5030 = scalar_lea.vmem %s4, %s5029
  %5031 = vst [vmem:[%s5030] sm:$0xff] %v5026
  %5032 = vst [vmem:[%s5030 + $0x8] sm:$0xff] %v5027
  %v5033 = vsel %vm835, %v5026, 0.0
  %v5034 = vsel %vm836, %v5027, 0.0
  %v5035 = vsel %vm837, %v5026, 0.0
  %v5036 = vsel %vm838, %v5027, 0.0
  %v5037 = vpack.c.bf16 %v5033, %v5033
  %v5038 = vpack.c.bf16 %v5034, %v5034
  %v5039 = vpack.c.bf16 %v5035, %v5035
  %v5040 = vpack.c.bf16 %v5036, %v5036
  %5041 = vmatpush.bf16.msra.mxu0 %v1675
  %5042 = vmatpush.bf16.msra.mxu0 %v1667
  %5043 = vmatpush.bf16.msra.mxu0 %v1659
  %5044 = vmatpush.bf16.msra.mxu0 %v1651
  %5045 = vmatpush.bf16.msra.mxu0 %v1643
  %5046 = vmatpush.bf16.msra.mxu0 %v1635
  %5047 = vmatpush.bf16.msra.mxu0 %v1627
  %5048 = vmatpush.bf16.msra.mxu0 %v1619
  %5049 = vmatmul.bf16.gmra.mxu0 %v5037
  %v5050 = vpop.f32.mrf.mxu0
  %v5051 = vadd.f32 0.0, %v5050
  %v5052 = vpop.f32.mrf.mxu0
  %5053 = vdwg.mxu0
  %5054 = vmatpush.bf16.msra.mxu0 %v1739
  %5055 = vmatpush.bf16.msra.mxu0 %v1731
  %5056 = vmatpush.bf16.msra.mxu0 %v1723
  %5057 = vmatpush.bf16.msra.mxu0 %v1715
  %5058 = vmatpush.bf16.msra.mxu0 %v1707
  %5059 = vmatpush.bf16.msra.mxu0 %v1699
  %5060 = vmatpush.bf16.msra.mxu0 %v1691
  %5061 = vmatpush.bf16.msra.mxu0 %v1683
  %5062 = vmatmul.bf16.gmra.mxu0 %v5038
  %v5063 = vpop.f32.mrf.mxu0
  %v5064 = vadd.f32 %v5051, %v5063
  %v5065 = vpop.f32.mrf.mxu0
  %5066 = vdwg.mxu0
  %5067 = vmatpush.bf16.msra.mxu0 %v1803
  %5068 = vmatpush.bf16.msra.mxu0 %v1795
  %5069 = vmatpush.bf16.msra.mxu0 %v1787
  %5070 = vmatpush.bf16.msra.mxu0 %v1779
  %5071 = vmatpush.bf16.msra.mxu0 %v1771
  %5072 = vmatpush.bf16.msra.mxu0 %v1763
  %5073 = vmatpush.bf16.msra.mxu0 %v1755
  %5074 = vmatpush.bf16.msra.mxu0 %v1747
  %5075 = vmatmul.bf16.gmra.mxu0 %v5039
  %v5076 = vpop.f32.mrf.mxu0
  %v5077 = vadd.f32 %v5064, %v5076
  %v5078 = vpop.f32.mrf.mxu0
  %5079 = vdwg.mxu0
  %5080 = vmatpush.bf16.msra.mxu0 %v1867
  %5081 = vmatpush.bf16.msra.mxu0 %v1859
  %5082 = vmatpush.bf16.msra.mxu0 %v1851
  %5083 = vmatpush.bf16.msra.mxu0 %v1843
  %5084 = vmatpush.bf16.msra.mxu0 %v1835
  %5085 = vmatpush.bf16.msra.mxu0 %v1827
  %5086 = vmatpush.bf16.msra.mxu0 %v1819
  %5087 = vmatpush.bf16.msra.mxu0 %v1811
  %5088 = vmatmul.bf16.gmra.mxu0 %v5040
  %v5089 = vpop.f32.mrf.mxu0
  %v5090 = vadd.f32 %v5077, %v5089
  %v5091 = vpop.f32.mrf.mxu0
  %5092 = vdwg.mxu0
  %5093 = vmatpush.bf16.msra.mxu0 %v1676
  %5094 = vmatpush.bf16.msra.mxu0 %v1668
  %5095 = vmatpush.bf16.msra.mxu0 %v1660
  %5096 = vmatpush.bf16.msra.mxu0 %v1652
  %5097 = vmatpush.bf16.msra.mxu0 %v1644
  %5098 = vmatpush.bf16.msra.mxu0 %v1636
  %5099 = vmatpush.bf16.msra.mxu0 %v1628
  %5100 = vmatpush.bf16.msra.mxu0 %v1620
  %5101 = vmatmul.bf16.gmra.mxu0 %v5037
  %v5102 = vpop.f32.mrf.mxu0
  %v5103 = vadd.f32 0.0, %v5102
  %v5104 = vpop.f32.mrf.mxu0
  %5105 = vdwg.mxu0
  %5106 = vmatpush.bf16.msra.mxu0 %v1740
  %5107 = vmatpush.bf16.msra.mxu0 %v1732
  %5108 = vmatpush.bf16.msra.mxu0 %v1724
  %5109 = vmatpush.bf16.msra.mxu0 %v1716
  %5110 = vmatpush.bf16.msra.mxu0 %v1708
  %5111 = vmatpush.bf16.msra.mxu0 %v1700
  %5112 = vmatpush.bf16.msra.mxu0 %v1692
  %5113 = vmatpush.bf16.msra.mxu0 %v1684
  %5114 = vmatmul.bf16.gmra.mxu0 %v5038
  %v5115 = vpop.f32.mrf.mxu0
  %v5116 = vadd.f32 %v5103, %v5115
  %v5117 = vpop.f32.mrf.mxu0
  %5118 = vdwg.mxu0
  %5119 = vmatpush.bf16.msra.mxu0 %v1804
  %5120 = vmatpush.bf16.msra.mxu0 %v1796
  %5121 = vmatpush.bf16.msra.mxu0 %v1788
  %5122 = vmatpush.bf16.msra.mxu0 %v1780
  %5123 = vmatpush.bf16.msra.mxu0 %v1772
  %5124 = vmatpush.bf16.msra.mxu0 %v1764
  %5125 = vmatpush.bf16.msra.mxu0 %v1756
  %5126 = vmatpush.bf16.msra.mxu0 %v1748
  %5127 = vmatmul.bf16.gmra.mxu0 %v5039
  %v5128 = vpop.f32.mrf.mxu0
  %v5129 = vadd.f32 %v5116, %v5128
  %v5130 = vpop.f32.mrf.mxu0
  %5131 = vdwg.mxu0
  %5132 = vmatpush.bf16.msra.mxu0 %v1868
  %5133 = vmatpush.bf16.msra.mxu0 %v1860
  %5134 = vmatpush.bf16.msra.mxu0 %v1852
  %5135 = vmatpush.bf16.msra.mxu0 %v1844
  %5136 = vmatpush.bf16.msra.mxu0 %v1836
  %5137 = vmatpush.bf16.msra.mxu0 %v1828
  %5138 = vmatpush.bf16.msra.mxu0 %v1820
  %5139 = vmatpush.bf16.msra.mxu0 %v1812
  %5140 = vmatmul.bf16.gmra.mxu0 %v5040
  %v5141 = vpop.f32.mrf.mxu0
  %v5142 = vadd.f32 %v5129, %v5141
  %v5143 = vpop.f32.mrf.mxu0
  %5144 = vdwg.mxu0
  %5145 = vmatpush.bf16.msra.mxu0 %v1677
  %5146 = vmatpush.bf16.msra.mxu0 %v1669
  %5147 = vmatpush.bf16.msra.mxu0 %v1661
  %5148 = vmatpush.bf16.msra.mxu0 %v1653
  %5149 = vmatpush.bf16.msra.mxu0 %v1645
  %5150 = vmatpush.bf16.msra.mxu0 %v1637
  %5151 = vmatpush.bf16.msra.mxu0 %v1629
  %5152 = vmatpush.bf16.msra.mxu0 %v1621
  %5153 = vmatmul.bf16.gmra.mxu0 %v5037
  %v5154 = vpop.f32.mrf.mxu0
  %v5155 = vadd.f32 0.0, %v5154
  %v5156 = vpop.f32.mrf.mxu0
  %5157 = vdwg.mxu0
  %5158 = vmatpush.bf16.msra.mxu0 %v1741
  %5159 = vmatpush.bf16.msra.mxu0 %v1733
  %5160 = vmatpush.bf16.msra.mxu0 %v1725
  %5161 = vmatpush.bf16.msra.mxu0 %v1717
  %5162 = vmatpush.bf16.msra.mxu0 %v1709
  %5163 = vmatpush.bf16.msra.mxu0 %v1701
  %5164 = vmatpush.bf16.msra.mxu0 %v1693
  %5165 = vmatpush.bf16.msra.mxu0 %v1685
  %5166 = vmatmul.bf16.gmra.mxu0 %v5038
  %v5167 = vpop.f32.mrf.mxu0
  %v5168 = vadd.f32 %v5155, %v5167
  %v5169 = vpop.f32.mrf.mxu0
  %5170 = vdwg.mxu0
  %5171 = vmatpush.bf16.msra.mxu0 %v1805
  %5172 = vmatpush.bf16.msra.mxu0 %v1797
  %5173 = vmatpush.bf16.msra.mxu0 %v1789
  %5174 = vmatpush.bf16.msra.mxu0 %v1781
  %5175 = vmatpush.bf16.msra.mxu0 %v1773
  %5176 = vmatpush.bf16.msra.mxu0 %v1765
  %5177 = vmatpush.bf16.msra.mxu0 %v1757
  %5178 = vmatpush.bf16.msra.mxu0 %v1749
  %5179 = vmatmul.bf16.gmra.mxu0 %v5039
  %v5180 = vpop.f32.mrf.mxu0
  %v5181 = vadd.f32 %v5168, %v5180
  %v5182 = vpop.f32.mrf.mxu0
  %5183 = vdwg.mxu0
  %5184 = vmatpush.bf16.msra.mxu0 %v1869
  %5185 = vmatpush.bf16.msra.mxu0 %v1861
  %5186 = vmatpush.bf16.msra.mxu0 %v1853
  %5187 = vmatpush.bf16.msra.mxu0 %v1845
  %5188 = vmatpush.bf16.msra.mxu0 %v1837
  %5189 = vmatpush.bf16.msra.mxu0 %v1829
  %5190 = vmatpush.bf16.msra.mxu0 %v1821
  %5191 = vmatpush.bf16.msra.mxu0 %v1813
  %5192 = vmatmul.bf16.gmra.mxu0 %v5040
  %v5193 = vpop.f32.mrf.mxu0
  %v5194 = vadd.f32 %v5181, %v5193
  %v5195 = vpop.f32.mrf.mxu0
  %5196 = vdwg.mxu0
  %5197 = vmatpush.bf16.msra.mxu0 %v1678
  %5198 = vmatpush.bf16.msra.mxu0 %v1670
  %5199 = vmatpush.bf16.msra.mxu0 %v1662
  %5200 = vmatpush.bf16.msra.mxu0 %v1654
  %5201 = vmatpush.bf16.msra.mxu0 %v1646
  %5202 = vmatpush.bf16.msra.mxu0 %v1638
  %5203 = vmatpush.bf16.msra.mxu0 %v1630
  %5204 = vmatpush.bf16.msra.mxu0 %v1622
  %5205 = vmatmul.bf16.gmra.mxu0 %v5037
  %v5206 = vpop.f32.mrf.mxu0
  %v5207 = vadd.f32 0.0, %v5206
  %v5208 = vpop.f32.mrf.mxu0
  %5209 = vdwg.mxu0
  %5210 = vmatpush.bf16.msra.mxu0 %v1742
  %5211 = vmatpush.bf16.msra.mxu0 %v1734
  %5212 = vmatpush.bf16.msra.mxu0 %v1726
  %5213 = vmatpush.bf16.msra.mxu0 %v1718
  %5214 = vmatpush.bf16.msra.mxu0 %v1710
  %5215 = vmatpush.bf16.msra.mxu0 %v1702
  %5216 = vmatpush.bf16.msra.mxu0 %v1694
  %5217 = vmatpush.bf16.msra.mxu0 %v1686
  %5218 = vmatmul.bf16.gmra.mxu0 %v5038
  %v5219 = vpop.f32.mrf.mxu0
  %v5220 = vadd.f32 %v5207, %v5219
  %v5221 = vpop.f32.mrf.mxu0
  %5222 = vdwg.mxu0
  %5223 = vmatpush.bf16.msra.mxu0 %v1806
  %5224 = vmatpush.bf16.msra.mxu0 %v1798
  %5225 = vmatpush.bf16.msra.mxu0 %v1790
  %5226 = vmatpush.bf16.msra.mxu0 %v1782
  %5227 = vmatpush.bf16.msra.mxu0 %v1774
  %5228 = vmatpush.bf16.msra.mxu0 %v1766
  %5229 = vmatpush.bf16.msra.mxu0 %v1758
  %5230 = vmatpush.bf16.msra.mxu0 %v1750
  %5231 = vmatmul.bf16.gmra.mxu0 %v5039
  %v5232 = vpop.f32.mrf.mxu0
  %v5233 = vadd.f32 %v5220, %v5232
  %v5234 = vpop.f32.mrf.mxu0
  %5235 = vdwg.mxu0
  %5236 = vmatpush.bf16.msra.mxu0 %v1870
  %5237 = vmatpush.bf16.msra.mxu0 %v1862
  %5238 = vmatpush.bf16.msra.mxu0 %v1854
  %5239 = vmatpush.bf16.msra.mxu0 %v1846
  %5240 = vmatpush.bf16.msra.mxu0 %v1838
  %5241 = vmatpush.bf16.msra.mxu0 %v1830
  %5242 = vmatpush.bf16.msra.mxu0 %v1822
  %5243 = vmatpush.bf16.msra.mxu0 %v1814
  %5244 = vmatmul.bf16.gmra.mxu0 %v5040
  %v5245 = vpop.f32.mrf.mxu0
  %v5246 = vadd.f32 %v5233, %v5245
  %v5247 = vpop.f32.mrf.mxu0
  %5248 = vdwg.mxu0
  %5249 = vmatpush.bf16.msra.mxu0 %v1679
  %5250 = vmatpush.bf16.msra.mxu0 %v1671
  %5251 = vmatpush.bf16.msra.mxu0 %v1663
  %5252 = vmatpush.bf16.msra.mxu0 %v1655
  %5253 = vmatpush.bf16.msra.mxu0 %v1647
  %5254 = vmatpush.bf16.msra.mxu0 %v1639
  %5255 = vmatpush.bf16.msra.mxu0 %v1631
  %5256 = vmatpush.bf16.msra.mxu0 %v1623
  %5257 = vmatmul.bf16.gmra.mxu0 %v5037
  %v5258 = vpop.f32.mrf.mxu0
  %v5259 = vadd.f32 0.0, %v5258
  %v5260 = vpop.f32.mrf.mxu0
  %5261 = vdwg.mxu0
  %5262 = vmatpush.bf16.msra.mxu0 %v1743
  %5263 = vmatpush.bf16.msra.mxu0 %v1735
  %5264 = vmatpush.bf16.msra.mxu0 %v1727
  %5265 = vmatpush.bf16.msra.mxu0 %v1719
  %5266 = vmatpush.bf16.msra.mxu0 %v1711
  %5267 = vmatpush.bf16.msra.mxu0 %v1703
  %5268 = vmatpush.bf16.msra.mxu0 %v1695
  %5269 = vmatpush.bf16.msra.mxu0 %v1687
  %5270 = vmatmul.bf16.gmra.mxu0 %v5038
  %v5271 = vpop.f32.mrf.mxu0
  %v5272 = vadd.f32 %v5259, %v5271
  %v5273 = vpop.f32.mrf.mxu0
  %5274 = vdwg.mxu0
  %5275 = vmatpush.bf16.msra.mxu0 %v1807
  %5276 = vmatpush.bf16.msra.mxu0 %v1799
  %5277 = vmatpush.bf16.msra.mxu0 %v1791
  %5278 = vmatpush.bf16.msra.mxu0 %v1783
  %5279 = vmatpush.bf16.msra.mxu0 %v1775
  %5280 = vmatpush.bf16.msra.mxu0 %v1767
  %5281 = vmatpush.bf16.msra.mxu0 %v1759
  %5282 = vmatpush.bf16.msra.mxu0 %v1751
  %5283 = vmatmul.bf16.gmra.mxu0 %v5039
  %v5284 = vpop.f32.mrf.mxu0
  %v5285 = vadd.f32 %v5272, %v5284
  %v5286 = vpop.f32.mrf.mxu0
  %5287 = vdwg.mxu0
  %5288 = vmatpush.bf16.msra.mxu0 %v1871
  %5289 = vmatpush.bf16.msra.mxu0 %v1863
  %5290 = vmatpush.bf16.msra.mxu0 %v1855
  %5291 = vmatpush.bf16.msra.mxu0 %v1847
  %5292 = vmatpush.bf16.msra.mxu0 %v1839
  %5293 = vmatpush.bf16.msra.mxu0 %v1831
  %5294 = vmatpush.bf16.msra.mxu0 %v1823
  %5295 = vmatpush.bf16.msra.mxu0 %v1815
  %5296 = vmatmul.bf16.gmra.mxu0 %v5040
  %v5297 = vpop.f32.mrf.mxu0
  %v5298 = vadd.f32 %v5285, %v5297
  %v5299 = vpop.f32.mrf.mxu0
  %5300 = vdwg.mxu0
  %5301 = vmatpush.bf16.msra.mxu0 %v1680
  %5302 = vmatpush.bf16.msra.mxu0 %v1672
  %5303 = vmatpush.bf16.msra.mxu0 %v1664
  %5304 = vmatpush.bf16.msra.mxu0 %v1656
  %5305 = vmatpush.bf16.msra.mxu0 %v1648
  %5306 = vmatpush.bf16.msra.mxu0 %v1640
  %5307 = vmatpush.bf16.msra.mxu0 %v1632
  %5308 = vmatpush.bf16.msra.mxu0 %v1624
  %5309 = vmatmul.bf16.gmra.mxu0 %v5037
  %v5310 = vpop.f32.mrf.mxu0
  %v5311 = vadd.f32 0.0, %v5310
  %v5312 = vpop.f32.mrf.mxu0
  %5313 = vdwg.mxu0
  %5314 = vmatpush.bf16.msra.mxu0 %v1744
  %5315 = vmatpush.bf16.msra.mxu0 %v1736
  %5316 = vmatpush.bf16.msra.mxu0 %v1728
  %5317 = vmatpush.bf16.msra.mxu0 %v1720
  %5318 = vmatpush.bf16.msra.mxu0 %v1712
  %5319 = vmatpush.bf16.msra.mxu0 %v1704
  %5320 = vmatpush.bf16.msra.mxu0 %v1696
  %5321 = vmatpush.bf16.msra.mxu0 %v1688
  %5322 = vmatmul.bf16.gmra.mxu0 %v5038
  %v5323 = vpop.f32.mrf.mxu0
  %v5324 = vadd.f32 %v5311, %v5323
  %v5325 = vpop.f32.mrf.mxu0
  %5326 = vdwg.mxu0
  %5327 = vmatpush.bf16.msra.mxu0 %v1808
  %5328 = vmatpush.bf16.msra.mxu0 %v1800
  %5329 = vmatpush.bf16.msra.mxu0 %v1792
  %5330 = vmatpush.bf16.msra.mxu0 %v1784
  %5331 = vmatpush.bf16.msra.mxu0 %v1776
  %5332 = vmatpush.bf16.msra.mxu0 %v1768
  %5333 = vmatpush.bf16.msra.mxu0 %v1760
  %5334 = vmatpush.bf16.msra.mxu0 %v1752
  %5335 = vmatmul.bf16.gmra.mxu0 %v5039
  %v5336 = vpop.f32.mrf.mxu0
  %v5337 = vadd.f32 %v5324, %v5336
  %v5338 = vpop.f32.mrf.mxu0
  %5339 = vdwg.mxu0
  %5340 = vmatpush.bf16.msra.mxu0 %v1872
  %5341 = vmatpush.bf16.msra.mxu0 %v1864
  %5342 = vmatpush.bf16.msra.mxu0 %v1856
  %5343 = vmatpush.bf16.msra.mxu0 %v1848
  %5344 = vmatpush.bf16.msra.mxu0 %v1840
  %5345 = vmatpush.bf16.msra.mxu0 %v1832
  %5346 = vmatpush.bf16.msra.mxu0 %v1824
  %5347 = vmatpush.bf16.msra.mxu0 %v1816
  %5348 = vmatmul.bf16.gmra.mxu0 %v5040
  %v5349 = vpop.f32.mrf.mxu0
  %v5350 = vadd.f32 %v5337, %v5349
  %v5351 = vpop.f32.mrf.mxu0
  %5352 = vdwg.mxu0
  %5353 = vmatpush.bf16.msra.mxu0 %v1681
  %5354 = vmatpush.bf16.msra.mxu0 %v1673
  %5355 = vmatpush.bf16.msra.mxu0 %v1665
  %5356 = vmatpush.bf16.msra.mxu0 %v1657
  %5357 = vmatpush.bf16.msra.mxu0 %v1649
  %5358 = vmatpush.bf16.msra.mxu0 %v1641
  %5359 = vmatpush.bf16.msra.mxu0 %v1633
  %5360 = vmatpush.bf16.msra.mxu0 %v1625
  %5361 = vmatmul.bf16.gmra.mxu0 %v5037
  %v5362 = vpop.f32.mrf.mxu0
  %v5363 = vadd.f32 0.0, %v5362
  %v5364 = vpop.f32.mrf.mxu0
  %5365 = vdwg.mxu0
  %5366 = vmatpush.bf16.msra.mxu0 %v1745
  %5367 = vmatpush.bf16.msra.mxu0 %v1737
  %5368 = vmatpush.bf16.msra.mxu0 %v1729
  %5369 = vmatpush.bf16.msra.mxu0 %v1721
  %5370 = vmatpush.bf16.msra.mxu0 %v1713
  %5371 = vmatpush.bf16.msra.mxu0 %v1705
  %5372 = vmatpush.bf16.msra.mxu0 %v1697
  %5373 = vmatpush.bf16.msra.mxu0 %v1689
  %5374 = vmatmul.bf16.gmra.mxu0 %v5038
  %v5375 = vpop.f32.mrf.mxu0
  %v5376 = vadd.f32 %v5363, %v5375
  %v5377 = vpop.f32.mrf.mxu0
  %5378 = vdwg.mxu0
  %5379 = vmatpush.bf16.msra.mxu0 %v1809
  %5380 = vmatpush.bf16.msra.mxu0 %v1801
  %5381 = vmatpush.bf16.msra.mxu0 %v1793
  %5382 = vmatpush.bf16.msra.mxu0 %v1785
  %5383 = vmatpush.bf16.msra.mxu0 %v1777
  %5384 = vmatpush.bf16.msra.mxu0 %v1769
  %5385 = vmatpush.bf16.msra.mxu0 %v1761
  %5386 = vmatpush.bf16.msra.mxu0 %v1753
  %5387 = vmatmul.bf16.gmra.mxu0 %v5039
  %v5388 = vpop.f32.mrf.mxu0
  %v5389 = vadd.f32 %v5376, %v5388
  %v5390 = vpop.f32.mrf.mxu0
  %5391 = vdwg.mxu0
  %5392 = vmatpush.bf16.msra.mxu0 %v1873
  %5393 = vmatpush.bf16.msra.mxu0 %v1865
  %5394 = vmatpush.bf16.msra.mxu0 %v1857
  %5395 = vmatpush.bf16.msra.mxu0 %v1849
  %5396 = vmatpush.bf16.msra.mxu0 %v1841
  %5397 = vmatpush.bf16.msra.mxu0 %v1833
  %5398 = vmatpush.bf16.msra.mxu0 %v1825
  %5399 = vmatpush.bf16.msra.mxu0 %v1817
  %5400 = vmatmul.bf16.gmra.mxu0 %v5040
  %v5401 = vpop.f32.mrf.mxu0
  %v5402 = vadd.f32 %v5389, %v5401
  %v5403 = vpop.f32.mrf.mxu0
  %5404 = vdwg.mxu0
  %5405 = vmatpush.bf16.msra.mxu0 %v1682
  %5406 = vmatpush.bf16.msra.mxu0 %v1674
  %5407 = vmatpush.bf16.msra.mxu0 %v1666
  %5408 = vmatpush.bf16.msra.mxu0 %v1658
  %5409 = vmatpush.bf16.msra.mxu0 %v1650
  %5410 = vmatpush.bf16.msra.mxu0 %v1642
  %5411 = vmatpush.bf16.msra.mxu0 %v1634
  %5412 = vmatpush.bf16.msra.mxu0 %v1626
  %5413 = vmatmul.bf16.gmra.mxu0 %v5037
  %v5414 = vpop.f32.mrf.mxu0
  %v5415 = vadd.f32 0.0, %v5414
  %v5416 = vpop.f32.mrf.mxu0
  %5417 = vdwg.mxu0
  %5418 = vmatpush.bf16.msra.mxu0 %v1746
  %5419 = vmatpush.bf16.msra.mxu0 %v1738
  %5420 = vmatpush.bf16.msra.mxu0 %v1730
  %5421 = vmatpush.bf16.msra.mxu0 %v1722
  %5422 = vmatpush.bf16.msra.mxu0 %v1714
  %5423 = vmatpush.bf16.msra.mxu0 %v1706
  %5424 = vmatpush.bf16.msra.mxu0 %v1698
  %5425 = vmatpush.bf16.msra.mxu0 %v1690
  %5426 = vmatmul.bf16.gmra.mxu0 %v5038
  %v5427 = vpop.f32.mrf.mxu0
  %v5428 = vadd.f32 %v5415, %v5427
  %v5429 = vpop.f32.mrf.mxu0
  %5430 = vdwg.mxu0
  %5431 = vmatpush.bf16.msra.mxu0 %v1810
  %5432 = vmatpush.bf16.msra.mxu0 %v1802
  %5433 = vmatpush.bf16.msra.mxu0 %v1794
  %5434 = vmatpush.bf16.msra.mxu0 %v1786
  %5435 = vmatpush.bf16.msra.mxu0 %v1778
  %5436 = vmatpush.bf16.msra.mxu0 %v1770
  %5437 = vmatpush.bf16.msra.mxu0 %v1762
  %5438 = vmatpush.bf16.msra.mxu0 %v1754
  %5439 = vmatmul.bf16.gmra.mxu0 %v5039
  %v5440 = vpop.f32.mrf.mxu0
  %v5441 = vadd.f32 %v5428, %v5440
  %v5442 = vpop.f32.mrf.mxu0
  %5443 = vdwg.mxu0
  %5444 = vmatpush.bf16.msra.mxu0 %v1874
  %5445 = vmatpush.bf16.msra.mxu0 %v1866
  %5446 = vmatpush.bf16.msra.mxu0 %v1858
  %5447 = vmatpush.bf16.msra.mxu0 %v1850
  %5448 = vmatpush.bf16.msra.mxu0 %v1842
  %5449 = vmatpush.bf16.msra.mxu0 %v1834
  %5450 = vmatpush.bf16.msra.mxu0 %v1826
  %5451 = vmatpush.bf16.msra.mxu0 %v1818
  %5452 = vmatmul.bf16.gmra.mxu0 %v5040
  %v5453 = vpop.f32.mrf.mxu0
  %v5454 = vadd.f32 %v5441, %v5453
  %v5455 = vpop.f32.mrf.mxu0
  %5456 = vdwg.mxu0
  %s5457 = smul.u32 5, 8
  %s5458 = smul.addr %s5457, 8
  %s5459 = scalar_lea.vmem [#allocation2], %s5458
  %v5460 = vld [vmem:[%s5459] sm:$0xff]
  %v5461 = vld [vmem:[%s5459 + $0x8] sm:$0xff]
  %v5462 = vld [vmem:[%s5459 + $0x10] sm:$0xff]
  %v5463 = vld [vmem:[%s5459 + $0x18] sm:$0xff]
  %v5464 = vld [vmem:[%s5459 + $0x20] sm:$0xff]
  %v5465 = vld [vmem:[%s5459 + $0x28] sm:$0xff]
  %v5466 = vld [vmem:[%s5459 + $0x30] sm:$0xff]
  %v5467 = vld [vmem:[%s5459 + $0x38] sm:$0xff]
  %v5468 = vadd.f32 %v5460, %v5090
  %v5469 = vadd.f32 %v5461, %v5142
  %v5470 = vadd.f32 %v5462, %v5194
  %v5471 = vadd.f32 %v5463, %v5246
  %v5472 = vadd.f32 %v5464, %v5298
  %v5473 = vadd.f32 %v5465, %v5350
  %v5474 = vadd.f32 %v5466, %v5402
  %v5475 = vadd.f32 %v5467, %v5454
  %v5476 = vadd.f32 %v5468, %v811
  %v5477 = vadd.f32 %v5469, %v812
  %v5478 = vadd.f32 %v5470, %v813
  %v5479 = vadd.f32 %v5471, %v814
  %v5480 = vadd.f32 %v5472, %v815
  %v5481 = vadd.f32 %v5473, %v816
  %v5482 = vadd.f32 %v5474, %v817
  %v5483 = vadd.f32 %v5475, %v818
  %v5484 = vxor.u32 %v5476, 2147483648
  %v5485 = vxor.u32 %v5477, 2147483648
  %v5486 = vmul.f32 %v5484, 1.442695
  %v5487 = vpow.pop %v5486
  %v5488 = vmul.f32 %v5485, 1.442695
  %v5489 = vpow.pop %v5488
  %v5490 = vadd.f32 %v5487, 1.0
  %v5491 = vadd.f32 %v5489, 1.0
  %v5492 = vrcp.pop %v5490
  %v5493 = vmul.f32 %v5490, %v5492
  %v5494 = vsub.f32 1.0, %v5493
  %v5495 = vmul.f32 %v5492, %v5494
  %v5496 = vadd.f32 %v5492, %v5495
  %vm5497 = vweird.f32 %v5490
  %vm5498 = vweird.f32 %v5492
  %vm5499 = vmor %vm5497, %vm5498
  %v5500 = vsel %vm5499, %v5492, %v5496
  %v5501 = vand.u32 2147483647, %v5490
  %vm5502 = vcmp.eq.f32.partialorder %v5501, 8.507059e+37
  %v5503 = vand.u32 %v5490, 2147483648
  %v5504 = vor.u32 1.1754944e-38, %v5503
  %v5505 = vsel %vm5502, %v5504, %v5500
  %v5506 = vmul.f32 1.0, %v5505
  %v5507 = vrcp.pop %v5491
  %v5508 = vmul.f32 %v5491, %v5507
  %v5509 = vsub.f32 1.0, %v5508
  %v5510 = vmul.f32 %v5507, %v5509
  %v5511 = vadd.f32 %v5507, %v5510
  %vm5512 = vweird.f32 %v5491
  %vm5513 = vweird.f32 %v5507
  %vm5514 = vmor %vm5512, %vm5513
  %v5515 = vsel %vm5514, %v5507, %v5511
  %v5516 = vand.u32 2147483647, %v5491
  %vm5517 = vcmp.eq.f32.partialorder %v5516, 8.507059e+37
  %v5518 = vand.u32 %v5491, 2147483648
  %v5519 = vor.u32 1.1754944e-38, %v5518
  %v5520 = vsel %vm5517, %v5519, %v5515
  %v5521 = vmul.f32 1.0, %v5520
  %v5522 = vxor.u32 %v5478, 2147483648
  %v5523 = vxor.u32 %v5479, 2147483648
  %v5524 = vmul.f32 %v5522, 1.442695
  %v5525 = vpow.pop %v5524
  %v5526 = vmul.f32 %v5523, 1.442695
  %v5527 = vpow.pop %v5526
  %v5528 = vadd.f32 %v5525, 1.0
  %v5529 = vadd.f32 %v5527, 1.0
  %v5530 = vrcp.pop %v5528
  %v5531 = vmul.f32 %v5528, %v5530
  %v5532 = vsub.f32 1.0, %v5531
  %v5533 = vmul.f32 %v5530, %v5532
  %v5534 = vadd.f32 %v5530, %v5533
  %vm5535 = vweird.f32 %v5528
  %vm5536 = vweird.f32 %v5530
  %vm5537 = vmor %vm5535, %vm5536
  %v5538 = vsel %vm5537, %v5530, %v5534
  %v5539 = vand.u32 2147483647, %v5528
  %vm5540 = vcmp.eq.f32.partialorder %v5539, 8.507059e+37
  %v5541 = vand.u32 %v5528, 2147483648
  %v5542 = vor.u32 1.1754944e-38, %v5541
  %v5543 = vsel %vm5540, %v5542, %v5538
  %v5544 = vmul.f32 1.0, %v5543
  %v5545 = vrcp.pop %v5529
  %v5546 = vmul.f32 %v5529, %v5545
  %v5547 = vsub.f32 1.0, %v5546
  %v5548 = vmul.f32 %v5545, %v5547
  %v5549 = vadd.f32 %v5545, %v5548
  %vm5550 = vweird.f32 %v5529
  %vm5551 = vweird.f32 %v5545
  %vm5552 = vmor %vm5550, %vm5551
  %v5553 = vsel %vm5552, %v5545, %v5549
  %v5554 = vand.u32 2147483647, %v5529
  %vm5555 = vcmp.eq.f32.partialorder %v5554, 8.507059e+37
  %v5556 = vand.u32 %v5529, 2147483648
  %v5557 = vor.u32 1.1754944e-38, %v5556
  %v5558 = vsel %vm5555, %v5557, %v5553
  %v5559 = vmul.f32 1.0, %v5558
  %v5560 = vtanh.pop %v5480
  %v5561 = vtanh.pop %v5481
  %v5562 = vxor.u32 %v5482, 2147483648
  %v5563 = vxor.u32 %v5483, 2147483648
  %v5564 = vmul.f32 %v5562, 1.442695
  %v5565 = vpow.pop %v5564
  %v5566 = vmul.f32 %v5563, 1.442695
  %v5567 = vpow.pop %v5566
  %v5568 = vadd.f32 %v5565, 1.0
  %v5569 = vadd.f32 %v5567, 1.0
  %v5570 = vrcp.pop %v5568
  %v5571 = vmul.f32 %v5568, %v5570
  %v5572 = vsub.f32 1.0, %v5571
  %v5573 = vmul.f32 %v5570, %v5572
  %v5574 = vadd.f32 %v5570, %v5573
  %vm5575 = vweird.f32 %v5568
  %vm5576 = vweird.f32 %v5570
  %vm5577 = vmor %vm5575, %vm5576
  %v5578 = vsel %vm5577, %v5570, %v5574
  %v5579 = vand.u32 2147483647, %v5568
  %vm5580 = vcmp.eq.f32.partialorder %v5579, 8.507059e+37
  %v5581 = vand.u32 %v5568, 2147483648
  %v5582 = vor.u32 1.1754944e-38, %v5581
  %v5583 = vsel %vm5580, %v5582, %v5578
  %v5584 = vmul.f32 1.0, %v5583
  %v5585 = vrcp.pop %v5569
  %v5586 = vmul.f32 %v5569, %v5585
  %v5587 = vsub.f32 1.0, %v5586
  %v5588 = vmul.f32 %v5585, %v5587
  %v5589 = vadd.f32 %v5585, %v5588
  %vm5590 = vweird.f32 %v5569
  %vm5591 = vweird.f32 %v5585
  %vm5592 = vmor %vm5590, %vm5591
  %v5593 = vsel %vm5592, %v5585, %v5589
  %v5594 = vand.u32 2147483647, %v5569
  %vm5595 = vcmp.eq.f32.partialorder %v5594, 8.507059e+37
  %v5596 = vand.u32 %v5569, 2147483648
  %v5597 = vor.u32 1.1754944e-38, %v5596
  %v5598 = vsel %vm5595, %v5597, %v5593
  %v5599 = vmul.f32 1.0, %v5598
  %v5600 = vmul.f32 %v5544, %v5022
  %v5601 = vmul.f32 %v5559, %v5023
  %v5602 = vmul.f32 %v5506, %v5560
  %v5603 = vmul.f32 %v5521, %v5561
  %v5604 = vadd.f32 %v5600, %v5602
  %v5605 = vadd.f32 %v5601, %v5603
  %v5606 = vtanh.pop %v5604
  %v5607 = vtanh.pop %v5605
  %v5608 = vmul.f32 %v5584, %v5606
  %v5609 = vmul.f32 %v5599, %v5607
  %s5610 = smul.u32 5, 2
  %s5611 = smul.addr %s5610, 8
  %s5612 = scalar_lea.vmem %s4, %s5611
  %5613 = vst [vmem:[%s5612] sm:$0xff] %v5608
  %5614 = vst [vmem:[%s5612 + $0x8] sm:$0xff] %v5609
  %v5615 = vsel %vm835, %v5608, 0.0
  %v5616 = vsel %vm836, %v5609, 0.0
  %v5617 = vsel %vm837, %v5608, 0.0
  %v5618 = vsel %vm838, %v5609, 0.0
  %v5619 = vpack.c.bf16 %v5615, %v5615
  %v5620 = vpack.c.bf16 %v5616, %v5616
  %v5621 = vpack.c.bf16 %v5617, %v5617
  %v5622 = vpack.c.bf16 %v5618, %v5618
  %5623 = vmatpush.bf16.msra.mxu0 %v1675
  %5624 = vmatpush.bf16.msra.mxu0 %v1667
  %5625 = vmatpush.bf16.msra.mxu0 %v1659
  %5626 = vmatpush.bf16.msra.mxu0 %v1651
  %5627 = vmatpush.bf16.msra.mxu0 %v1643
  %5628 = vmatpush.bf16.msra.mxu0 %v1635
  %5629 = vmatpush.bf16.msra.mxu0 %v1627
  %5630 = vmatpush.bf16.msra.mxu0 %v1619
  %5631 = vmatmul.bf16.gmra.mxu0 %v5619
  %v5632 = vpop.f32.mrf.mxu0
  %v5633 = vadd.f32 0.0, %v5632
  %v5634 = vpop.f32.mrf.mxu0
  %5635 = vdwg.mxu0
  %5636 = vmatpush.bf16.msra.mxu0 %v1739
  %5637 = vmatpush.bf16.msra.mxu0 %v1731
  %5638 = vmatpush.bf16.msra.mxu0 %v1723
  %5639 = vmatpush.bf16.msra.mxu0 %v1715
  %5640 = vmatpush.bf16.msra.mxu0 %v1707
  %5641 = vmatpush.bf16.msra.mxu0 %v1699
  %5642 = vmatpush.bf16.msra.mxu0 %v1691
  %5643 = vmatpush.bf16.msra.mxu0 %v1683
  %5644 = vmatmul.bf16.gmra.mxu0 %v5620
  %v5645 = vpop.f32.mrf.mxu0
  %v5646 = vadd.f32 %v5633, %v5645
  %v5647 = vpop.f32.mrf.mxu0
  %5648 = vdwg.mxu0
  %5649 = vmatpush.bf16.msra.mxu0 %v1803
  %5650 = vmatpush.bf16.msra.mxu0 %v1795
  %5651 = vmatpush.bf16.msra.mxu0 %v1787
  %5652 = vmatpush.bf16.msra.mxu0 %v1779
  %5653 = vmatpush.bf16.msra.mxu0 %v1771
  %5654 = vmatpush.bf16.msra.mxu0 %v1763
  %5655 = vmatpush.bf16.msra.mxu0 %v1755
  %5656 = vmatpush.bf16.msra.mxu0 %v1747
  %5657 = vmatmul.bf16.gmra.mxu0 %v5621
  %v5658 = vpop.f32.mrf.mxu0
  %v5659 = vadd.f32 %v5646, %v5658
  %v5660 = vpop.f32.mrf.mxu0
  %5661 = vdwg.mxu0
  %5662 = vmatpush.bf16.msra.mxu0 %v1867
  %5663 = vmatpush.bf16.msra.mxu0 %v1859
  %5664 = vmatpush.bf16.msra.mxu0 %v1851
  %5665 = vmatpush.bf16.msra.mxu0 %v1843
  %5666 = vmatpush.bf16.msra.mxu0 %v1835
  %5667 = vmatpush.bf16.msra.mxu0 %v1827
  %5668 = vmatpush.bf16.msra.mxu0 %v1819
  %5669 = vmatpush.bf16.msra.mxu0 %v1811
  %5670 = vmatmul.bf16.gmra.mxu0 %v5622
  %v5671 = vpop.f32.mrf.mxu0
  %v5672 = vadd.f32 %v5659, %v5671
  %v5673 = vpop.f32.mrf.mxu0
  %5674 = vdwg.mxu0
  %5675 = vmatpush.bf16.msra.mxu0 %v1676
  %5676 = vmatpush.bf16.msra.mxu0 %v1668
  %5677 = vmatpush.bf16.msra.mxu0 %v1660
  %5678 = vmatpush.bf16.msra.mxu0 %v1652
  %5679 = vmatpush.bf16.msra.mxu0 %v1644
  %5680 = vmatpush.bf16.msra.mxu0 %v1636
  %5681 = vmatpush.bf16.msra.mxu0 %v1628
  %5682 = vmatpush.bf16.msra.mxu0 %v1620
  %5683 = vmatmul.bf16.gmra.mxu0 %v5619
  %v5684 = vpop.f32.mrf.mxu0
  %v5685 = vadd.f32 0.0, %v5684
  %v5686 = vpop.f32.mrf.mxu0
  %5687 = vdwg.mxu0
  %5688 = vmatpush.bf16.msra.mxu0 %v1740
  %5689 = vmatpush.bf16.msra.mxu0 %v1732
  %5690 = vmatpush.bf16.msra.mxu0 %v1724
  %5691 = vmatpush.bf16.msra.mxu0 %v1716
  %5692 = vmatpush.bf16.msra.mxu0 %v1708
  %5693 = vmatpush.bf16.msra.mxu0 %v1700
  %5694 = vmatpush.bf16.msra.mxu0 %v1692
  %5695 = vmatpush.bf16.msra.mxu0 %v1684
  %5696 = vmatmul.bf16.gmra.mxu0 %v5620
  %v5697 = vpop.f32.mrf.mxu0
  %v5698 = vadd.f32 %v5685, %v5697
  %v5699 = vpop.f32.mrf.mxu0
  %5700 = vdwg.mxu0
  %5701 = vmatpush.bf16.msra.mxu0 %v1804
  %5702 = vmatpush.bf16.msra.mxu0 %v1796
  %5703 = vmatpush.bf16.msra.mxu0 %v1788
  %5704 = vmatpush.bf16.msra.mxu0 %v1780
  %5705 = vmatpush.bf16.msra.mxu0 %v1772
  %5706 = vmatpush.bf16.msra.mxu0 %v1764
  %5707 = vmatpush.bf16.msra.mxu0 %v1756
  %5708 = vmatpush.bf16.msra.mxu0 %v1748
  %5709 = vmatmul.bf16.gmra.mxu0 %v5621
  %v5710 = vpop.f32.mrf.mxu0
  %v5711 = vadd.f32 %v5698, %v5710
  %v5712 = vpop.f32.mrf.mxu0
  %5713 = vdwg.mxu0
  %5714 = vmatpush.bf16.msra.mxu0 %v1868
  %5715 = vmatpush.bf16.msra.mxu0 %v1860
  %5716 = vmatpush.bf16.msra.mxu0 %v1852
  %5717 = vmatpush.bf16.msra.mxu0 %v1844
  %5718 = vmatpush.bf16.msra.mxu0 %v1836
  %5719 = vmatpush.bf16.msra.mxu0 %v1828
  %5720 = vmatpush.bf16.msra.mxu0 %v1820
  %5721 = vmatpush.bf16.msra.mxu0 %v1812
  %5722 = vmatmul.bf16.gmra.mxu0 %v5622
  %v5723 = vpop.f32.mrf.mxu0
  %v5724 = vadd.f32 %v5711, %v5723
  %v5725 = vpop.f32.mrf.mxu0
  %5726 = vdwg.mxu0
  %5727 = vmatpush.bf16.msra.mxu0 %v1677
  %5728 = vmatpush.bf16.msra.mxu0 %v1669
  %5729 = vmatpush.bf16.msra.mxu0 %v1661
  %5730 = vmatpush.bf16.msra.mxu0 %v1653
  %5731 = vmatpush.bf16.msra.mxu0 %v1645
  %5732 = vmatpush.bf16.msra.mxu0 %v1637
  %5733 = vmatpush.bf16.msra.mxu0 %v1629
  %5734 = vmatpush.bf16.msra.mxu0 %v1621
  %5735 = vmatmul.bf16.gmra.mxu0 %v5619
  %v5736 = vpop.f32.mrf.mxu0
  %v5737 = vadd.f32 0.0, %v5736
  %v5738 = vpop.f32.mrf.mxu0
  %5739 = vdwg.mxu0
  %5740 = vmatpush.bf16.msra.mxu0 %v1741
  %5741 = vmatpush.bf16.msra.mxu0 %v1733
  %5742 = vmatpush.bf16.msra.mxu0 %v1725
  %5743 = vmatpush.bf16.msra.mxu0 %v1717
  %5744 = vmatpush.bf16.msra.mxu0 %v1709
  %5745 = vmatpush.bf16.msra.mxu0 %v1701
  %5746 = vmatpush.bf16.msra.mxu0 %v1693
  %5747 = vmatpush.bf16.msra.mxu0 %v1685
  %5748 = vmatmul.bf16.gmra.mxu0 %v5620
  %v5749 = vpop.f32.mrf.mxu0
  %v5750 = vadd.f32 %v5737, %v5749
  %v5751 = vpop.f32.mrf.mxu0
  %5752 = vdwg.mxu0
  %5753 = vmatpush.bf16.msra.mxu0 %v1805
  %5754 = vmatpush.bf16.msra.mxu0 %v1797
  %5755 = vmatpush.bf16.msra.mxu0 %v1789
  %5756 = vmatpush.bf16.msra.mxu0 %v1781
  %5757 = vmatpush.bf16.msra.mxu0 %v1773
  %5758 = vmatpush.bf16.msra.mxu0 %v1765
  %5759 = vmatpush.bf16.msra.mxu0 %v1757
  %5760 = vmatpush.bf16.msra.mxu0 %v1749
  %5761 = vmatmul.bf16.gmra.mxu0 %v5621
  %v5762 = vpop.f32.mrf.mxu0
  %v5763 = vadd.f32 %v5750, %v5762
  %v5764 = vpop.f32.mrf.mxu0
  %5765 = vdwg.mxu0
  %5766 = vmatpush.bf16.msra.mxu0 %v1869
  %5767 = vmatpush.bf16.msra.mxu0 %v1861
  %5768 = vmatpush.bf16.msra.mxu0 %v1853
  %5769 = vmatpush.bf16.msra.mxu0 %v1845
  %5770 = vmatpush.bf16.msra.mxu0 %v1837
  %5771 = vmatpush.bf16.msra.mxu0 %v1829
  %5772 = vmatpush.bf16.msra.mxu0 %v1821
  %5773 = vmatpush.bf16.msra.mxu0 %v1813
  %5774 = vmatmul.bf16.gmra.mxu0 %v5622
  %v5775 = vpop.f32.mrf.mxu0
  %v5776 = vadd.f32 %v5763, %v5775
  %v5777 = vpop.f32.mrf.mxu0
  %5778 = vdwg.mxu0
  %5779 = vmatpush.bf16.msra.mxu0 %v1678
  %5780 = vmatpush.bf16.msra.mxu0 %v1670
  %5781 = vmatpush.bf16.msra.mxu0 %v1662
  %5782 = vmatpush.bf16.msra.mxu0 %v1654
  %5783 = vmatpush.bf16.msra.mxu0 %v1646
  %5784 = vmatpush.bf16.msra.mxu0 %v1638
  %5785 = vmatpush.bf16.msra.mxu0 %v1630
  %5786 = vmatpush.bf16.msra.mxu0 %v1622
  %5787 = vmatmul.bf16.gmra.mxu0 %v5619
  %v5788 = vpop.f32.mrf.mxu0
  %v5789 = vadd.f32 0.0, %v5788
  %v5790 = vpop.f32.mrf.mxu0
  %5791 = vdwg.mxu0
  %5792 = vmatpush.bf16.msra.mxu0 %v1742
  %5793 = vmatpush.bf16.msra.mxu0 %v1734
  %5794 = vmatpush.bf16.msra.mxu0 %v1726
  %5795 = vmatpush.bf16.msra.mxu0 %v1718
  %5796 = vmatpush.bf16.msra.mxu0 %v1710
  %5797 = vmatpush.bf16.msra.mxu0 %v1702
  %5798 = vmatpush.bf16.msra.mxu0 %v1694
  %5799 = vmatpush.bf16.msra.mxu0 %v1686
  %5800 = vmatmul.bf16.gmra.mxu0 %v5620
  %v5801 = vpop.f32.mrf.mxu0
  %v5802 = vadd.f32 %v5789, %v5801
  %v5803 = vpop.f32.mrf.mxu0
  %5804 = vdwg.mxu0
  %5805 = vmatpush.bf16.msra.mxu0 %v1806
  %5806 = vmatpush.bf16.msra.mxu0 %v1798
  %5807 = vmatpush.bf16.msra.mxu0 %v1790
  %5808 = vmatpush.bf16.msra.mxu0 %v1782
  %5809 = vmatpush.bf16.msra.mxu0 %v1774
  %5810 = vmatpush.bf16.msra.mxu0 %v1766
  %5811 = vmatpush.bf16.msra.mxu0 %v1758
  %5812 = vmatpush.bf16.msra.mxu0 %v1750
  %5813 = vmatmul.bf16.gmra.mxu0 %v5621
  %v5814 = vpop.f32.mrf.mxu0
  %v5815 = vadd.f32 %v5802, %v5814
  %v5816 = vpop.f32.mrf.mxu0
  %5817 = vdwg.mxu0
  %5818 = vmatpush.bf16.msra.mxu0 %v1870
  %5819 = vmatpush.bf16.msra.mxu0 %v1862
  %5820 = vmatpush.bf16.msra.mxu0 %v1854
  %5821 = vmatpush.bf16.msra.mxu0 %v1846
  %5822 = vmatpush.bf16.msra.mxu0 %v1838
  %5823 = vmatpush.bf16.msra.mxu0 %v1830
  %5824 = vmatpush.bf16.msra.mxu0 %v1822
  %5825 = vmatpush.bf16.msra.mxu0 %v1814
  %5826 = vmatmul.bf16.gmra.mxu0 %v5622
  %v5827 = vpop.f32.mrf.mxu0
  %v5828 = vadd.f32 %v5815, %v5827
  %v5829 = vpop.f32.mrf.mxu0
  %5830 = vdwg.mxu0
  %5831 = vmatpush.bf16.msra.mxu0 %v1679
  %5832 = vmatpush.bf16.msra.mxu0 %v1671
  %5833 = vmatpush.bf16.msra.mxu0 %v1663
  %5834 = vmatpush.bf16.msra.mxu0 %v1655
  %5835 = vmatpush.bf16.msra.mxu0 %v1647
  %5836 = vmatpush.bf16.msra.mxu0 %v1639
  %5837 = vmatpush.bf16.msra.mxu0 %v1631
  %5838 = vmatpush.bf16.msra.mxu0 %v1623
  %5839 = vmatmul.bf16.gmra.mxu0 %v5619
  %v5840 = vpop.f32.mrf.mxu0
  %v5841 = vadd.f32 0.0, %v5840
  %v5842 = vpop.f32.mrf.mxu0
  %5843 = vdwg.mxu0
  %5844 = vmatpush.bf16.msra.mxu0 %v1743
  %5845 = vmatpush.bf16.msra.mxu0 %v1735
  %5846 = vmatpush.bf16.msra.mxu0 %v1727
  %5847 = vmatpush.bf16.msra.mxu0 %v1719
  %5848 = vmatpush.bf16.msra.mxu0 %v1711
  %5849 = vmatpush.bf16.msra.mxu0 %v1703
  %5850 = vmatpush.bf16.msra.mxu0 %v1695
  %5851 = vmatpush.bf16.msra.mxu0 %v1687
  %5852 = vmatmul.bf16.gmra.mxu0 %v5620
  %v5853 = vpop.f32.mrf.mxu0
  %v5854 = vadd.f32 %v5841, %v5853
  %v5855 = vpop.f32.mrf.mxu0
  %5856 = vdwg.mxu0
  %5857 = vmatpush.bf16.msra.mxu0 %v1807
  %5858 = vmatpush.bf16.msra.mxu0 %v1799
  %5859 = vmatpush.bf16.msra.mxu0 %v1791
  %5860 = vmatpush.bf16.msra.mxu0 %v1783
  %5861 = vmatpush.bf16.msra.mxu0 %v1775
  %5862 = vmatpush.bf16.msra.mxu0 %v1767
  %5863 = vmatpush.bf16.msra.mxu0 %v1759
  %5864 = vmatpush.bf16.msra.mxu0 %v1751
  %5865 = vmatmul.bf16.gmra.mxu0 %v5621
  %v5866 = vpop.f32.mrf.mxu0
  %v5867 = vadd.f32 %v5854, %v5866
  %v5868 = vpop.f32.mrf.mxu0
  %5869 = vdwg.mxu0
  %5870 = vmatpush.bf16.msra.mxu0 %v1871
  %5871 = vmatpush.bf16.msra.mxu0 %v1863
  %5872 = vmatpush.bf16.msra.mxu0 %v1855
  %5873 = vmatpush.bf16.msra.mxu0 %v1847
  %5874 = vmatpush.bf16.msra.mxu0 %v1839
  %5875 = vmatpush.bf16.msra.mxu0 %v1831
  %5876 = vmatpush.bf16.msra.mxu0 %v1823
  %5877 = vmatpush.bf16.msra.mxu0 %v1815
  %5878 = vmatmul.bf16.gmra.mxu0 %v5622
  %v5879 = vpop.f32.mrf.mxu0
  %v5880 = vadd.f32 %v5867, %v5879
  %v5881 = vpop.f32.mrf.mxu0
  %5882 = vdwg.mxu0
  %5883 = vmatpush.bf16.msra.mxu0 %v1680
  %5884 = vmatpush.bf16.msra.mxu0 %v1672
  %5885 = vmatpush.bf16.msra.mxu0 %v1664
  %5886 = vmatpush.bf16.msra.mxu0 %v1656
  %5887 = vmatpush.bf16.msra.mxu0 %v1648
  %5888 = vmatpush.bf16.msra.mxu0 %v1640
  %5889 = vmatpush.bf16.msra.mxu0 %v1632
  %5890 = vmatpush.bf16.msra.mxu0 %v1624
  %5891 = vmatmul.bf16.gmra.mxu0 %v5619
  %v5892 = vpop.f32.mrf.mxu0
  %v5893 = vadd.f32 0.0, %v5892
  %v5894 = vpop.f32.mrf.mxu0
  %5895 = vdwg.mxu0
  %5896 = vmatpush.bf16.msra.mxu0 %v1744
  %5897 = vmatpush.bf16.msra.mxu0 %v1736
  %5898 = vmatpush.bf16.msra.mxu0 %v1728
  %5899 = vmatpush.bf16.msra.mxu0 %v1720
  %5900 = vmatpush.bf16.msra.mxu0 %v1712
  %5901 = vmatpush.bf16.msra.mxu0 %v1704
  %5902 = vmatpush.bf16.msra.mxu0 %v1696
  %5903 = vmatpush.bf16.msra.mxu0 %v1688
  %5904 = vmatmul.bf16.gmra.mxu0 %v5620
  %v5905 = vpop.f32.mrf.mxu0
  %v5906 = vadd.f32 %v5893, %v5905
  %v5907 = vpop.f32.mrf.mxu0
  %5908 = vdwg.mxu0
  %5909 = vmatpush.bf16.msra.mxu0 %v1808
  %5910 = vmatpush.bf16.msra.mxu0 %v1800
  %5911 = vmatpush.bf16.msra.mxu0 %v1792
  %5912 = vmatpush.bf16.msra.mxu0 %v1784
  %5913 = vmatpush.bf16.msra.mxu0 %v1776
  %5914 = vmatpush.bf16.msra.mxu0 %v1768
  %5915 = vmatpush.bf16.msra.mxu0 %v1760
  %5916 = vmatpush.bf16.msra.mxu0 %v1752
  %5917 = vmatmul.bf16.gmra.mxu0 %v5621
  %v5918 = vpop.f32.mrf.mxu0
  %v5919 = vadd.f32 %v5906, %v5918
  %v5920 = vpop.f32.mrf.mxu0
  %5921 = vdwg.mxu0
  %5922 = vmatpush.bf16.msra.mxu0 %v1872
  %5923 = vmatpush.bf16.msra.mxu0 %v1864
  %5924 = vmatpush.bf16.msra.mxu0 %v1856
  %5925 = vmatpush.bf16.msra.mxu0 %v1848
  %5926 = vmatpush.bf16.msra.mxu0 %v1840
  %5927 = vmatpush.bf16.msra.mxu0 %v1832
  %5928 = vmatpush.bf16.msra.mxu0 %v1824
  %5929 = vmatpush.bf16.msra.mxu0 %v1816
  %5930 = vmatmul.bf16.gmra.mxu0 %v5622
  %v5931 = vpop.f32.mrf.mxu0
  %v5932 = vadd.f32 %v5919, %v5931
  %v5933 = vpop.f32.mrf.mxu0
  %5934 = vdwg.mxu0
  %5935 = vmatpush.bf16.msra.mxu0 %v1681
  %5936 = vmatpush.bf16.msra.mxu0 %v1673
  %5937 = vmatpush.bf16.msra.mxu0 %v1665
  %5938 = vmatpush.bf16.msra.mxu0 %v1657
  %5939 = vmatpush.bf16.msra.mxu0 %v1649
  %5940 = vmatpush.bf16.msra.mxu0 %v1641
  %5941 = vmatpush.bf16.msra.mxu0 %v1633
  %5942 = vmatpush.bf16.msra.mxu0 %v1625
  %5943 = vmatmul.bf16.gmra.mxu0 %v5619
  %v5944 = vpop.f32.mrf.mxu0
  %v5945 = vadd.f32 0.0, %v5944
  %v5946 = vpop.f32.mrf.mxu0
  %5947 = vdwg.mxu0
  %5948 = vmatpush.bf16.msra.mxu0 %v1745
  %5949 = vmatpush.bf16.msra.mxu0 %v1737
  %5950 = vmatpush.bf16.msra.mxu0 %v1729
  %5951 = vmatpush.bf16.msra.mxu0 %v1721
  %5952 = vmatpush.bf16.msra.mxu0 %v1713
  %5953 = vmatpush.bf16.msra.mxu0 %v1705
  %5954 = vmatpush.bf16.msra.mxu0 %v1697
  %5955 = vmatpush.bf16.msra.mxu0 %v1689
  %5956 = vmatmul.bf16.gmra.mxu0 %v5620
  %v5957 = vpop.f32.mrf.mxu0
  %v5958 = vadd.f32 %v5945, %v5957
  %v5959 = vpop.f32.mrf.mxu0
  %5960 = vdwg.mxu0
  %5961 = vmatpush.bf16.msra.mxu0 %v1809
  %5962 = vmatpush.bf16.msra.mxu0 %v1801
  %5963 = vmatpush.bf16.msra.mxu0 %v1793
  %5964 = vmatpush.bf16.msra.mxu0 %v1785
  %5965 = vmatpush.bf16.msra.mxu0 %v1777
  %5966 = vmatpush.bf16.msra.mxu0 %v1769
  %5967 = vmatpush.bf16.msra.mxu0 %v1761
  %5968 = vmatpush.bf16.msra.mxu0 %v1753
  %5969 = vmatmul.bf16.gmra.mxu0 %v5621
  %v5970 = vpop.f32.mrf.mxu0
  %v5971 = vadd.f32 %v5958, %v5970
  %v5972 = vpop.f32.mrf.mxu0
  %5973 = vdwg.mxu0
  %5974 = vmatpush.bf16.msra.mxu0 %v1873
  %5975 = vmatpush.bf16.msra.mxu0 %v1865
  %5976 = vmatpush.bf16.msra.mxu0 %v1857
  %5977 = vmatpush.bf16.msra.mxu0 %v1849
  %5978 = vmatpush.bf16.msra.mxu0 %v1841
  %5979 = vmatpush.bf16.msra.mxu0 %v1833
  %5980 = vmatpush.bf16.msra.mxu0 %v1825
  %5981 = vmatpush.bf16.msra.mxu0 %v1817
  %5982 = vmatmul.bf16.gmra.mxu0 %v5622
  %v5983 = vpop.f32.mrf.mxu0
  %v5984 = vadd.f32 %v5971, %v5983
  %v5985 = vpop.f32.mrf.mxu0
  %5986 = vdwg.mxu0
  %5987 = vmatpush.bf16.msra.mxu0 %v1682
  %5988 = vmatpush.bf16.msra.mxu0 %v1674
  %5989 = vmatpush.bf16.msra.mxu0 %v1666
  %5990 = vmatpush.bf16.msra.mxu0 %v1658
  %5991 = vmatpush.bf16.msra.mxu0 %v1650
  %5992 = vmatpush.bf16.msra.mxu0 %v1642
  %5993 = vmatpush.bf16.msra.mxu0 %v1634
  %5994 = vmatpush.bf16.msra.mxu0 %v1626
  %5995 = vmatmul.bf16.gmra.mxu0 %v5619
  %v5996 = vpop.f32.mrf.mxu0
  %v5997 = vadd.f32 0.0, %v5996
  %v5998 = vpop.f32.mrf.mxu0
  %5999 = vdwg.mxu0
  %6000 = vmatpush.bf16.msra.mxu0 %v1746
  %6001 = vmatpush.bf16.msra.mxu0 %v1738
  %6002 = vmatpush.bf16.msra.mxu0 %v1730
  %6003 = vmatpush.bf16.msra.mxu0 %v1722
  %6004 = vmatpush.bf16.msra.mxu0 %v1714
  %6005 = vmatpush.bf16.msra.mxu0 %v1706
  %6006 = vmatpush.bf16.msra.mxu0 %v1698
  %6007 = vmatpush.bf16.msra.mxu0 %v1690
  %6008 = vmatmul.bf16.gmra.mxu0 %v5620
  %v6009 = vpop.f32.mrf.mxu0
  %v6010 = vadd.f32 %v5997, %v6009
  %v6011 = vpop.f32.mrf.mxu0
  %6012 = vdwg.mxu0
  %6013 = vmatpush.bf16.msra.mxu0 %v1810
  %6014 = vmatpush.bf16.msra.mxu0 %v1802
  %6015 = vmatpush.bf16.msra.mxu0 %v1794
  %6016 = vmatpush.bf16.msra.mxu0 %v1786
  %6017 = vmatpush.bf16.msra.mxu0 %v1778
  %6018 = vmatpush.bf16.msra.mxu0 %v1770
  %6019 = vmatpush.bf16.msra.mxu0 %v1762
  %6020 = vmatpush.bf16.msra.mxu0 %v1754
  %6021 = vmatmul.bf16.gmra.mxu0 %v5621
  %v6022 = vpop.f32.mrf.mxu0
  %v6023 = vadd.f32 %v6010, %v6022
  %v6024 = vpop.f32.mrf.mxu0
  %6025 = vdwg.mxu0
  %6026 = vmatpush.bf16.msra.mxu0 %v1874
  %6027 = vmatpush.bf16.msra.mxu0 %v1866
  %6028 = vmatpush.bf16.msra.mxu0 %v1858
  %6029 = vmatpush.bf16.msra.mxu0 %v1850
  %6030 = vmatpush.bf16.msra.mxu0 %v1842
  %6031 = vmatpush.bf16.msra.mxu0 %v1834
  %6032 = vmatpush.bf16.msra.mxu0 %v1826
  %6033 = vmatpush.bf16.msra.mxu0 %v1818
  %6034 = vmatmul.bf16.gmra.mxu0 %v5622
  %v6035 = vpop.f32.mrf.mxu0
  %v6036 = vadd.f32 %v6023, %v6035
  %v6037 = vpop.f32.mrf.mxu0
  %6038 = vdwg.mxu0
  %s6039 = smul.u32 6, 8
  %s6040 = smul.addr %s6039, 8
  %s6041 = scalar_lea.vmem [#allocation2], %s6040
  %v6042 = vld [vmem:[%s6041] sm:$0xff]
  %v6043 = vld [vmem:[%s6041 + $0x8] sm:$0xff]
  %v6044 = vld [vmem:[%s6041 + $0x10] sm:$0xff]
  %v6045 = vld [vmem:[%s6041 + $0x18] sm:$0xff]
  %v6046 = vld [vmem:[%s6041 + $0x20] sm:$0xff]
  %v6047 = vld [vmem:[%s6041 + $0x28] sm:$0xff]
  %v6048 = vld [vmem:[%s6041 + $0x30] sm:$0xff]
  %v6049 = vld [vmem:[%s6041 + $0x38] sm:$0xff]
  %v6050 = vadd.f32 %v6042, %v5672
  %v6051 = vadd.f32 %v6043, %v5724
  %v6052 = vadd.f32 %v6044, %v5776
  %v6053 = vadd.f32 %v6045, %v5828
  %v6054 = vadd.f32 %v6046, %v5880
  %v6055 = vadd.f32 %v6047, %v5932
  %v6056 = vadd.f32 %v6048, %v5984
  %v6057 = vadd.f32 %v6049, %v6036
  %v6058 = vadd.f32 %v6050, %v811
  %v6059 = vadd.f32 %v6051, %v812
  %v6060 = vadd.f32 %v6052, %v813
  %v6061 = vadd.f32 %v6053, %v814
  %v6062 = vadd.f32 %v6054, %v815
  %v6063 = vadd.f32 %v6055, %v816
  %v6064 = vadd.f32 %v6056, %v817
  %v6065 = vadd.f32 %v6057, %v818
  %v6066 = vxor.u32 %v6058, 2147483648
  %v6067 = vxor.u32 %v6059, 2147483648
  %v6068 = vmul.f32 %v6066, 1.442695
  %v6069 = vpow.pop %v6068
  %v6070 = vmul.f32 %v6067, 1.442695
  %v6071 = vpow.pop %v6070
  %v6072 = vadd.f32 %v6069, 1.0
  %v6073 = vadd.f32 %v6071, 1.0
  %v6074 = vrcp.pop %v6072
  %v6075 = vmul.f32 %v6072, %v6074
  %v6076 = vsub.f32 1.0, %v6075
  %v6077 = vmul.f32 %v6074, %v6076
  %v6078 = vadd.f32 %v6074, %v6077
  %vm6079 = vweird.f32 %v6072
  %vm6080 = vweird.f32 %v6074
  %vm6081 = vmor %vm6079, %vm6080
  %v6082 = vsel %vm6081, %v6074, %v6078
  %v6083 = vand.u32 2147483647, %v6072
  %vm6084 = vcmp.eq.f32.partialorder %v6083, 8.507059e+37
  %v6085 = vand.u32 %v6072, 2147483648
  %v6086 = vor.u32 1.1754944e-38, %v6085
  %v6087 = vsel %vm6084, %v6086, %v6082
  %v6088 = vmul.f32 1.0, %v6087
  %v6089 = vrcp.pop %v6073
  %v6090 = vmul.f32 %v6073, %v6089
  %v6091 = vsub.f32 1.0, %v6090
  %v6092 = vmul.f32 %v6089, %v6091
  %v6093 = vadd.f32 %v6089, %v6092
  %vm6094 = vweird.f32 %v6073
  %vm6095 = vweird.f32 %v6089
  %vm6096 = vmor %vm6094, %vm6095
  %v6097 = vsel %vm6096, %v6089, %v6093
  %v6098 = vand.u32 2147483647, %v6073
  %vm6099 = vcmp.eq.f32.partialorder %v6098, 8.507059e+37
  %v6100 = vand.u32 %v6073, 2147483648
  %v6101 = vor.u32 1.1754944e-38, %v6100
  %v6102 = vsel %vm6099, %v6101, %v6097
  %v6103 = vmul.f32 1.0, %v6102
  %v6104 = vxor.u32 %v6060, 2147483648
  %v6105 = vxor.u32 %v6061, 2147483648
  %v6106 = vmul.f32 %v6104, 1.442695
  %v6107 = vpow.pop %v6106
  %v6108 = vmul.f32 %v6105, 1.442695
  %v6109 = vpow.pop %v6108
  %v6110 = vadd.f32 %v6107, 1.0
  %v6111 = vadd.f32 %v6109, 1.0
  %v6112 = vrcp.pop %v6110
  %v6113 = vmul.f32 %v6110, %v6112
  %v6114 = vsub.f32 1.0, %v6113
  %v6115 = vmul.f32 %v6112, %v6114
  %v6116 = vadd.f32 %v6112, %v6115
  %vm6117 = vweird.f32 %v6110
  %vm6118 = vweird.f32 %v6112
  %vm6119 = vmor %vm6117, %vm6118
  %v6120 = vsel %vm6119, %v6112, %v6116
  %v6121 = vand.u32 2147483647, %v6110
  %vm6122 = vcmp.eq.f32.partialorder %v6121, 8.507059e+37
  %v6123 = vand.u32 %v6110, 2147483648
  %v6124 = vor.u32 1.1754944e-38, %v6123
  %v6125 = vsel %vm6122, %v6124, %v6120
  %v6126 = vmul.f32 1.0, %v6125
  %v6127 = vrcp.pop %v6111
  %v6128 = vmul.f32 %v6111, %v6127
  %v6129 = vsub.f32 1.0, %v6128
  %v6130 = vmul.f32 %v6127, %v6129
  %v6131 = vadd.f32 %v6127, %v6130
  %vm6132 = vweird.f32 %v6111
  %vm6133 = vweird.f32 %v6127
  %vm6134 = vmor %vm6132, %vm6133
  %v6135 = vsel %vm6134, %v6127, %v6131
  %v6136 = vand.u32 2147483647, %v6111
  %vm6137 = vcmp.eq.f32.partialorder %v6136, 8.507059e+37
  %v6138 = vand.u32 %v6111, 2147483648
  %v6139 = vor.u32 1.1754944e-38, %v6138
  %v6140 = vsel %vm6137, %v6139, %v6135
  %v6141 = vmul.f32 1.0, %v6140
  %v6142 = vtanh.pop %v6062
  %v6143 = vtanh.pop %v6063
  %v6144 = vxor.u32 %v6064, 2147483648
  %v6145 = vxor.u32 %v6065, 2147483648
  %v6146 = vmul.f32 %v6144, 1.442695
  %v6147 = vpow.pop %v6146
  %v6148 = vmul.f32 %v6145, 1.442695
  %v6149 = vpow.pop %v6148
  %v6150 = vadd.f32 %v6147, 1.0
  %v6151 = vadd.f32 %v6149, 1.0
  %v6152 = vrcp.pop %v6150
  %v6153 = vmul.f32 %v6150, %v6152
  %v6154 = vsub.f32 1.0, %v6153
  %v6155 = vmul.f32 %v6152, %v6154
  %v6156 = vadd.f32 %v6152, %v6155
  %vm6157 = vweird.f32 %v6150
  %vm6158 = vweird.f32 %v6152
  %vm6159 = vmor %vm6157, %vm6158
  %v6160 = vsel %vm6159, %v6152, %v6156
  %v6161 = vand.u32 2147483647, %v6150
  %vm6162 = vcmp.eq.f32.partialorder %v6161, 8.507059e+37
  %v6163 = vand.u32 %v6150, 2147483648
  %v6164 = vor.u32 1.1754944e-38, %v6163
  %v6165 = vsel %vm6162, %v6164, %v6160
  %v6166 = vmul.f32 1.0, %v6165
  %v6167 = vrcp.pop %v6151
  %v6168 = vmul.f32 %v6151, %v6167
  %v6169 = vsub.f32 1.0, %v6168
  %v6170 = vmul.f32 %v6167, %v6169
  %v6171 = vadd.f32 %v6167, %v6170
  %vm6172 = vweird.f32 %v6151
  %vm6173 = vweird.f32 %v6167
  %vm6174 = vmor %vm6172, %vm6173
  %v6175 = vsel %vm6174, %v6167, %v6171
  %v6176 = vand.u32 2147483647, %v6151
  %vm6177 = vcmp.eq.f32.partialorder %v6176, 8.507059e+37
  %v6178 = vand.u32 %v6151, 2147483648
  %v6179 = vor.u32 1.1754944e-38, %v6178
  %v6180 = vsel %vm6177, %v6179, %v6175
  %v6181 = vmul.f32 1.0, %v6180
  %v6182 = vmul.f32 %v6126, %v5604
  %v6183 = vmul.f32 %v6141, %v5605
  %v6184 = vmul.f32 %v6088, %v6142
  %v6185 = vmul.f32 %v6103, %v6143
  %v6186 = vadd.f32 %v6182, %v6184
  %v6187 = vadd.f32 %v6183, %v6185
  %v6188 = vtanh.pop %v6186
  %v6189 = vtanh.pop %v6187
  %v6190 = vmul.f32 %v6166, %v6188
  %v6191 = vmul.f32 %v6181, %v6189
  %s6192 = smul.u32 6, 2
  %s6193 = smul.addr %s6192, 8
  %s6194 = scalar_lea.vmem %s4, %s6193
  %6195 = vst [vmem:[%s6194] sm:$0xff] %v6190
  %6196 = vst [vmem:[%s6194 + $0x8] sm:$0xff] %v6191
  %v6197 = vsel %vm835, %v6190, 0.0
  %v6198 = vsel %vm836, %v6191, 0.0
  %v6199 = vsel %vm837, %v6190, 0.0
  %v6200 = vsel %vm838, %v6191, 0.0
  %v6201 = vpack.c.bf16 %v6197, %v6197
  %v6202 = vpack.c.bf16 %v6198, %v6198
  %v6203 = vpack.c.bf16 %v6199, %v6199
  %v6204 = vpack.c.bf16 %v6200, %v6200
  %6205 = vmatpush.bf16.msra.mxu0 %v1675
  %6206 = vmatpush.bf16.msra.mxu0 %v1667
  %6207 = vmatpush.bf16.msra.mxu0 %v1659
  %6208 = vmatpush.bf16.msra.mxu0 %v1651
  %6209 = vmatpush.bf16.msra.mxu0 %v1643
  %6210 = vmatpush.bf16.msra.mxu0 %v1635
  %6211 = vmatpush.bf16.msra.mxu0 %v1627
  %6212 = vmatpush.bf16.msra.mxu0 %v1619
  %6213 = vmatmul.bf16.gmra.mxu0 %v6201
  %v6214 = vpop.f32.mrf.mxu0
  %v6215 = vadd.f32 0.0, %v6214
  %v6216 = vpop.f32.mrf.mxu0
  %6217 = vdwg.mxu0
  %6218 = vmatpush.bf16.msra.mxu0 %v1739
  %6219 = vmatpush.bf16.msra.mxu0 %v1731
  %6220 = vmatpush.bf16.msra.mxu0 %v1723
  %6221 = vmatpush.bf16.msra.mxu0 %v1715
  %6222 = vmatpush.bf16.msra.mxu0 %v1707
  %6223 = vmatpush.bf16.msra.mxu0 %v1699
  %6224 = vmatpush.bf16.msra.mxu0 %v1691
  %6225 = vmatpush.bf16.msra.mxu0 %v1683
  %6226 = vmatmul.bf16.gmra.mxu0 %v6202
  %v6227 = vpop.f32.mrf.mxu0
  %v6228 = vadd.f32 %v6215, %v6227
  %v6229 = vpop.f32.mrf.mxu0
  %6230 = vdwg.mxu0
  %6231 = vmatpush.bf16.msra.mxu0 %v1803
  %6232 = vmatpush.bf16.msra.mxu0 %v1795
  %6233 = vmatpush.bf16.msra.mxu0 %v1787
  %6234 = vmatpush.bf16.msra.mxu0 %v1779
  %6235 = vmatpush.bf16.msra.mxu0 %v1771
  %6236 = vmatpush.bf16.msra.mxu0 %v1763
  %6237 = vmatpush.bf16.msra.mxu0 %v1755
  %6238 = vmatpush.bf16.msra.mxu0 %v1747
  %6239 = vmatmul.bf16.gmra.mxu0 %v6203
  %v6240 = vpop.f32.mrf.mxu0
  %v6241 = vadd.f32 %v6228, %v6240
  %v6242 = vpop.f32.mrf.mxu0
  %6243 = vdwg.mxu0
  %6244 = vmatpush.bf16.msra.mxu0 %v1867
  %6245 = vmatpush.bf16.msra.mxu0 %v1859
  %6246 = vmatpush.bf16.msra.mxu0 %v1851
  %6247 = vmatpush.bf16.msra.mxu0 %v1843
  %6248 = vmatpush.bf16.msra.mxu0 %v1835
  %6249 = vmatpush.bf16.msra.mxu0 %v1827
  %6250 = vmatpush.bf16.msra.mxu0 %v1819
  %6251 = vmatpush.bf16.msra.mxu0 %v1811
  %6252 = vmatmul.bf16.gmra.mxu0 %v6204
  %v6253 = vpop.f32.mrf.mxu0
  %v6254 = vadd.f32 %v6241, %v6253
  %v6255 = vpop.f32.mrf.mxu0
  %6256 = vdwg.mxu0
  %6257 = vmatpush.bf16.msra.mxu0 %v1676
  %6258 = vmatpush.bf16.msra.mxu0 %v1668
  %6259 = vmatpush.bf16.msra.mxu0 %v1660
  %6260 = vmatpush.bf16.msra.mxu0 %v1652
  %6261 = vmatpush.bf16.msra.mxu0 %v1644
  %6262 = vmatpush.bf16.msra.mxu0 %v1636
  %6263 = vmatpush.bf16.msra.mxu0 %v1628
  %6264 = vmatpush.bf16.msra.mxu0 %v1620
  %6265 = vmatmul.bf16.gmra.mxu0 %v6201
  %v6266 = vpop.f32.mrf.mxu0
  %v6267 = vadd.f32 0.0, %v6266
  %v6268 = vpop.f32.mrf.mxu0
  %6269 = vdwg.mxu0
  %6270 = vmatpush.bf16.msra.mxu0 %v1740
  %6271 = vmatpush.bf16.msra.mxu0 %v1732
  %6272 = vmatpush.bf16.msra.mxu0 %v1724
  %6273 = vmatpush.bf16.msra.mxu0 %v1716
  %6274 = vmatpush.bf16.msra.mxu0 %v1708
  %6275 = vmatpush.bf16.msra.mxu0 %v1700
  %6276 = vmatpush.bf16.msra.mxu0 %v1692
  %6277 = vmatpush.bf16.msra.mxu0 %v1684
  %6278 = vmatmul.bf16.gmra.mxu0 %v6202
  %v6279 = vpop.f32.mrf.mxu0
  %v6280 = vadd.f32 %v6267, %v6279
  %v6281 = vpop.f32.mrf.mxu0
  %6282 = vdwg.mxu0
  %6283 = vmatpush.bf16.msra.mxu0 %v1804
  %6284 = vmatpush.bf16.msra.mxu0 %v1796
  %6285 = vmatpush.bf16.msra.mxu0 %v1788
  %6286 = vmatpush.bf16.msra.mxu0 %v1780
  %6287 = vmatpush.bf16.msra.mxu0 %v1772
  %6288 = vmatpush.bf16.msra.mxu0 %v1764
  %6289 = vmatpush.bf16.msra.mxu0 %v1756
  %6290 = vmatpush.bf16.msra.mxu0 %v1748
  %6291 = vmatmul.bf16.gmra.mxu0 %v6203
  %v6292 = vpop.f32.mrf.mxu0
  %v6293 = vadd.f32 %v6280, %v6292
  %v6294 = vpop.f32.mrf.mxu0
  %6295 = vdwg.mxu0
  %6296 = vmatpush.bf16.msra.mxu0 %v1868
  %6297 = vmatpush.bf16.msra.mxu0 %v1860
  %6298 = vmatpush.bf16.msra.mxu0 %v1852
  %6299 = vmatpush.bf16.msra.mxu0 %v1844
  %6300 = vmatpush.bf16.msra.mxu0 %v1836
  %6301 = vmatpush.bf16.msra.mxu0 %v1828
  %6302 = vmatpush.bf16.msra.mxu0 %v1820
  %6303 = vmatpush.bf16.msra.mxu0 %v1812
  %6304 = vmatmul.bf16.gmra.mxu0 %v6204
  %v6305 = vpop.f32.mrf.mxu0
  %v6306 = vadd.f32 %v6293, %v6305
  %v6307 = vpop.f32.mrf.mxu0
  %6308 = vdwg.mxu0
  %6309 = vmatpush.bf16.msra.mxu0 %v1677
  %6310 = vmatpush.bf16.msra.mxu0 %v1669
  %6311 = vmatpush.bf16.msra.mxu0 %v1661
  %6312 = vmatpush.bf16.msra.mxu0 %v1653
  %6313 = vmatpush.bf16.msra.mxu0 %v1645
  %6314 = vmatpush.bf16.msra.mxu0 %v1637
  %6315 = vmatpush.bf16.msra.mxu0 %v1629
  %6316 = vmatpush.bf16.msra.mxu0 %v1621
  %6317 = vmatmul.bf16.gmra.mxu0 %v6201
  %v6318 = vpop.f32.mrf.mxu0
  %v6319 = vadd.f32 0.0, %v6318
  %v6320 = vpop.f32.mrf.mxu0
  %6321 = vdwg.mxu0
  %6322 = vmatpush.bf16.msra.mxu0 %v1741
  %6323 = vmatpush.bf16.msra.mxu0 %v1733
  %6324 = vmatpush.bf16.msra.mxu0 %v1725
  %6325 = vmatpush.bf16.msra.mxu0 %v1717
  %6326 = vmatpush.bf16.msra.mxu0 %v1709
  %6327 = vmatpush.bf16.msra.mxu0 %v1701
  %6328 = vmatpush.bf16.msra.mxu0 %v1693
  %6329 = vmatpush.bf16.msra.mxu0 %v1685
  %6330 = vmatmul.bf16.gmra.mxu0 %v6202
  %v6331 = vpop.f32.mrf.mxu0
  %v6332 = vadd.f32 %v6319, %v6331
  %v6333 = vpop.f32.mrf.mxu0
  %6334 = vdwg.mxu0
  %6335 = vmatpush.bf16.msra.mxu0 %v1805
  %6336 = vmatpush.bf16.msra.mxu0 %v1797
  %6337 = vmatpush.bf16.msra.mxu0 %v1789
  %6338 = vmatpush.bf16.msra.mxu0 %v1781
  %6339 = vmatpush.bf16.msra.mxu0 %v1773
  %6340 = vmatpush.bf16.msra.mxu0 %v1765
  %6341 = vmatpush.bf16.msra.mxu0 %v1757
  %6342 = vmatpush.bf16.msra.mxu0 %v1749
  %6343 = vmatmul.bf16.gmra.mxu0 %v6203
  %v6344 = vpop.f32.mrf.mxu0
  %v6345 = vadd.f32 %v6332, %v6344
  %v6346 = vpop.f32.mrf.mxu0
  %6347 = vdwg.mxu0
  %6348 = vmatpush.bf16.msra.mxu0 %v1869
  %6349 = vmatpush.bf16.msra.mxu0 %v1861
  %6350 = vmatpush.bf16.msra.mxu0 %v1853
  %6351 = vmatpush.bf16.msra.mxu0 %v1845
  %6352 = vmatpush.bf16.msra.mxu0 %v1837
  %6353 = vmatpush.bf16.msra.mxu0 %v1829
  %6354 = vmatpush.bf16.msra.mxu0 %v1821
  %6355 = vmatpush.bf16.msra.mxu0 %v1813
  %6356 = vmatmul.bf16.gmra.mxu0 %v6204
  %v6357 = vpop.f32.mrf.mxu0
  %v6358 = vadd.f32 %v6345, %v6357
  %v6359 = vpop.f32.mrf.mxu0
  %6360 = vdwg.mxu0
  %6361 = vmatpush.bf16.msra.mxu0 %v1678
  %6362 = vmatpush.bf16.msra.mxu0 %v1670
  %6363 = vmatpush.bf16.msra.mxu0 %v1662
  %6364 = vmatpush.bf16.msra.mxu0 %v1654
  %6365 = vmatpush.bf16.msra.mxu0 %v1646
  %6366 = vmatpush.bf16.msra.mxu0 %v1638
  %6367 = vmatpush.bf16.msra.mxu0 %v1630
  %6368 = vmatpush.bf16.msra.mxu0 %v1622
  %6369 = vmatmul.bf16.gmra.mxu0 %v6201
  %v6370 = vpop.f32.mrf.mxu0
  %v6371 = vadd.f32 0.0, %v6370
  %v6372 = vpop.f32.mrf.mxu0
  %6373 = vdwg.mxu0
  %6374 = vmatpush.bf16.msra.mxu0 %v1742
  %6375 = vmatpush.bf16.msra.mxu0 %v1734
  %6376 = vmatpush.bf16.msra.mxu0 %v1726
  %6377 = vmatpush.bf16.msra.mxu0 %v1718
  %6378 = vmatpush.bf16.msra.mxu0 %v1710
  %6379 = vmatpush.bf16.msra.mxu0 %v1702
  %6380 = vmatpush.bf16.msra.mxu0 %v1694
  %6381 = vmatpush.bf16.msra.mxu0 %v1686
  %6382 = vmatmul.bf16.gmra.mxu0 %v6202
  %v6383 = vpop.f32.mrf.mxu0
  %v6384 = vadd.f32 %v6371, %v6383
  %v6385 = vpop.f32.mrf.mxu0
  %6386 = vdwg.mxu0
  %6387 = vmatpush.bf16.msra.mxu0 %v1806
  %6388 = vmatpush.bf16.msra.mxu0 %v1798
  %6389 = vmatpush.bf16.msra.mxu0 %v1790
  %6390 = vmatpush.bf16.msra.mxu0 %v1782
  %6391 = vmatpush.bf16.msra.mxu0 %v1774
  %6392 = vmatpush.bf16.msra.mxu0 %v1766
  %6393 = vmatpush.bf16.msra.mxu0 %v1758
  %6394 = vmatpush.bf16.msra.mxu0 %v1750
  %6395 = vmatmul.bf16.gmra.mxu0 %v6203
  %v6396 = vpop.f32.mrf.mxu0
  %v6397 = vadd.f32 %v6384, %v6396
  %v6398 = vpop.f32.mrf.mxu0
  %6399 = vdwg.mxu0
  %6400 = vmatpush.bf16.msra.mxu0 %v1870
  %6401 = vmatpush.bf16.msra.mxu0 %v1862
  %6402 = vmatpush.bf16.msra.mxu0 %v1854
  %6403 = vmatpush.bf16.msra.mxu0 %v1846
  %6404 = vmatpush.bf16.msra.mxu0 %v1838
  %6405 = vmatpush.bf16.msra.mxu0 %v1830
  %6406 = vmatpush.bf16.msra.mxu0 %v1822
  %6407 = vmatpush.bf16.msra.mxu0 %v1814
  %6408 = vmatmul.bf16.gmra.mxu0 %v6204
  %v6409 = vpop.f32.mrf.mxu0
  %v6410 = vadd.f32 %v6397, %v6409
  %v6411 = vpop.f32.mrf.mxu0
  %6412 = vdwg.mxu0
  %6413 = vmatpush.bf16.msra.mxu0 %v1679
  %6414 = vmatpush.bf16.msra.mxu0 %v1671
  %6415 = vmatpush.bf16.msra.mxu0 %v1663
  %6416 = vmatpush.bf16.msra.mxu0 %v1655
  %6417 = vmatpush.bf16.msra.mxu0 %v1647
  %6418 = vmatpush.bf16.msra.mxu0 %v1639
  %6419 = vmatpush.bf16.msra.mxu0 %v1631
  %6420 = vmatpush.bf16.msra.mxu0 %v1623
  %6421 = vmatmul.bf16.gmra.mxu0 %v6201
  %v6422 = vpop.f32.mrf.mxu0
  %v6423 = vadd.f32 0.0, %v6422
  %v6424 = vpop.f32.mrf.mxu0
  %6425 = vdwg.mxu0
  %6426 = vmatpush.bf16.msra.mxu0 %v1743
  %6427 = vmatpush.bf16.msra.mxu0 %v1735
  %6428 = vmatpush.bf16.msra.mxu0 %v1727
  %6429 = vmatpush.bf16.msra.mxu0 %v1719
  %6430 = vmatpush.bf16.msra.mxu0 %v1711
  %6431 = vmatpush.bf16.msra.mxu0 %v1703
  %6432 = vmatpush.bf16.msra.mxu0 %v1695
  %6433 = vmatpush.bf16.msra.mxu0 %v1687
  %6434 = vmatmul.bf16.gmra.mxu0 %v6202
  %v6435 = vpop.f32.mrf.mxu0
  %v6436 = vadd.f32 %v6423, %v6435
  %v6437 = vpop.f32.mrf.mxu0
  %6438 = vdwg.mxu0
  %6439 = vmatpush.bf16.msra.mxu0 %v1807
  %6440 = vmatpush.bf16.msra.mxu0 %v1799
  %6441 = vmatpush.bf16.msra.mxu0 %v1791
  %6442 = vmatpush.bf16.msra.mxu0 %v1783
  %6443 = vmatpush.bf16.msra.mxu0 %v1775
  %6444 = vmatpush.bf16.msra.mxu0 %v1767
  %6445 = vmatpush.bf16.msra.mxu0 %v1759
  %6446 = vmatpush.bf16.msra.mxu0 %v1751
  %6447 = vmatmul.bf16.gmra.mxu0 %v6203
  %v6448 = vpop.f32.mrf.mxu0
  %v6449 = vadd.f32 %v6436, %v6448
  %v6450 = vpop.f32.mrf.mxu0
  %6451 = vdwg.mxu0
  %6452 = vmatpush.bf16.msra.mxu0 %v1871
  %6453 = vmatpush.bf16.msra.mxu0 %v1863
  %6454 = vmatpush.bf16.msra.mxu0 %v1855
  %6455 = vmatpush.bf16.msra.mxu0 %v1847
  %6456 = vmatpush.bf16.msra.mxu0 %v1839
  %6457 = vmatpush.bf16.msra.mxu0 %v1831
  %6458 = vmatpush.bf16.msra.mxu0 %v1823
  %6459 = vmatpush.bf16.msra.mxu0 %v1815
  %6460 = vmatmul.bf16.gmra.mxu0 %v6204
  %v6461 = vpop.f32.mrf.mxu0
  %v6462 = vadd.f32 %v6449, %v6461
  %v6463 = vpop.f32.mrf.mxu0
  %6464 = vdwg.mxu0
  %6465 = vmatpush.bf16.msra.mxu0 %v1680
  %6466 = vmatpush.bf16.msra.mxu0 %v1672
  %6467 = vmatpush.bf16.msra.mxu0 %v1664
  %6468 = vmatpush.bf16.msra.mxu0 %v1656
  %6469 = vmatpush.bf16.msra.mxu0 %v1648
  %6470 = vmatpush.bf16.msra.mxu0 %v1640
  %6471 = vmatpush.bf16.msra.mxu0 %v1632
  %6472 = vmatpush.bf16.msra.mxu0 %v1624
  %6473 = vmatmul.bf16.gmra.mxu0 %v6201
  %v6474 = vpop.f32.mrf.mxu0
  %v6475 = vadd.f32 0.0, %v6474
  %v6476 = vpop.f32.mrf.mxu0
  %6477 = vdwg.mxu0
  %6478 = vmatpush.bf16.msra.mxu0 %v1744
  %6479 = vmatpush.bf16.msra.mxu0 %v1736
  %6480 = vmatpush.bf16.msra.mxu0 %v1728
  %6481 = vmatpush.bf16.msra.mxu0 %v1720
  %6482 = vmatpush.bf16.msra.mxu0 %v1712
  %6483 = vmatpush.bf16.msra.mxu0 %v1704
  %6484 = vmatpush.bf16.msra.mxu0 %v1696
  %6485 = vmatpush.bf16.msra.mxu0 %v1688
  %6486 = vmatmul.bf16.gmra.mxu0 %v6202
  %v6487 = vpop.f32.mrf.mxu0
  %v6488 = vadd.f32 %v6475, %v6487
  %v6489 = vpop.f32.mrf.mxu0
  %6490 = vdwg.mxu0
  %6491 = vmatpush.bf16.msra.mxu0 %v1808
  %6492 = vmatpush.bf16.msra.mxu0 %v1800
  %6493 = vmatpush.bf16.msra.mxu0 %v1792
  %6494 = vmatpush.bf16.msra.mxu0 %v1784
  %6495 = vmatpush.bf16.msra.mxu0 %v1776
  %6496 = vmatpush.bf16.msra.mxu0 %v1768
  %6497 = vmatpush.bf16.msra.mxu0 %v1760
  %6498 = vmatpush.bf16.msra.mxu0 %v1752
  %6499 = vmatmul.bf16.gmra.mxu0 %v6203
  %v6500 = vpop.f32.mrf.mxu0
  %v6501 = vadd.f32 %v6488, %v6500
  %v6502 = vpop.f32.mrf.mxu0
  %6503 = vdwg.mxu0
  %6504 = vmatpush.bf16.msra.mxu0 %v1872
  %6505 = vmatpush.bf16.msra.mxu0 %v1864
  %6506 = vmatpush.bf16.msra.mxu0 %v1856
  %6507 = vmatpush.bf16.msra.mxu0 %v1848
  %6508 = vmatpush.bf16.msra.mxu0 %v1840
  %6509 = vmatpush.bf16.msra.mxu0 %v1832
  %6510 = vmatpush.bf16.msra.mxu0 %v1824
  %6511 = vmatpush.bf16.msra.mxu0 %v1816
  %6512 = vmatmul.bf16.gmra.mxu0 %v6204
  %v6513 = vpop.f32.mrf.mxu0
  %v6514 = vadd.f32 %v6501, %v6513
  %v6515 = vpop.f32.mrf.mxu0
  %6516 = vdwg.mxu0
  %6517 = vmatpush.bf16.msra.mxu0 %v1681
  %6518 = vmatpush.bf16.msra.mxu0 %v1673
  %6519 = vmatpush.bf16.msra.mxu0 %v1665
  %6520 = vmatpush.bf16.msra.mxu0 %v1657
  %6521 = vmatpush.bf16.msra.mxu0 %v1649
  %6522 = vmatpush.bf16.msra.mxu0 %v1641
  %6523 = vmatpush.bf16.msra.mxu0 %v1633
  %6524 = vmatpush.bf16.msra.mxu0 %v1625
  %6525 = vmatmul.bf16.gmra.mxu0 %v6201
  %v6526 = vpop.f32.mrf.mxu0
  %v6527 = vadd.f32 0.0, %v6526
  %v6528 = vpop.f32.mrf.mxu0
  %6529 = vdwg.mxu0
  %6530 = vmatpush.bf16.msra.mxu0 %v1745
  %6531 = vmatpush.bf16.msra.mxu0 %v1737
  %6532 = vmatpush.bf16.msra.mxu0 %v1729
  %6533 = vmatpush.bf16.msra.mxu0 %v1721
  %6534 = vmatpush.bf16.msra.mxu0 %v1713
  %6535 = vmatpush.bf16.msra.mxu0 %v1705
  %6536 = vmatpush.bf16.msra.mxu0 %v1697
  %6537 = vmatpush.bf16.msra.mxu0 %v1689
  %6538 = vmatmul.bf16.gmra.mxu0 %v6202
  %v6539 = vpop.f32.mrf.mxu0
  %v6540 = vadd.f32 %v6527, %v6539
  %v6541 = vpop.f32.mrf.mxu0
  %6542 = vdwg.mxu0
  %6543 = vmatpush.bf16.msra.mxu0 %v1809
  %6544 = vmatpush.bf16.msra.mxu0 %v1801
  %6545 = vmatpush.bf16.msra.mxu0 %v1793
  %6546 = vmatpush.bf16.msra.mxu0 %v1785
  %6547 = vmatpush.bf16.msra.mxu0 %v1777
  %6548 = vmatpush.bf16.msra.mxu0 %v1769
  %6549 = vmatpush.bf16.msra.mxu0 %v1761
  %6550 = vmatpush.bf16.msra.mxu0 %v1753
  %6551 = vmatmul.bf16.gmra.mxu0 %v6203
  %v6552 = vpop.f32.mrf.mxu0
  %v6553 = vadd.f32 %v6540, %v6552
  %v6554 = vpop.f32.mrf.mxu0
  %6555 = vdwg.mxu0
  %6556 = vmatpush.bf16.msra.mxu0 %v1873
  %6557 = vmatpush.bf16.msra.mxu0 %v1865
  %6558 = vmatpush.bf16.msra.mxu0 %v1857
  %6559 = vmatpush.bf16.msra.mxu0 %v1849
  %6560 = vmatpush.bf16.msra.mxu0 %v1841
  %6561 = vmatpush.bf16.msra.mxu0 %v1833
  %6562 = vmatpush.bf16.msra.mxu0 %v1825
  %6563 = vmatpush.bf16.msra.mxu0 %v1817
  %6564 = vmatmul.bf16.gmra.mxu0 %v6204
  %v6565 = vpop.f32.mrf.mxu0
  %v6566 = vadd.f32 %v6553, %v6565
  %v6567 = vpop.f32.mrf.mxu0
  %6568 = vdwg.mxu0
  %6569 = vmatpush.bf16.msra.mxu0 %v1682
  %6570 = vmatpush.bf16.msra.mxu0 %v1674
  %6571 = vmatpush.bf16.msra.mxu0 %v1666
  %6572 = vmatpush.bf16.msra.mxu0 %v1658
  %6573 = vmatpush.bf16.msra.mxu0 %v1650
  %6574 = vmatpush.bf16.msra.mxu0 %v1642
  %6575 = vmatpush.bf16.msra.mxu0 %v1634
  %6576 = vmatpush.bf16.msra.mxu0 %v1626
  %6577 = vmatmul.bf16.gmra.mxu0 %v6201
  %v6578 = vpop.f32.mrf.mxu0
  %v6579 = vadd.f32 0.0, %v6578
  %v6580 = vpop.f32.mrf.mxu0
  %6581 = vdwg.mxu0
  %6582 = vmatpush.bf16.msra.mxu0 %v1746
  %6583 = vmatpush.bf16.msra.mxu0 %v1738
  %6584 = vmatpush.bf16.msra.mxu0 %v1730
  %6585 = vmatpush.bf16.msra.mxu0 %v1722
  %6586 = vmatpush.bf16.msra.mxu0 %v1714
  %6587 = vmatpush.bf16.msra.mxu0 %v1706
  %6588 = vmatpush.bf16.msra.mxu0 %v1698
  %6589 = vmatpush.bf16.msra.mxu0 %v1690
  %6590 = vmatmul.bf16.gmra.mxu0 %v6202
  %v6591 = vpop.f32.mrf.mxu0
  %v6592 = vadd.f32 %v6579, %v6591
  %v6593 = vpop.f32.mrf.mxu0
  %6594 = vdwg.mxu0
  %6595 = vmatpush.bf16.msra.mxu0 %v1810
  %6596 = vmatpush.bf16.msra.mxu0 %v1802
  %6597 = vmatpush.bf16.msra.mxu0 %v1794
  %6598 = vmatpush.bf16.msra.mxu0 %v1786
  %6599 = vmatpush.bf16.msra.mxu0 %v1778
  %6600 = vmatpush.bf16.msra.mxu0 %v1770
  %6601 = vmatpush.bf16.msra.mxu0 %v1762
  %6602 = vmatpush.bf16.msra.mxu0 %v1754
  %6603 = vmatmul.bf16.gmra.mxu0 %v6203
  %v6604 = vpop.f32.mrf.mxu0
  %v6605 = vadd.f32 %v6592, %v6604
  %v6606 = vpop.f32.mrf.mxu0
  %6607 = vdwg.mxu0
  %6608 = vmatpush.bf16.msra.mxu0 %v1874
  %6609 = vmatpush.bf16.msra.mxu0 %v1866
  %6610 = vmatpush.bf16.msra.mxu0 %v1858
  %6611 = vmatpush.bf16.msra.mxu0 %v1850
  %6612 = vmatpush.bf16.msra.mxu0 %v1842
  %6613 = vmatpush.bf16.msra.mxu0 %v1834
  %6614 = vmatpush.bf16.msra.mxu0 %v1826
  %6615 = vmatpush.bf16.msra.mxu0 %v1818
  %6616 = vmatmul.bf16.gmra.mxu0 %v6204
  %v6617 = vpop.f32.mrf.mxu0
  %v6618 = vadd.f32 %v6605, %v6617
  %v6619 = vpop.f32.mrf.mxu0
  %6620 = vdwg.mxu0
  %s6621 = smul.u32 7, 8
  %s6622 = smul.addr %s6621, 8
  %s6623 = scalar_lea.vmem [#allocation2], %s6622
  %v6624 = vld [vmem:[%s6623] sm:$0xff]
  %v6625 = vld [vmem:[%s6623 + $0x8] sm:$0xff]
  %v6626 = vld [vmem:[%s6623 + $0x10] sm:$0xff]
  %v6627 = vld [vmem:[%s6623 + $0x18] sm:$0xff]
  %v6628 = vld [vmem:[%s6623 + $0x20] sm:$0xff]
  %v6629 = vld [vmem:[%s6623 + $0x28] sm:$0xff]
  %v6630 = vld [vmem:[%s6623 + $0x30] sm:$0xff]
  %v6631 = vld [vmem:[%s6623 + $0x38] sm:$0xff]
  %v6632 = vadd.f32 %v6624, %v6254
  %v6633 = vadd.f32 %v6625, %v6306
  %v6634 = vadd.f32 %v6626, %v6358
  %v6635 = vadd.f32 %v6627, %v6410
  %v6636 = vadd.f32 %v6628, %v6462
  %v6637 = vadd.f32 %v6629, %v6514
  %v6638 = vadd.f32 %v6630, %v6566
  %v6639 = vadd.f32 %v6631, %v6618
  %v6640 = vadd.f32 %v6632, %v811
  %v6641 = vadd.f32 %v6633, %v812
  %v6642 = vadd.f32 %v6634, %v813
  %v6643 = vadd.f32 %v6635, %v814
  %v6644 = vadd.f32 %v6636, %v815
  %v6645 = vadd.f32 %v6637, %v816
  %v6646 = vadd.f32 %v6638, %v817
  %v6647 = vadd.f32 %v6639, %v818
  %v6648 = vxor.u32 %v6640, 2147483648
  %v6649 = vxor.u32 %v6641, 2147483648
  %v6650 = vmul.f32 %v6648, 1.442695
  %v6651 = vpow.pop %v6650
  %v6652 = vmul.f32 %v6649, 1.442695
  %v6653 = vpow.pop %v6652
  %v6654 = vadd.f32 %v6651, 1.0
  %v6655 = vadd.f32 %v6653, 1.0
  %v6656 = vrcp.pop %v6654
  %v6657 = vmul.f32 %v6654, %v6656
  %v6658 = vsub.f32 1.0, %v6657
  %v6659 = vmul.f32 %v6656, %v6658
  %v6660 = vadd.f32 %v6656, %v6659
  %vm6661 = vweird.f32 %v6654
  %vm6662 = vweird.f32 %v6656
  %vm6663 = vmor %vm6661, %vm6662
  %v6664 = vsel %vm6663, %v6656, %v6660
  %v6665 = vand.u32 2147483647, %v6654
  %vm6666 = vcmp.eq.f32.partialorder %v6665, 8.507059e+37
  %v6667 = vand.u32 %v6654, 2147483648
  %v6668 = vor.u32 1.1754944e-38, %v6667
  %v6669 = vsel %vm6666, %v6668, %v6664
  %v6670 = vmul.f32 1.0, %v6669
  %v6671 = vrcp.pop %v6655
  %v6672 = vmul.f32 %v6655, %v6671
  %v6673 = vsub.f32 1.0, %v6672
  %v6674 = vmul.f32 %v6671, %v6673
  %v6675 = vadd.f32 %v6671, %v6674
  %vm6676 = vweird.f32 %v6655
  %vm6677 = vweird.f32 %v6671
  %vm6678 = vmor %vm6676, %vm6677
  %v6679 = vsel %vm6678, %v6671, %v6675
  %v6680 = vand.u32 2147483647, %v6655
  %vm6681 = vcmp.eq.f32.partialorder %v6680, 8.507059e+37
  %v6682 = vand.u32 %v6655, 2147483648
  %v6683 = vor.u32 1.1754944e-38, %v6682
  %v6684 = vsel %vm6681, %v6683, %v6679
  %v6685 = vmul.f32 1.0, %v6684
  %v6686 = vxor.u32 %v6642, 2147483648
  %v6687 = vxor.u32 %v6643, 2147483648
  %v6688 = vmul.f32 %v6686, 1.442695
  %v6689 = vpow.pop %v6688
  %v6690 = vmul.f32 %v6687, 1.442695
  %v6691 = vpow.pop %v6690
  %v6692 = vadd.f32 %v6689, 1.0
  %v6693 = vadd.f32 %v6691, 1.0
  %v6694 = vrcp.pop %v6692
  %v6695 = vmul.f32 %v6692, %v6694
  %v6696 = vsub.f32 1.0, %v6695
  %v6697 = vmul.f32 %v6694, %v6696
  %v6698 = vadd.f32 %v6694, %v6697
  %vm6699 = vweird.f32 %v6692
  %vm6700 = vweird.f32 %v6694
  %vm6701 = vmor %vm6699, %vm6700
  %v6702 = vsel %vm6701, %v6694, %v6698
  %v6703 = vand.u32 2147483647, %v6692
  %vm6704 = vcmp.eq.f32.partialorder %v6703, 8.507059e+37
  %v6705 = vand.u32 %v6692, 2147483648
  %v6706 = vor.u32 1.1754944e-38, %v6705
  %v6707 = vsel %vm6704, %v6706, %v6702
  %v6708 = vmul.f32 1.0, %v6707
  %v6709 = vrcp.pop %v6693
  %v6710 = vmul.f32 %v6693, %v6709
  %v6711 = vsub.f32 1.0, %v6710
  %v6712 = vmul.f32 %v6709, %v6711
  %v6713 = vadd.f32 %v6709, %v6712
  %vm6714 = vweird.f32 %v6693
  %vm6715 = vweird.f32 %v6709
  %vm6716 = vmor %vm6714, %vm6715
  %v6717 = vsel %vm6716, %v6709, %v6713
  %v6718 = vand.u32 2147483647, %v6693
  %vm6719 = vcmp.eq.f32.partialorder %v6718, 8.507059e+37
  %v6720 = vand.u32 %v6693, 2147483648
  %v6721 = vor.u32 1.1754944e-38, %v6720
  %v6722 = vsel %vm6719, %v6721, %v6717
  %v6723 = vmul.f32 1.0, %v6722
  %v6724 = vtanh.pop %v6644
  %v6725 = vtanh.pop %v6645
  %v6726 = vxor.u32 %v6646, 2147483648
  %v6727 = vxor.u32 %v6647, 2147483648
  %v6728 = vmul.f32 %v6726, 1.442695
  %v6729 = vpow.pop %v6728
  %v6730 = vmul.f32 %v6727, 1.442695
  %v6731 = vpow.pop %v6730
  %v6732 = vadd.f32 %v6729, 1.0
  %v6733 = vadd.f32 %v6731, 1.0
  %v6734 = vrcp.pop %v6732
  %v6735 = vmul.f32 %v6732, %v6734
  %v6736 = vsub.f32 1.0, %v6735
  %v6737 = vmul.f32 %v6734, %v6736
  %v6738 = vadd.f32 %v6734, %v6737
  %vm6739 = vweird.f32 %v6732
  %vm6740 = vweird.f32 %v6734
  %vm6741 = vmor %vm6739, %vm6740
  %v6742 = vsel %vm6741, %v6734, %v6738
  %v6743 = vand.u32 2147483647, %v6732
  %vm6744 = vcmp.eq.f32.partialorder %v6743, 8.507059e+37
  %v6745 = vand.u32 %v6732, 2147483648
  %v6746 = vor.u32 1.1754944e-38, %v6745
  %v6747 = vsel %vm6744, %v6746, %v6742
  %v6748 = vmul.f32 1.0, %v6747
  %v6749 = vrcp.pop %v6733
  %v6750 = vmul.f32 %v6733, %v6749
  %v6751 = vsub.f32 1.0, %v6750
  %v6752 = vmul.f32 %v6749, %v6751
  %v6753 = vadd.f32 %v6749, %v6752
  %vm6754 = vweird.f32 %v6733
  %vm6755 = vweird.f32 %v6749
  %vm6756 = vmor %vm6754, %vm6755
  %v6757 = vsel %vm6756, %v6749, %v6753
  %v6758 = vand.u32 2147483647, %v6733
  %vm6759 = vcmp.eq.f32.partialorder %v6758, 8.507059e+37
  %v6760 = vand.u32 %v6733, 2147483648
  %v6761 = vor.u32 1.1754944e-38, %v6760
  %v6762 = vsel %vm6759, %v6761, %v6757
  %v6763 = vmul.f32 1.0, %v6762
  %v6764 = vmul.f32 %v6708, %v6186
  %v6765 = vmul.f32 %v6723, %v6187
  %v6766 = vmul.f32 %v6670, %v6724
  %v6767 = vmul.f32 %v6685, %v6725
  %v6768 = vadd.f32 %v6764, %v6766
  %v6769 = vadd.f32 %v6765, %v6767
  %v6770 = vtanh.pop %v6768
  %v6771 = vtanh.pop %v6769
  %v6772 = vmul.f32 %v6748, %v6770
  %v6773 = vmul.f32 %v6763, %v6771
  %s6774 = smul.u32 7, 2
  %s6775 = smul.addr %s6774, 8
  %s6776 = scalar_lea.vmem %s4, %s6775
  %6777 = vst [vmem:[%s6776] sm:$0xff] %v6772
  %6778 = vst [vmem:[%s6776 + $0x8] sm:$0xff] %v6773
  %6779 = vst [vmem:[#allocation3] sm:$0xff] %v6772
  %6780 = vst [vmem:[#allocation3 + $0x8] sm:$0xff] %v6773
  %6781 = vst [vmem:[#allocation4] sm:$0xff] %v6768
  %6782 = vst [vmem:[#allocation4 + $0x8] sm:$0xff] %v6769
  // Predicated region
  $region22: #{encode1_forward.1} parent=0 // pred_check
    _
  $region23: #{encode1_forward.1} parent=0 // pred_check_branch
    %6784 = sbr.rel (0) target = $region25
  $region24: #{encode1_forward.1} parent=0 // pred_region
    _
  $region25: #{encode1_forward.1} parent=0 // pred_fallthru
    _
  // Predicated region
  $region26: #{encode1_forward.1} parent=0 // pred_check
    _
  $region27: #{encode1_forward.1} parent=0 // pred_check_branch
    %6786 = sbr.rel (0) target = $region29
  $region28: #{encode1_forward.1} parent=0 // pred_region
    _
  $region29: #{encode1_forward.1} parent=0 // pred_fallthru
    _

</llo_original>
